<compile_context>
chip_gen: v6e
topology: v6e:2x2x1
jax: 0.10.0
libtpu: 0.0.40
codegen_flags: <defaults>
</compile_context>

<pallas_src>
import jax
import jax.numpy as jnp
import numpy as np
from jax.experimental import pallas as pl
from jax.experimental.pallas import tpu as pltpu

EPS = 1e-5


def _resblock_kernel(x_ref, w1_ref, g1_ref, b1_ref, w2_ref, g2_ref, b2_ref,
                     o_ref, pad_ref, col_ref):
    # x_ref:   (1, H, W, C)   current batch element, f32
    # w*_ref:  (9*C, C)       conv weights, rows ordered (dy, dx, ci), bf16
    # g*/b*:   (1, C)         InstanceNorm affine params, f32
    # o_ref:   (1, H, W, C)   output block
    # pad_ref: (H+2, W+2, C)  f32 scratch: zero-padded activations (persistent)
    # col_ref: (H*W, 9*C)     bf16 scratch: im2col slab (fully rewritten per conv)
    H = x_ref.shape[1]
    W = x_ref.shape[2]
    C = x_ref.shape[3]

    x = x_ref[0].astype(jnp.float32)                      # (H, W, C)

    # ---- zero only the halo ring (once per grid step; interior is always ----
    # ---- fully overwritten before each conv, so no full-buffer re-zero)  ----
    zrow = jnp.zeros((1, W + 2, C), jnp.float32)
    zcol = jnp.zeros((H + 2, 1, C), jnp.float32)
    pad_ref[0:1, :, :] = zrow
    pad_ref[H + 1:H + 2, :, :] = zrow
    pad_ref[:, 0:1, :] = zcol
    pad_ref[:, W + 1:W + 2, :] = zcol

    def conv3x3(w_ref):
        # im2col: gather the 9 shifted (H*W, C) patches into one bf16 slab, then a
        # single (H*W, 9C) @ (9C, C) MXU matmul with f32 accumulation.
        for dy in range(3):
            for dx in range(3):
                t = dy * 3 + dx
                patch = pad_ref[dy:dy + H, dx:dx + W, :].reshape(H * W, C)
                col_ref[:, t * C:(t + 1) * C] = patch.astype(jnp.bfloat16)
        return jnp.dot(col_ref[...], w_ref[...],
                       preferred_element_type=jnp.float32)          # (H*W, C) f32

    def inorm(h, g_ref, b_ref):
        # Per-(sample, channel) instance norm over H*W (biased variance, eps=1e-5).
        mean = jnp.mean(h, axis=0, keepdims=True)                    # (1, C)
        var = jnp.mean((h - mean) ** 2, axis=0, keepdims=True)
        hn = (h - mean) * jax.lax.rsqrt(var + EPS)
        return hn * g_ref[...] + b_ref[...]

    # ---- conv1 -> IN1 -> ReLU ----
    pad_ref[1:H + 1, 1:W + 1, :] = x
    h = conv3x3(w1_ref)
    h = inorm(h, g1_ref, b1_ref)
    h = jnp.maximum(h, 0.0)

    # ---- conv2 -> IN2 ----
    pad_ref[1:H + 1, 1:W + 1, :] = h.reshape(H, W, C)
    h2 = conv3x3(w2_ref)
    h2 = inorm(h2, g2_ref, b2_ref)

    # ---- residual add (f32 skip path) ----
    out = x.reshape(H * W, C) + h2
    o_ref[0] = out.reshape(H, W, C).astype(o_ref.dtype)


def residual_block_pallas(x_nchw, w1_oihw, g1, b1, w2_oihw, g2, b2):
    """x_nchw: (N, C, H, W) float32.  Returns (N, C, H, W) float32."""
    N, C, H, W = x_nchw.shape
    x_nhwc = jnp.transpose(x_nchw, (0, 2, 3, 1))                     # (N, H, W, C)
    # OIHW -> HWIO -> (9*Cin, Cout), cast to bf16 for the MXU (f32 accumulation in-kernel).
    w1_mat = jnp.transpose(w1_oihw, (2, 3, 1, 0)).reshape(9 * C, C).astype(jnp.bfloat16)
    w2_mat = jnp.transpose(w2_oihw, (2, 3, 1, 0)).reshape(9 * C, C).astype(jnp.bfloat16)
    g1_2d, b1_2d = g1.reshape(1, C), b1.reshape(1, C)
    g2_2d, b2_2d = g2.reshape(1, C), b2.reshape(1, C)

    # Constant index maps -> weights / affine params are DMA'd once (not re-fetched
    # per grid step).  For large C, pl.Buffered(1) on these specs would also halve
    # their VMEM footprint; not needed at these sizes.
    full = lambda shape: pl.BlockSpec(shape, lambda n: (0,) * len(shape))

    out_nhwc = pl.pallas_call(
        _resblock_kernel,
        out_shape=jax.ShapeDtypeStruct((N, H, W, C), jnp.float32),
        grid=(N,),
        in_specs=[
            pl.BlockSpec((1, H, W, C), lambda n: (n, 0, 0, 0)),      # x
            full((9 * C, C)),                                        # w1 (im2col layout)
            full((1, C)),                                            # gamma1
            full((1, C)),                                            # beta1
            full((9 * C, C)),                                        # w2
            full((1, C)),                                            # gamma2
            full((1, C)),                                            # beta2
        ],
        out_specs=pl.BlockSpec((1, H, W, C), lambda n: (n, 0, 0, 0)),
        scratch_shapes=[
            pltpu.VMEM((H + 2, W + 2, C), jnp.float32),              # padded activations
            pltpu.VMEM((H * W, 9 * C), jnp.bfloat16),                # im2col slab
        ],
        compiler_params=pltpu.CompilerParams(
            dimension_semantics=("parallel",),                       # N over v7x's 2 TCs
            vmem_limit_bytes=32 * 1024 * 1024),
    )(x_nhwc, w1_mat, g1_2d, b1_2d, w2_mat, g2_2d, b2_2d)

    return jnp.transpose(out_nhwc, (0, 3, 1, 2))                     # back to NCHW


def residual_block_ref(x, w1, g1, b1, w2, g2, b2, conv_dtype=jnp.float32):
    """Pure-JAX reference in NCHW mirroring the PyTorch module.

    conv_dtype=bf16 applies the same conv-input quantization the kernel uses
    (f32 accumulation), isolating kernel-logic errors from the MXU dtype choice.
    """
    def conv(h, w):
        return jax.lax.conv_general_dilated(
            h.astype(conv_dtype), w.astype(conv_dtype),
            window_strides=(1, 1), padding="SAME",
            dimension_numbers=("NCHW", "OIHW", "NCHW"),
            preferred_element_type=jnp.float32)

    def inorm(h, g, b):
        mean = h.mean(axis=(2, 3), keepdims=True)
        var = ((h - mean) ** 2).mean(axis=(2, 3), keepdims=True)
        hn = (h - mean) / jnp.sqrt(var + EPS)
        return hn * g[None, :, None, None] + b[None, :, None, None]

    h = jax.nn.relu(inorm(conv(x, w1), g1, b1))
    h = inorm(conv(h, w2), g2, b2)
    return x + h


if __name__ == "__main__":
    N, C, H, W = 2, 4, 16, 16          # ResidualBlock(dim_in=4, dim_out=4)
    key = jax.random.PRNGKey(0)
    kx, kw1, kw2, kg1, kb1, kg2, kb2 = jax.random.split(key, 7)

    x = jax.random.normal(kx, (N, C, H, W), jnp.float32)
    # Conv2d weights in PyTorch layout (Cout, Cin, kH, kW), no bias.
    w1 = 0.2 * jax.random.normal(kw1, (C, C, 3, 3), jnp.float32)
    w2 = 0.2 * jax.random.normal(kw2, (C, C, 3, 3), jnp.float32)
    # InstanceNorm2d affine params (perturbed so the affine path is exercised).
    g1 = 1.0 + 0.1 * jax.random.normal(kg1, (C,), jnp.float32)
    b1 = 0.1 * jax.random.normal(kb1, (C,), jnp.float32)
    g2 = 1.0 + 0.1 * jax.random.normal(kg2, (C,), jnp.float32)
    b2 = 0.1 * jax.random.normal(kb2, (C,), jnp.float32)

    out = jax.block_until_ready(residual_block_pallas(x, w1, g1, b1, w2, g2, b2))
    out_np = np.asarray(out)

    # Tight check vs. a reference with the same bf16 conv-input quantization
    # (verifies padding / im2col / norm / residual logic precisely).
    ref_bf16 = residual_block_ref(x, w1, g1, b1, w2, g2, b2, conv_dtype=jnp.bfloat16)
    np.testing.assert_allclose(out_np, np.asarray(ref_bf16), atol=5e-3, rtol=5e-3)

    # Loose check vs. the full-f32 PyTorch-equivalent forward (bf16 MXU inputs,
    # f32 accumulation -> small, bounded quantization error).
    ref_f32 = residual_block_ref(x, w1, g1, b1, w2, g2, b2)
    np.testing.assert_allclose(out_np, np.asarray(ref_f32), atol=5e-2, rtol=5e-2)

    print("KERNEL_OK")
</pallas_src>

<mosaic_0001>
module attributes {stable_mosaic.version = 11 : i64} {
  func.func @_resblock_kernel(%arg0: i32, %arg1: memref<1x16x16x4xf32, #tpu.memory_space<vmem>>, %arg2: memref<36x4xbf16, #tpu.memory_space<vmem>>, %arg3: memref<1x4xf32, #tpu.memory_space<vmem>>, %arg4: memref<1x4xf32, #tpu.memory_space<vmem>>, %arg5: memref<36x4xbf16, #tpu.memory_space<vmem>>, %arg6: memref<1x4xf32, #tpu.memory_space<vmem>>, %arg7: memref<1x4xf32, #tpu.memory_space<vmem>>, %arg8: memref<1x16x16x4xf32, #tpu.memory_space<vmem>>, %arg9: memref<18x18x4xf32, #tpu.memory_space<vmem>>, %arg10: memref<256x36xbf16, #tpu.memory_space<vmem>>) attributes {dimension_semantics = [#tpu.dimension_semantics<parallel>], iteration_bounds = array<i64: 2>, scalar_prefetch = 0 : i64, scratch_operands = 2 : i64, tpu.core_type = #tpu.core_type<tc>, window_params = [{transform_indices = @transform_0, window_bounds = array<i64: 1, 16, 16, 4>}, {pipeline_mode = #tpu.pipeline_mode<synchronous>, transform_indices = @transform_1, window_bounds = array<i64: 36, 4>}, {pipeline_mode = #tpu.pipeline_mode<synchronous>, transform_indices = @transform_2, window_bounds = array<i64: 1, 4>}, {pipeline_mode = #tpu.pipeline_mode<synchronous>, transform_indices = @transform_3, window_bounds = array<i64: 1, 4>}, {pipeline_mode = #tpu.pipeline_mode<synchronous>, transform_indices = @transform_4, window_bounds = array<i64: 36, 4>}, {pipeline_mode = #tpu.pipeline_mode<synchronous>, transform_indices = @transform_5, window_bounds = array<i64: 1, 4>}, {pipeline_mode = #tpu.pipeline_mode<synchronous>, transform_indices = @transform_6, window_bounds = array<i64: 1, 4>}, {transform_indices = @transform_7, window_bounds = array<i64: 1, 16, 16, 4>}]} {
    %c0 = arith.constant 0 : index
    %c0_0 = arith.constant 0 : index
    %c0_1 = arith.constant 0 : index
    %c0_2 = arith.constant 0 : index
    %0 = vector.load %arg1[%c0, %c0_0, %c0_1, %c0_2] : memref<1x16x16x4xf32, #tpu.memory_space<vmem>>, vector<1x16x16x4xf32>
    %1 = vector.shape_cast %0 : vector<1x16x16x4xf32> to vector<16x16x4xf32>
    %cst = arith.constant 0.000000e+00 : f32
    %2 = vector.broadcast %cst : f32 to vector<1x18x4xf32>
    %cst_3 = arith.constant 0.000000e+00 : f32
    %3 = vector.broadcast %cst_3 : f32 to vector<18x1x4xf32>
    %c0_4 = arith.constant 0 : index
    %c0_5 = arith.constant 0 : index
    %c0_6 = arith.constant 0 : index
    %4 = vector.load %arg9[%c0_4, %c0_5, %c0_6] : memref<18x18x4xf32, #tpu.memory_space<vmem>>, vector<1x18x4xf32>
    tpu.vector_store %arg9[%c0_4, %c0_5, %c0_6], %2 {strides = array<i32>} : memref<18x18x4xf32, #tpu.memory_space<vmem>>, vector<1x18x4xf32>,
    %c17 = arith.constant 17 : index
    %c0_7 = arith.constant 0 : index
    %c0_8 = arith.constant 0 : index
    %5 = vector.load %arg9[%c17, %c0_7, %c0_8] : memref<18x18x4xf32, #tpu.memory_space<vmem>>, vector<1x18x4xf32>
    tpu.vector_store %arg9[%c17, %c0_7, %c0_8], %2 {strides = array<i32>} : memref<18x18x4xf32, #tpu.memory_space<vmem>>, vector<1x18x4xf32>,
    %c0_9 = arith.constant 0 : index
    %c0_10 = arith.constant 0 : index
    %c0_11 = arith.constant 0 : index
    %6 = vector.load %arg9[%c0_9, %c0_10, %c0_11] : memref<18x18x4xf32, #tpu.memory_space<vmem>>, vector<18x1x4xf32>
    tpu.vector_store %arg9[%c0_9, %c0_10, %c0_11], %3 {strides = array<i32>} : memref<18x18x4xf32, #tpu.memory_space<vmem>>, vector<18x1x4xf32>,
    %c0_12 = arith.constant 0 : index
    %c17_13 = arith.constant 17 : index
    %c0_14 = arith.constant 0 : index
    %7 = vector.load %arg9[%c0_12, %c17_13, %c0_14] : memref<18x18x4xf32, #tpu.memory_space<vmem>>, vector<18x1x4xf32>
    tpu.vector_store %arg9[%c0_12, %c17_13, %c0_14], %3 {strides = array<i32>} : memref<18x18x4xf32, #tpu.memory_space<vmem>>, vector<18x1x4xf32>,
    %c1 = arith.constant 1 : index
    %c1_15 = arith.constant 1 : index
    %c0_16 = arith.constant 0 : index
    %8 = vector.load %arg9[%c1, %c1_15, %c0_16] : memref<18x18x4xf32, #tpu.memory_space<vmem>>, vector<16x16x4xf32>
    tpu.vector_store %arg9[%c1, %c1_15, %c0_16], %1 {strides = array<i32>} : memref<18x18x4xf32, #tpu.memory_space<vmem>>, vector<16x16x4xf32>,
    %c0_17 = arith.constant 0 : index
    %c0_18 = arith.constant 0 : index
    %c0_19 = arith.constant 0 : index
    %9 = vector.load %arg9[%c0_17, %c0_18, %c0_19] : memref<18x18x4xf32, #tpu.memory_space<vmem>>, vector<16x16x4xf32>
    %10 = vector.shape_cast %9 : vector<16x16x4xf32> to vector<256x4xf32>
    %11 = arith.truncf %10 : vector<256x4xf32> to vector<256x4xbf16>
    %c0_20 = arith.constant 0 : index
    %c0_21 = arith.constant 0 : index
    %12 = vector.load %arg10[%c0_20, %c0_21] : memref<256x36xbf16, #tpu.memory_space<vmem>>, vector<256x4xbf16>
    tpu.vector_store %arg10[%c0_20, %c0_21], %11 {strides = array<i32>} : memref<256x36xbf16, #tpu.memory_space<vmem>>, vector<256x4xbf16>,
    %c0_22 = arith.constant 0 : index
    %c1_23 = arith.constant 1 : index
    %c0_24 = arith.constant 0 : index
    %13 = vector.load %arg9[%c0_22, %c1_23, %c0_24] : memref<18x18x4xf32, #tpu.memory_space<vmem>>, vector<16x16x4xf32>
    %14 = vector.shape_cast %13 : vector<16x16x4xf32> to vector<256x4xf32>
    %15 = arith.truncf %14 : vector<256x4xf32> to vector<256x4xbf16>
    %c0_25 = arith.constant 0 : index
    %c4 = arith.constant 4 : index
    %16 = vector.load %arg10[%c0_25, %c4] : memref<256x36xbf16, #tpu.memory_space<vmem>>, vector<256x4xbf16>
    tpu.vector_store %arg10[%c0_25, %c4], %15 {strides = array<i32>} : memref<256x36xbf16, #tpu.memory_space<vmem>>, vector<256x4xbf16>,
    %c0_26 = arith.constant 0 : index
    %c2 = arith.constant 2 : index
    %c0_27 = arith.constant 0 : index
    %17 = vector.load %arg9[%c0_26, %c2, %c0_27] : memref<18x18x4xf32, #tpu.memory_space<vmem>>, vector<16x16x4xf32>
    %18 = vector.shape_cast %17 : vector<16x16x4xf32> to vector<256x4xf32>
    %19 = arith.truncf %18 : vector<256x4xf32> to vector<256x4xbf16>
    %c0_28 = arith.constant 0 : index
    %c8 = arith.constant 8 : index
    %20 = vector.load %arg10[%c0_28, %c8] : memref<256x36xbf16, #tpu.memory_space<vmem>>, vector<256x4xbf16>
    tpu.vector_store %arg10[%c0_28, %c8], %19 {strides = array<i32>} : memref<256x36xbf16, #tpu.memory_space<vmem>>, vector<256x4xbf16>,
    %c1_29 = arith.constant 1 : index
    %c0_30 = arith.constant 0 : index
    %c0_31 = arith.constant 0 : index
    %21 = vector.load %arg9[%c1_29, %c0_30, %c0_31] : memref<18x18x4xf32, #tpu.memory_space<vmem>>, vector<16x16x4xf32>
    %22 = vector.shape_cast %21 : vector<16x16x4xf32> to vector<256x4xf32>
    %23 = arith.truncf %22 : vector<256x4xf32> to vector<256x4xbf16>
    %c0_32 = arith.constant 0 : index
    %c12 = arith.constant 12 : index
    %24 = vector.load %arg10[%c0_32, %c12] : memref<256x36xbf16, #tpu.memory_space<vmem>>, vector<256x4xbf16>
    tpu.vector_store %arg10[%c0_32, %c12], %23 {strides = array<i32>} : memref<256x36xbf16, #tpu.memory_space<vmem>>, vector<256x4xbf16>,
    %c1_33 = arith.constant 1 : index
    %c1_34 = arith.constant 1 : index
    %c0_35 = arith.constant 0 : index
    %25 = vector.load %arg9[%c1_33, %c1_34, %c0_35] : memref<18x18x4xf32, #tpu.memory_space<vmem>>, vector<16x16x4xf32>
    %26 = vector.shape_cast %25 : vector<16x16x4xf32> to vector<256x4xf32>
    %27 = arith.truncf %26 : vector<256x4xf32> to vector<256x4xbf16>
    %c0_36 = arith.constant 0 : index
    %c16 = arith.constant 16 : index
    %28 = vector.load %arg10[%c0_36, %c16] : memref<256x36xbf16, #tpu.memory_space<vmem>>, vector<256x4xbf16>
    tpu.vector_store %arg10[%c0_36, %c16], %27 {strides = array<i32>} : memref<256x36xbf16, #tpu.memory_space<vmem>>, vector<256x4xbf16>,
    %c1_37 = arith.constant 1 : index
    %c2_38 = arith.constant 2 : index
    %c0_39 = arith.constant 0 : index
    %29 = vector.load %arg9[%c1_37, %c2_38, %c0_39] : memref<18x18x4xf32, #tpu.memory_space<vmem>>, vector<16x16x4xf32>
    %30 = vector.shape_cast %29 : vector<16x16x4xf32> to vector<256x4xf32>
    %31 = arith.truncf %30 : vector<256x4xf32> to vector<256x4xbf16>
    %c0_40 = arith.constant 0 : index
    %c20 = arith.constant 20 : index
    %32 = vector.load %arg10[%c0_40, %c20] : memref<256x36xbf16, #tpu.memory_space<vmem>>, vector<256x4xbf16>
    tpu.vector_store %arg10[%c0_40, %c20], %31 {strides = array<i32>} : memref<256x36xbf16, #tpu.memory_space<vmem>>, vector<256x4xbf16>,
    %c2_41 = arith.constant 2 : index
    %c0_42 = arith.constant 0 : index
    %c0_43 = arith.constant 0 : index
    %33 = vector.load %arg9[%c2_41, %c0_42, %c0_43] : memref<18x18x4xf32, #tpu.memory_space<vmem>>, vector<16x16x4xf32>
    %34 = vector.shape_cast %33 : vector<16x16x4xf32> to vector<256x4xf32>
    %35 = arith.truncf %34 : vector<256x4xf32> to vector<256x4xbf16>
    %c0_44 = arith.constant 0 : index
    %c24 = arith.constant 24 : index
    %36 = vector.load %arg10[%c0_44, %c24] : memref<256x36xbf16, #tpu.memory_space<vmem>>, vector<256x4xbf16>
    tpu.vector_store %arg10[%c0_44, %c24], %35 {strides = array<i32>} : memref<256x36xbf16, #tpu.memory_space<vmem>>, vector<256x4xbf16>,
    %c2_45 = arith.constant 2 : index
    %c1_46 = arith.constant 1 : index
    %c0_47 = arith.constant 0 : index
    %37 = vector.load %arg9[%c2_45, %c1_46, %c0_47] : memref<18x18x4xf32, #tpu.memory_space<vmem>>, vector<16x16x4xf32>
    %38 = vector.shape_cast %37 : vector<16x16x4xf32> to vector<256x4xf32>
    %39 = arith.truncf %38 : vector<256x4xf32> to vector<256x4xbf16>
    %c0_48 = arith.constant 0 : index
    %c28 = arith.constant 28 : index
    %40 = vector.load %arg10[%c0_48, %c28] : memref<256x36xbf16, #tpu.memory_space<vmem>>, vector<256x4xbf16>
    tpu.vector_store %arg10[%c0_48, %c28], %39 {strides = array<i32>} : memref<256x36xbf16, #tpu.memory_space<vmem>>, vector<256x4xbf16>,
    %c2_49 = arith.constant 2 : index
    %c2_50 = arith.constant 2 : index
    %c0_51 = arith.constant 0 : index
    %41 = vector.load %arg9[%c2_49, %c2_50, %c0_51] : memref<18x18x4xf32, #tpu.memory_space<vmem>>, vector<16x16x4xf32>
    %42 = vector.shape_cast %41 : vector<16x16x4xf32> to vector<256x4xf32>
    %43 = arith.truncf %42 : vector<256x4xf32> to vector<256x4xbf16>
    %c0_52 = arith.constant 0 : index
    %c32 = arith.constant 32 : index
    %44 = vector.load %arg10[%c0_52, %c32] : memref<256x36xbf16, #tpu.memory_space<vmem>>, vector<256x4xbf16>
    tpu.vector_store %arg10[%c0_52, %c32], %43 {strides = array<i32>} : memref<256x36xbf16, #tpu.memory_space<vmem>>, vector<256x4xbf16>,
    %c0_53 = arith.constant 0 : index
    %c0_54 = arith.constant 0 : index
    %45 = vector.load %arg10[%c0_53, %c0_54] : memref<256x36xbf16, #tpu.memory_space<vmem>>, vector<256x36xbf16>
    %c0_55 = arith.constant 0 : index
    %c0_56 = arith.constant 0 : index
    %46 = vector.load %arg2[%c0_55, %c0_56] : memref<36x4xbf16, #tpu.memory_space<vmem>>, vector<36x4xbf16>
    %cst_57 = arith.constant dense<0.000000e+00> : vector<256x4xf32>
    %47 = tpu.matmul %45, %46, %cst_57 {dimension_numbers = #tpu.dot_dimension_numbers<[1], [0], [0], [1], [0, 0, 1, 1], [], []>} : vector<256x36xbf16>, vector<36x4xbf16>, vector<256x4xf32> -> vector<256x4xf32>
    %cst_58 = arith.constant dense<0.000000e+00> : vector<4xf32>
    %48 = vector.multi_reduction <add>, %47, %cst_58 [0] : vector<256x4xf32> to vector<4xf32>
    %49 = vector.shape_cast %48 : vector<4xf32> to vector<1x4xf32>
    %cst_59 = arith.constant 2.560000e+02 : f32
    %50 = vector.broadcast %cst_59 : f32 to vector<1x4xf32>
    %51 = arith.divf %49, %50 : vector<1x4xf32>
    %52 = vector.broadcast %51 : vector<1x4xf32> to vector<256x4xf32>
    %53 = arith.subf %47, %52 : vector<256x4xf32>
    %54 = arith.mulf %53, %53 : vector<256x4xf32>
    %cst_60 = arith.constant dense<0.000000e+00> : vector<4xf32>
    %55 = vector.multi_reduction <add>, %54, %cst_60 [0] : vector<256x4xf32> to vector<4xf32>
    %56 = vector.shape_cast %55 : vector<4xf32> to vector<1x4xf32>
    %cst_61 = arith.constant 2.560000e+02 : f32
    %57 = vector.broadcast %cst_61 : f32 to vector<1x4xf32>
    %58 = arith.divf %56, %57 : vector<1x4xf32>
    %59 = vector.broadcast %51 : vector<1x4xf32> to vector<256x4xf32>
    %60 = arith.subf %47, %59 : vector<256x4xf32>
    %cst_62 = arith.constant 9.99999974E-6 : f32
    %61 = vector.broadcast %cst_62 : f32 to vector<1x4xf32>
    %62 = arith.addf %58, %61 : vector<1x4xf32>
    %63 = math.rsqrt %62 : vector<1x4xf32>
    %64 = vector.broadcast %63 : vector<1x4xf32> to vector<256x4xf32>
    %65 = arith.mulf %60, %64 : vector<256x4xf32>
    %c0_63 = arith.constant 0 : index
    %c0_64 = arith.constant 0 : index
    %66 = vector.load %arg3[%c0_63, %c0_64] : memref<1x4xf32, #tpu.memory_space<vmem>>, vector<1x4xf32>
    %67 = vector.broadcast %66 : vector<1x4xf32> to vector<256x4xf32>
    %68 = arith.mulf %65, %67 : vector<256x4xf32>
    %c0_65 = arith.constant 0 : index
    %c0_66 = arith.constant 0 : index
    %69 = vector.load %arg4[%c0_65, %c0_66] : memref<1x4xf32, #tpu.memory_space<vmem>>, vector<1x4xf32>
    %70 = vector.broadcast %69 : vector<1x4xf32> to vector<256x4xf32>
    %71 = arith.addf %68, %70 : vector<256x4xf32>
    %cst_67 = arith.constant 0.000000e+00 : f32
    %72 = vector.broadcast %cst_67 : f32 to vector<256x4xf32>
    %73 = arith.maximumf %71, %72 : vector<256x4xf32>
    %74 = vector.shape_cast %73 : vector<256x4xf32> to vector<16x16x4xf32>
    %c1_68 = arith.constant 1 : index
    %c1_69 = arith.constant 1 : index
    %c0_70 = arith.constant 0 : index
    %75 = vector.load %arg9[%c1_68, %c1_69, %c0_70] : memref<18x18x4xf32, #tpu.memory_space<vmem>>, vector<16x16x4xf32>
    tpu.vector_store %arg9[%c1_68, %c1_69, %c0_70], %74 {strides = array<i32>} : memref<18x18x4xf32, #tpu.memory_space<vmem>>, vector<16x16x4xf32>,
    %c0_71 = arith.constant 0 : index
    %c0_72 = arith.constant 0 : index
    %c0_73 = arith.constant 0 : index
    %76 = vector.load %arg9[%c0_71, %c0_72, %c0_73] : memref<18x18x4xf32, #tpu.memory_space<vmem>>, vector<16x16x4xf32>
    %77 = vector.shape_cast %76 : vector<16x16x4xf32> to vector<256x4xf32>
    %78 = arith.truncf %77 : vector<256x4xf32> to vector<256x4xbf16>
    %c0_74 = arith.constant 0 : index
    %c0_75 = arith.constant 0 : index
    %79 = vector.load %arg10[%c0_74, %c0_75] : memref<256x36xbf16, #tpu.memory_space<vmem>>, vector<256x4xbf16>
    tpu.vector_store %arg10[%c0_74, %c0_75], %78 {strides = array<i32>} : memref<256x36xbf16, #tpu.memory_space<vmem>>, vector<256x4xbf16>,
    %c0_76 = arith.constant 0 : index
    %c1_77 = arith.constant 1 : index
    %c0_78 = arith.constant 0 : index
    %80 = vector.load %arg9[%c0_76, %c1_77, %c0_78] : memref<18x18x4xf32, #tpu.memory_space<vmem>>, vector<16x16x4xf32>
    %81 = vector.shape_cast %80 : vector<16x16x4xf32> to vector<256x4xf32>
    %82 = arith.truncf %81 : vector<256x4xf32> to vector<256x4xbf16>
    %c0_79 = arith.constant 0 : index
    %c4_80 = arith.constant 4 : index
    %83 = vector.load %arg10[%c0_79, %c4_80] : memref<256x36xbf16, #tpu.memory_space<vmem>>, vector<256x4xbf16>
    tpu.vector_store %arg10[%c0_79, %c4_80], %82 {strides = array<i32>} : memref<256x36xbf16, #tpu.memory_space<vmem>>, vector<256x4xbf16>,
    %c0_81 = arith.constant 0 : index
    %c2_82 = arith.constant 2 : index
    %c0_83 = arith.constant 0 : index
    %84 = vector.load %arg9[%c0_81, %c2_82, %c0_83] : memref<18x18x4xf32, #tpu.memory_space<vmem>>, vector<16x16x4xf32>
    %85 = vector.shape_cast %84 : vector<16x16x4xf32> to vector<256x4xf32>
    %86 = arith.truncf %85 : vector<256x4xf32> to vector<256x4xbf16>
    %c0_84 = arith.constant 0 : index
    %c8_85 = arith.constant 8 : index
    %87 = vector.load %arg10[%c0_84, %c8_85] : memref<256x36xbf16, #tpu.memory_space<vmem>>, vector<256x4xbf16>
    tpu.vector_store %arg10[%c0_84, %c8_85], %86 {strides = array<i32>} : memref<256x36xbf16, #tpu.memory_space<vmem>>, vector<256x4xbf16>,
    %c1_86 = arith.constant 1 : index
    %c0_87 = arith.constant 0 : index
    %c0_88 = arith.constant 0 : index
    %88 = vector.load %arg9[%c1_86, %c0_87, %c0_88] : memref<18x18x4xf32, #tpu.memory_space<vmem>>, vector<16x16x4xf32>
    %89 = vector.shape_cast %88 : vector<16x16x4xf32> to vector<256x4xf32>
    %90 = arith.truncf %89 : vector<256x4xf32> to vector<256x4xbf16>
    %c0_89 = arith.constant 0 : index
    %c12_90 = arith.constant 12 : index
    %91 = vector.load %arg10[%c0_89, %c12_90] : memref<256x36xbf16, #tpu.memory_space<vmem>>, vector<256x4xbf16>
    tpu.vector_store %arg10[%c0_89, %c12_90], %90 {strides = array<i32>} : memref<256x36xbf16, #tpu.memory_space<vmem>>, vector<256x4xbf16>,
    %c1_91 = arith.constant 1 : index
    %c1_92 = arith.constant 1 : index
    %c0_93 = arith.constant 0 : index
    %92 = vector.load %arg9[%c1_91, %c1_92, %c0_93] : memref<18x18x4xf32, #tpu.memory_space<vmem>>, vector<16x16x4xf32>
    %93 = vector.shape_cast %92 : vector<16x16x4xf32> to vector<256x4xf32>
    %94 = arith.truncf %93 : vector<256x4xf32> to vector<256x4xbf16>
    %c0_94 = arith.constant 0 : index
    %c16_95 = arith.constant 16 : index
    %95 = vector.load %arg10[%c0_94, %c16_95] : memref<256x36xbf16, #tpu.memory_space<vmem>>, vector<256x4xbf16>
    tpu.vector_store %arg10[%c0_94, %c16_95], %94 {strides = array<i32>} : memref<256x36xbf16, #tpu.memory_space<vmem>>, vector<256x4xbf16>,
    %c1_96 = arith.constant 1 : index
    %c2_97 = arith.constant 2 : index
    %c0_98 = arith.constant 0 : index
    %96 = vector.load %arg9[%c1_96, %c2_97, %c0_98] : memref<18x18x4xf32, #tpu.memory_space<vmem>>, vector<16x16x4xf32>
    %97 = vector.shape_cast %96 : vector<16x16x4xf32> to vector<256x4xf32>
    %98 = arith.truncf %97 : vector<256x4xf32> to vector<256x4xbf16>
    %c0_99 = arith.constant 0 : index
    %c20_100 = arith.constant 20 : index
    %99 = vector.load %arg10[%c0_99, %c20_100] : memref<256x36xbf16, #tpu.memory_space<vmem>>, vector<256x4xbf16>
    tpu.vector_store %arg10[%c0_99, %c20_100], %98 {strides = array<i32>} : memref<256x36xbf16, #tpu.memory_space<vmem>>, vector<256x4xbf16>,
    %c2_101 = arith.constant 2 : index
    %c0_102 = arith.constant 0 : index
    %c0_103 = arith.constant 0 : index
    %100 = vector.load %arg9[%c2_101, %c0_102, %c0_103] : memref<18x18x4xf32, #tpu.memory_space<vmem>>, vector<16x16x4xf32>
    %101 = vector.shape_cast %100 : vector<16x16x4xf32> to vector<256x4xf32>
    %102 = arith.truncf %101 : vector<256x4xf32> to vector<256x4xbf16>
    %c0_104 = arith.constant 0 : index
    %c24_105 = arith.constant 24 : index
    %103 = vector.load %arg10[%c0_104, %c24_105] : memref<256x36xbf16, #tpu.memory_space<vmem>>, vector<256x4xbf16>
    tpu.vector_store %arg10[%c0_104, %c24_105], %102 {strides = array<i32>} : memref<256x36xbf16, #tpu.memory_space<vmem>>, vector<256x4xbf16>,
    %c2_106 = arith.constant 2 : index
    %c1_107 = arith.constant 1 : index
    %c0_108 = arith.constant 0 : index
    %104 = vector.load %arg9[%c2_106, %c1_107, %c0_108] : memref<18x18x4xf32, #tpu.memory_space<vmem>>, vector<16x16x4xf32>
    %105 = vector.shape_cast %104 : vector<16x16x4xf32> to vector<256x4xf32>
    %106 = arith.truncf %105 : vector<256x4xf32> to vector<256x4xbf16>
    %c0_109 = arith.constant 0 : index
    %c28_110 = arith.constant 28 : index
    %107 = vector.load %arg10[%c0_109, %c28_110] : memref<256x36xbf16, #tpu.memory_space<vmem>>, vector<256x4xbf16>
    tpu.vector_store %arg10[%c0_109, %c28_110], %106 {strides = array<i32>} : memref<256x36xbf16, #tpu.memory_space<vmem>>, vector<256x4xbf16>,
    %c2_111 = arith.constant 2 : index
    %c2_112 = arith.constant 2 : index
    %c0_113 = arith.constant 0 : index
    %108 = vector.load %arg9[%c2_111, %c2_112, %c0_113] : memref<18x18x4xf32, #tpu.memory_space<vmem>>, vector<16x16x4xf32>
    %109 = vector.shape_cast %108 : vector<16x16x4xf32> to vector<256x4xf32>
    %110 = arith.truncf %109 : vector<256x4xf32> to vector<256x4xbf16>
    %c0_114 = arith.constant 0 : index
    %c32_115 = arith.constant 32 : index
    %111 = vector.load %arg10[%c0_114, %c32_115] : memref<256x36xbf16, #tpu.memory_space<vmem>>, vector<256x4xbf16>
    tpu.vector_store %arg10[%c0_114, %c32_115], %110 {strides = array<i32>} : memref<256x36xbf16, #tpu.memory_space<vmem>>, vector<256x4xbf16>,
    %c0_116 = arith.constant 0 : index
    %c0_117 = arith.constant 0 : index
    %112 = vector.load %arg10[%c0_116, %c0_117] : memref<256x36xbf16, #tpu.memory_space<vmem>>, vector<256x36xbf16>
    %c0_118 = arith.constant 0 : index
    %c0_119 = arith.constant 0 : index
    %113 = vector.load %arg5[%c0_118, %c0_119] : memref<36x4xbf16, #tpu.memory_space<vmem>>, vector<36x4xbf16>
    %cst_120 = arith.constant dense<0.000000e+00> : vector<256x4xf32>
    %114 = tpu.matmul %112, %113, %cst_120 {dimension_numbers = #tpu.dot_dimension_numbers<[1], [0], [0], [1], [0, 0, 1, 1], [], []>} : vector<256x36xbf16>, vector<36x4xbf16>, vector<256x4xf32> -> vector<256x4xf32>
    %cst_121 = arith.constant dense<0.000000e+00> : vector<4xf32>
    %115 = vector.multi_reduction <add>, %114, %cst_121 [0] : vector<256x4xf32> to vector<4xf32>
    %116 = vector.shape_cast %115 : vector<4xf32> to vector<1x4xf32>
    %cst_122 = arith.constant 2.560000e+02 : f32
    %117 = vector.broadcast %cst_122 : f32 to vector<1x4xf32>
    %118 = arith.divf %116, %117 : vector<1x4xf32>
    %119 = vector.broadcast %118 : vector<1x4xf32> to vector<256x4xf32>
    %120 = arith.subf %114, %119 : vector<256x4xf32>
    %121 = arith.mulf %120, %120 : vector<256x4xf32>
    %cst_123 = arith.constant dense<0.000000e+00> : vector<4xf32>
    %122 = vector.multi_reduction <add>, %121, %cst_123 [0] : vector<256x4xf32> to vector<4xf32>
    %123 = vector.shape_cast %122 : vector<4xf32> to vector<1x4xf32>
    %cst_124 = arith.constant 2.560000e+02 : f32
    %124 = vector.broadcast %cst_124 : f32 to vector<1x4xf32>
    %125 = arith.divf %123, %124 : vector<1x4xf32>
    %126 = vector.broadcast %118 : vector<1x4xf32> to vector<256x4xf32>
    %127 = arith.subf %114, %126 : vector<256x4xf32>
    %cst_125 = arith.constant 9.99999974E-6 : f32
    %128 = vector.broadcast %cst_125 : f32 to vector<1x4xf32>
    %129 = arith.addf %125, %128 : vector<1x4xf32>
    %130 = math.rsqrt %129 : vector<1x4xf32>
    %131 = vector.broadcast %130 : vector<1x4xf32> to vector<256x4xf32>
    %132 = arith.mulf %127, %131 : vector<256x4xf32>
    %c0_126 = arith.constant 0 : index
    %c0_127 = arith.constant 0 : index
    %133 = vector.load %arg6[%c0_126, %c0_127] : memref<1x4xf32, #tpu.memory_space<vmem>>, vector<1x4xf32>
    %134 = vector.broadcast %133 : vector<1x4xf32> to vector<256x4xf32>
    %135 = arith.mulf %132, %134 : vector<256x4xf32>
    %c0_128 = arith.constant 0 : index
    %c0_129 = arith.constant 0 : index
    %136 = vector.load %arg7[%c0_128, %c0_129] : memref<1x4xf32, #tpu.memory_space<vmem>>, vector<1x4xf32>
    %137 = vector.broadcast %136 : vector<1x4xf32> to vector<256x4xf32>
    %138 = arith.addf %135, %137 : vector<256x4xf32>
    %139 = vector.shape_cast %1 : vector<16x16x4xf32> to vector<256x4xf32>
    %140 = arith.addf %139, %138 : vector<256x4xf32>
    %141 = vector.shape_cast %140 : vector<256x4xf32> to vector<16x16x4xf32>
    %c0_130 = arith.constant 0 : index
    %c0_131 = arith.constant 0 : index
    %c0_132 = arith.constant 0 : index
    %c0_133 = arith.constant 0 : index
    %142 = vector.load %arg8[%c0_130, %c0_131, %c0_132, %c0_133] : memref<1x16x16x4xf32, #tpu.memory_space<vmem>>, vector<1x16x16x4xf32>
    %143 = vector.shape_cast %142 : vector<1x16x16x4xf32> to vector<16x16x4xf32>
    %144 = vector.shape_cast %141 : vector<16x16x4xf32> to vector<1x16x16x4xf32>
    tpu.vector_store %arg8[%c0_130, %c0_131, %c0_132, %c0_133], %144 {strides = array<i32>} : memref<1x16x16x4xf32, #tpu.memory_space<vmem>>, vector<1x16x16x4xf32>,
    return
  }
  func.func @transform_0(%arg0: i32) -> (i32, i32, i32, i32) {
    %c0_i32 = arith.constant 0 : i32
    %c0_i32_0 = arith.constant 0 : i32
    %c0_i32_1 = arith.constant 0 : i32
    %c0_i32_2 = arith.constant 0 : i32
    return %arg0, %c0_i32, %c0_i32_0, %c0_i32_1 : i32, i32, i32, i32
  }
  func.func @transform_1(%arg0: i32) -> (i32, i32) {
    %c0_i32 = arith.constant 0 : i32
    %c0_i32_0 = arith.constant 0 : i32
    %c0_i32_1 = arith.constant 0 : i32
    return %c0_i32, %c0_i32_0 : i32, i32
  }
  func.func @transform_2(%arg0: i32) -> (i32, i32) {
    %c0_i32 = arith.constant 0 : i32
    %c0_i32_0 = arith.constant 0 : i32
    %c0_i32_1 = arith.constant 0 : i32
    return %c0_i32, %c0_i32_0 : i32, i32
  }
  func.func @transform_3(%arg0: i32) -> (i32, i32) {
    %c0_i32 = arith.constant 0 : i32
    %c0_i32_0 = arith.constant 0 : i32
    %c0_i32_1 = arith.constant 0 : i32
    return %c0_i32, %c0_i32_0 : i32, i32
  }
  func.func @transform_4(%arg0: i32) -> (i32, i32) {
    %c0_i32 = arith.constant 0 : i32
    %c0_i32_0 = arith.constant 0 : i32
    %c0_i32_1 = arith.constant 0 : i32
    return %c0_i32, %c0_i32_0 : i32, i32
  }
  func.func @transform_5(%arg0: i32) -> (i32, i32) {
    %c0_i32 = arith.constant 0 : i32
    %c0_i32_0 = arith.constant 0 : i32
    %c0_i32_1 = arith.constant 0 : i32
    return %c0_i32, %c0_i32_0 : i32, i32
  }
  func.func @transform_6(%arg0: i32) -> (i32, i32) {
    %c0_i32 = arith.constant 0 : i32
    %c0_i32_0 = arith.constant 0 : i32
    %c0_i32_1 = arith.constant 0 : i32
    return %c0_i32, %c0_i32_0 : i32, i32
  }
  func.func @transform_7(%arg0: i32) -> (i32, i32, i32, i32) {
    %c0_i32 = arith.constant 0 : i32
    %c0_i32_0 = arith.constant 0 : i32
    %c0_i32_1 = arith.constant 0 : i32
    %c0_i32_2 = arith.constant 0 : i32
    return %arg0, %c0_i32, %c0_i32_0, %c0_i32_1 : i32, i32, i32, i32
  }
}

</mosaic_0001>

<llo_original>
// kernel: tpu_custom_call.1
$region0: #{tpu_custom_call.1}
  #allocation0 [shape = 'u32[]', space=smem, size = 0x4, offset = 0x4, fixed_abs, tag = 'smem constant byte address 0x4 - core index']
  #allocation1 [shape = 'u32[144,128]{1,0:T(1,128)}', space=vmem, size = 0x12000, scoped, tag = 'internal scratch']
  #allocation2 [shape = 'f32[18,18,4]{2,1,0:T(8,128)}', space=vmem, size = 0x36000, scoped, tag = 'scratch operand']
  #allocation3 [shape = 'bf16[256,36]{1,0:T(8,128)(2,1)}', space=vmem, size = 0x10000, scoped, tag = 'scratch operand']
  %s0 = inlined_call_operand.vmem [shape: f32[2,16,16,4], index: 0, kind: input, shape index: {}]
  %s1 = inlined_call_operand.vmem [shape: bf16[36,4], index: 1, kind: input, shape index: {}]
  %s2 = inlined_call_operand.vmem [shape: f32[1,4], index: 2, kind: input, shape index: {}]
  %s3 = inlined_call_operand.vmem [shape: f32[1,4], index: 3, kind: input, shape index: {}]
  %s4 = inlined_call_operand.vmem [shape: bf16[36,4], index: 4, kind: input, shape index: {}]
  %s5 = inlined_call_operand.vmem [shape: f32[1,4], index: 5, kind: input, shape index: {}]
  %s6 = inlined_call_operand.vmem [shape: f32[1,4], index: 6, kind: input, shape index: {}]
  %s7 = inlined_call_operand.vmem [shape: f32[2,16,16,4], index: 7, kind: output, shape index: {}]
  %s8 = sld [smem:[#allocation0]]
  $region61: #{tpu_custom_call.1} parent=0
    _
  %s10 = ssub.s32 1, %s8
  %s11 = scalar_select 0, %s10, %s8
  loop: start=0, step=1, limit=4
  $region2: #{tpu_custom_call.1} parent=0 // loop_pre_header
    _
  $region3: #{tpu_custom_call.1} parent=0 // loop_header
    %s13 = sphi 0, %s17
    %p14 = scmp.ge.s32.totalorder %s13, 4
    %s23 = sphi 0, %s25
    %s26 = sphi 0, %s23
    %s27 = sphi 0, %s26
    %s43 = sphi 0, %s27
    %s47 = sphi 0, %s47
    %s49 = sphi 0, %s47
    %s50 = sphi 0, %s49
    %s64 = sphi 0, %s50
    %s68 = sphi 0, %s68
    %s70 = sphi 0, %s68
    %s71 = sphi 0, %s70
    %s85 = sphi 0, %s71
    %s89 = sphi 0, %s89
    %s91 = sphi 0, %s89
    %s92 = sphi 0, %s91
    %s106 = sphi 0, %s92
    %s110 = sphi 0, %s110
    %s112 = sphi 0, %s110
    %s113 = sphi 0, %s112
    %s127 = sphi 0, %s113
    %s131 = sphi 0, %s131
    %s133 = sphi 0, %s131
    %s134 = sphi 0, %s133
    %s148 = sphi 0, %s134
    %s152 = sphi 0, %s152
    %s154 = sphi 0, %s152
    %s155 = sphi 0, %s154
    %s169 = sphi 0, %s155
    %s175 = sphi 0, %s177
    %s178 = sphi 0, %s175
    %s179 = sphi 0, %s178
    %s195 = sphi 0, %s179
  $region4: #{tpu_custom_call.1} parent=0 // loop_header_branch
    %16 = sbr.rel (%p14) target = $region8
  $region5: #{tpu_custom_call.1} parent=0 // loop_body
    %s18 = ssub.s32 %s13, 1
    %s19 = ssub.s32 %s13, 2
    %s20 = sadd.s32 %s13, 1
    %s21 = ssub.s32 %s13, %s20
    %p22 = scmp.eq.s32.totalorder %s21, 0
    %s24 = sadd.s32 %s23, 1
    %s25 = scalar_select %p22, %s23, %s24
    %p28 = pneg %p22
    %p29 = scmp.eq.s32.totalorder %s13, 1
    %p30 = por %p28, %p29
    %p31 = scmp.ne.s32.totalorder %s23, %s26
    %p32 = scmp.eq.s32.totalorder %s13, 0
    %p33 = por %p31, %p32
    %p34 = scmp.ne.s32.totalorder %s23, %s26
    %p35 = scmp.eq.s32.totalorder %s18, 1
    %p36 = por %p34, %p35
    %p37 = scmp.ne.s32.totalorder %s26, %s27
    %p38 = scmp.eq.s32.totalorder %s18, 0
    %p39 = por %p37, %p38
    %p40 = scmp.ne.s32.totalorder %s26, %s27
    %p41 = scmp.eq.s32.totalorder %s19, 1
    %p42 = por %p40, %p41
    %p44 = scmp.ne.s32.totalorder %s27, %s43
    %p45 = scmp.eq.s32.totalorder %s19, 0
    %p46 = por %p44, %p45
    %s48 = sadd.s32 %s47, 1
    %p51 = scmp.eq.s32.totalorder %s13, 1
    %p52 = scmp.ne.s32.totalorder %s47, %s49
    %p53 = scmp.eq.s32.totalorder %s13, 0
    %p54 = por %p52, %p53
    %p55 = scmp.ne.s32.totalorder %s47, %s49
    %p56 = scmp.eq.s32.totalorder %s18, 1
    %p57 = por %p55, %p56
    %p58 = scmp.ne.s32.totalorder %s49, %s50
    %p59 = scmp.eq.s32.totalorder %s18, 0
    %p60 = por %p58, %p59
    %p61 = scmp.ne.s32.totalorder %s49, %s50
    %p62 = scmp.eq.s32.totalorder %s19, 1
    %p63 = por %p61, %p62
    %p65 = scmp.ne.s32.totalorder %s50, %s64
    %p66 = scmp.eq.s32.totalorder %s19, 0
    %p67 = por %p65, %p66
    %s69 = sadd.s32 %s68, 1
    %p72 = scmp.eq.s32.totalorder %s13, 1
    %p73 = scmp.ne.s32.totalorder %s68, %s70
    %p74 = scmp.eq.s32.totalorder %s13, 0
    %p75 = por %p73, %p74
    %p76 = scmp.ne.s32.totalorder %s68, %s70
    %p77 = scmp.eq.s32.totalorder %s18, 1
    %p78 = por %p76, %p77
    %p79 = scmp.ne.s32.totalorder %s70, %s71
    %p80 = scmp.eq.s32.totalorder %s18, 0
    %p81 = por %p79, %p80
    %p82 = scmp.ne.s32.totalorder %s70, %s71
    %p83 = scmp.eq.s32.totalorder %s19, 1
    %p84 = por %p82, %p83
    %p86 = scmp.ne.s32.totalorder %s71, %s85
    %p87 = scmp.eq.s32.totalorder %s19, 0
    %p88 = por %p86, %p87
    %s90 = sadd.s32 %s89, 1
    %p93 = scmp.eq.s32.totalorder %s13, 1
    %p94 = scmp.ne.s32.totalorder %s89, %s91
    %p95 = scmp.eq.s32.totalorder %s13, 0
    %p96 = por %p94, %p95
    %p97 = scmp.ne.s32.totalorder %s89, %s91
    %p98 = scmp.eq.s32.totalorder %s18, 1
    %p99 = por %p97, %p98
    %p100 = scmp.ne.s32.totalorder %s91, %s92
    %p101 = scmp.eq.s32.totalorder %s18, 0
    %p102 = por %p100, %p101
    %p103 = scmp.ne.s32.totalorder %s91, %s92
    %p104 = scmp.eq.s32.totalorder %s19, 1
    %p105 = por %p103, %p104
    %p107 = scmp.ne.s32.totalorder %s92, %s106
    %p108 = scmp.eq.s32.totalorder %s19, 0
    %p109 = por %p107, %p108
    %s111 = sadd.s32 %s110, 1
    %p114 = scmp.eq.s32.totalorder %s13, 1
    %p115 = scmp.ne.s32.totalorder %s110, %s112
    %p116 = scmp.eq.s32.totalorder %s13, 0
    %p117 = por %p115, %p116
    %p118 = scmp.ne.s32.totalorder %s110, %s112
    %p119 = scmp.eq.s32.totalorder %s18, 1
    %p120 = por %p118, %p119
    %p121 = scmp.ne.s32.totalorder %s112, %s113
    %p122 = scmp.eq.s32.totalorder %s18, 0
    %p123 = por %p121, %p122
    %p124 = scmp.ne.s32.totalorder %s112, %s113
    %p125 = scmp.eq.s32.totalorder %s19, 1
    %p126 = por %p124, %p125
    %p128 = scmp.ne.s32.totalorder %s113, %s127
    %p129 = scmp.eq.s32.totalorder %s19, 0
    %p130 = por %p128, %p129
    %s132 = sadd.s32 %s131, 1
    %p135 = scmp.eq.s32.totalorder %s13, 1
    %p136 = scmp.ne.s32.totalorder %s131, %s133
    %p137 = scmp.eq.s32.totalorder %s13, 0
    %p138 = por %p136, %p137
    %p139 = scmp.ne.s32.totalorder %s131, %s133
    %p140 = scmp.eq.s32.totalorder %s18, 1
    %p141 = por %p139, %p140
    %p142 = scmp.ne.s32.totalorder %s133, %s134
    %p143 = scmp.eq.s32.totalorder %s18, 0
    %p144 = por %p142, %p143
    %p145 = scmp.ne.s32.totalorder %s133, %s134
    %p146 = scmp.eq.s32.totalorder %s19, 1
    %p147 = por %p145, %p146
    %p149 = scmp.ne.s32.totalorder %s134, %s148
    %p150 = scmp.eq.s32.totalorder %s19, 0
    %p151 = por %p149, %p150
    %s153 = sadd.s32 %s152, 1
    %p156 = scmp.eq.s32.totalorder %s13, 1
    %p157 = scmp.ne.s32.totalorder %s152, %s154
    %p158 = scmp.eq.s32.totalorder %s13, 0
    %p159 = por %p157, %p158
    %p160 = scmp.ne.s32.totalorder %s152, %s154
    %p161 = scmp.eq.s32.totalorder %s18, 1
    %p162 = por %p160, %p161
    %p163 = scmp.ne.s32.totalorder %s154, %s155
    %p164 = scmp.eq.s32.totalorder %s18, 0
    %p165 = por %p163, %p164
    %p166 = scmp.ne.s32.totalorder %s154, %s155
    %p167 = scmp.eq.s32.totalorder %s19, 1
    %p168 = por %p166, %p167
    %p170 = scmp.ne.s32.totalorder %s155, %s169
    %p171 = scmp.eq.s32.totalorder %s19, 0
    %p172 = por %p170, %p171
    %s173 = ssub.s32 %s13, %s20
    %p174 = scmp.eq.s32.totalorder %s173, 0
    %s176 = sadd.s32 %s175, 1
    %s177 = scalar_select %p174, %s175, %s176
    %p180 = pneg %p174
    %p181 = scmp.eq.s32.totalorder %s13, 1
    %p182 = por %p180, %p181
    %p183 = scmp.ne.s32.totalorder %s175, %s178
    %p184 = scmp.eq.s32.totalorder %s13, 0
    %p185 = por %p183, %p184
    %p186 = scmp.ne.s32.totalorder %s175, %s178
    %p187 = scmp.eq.s32.totalorder %s18, 1
    %p188 = por %p186, %p187
    %p189 = scmp.ne.s32.totalorder %s178, %s179
    %p190 = scmp.eq.s32.totalorder %s18, 0
    %p191 = por %p189, %p190
    %p192 = scmp.ne.s32.totalorder %s178, %s179
    %p193 = scmp.eq.s32.totalorder %s19, 1
    %p194 = por %p192, %p193
    %p196 = scmp.ne.s32.totalorder %s179, %s195
    %p197 = scmp.eq.s32.totalorder %s19, 0
    %p198 = por %p196, %p197
    %p199 = scmp.le.s32.totalorder 1, %s13
    %p200 = scmp.lt.s32.totalorder %s13, 3
    %p201 = pnand %p199, %p200
    %p202 = pneg %p201
    // Predicated region
    $region9: #{tpu_custom_call.1} parent=5 // pred_check
      _
    $region10: #{tpu_custom_call.1} parent=5 // pred_check_branch
      %204 = sbr.rel (%p201) target = $region12
    $region11: #{tpu_custom_call.1} parent=5 // pred_region
      %s205 = ssub.s32 %s13, 1
      // Predicated region
      $region13: #{tpu_custom_call.1} parent=11 // pred_check
        %p206 = pneg %p60
      $region14: #{tpu_custom_call.1} parent=11 // pred_check_branch
        %208 = sbr.rel (%p206) target = $region16
      $region15: #{tpu_custom_call.1} parent=11 // pred_region
        _
      $region16: #{tpu_custom_call.1} parent=11 // pred_fallthru
        _
      // Predicated region
      $region17: #{tpu_custom_call.1} parent=11 // pred_check
        %p209 = pneg %p81
      $region18: #{tpu_custom_call.1} parent=11 // pred_check_branch
        %211 = sbr.rel (%p209) target = $region20
      $region19: #{tpu_custom_call.1} parent=11 // pred_region
        _
      $region20: #{tpu_custom_call.1} parent=11 // pred_fallthru
        _
      // Predicated region
      $region21: #{tpu_custom_call.1} parent=11 // pred_check
        %p212 = pneg %p102
      $region22: #{tpu_custom_call.1} parent=11 // pred_check_branch
        %214 = sbr.rel (%p212) target = $region24
      $region23: #{tpu_custom_call.1} parent=11 // pred_region
        _
      $region24: #{tpu_custom_call.1} parent=11 // pred_fallthru
        _
      // Predicated region
      $region25: #{tpu_custom_call.1} parent=11 // pred_check
        %p215 = pneg %p123
      $region26: #{tpu_custom_call.1} parent=11 // pred_check_branch
        %217 = sbr.rel (%p215) target = $region28
      $region27: #{tpu_custom_call.1} parent=11 // pred_region
        _
      $region28: #{tpu_custom_call.1} parent=11 // pred_fallthru
        _
      // Predicated region
      $region29: #{tpu_custom_call.1} parent=11 // pred_check
        %p218 = pneg %p144
      $region30: #{tpu_custom_call.1} parent=11 // pred_check_branch
        %220 = sbr.rel (%p218) target = $region32
      $region31: #{tpu_custom_call.1} parent=11 // pred_region
        _
      $region32: #{tpu_custom_call.1} parent=11 // pred_fallthru
        _
      // Predicated region
      $region33: #{tpu_custom_call.1} parent=11 // pred_check
        %p221 = pneg %p165
      $region34: #{tpu_custom_call.1} parent=11 // pred_check_branch
        %223 = sbr.rel (%p221) target = $region36
      $region35: #{tpu_custom_call.1} parent=11 // pred_region
        _
      $region36: #{tpu_custom_call.1} parent=11 // pred_fallthru
        _
    $region12: #{tpu_custom_call.1} parent=5 // pred_fallthru
      _
    %p224 = scmp.lt.s32.totalorder %s13, 2
    // Predicated region
    $region37: #{tpu_custom_call.1} parent=5 // pred_check
      %p225 = pneg %p224
    $region38: #{tpu_custom_call.1} parent=5 // pred_check_branch
      %227 = sbr.rel (%p225) target = $region40
    $region39: #{tpu_custom_call.1} parent=5 // pred_region
      // Predicated region
      $region41: #{tpu_custom_call.1} parent=39 // pred_check
        %p228 = pneg %p33
      $region42: #{tpu_custom_call.1} parent=39 // pred_check_branch
        %230 = sbr.rel (%p228) target = $region44
      $region43: #{tpu_custom_call.1} parent=39 // pred_region
        %p231 = scmp.lt.s32.totalorder %s13, 1
        %s232 = scalar_select %p231, %s13, 1
        %s233 = smul.addr %s232, 32
        %s234 = smul.addr %s233, 8
        %s235 = scalar_lea.vmem %s0, %s234
      $region44: #{tpu_custom_call.1} parent=39 // pred_fallthru
        _
    $region40: #{tpu_custom_call.1} parent=5 // pred_fallthru
      _
    %p236 = scmp.le.s32.totalorder 1, %s13
    %p237 = scmp.lt.s32.totalorder %s13, 3
    %p238 = pnand %p236, %p237
    %p239 = pneg %p238
    // Predicated region
    $region45: #{tpu_custom_call.1} parent=5 // pred_check
      _
    $region46: #{tpu_custom_call.1} parent=5 // pred_check_branch
      %241 = sbr.rel (%p238) target = $region48
    $region47: #{tpu_custom_call.1} parent=5 // pred_region
      %s242 = ssub.s32 %s13, 1
      %p243 = scmp.lt.s32.totalorder %s18, 1
      %s244 = scalar_select %p243, %s18, 1
      %s245 = smul.addr %s244, 32
      %s246 = smul.addr %s245, 8
      %s247 = scalar_lea.vmem %s0, %s246
      %p248 = pneg %p39
      %p249 = pneg %p36
      %p250 = pneg %p60
      %p251 = pneg %p57
      %p252 = pneg %p81
      %p253 = pneg %p78
      %p254 = pneg %p102
      %p255 = pneg %p99
      %p256 = pneg %p123
      %p257 = pneg %p120
      %p258 = pneg %p144
      %p259 = pneg %p141
      %p260 = pneg %p165
      %p261 = pneg %p162
      %p262 = pneg %p191
      %p263 = pneg %p188
      %p264 = scmp.lt.s32.totalorder %s18, 1
      %s265 = scalar_select %p264, %s18, 1
      %s266 = smul.addr %s265, 32
      %s267 = smul.addr %s266, 8
      %s268 = scalar_lea.vmem %s7, %s267
      %p269 = scmp.lt.s32.totalorder %s18, 1
      %s270 = scalar_select %p269, %s18, 1
      %s271 = smul.addr %s270, 32
      %s272 = smul.addr %s271, 8
      %s273 = scalar_lea.vmem %s0, %s272
      %p274 = scmp.lt.s32.totalorder %s18, 1
      %s275 = scalar_select %p274, %s18, 1
      %s276 = smul.addr %s275, 32
      %s277 = smul.addr %s276, 8
      %s278 = scalar_lea.vmem %s7, %s277
      %v280 = vld [vmem:[%s273] sm:$0xff]
      %v281 = vld [vmem:[%s273 + $0x8] sm:$0xff]
      %v282 = vld [vmem:[%s273 + $0x10] sm:$0xff]
      %v283 = vld [vmem:[%s273 + $0x18] sm:$0xff]
      %v284 = vld [vmem:[%s273 + $0x20] sm:$0xff]
      %v285 = vld [vmem:[%s273 + $0x28] sm:$0xff]
      %v286 = vld [vmem:[%s273 + $0x30] sm:$0xff]
      %v287 = vld [vmem:[%s273 + $0x38] sm:$0xff]
      %v288 = vld [vmem:[%s273 + $0x40] sm:$0xff]
      %v289 = vld [vmem:[%s273 + $0x48] sm:$0xff]
      %v290 = vld [vmem:[%s273 + $0x50] sm:$0xff]
      %v291 = vld [vmem:[%s273 + $0x58] sm:$0xff]
      %v292 = vld [vmem:[%s273 + $0x60] sm:$0xff]
      %v293 = vld [vmem:[%s273 + $0x68] sm:$0xff]
      %v294 = vld [vmem:[%s273 + $0x70] sm:$0xff]
      %v295 = vld [vmem:[%s273 + $0x78] sm:$0xff]
      %v296 = vld [vmem:[%s273 + $0x80] sm:$0xff]
      %v297 = vld [vmem:[%s273 + $0x88] sm:$0xff]
      %v298 = vld [vmem:[%s273 + $0x90] sm:$0xff]
      %v299 = vld [vmem:[%s273 + $0x98] sm:$0xff]
      %v300 = vld [vmem:[%s273 + $0xa0] sm:$0xff]
      %v301 = vld [vmem:[%s273 + $0xa8] sm:$0xff]
      %v302 = vld [vmem:[%s273 + $0xb0] sm:$0xff]
      %v303 = vld [vmem:[%s273 + $0xb8] sm:$0xff]
      %v304 = vld [vmem:[%s273 + $0xc0] sm:$0xff]
      %v305 = vld [vmem:[%s273 + $0xc8] sm:$0xff]
      %v306 = vld [vmem:[%s273 + $0xd0] sm:$0xff]
      %v307 = vld [vmem:[%s273 + $0xd8] sm:$0xff]
      %v308 = vld [vmem:[%s273 + $0xe0] sm:$0xff]
      %v309 = vld [vmem:[%s273 + $0xe8] sm:$0xff]
      %v310 = vld [vmem:[%s273 + $0xf0] sm:$0xff]
      %v311 = vld [vmem:[%s273 + $0xf8] sm:$0xff]
      %vm312 = vcmask 31744
      %313 = vst.msk [vmem:[#allocation2] sm:$0xff] %vm312, 0.0
      %314 = vst.msk [vmem:[#allocation2 + $0x8] sm:$0xff] %vm312, 0.0
      %vm315 = vcmask 25600
      %316 = vst.msk [vmem:[#allocation2 + $0x10] sm:$0x3] %vm315, 0.0
      %s317 = scalar_lea.vmem [#allocation2], 408
      %318 = vst.msk [vmem:[%s317] sm:$0xff] %vm312, 0.0
      %319 = vst.msk [vmem:[%s317 + $0x8] sm:$0xff] %vm312, 0.0
      %320 = vst.msk [vmem:[%s317 + $0x10] sm:$0x3] %vm315, 0.0
      %vm321 = vcmask 24576
      %322 = vst.msk [vmem:[#allocation2] sm:$0x1] %vm321, 0.0
      %323 = vst.msk [vmem:[#allocation2 + $0x18] sm:$0x1] %vm321, 0.0
      %324 = vst.msk [vmem:[#allocation2 + $0x30] sm:$0x1] %vm321, 0.0
      %325 = vst.msk [vmem:[#allocation2 + $0x48] sm:$0x1] %vm321, 0.0
      %326 = vst.msk [vmem:[#allocation2 + $0x60] sm:$0x1] %vm321, 0.0
      %327 = vst.msk [vmem:[#allocation2 + $0x78] sm:$0x1] %vm321, 0.0
      %328 = vst.msk [vmem:[#allocation2 + $0x90] sm:$0x1] %vm321, 0.0
      %329 = vst.msk [vmem:[#allocation2 + $0xa8] sm:$0x1] %vm321, 0.0
      %330 = vst.msk [vmem:[#allocation2 + $0xc0] sm:$0x1] %vm321, 0.0
      %331 = vst.msk [vmem:[#allocation2 + $0xd8] sm:$0x1] %vm321, 0.0
      %332 = vst.msk [vmem:[#allocation2 + $0xf0] sm:$0x1] %vm321, 0.0
      %333 = vst.msk [vmem:[#allocation2 + $0x108] sm:$0x1] %vm321, 0.0
      %334 = vst.msk [vmem:[#allocation2 + $0x120] sm:$0x1] %vm321, 0.0
      %335 = vst.msk [vmem:[#allocation2 + $0x138] sm:$0x1] %vm321, 0.0
      %336 = vst.msk [vmem:[#allocation2 + $0x150] sm:$0x1] %vm321, 0.0
      %337 = vst.msk [vmem:[#allocation2 + $0x168] sm:$0x1] %vm321, 0.0
      %338 = vst.msk [vmem:[#allocation2 + $0x180] sm:$0x1] %vm321, 0.0
      %339 = vst.msk [vmem:[#allocation2 + $0x198] sm:$0x1] %vm321, 0.0
      %340 = vst.msk [vmem:[#allocation2 + $0x11] sm:$0x1] %vm321, 0.0
      %341 = vst.msk [vmem:[#allocation2 + $0x29] sm:$0x1] %vm321, 0.0
      %342 = vst.msk [vmem:[#allocation2 + $0x41] sm:$0x1] %vm321, 0.0
      %343 = vst.msk [vmem:[#allocation2 + $0x59] sm:$0x1] %vm321, 0.0
      %344 = vst.msk [vmem:[#allocation2 + $0x71] sm:$0x1] %vm321, 0.0
      %345 = vst.msk [vmem:[#allocation2 + $0x89] sm:$0x1] %vm321, 0.0
      %346 = vst.msk [vmem:[#allocation2 + $0xa1] sm:$0x1] %vm321, 0.0
      %347 = vst.msk [vmem:[#allocation2 + $0xb9] sm:$0x1] %vm321, 0.0
      %348 = vst.msk [vmem:[#allocation2 + $0xd1] sm:$0x1] %vm321, 0.0
      %349 = vst.msk [vmem:[#allocation2 + $0xe9] sm:$0x1] %vm321, 0.0
      %350 = vst.msk [vmem:[#allocation2 + $0x101] sm:$0x1] %vm321, 0.0
      %351 = vst.msk [vmem:[#allocation2 + $0x119] sm:$0x1] %vm321, 0.0
      %352 = vst.msk [vmem:[#allocation2 + $0x131] sm:$0x1] %vm321, 0.0
      %353 = vst.msk [vmem:[#allocation2 + $0x149] sm:$0x1] %vm321, 0.0
      %354 = vst.msk [vmem:[#allocation2 + $0x161] sm:$0x1] %vm321, 0.0
      %355 = vst.msk [vmem:[#allocation2 + $0x179] sm:$0x1] %vm321, 0.0
      %356 = vst.msk [vmem:[#allocation2 + $0x191] sm:$0x1] %vm321, 0.0
      %357 = vst.msk [vmem:[#allocation2 + $0x1a9] sm:$0x1] %vm321, 0.0
      %s358 = scalar_lea.vmem [#allocation2], 24
      %359 = vst.msk [vmem:[%s358 + $0x1] sm:$0xff] %vm312, %v280
      %360 = vst.msk [vmem:[%s358 + $0x9] sm:$0xff] %vm312, %v281
      %361 = vst.msk [vmem:[%s358 + $0x19] sm:$0xff] %vm312, %v282
      %362 = vst.msk [vmem:[%s358 + $0x21] sm:$0xff] %vm312, %v283
      %363 = vst.msk [vmem:[%s358 + $0x31] sm:$0xff] %vm312, %v284
      %364 = vst.msk [vmem:[%s358 + $0x39] sm:$0xff] %vm312, %v285
      %365 = vst.msk [vmem:[%s358 + $0x49] sm:$0xff] %vm312, %v286
      %366 = vst.msk [vmem:[%s358 + $0x51] sm:$0xff] %vm312, %v287
      %367 = vst.msk [vmem:[%s358 + $0x61] sm:$0xff] %vm312, %v288
      %368 = vst.msk [vmem:[%s358 + $0x69] sm:$0xff] %vm312, %v289
      %369 = vst.msk [vmem:[%s358 + $0x79] sm:$0xff] %vm312, %v290
      %370 = vst.msk [vmem:[%s358 + $0x81] sm:$0xff] %vm312, %v291
      %371 = vst.msk [vmem:[%s358 + $0x91] sm:$0xff] %vm312, %v292
      %372 = vst.msk [vmem:[%s358 + $0x99] sm:$0xff] %vm312, %v293
      %373 = vst.msk [vmem:[%s358 + $0xa9] sm:$0xff] %vm312, %v294
      %374 = vst.msk [vmem:[%s358 + $0xb1] sm:$0xff] %vm312, %v295
      %375 = vst.msk [vmem:[%s358 + $0xc1] sm:$0xff] %vm312, %v296
      %376 = vst.msk [vmem:[%s358 + $0xc9] sm:$0xff] %vm312, %v297
      %377 = vst.msk [vmem:[%s358 + $0xd9] sm:$0xff] %vm312, %v298
      %378 = vst.msk [vmem:[%s358 + $0xe1] sm:$0xff] %vm312, %v299
      %379 = vst.msk [vmem:[%s358 + $0xf1] sm:$0xff] %vm312, %v300
      %380 = vst.msk [vmem:[%s358 + $0xf9] sm:$0xff] %vm312, %v301
      %381 = vst.msk [vmem:[%s358 + $0x109] sm:$0xff] %vm312, %v302
      %382 = vst.msk [vmem:[%s358 + $0x111] sm:$0xff] %vm312, %v303
      %383 = vst.msk [vmem:[%s358 + $0x121] sm:$0xff] %vm312, %v304
      %384 = vst.msk [vmem:[%s358 + $0x129] sm:$0xff] %vm312, %v305
      %385 = vst.msk [vmem:[%s358 + $0x139] sm:$0xff] %vm312, %v306
      %386 = vst.msk [vmem:[%s358 + $0x141] sm:$0xff] %vm312, %v307
      %387 = vst.msk [vmem:[%s358 + $0x151] sm:$0xff] %vm312, %v308
      %388 = vst.msk [vmem:[%s358 + $0x159] sm:$0xff] %vm312, %v309
      %389 = vst.msk [vmem:[%s358 + $0x169] sm:$0xff] %vm312, %v310
      %390 = vst.msk [vmem:[%s358 + $0x171] sm:$0xff] %vm312, %v311
      %v391 = vld [vmem:[#allocation2] sm:$0xff]
      %v392 = vld [vmem:[#allocation2 + $0x8] sm:$0xff]
      %v393 = vld [vmem:[#allocation2 + $0x18] sm:$0xff]
      %v394 = vld [vmem:[#allocation2 + $0x20] sm:$0xff]
      %v395 = vld [vmem:[#allocation2 + $0x30] sm:$0xff]
      %v396 = vld [vmem:[#allocation2 + $0x38] sm:$0xff]
      %v397 = vld [vmem:[#allocation2 + $0x48] sm:$0xff]
      %v398 = vld [vmem:[#allocation2 + $0x50] sm:$0xff]
      %v399 = vld [vmem:[#allocation2 + $0x60] sm:$0xff]
      %v400 = vld [vmem:[#allocation2 + $0x68] sm:$0xff]
      %v401 = vld [vmem:[#allocation2 + $0x78] sm:$0xff]
      %v402 = vld [vmem:[#allocation2 + $0x80] sm:$0xff]
      %v403 = vld [vmem:[#allocation2 + $0x90] sm:$0xff]
      %v404 = vld [vmem:[#allocation2 + $0x98] sm:$0xff]
      %v405 = vld [vmem:[#allocation2 + $0xa8] sm:$0xff]
      %v406 = vld [vmem:[#allocation2 + $0xb0] sm:$0xff]
      %v407 = vld [vmem:[#allocation2 + $0xc0] sm:$0xff]
      %v408 = vld [vmem:[#allocation2 + $0xc8] sm:$0xff]
      %v409 = vld [vmem:[#allocation2 + $0xd8] sm:$0xff]
      %v410 = vld [vmem:[#allocation2 + $0xe0] sm:$0xff]
      %v411 = vld [vmem:[#allocation2 + $0xf0] sm:$0xff]
      %v412 = vld [vmem:[#allocation2 + $0xf8] sm:$0xff]
      %v413 = vld [vmem:[#allocation2 + $0x108] sm:$0xff]
      %v414 = vld [vmem:[#allocation2 + $0x110] sm:$0xff]
      %v415 = vld [vmem:[#allocation2 + $0x120] sm:$0xff]
      %v416 = vld [vmem:[#allocation2 + $0x128] sm:$0xff]
      %v417 = vld [vmem:[#allocation2 + $0x138] sm:$0xff]
      %v418 = vld [vmem:[#allocation2 + $0x140] sm:$0xff]
      %v419 = vld [vmem:[#allocation2 + $0x150] sm:$0xff]
      %v420 = vld [vmem:[#allocation2 + $0x158] sm:$0xff]
      %v421 = vld [vmem:[#allocation2 + $0x168] sm:$0xff]
      %v422 = vld [vmem:[#allocation2 + $0x170] sm:$0xff]
      %v423 = vpack.c.bf16 %v392, %v391
      %v424 = vpack.c.bf16 %v394, %v393
      %v425 = vpack.c.bf16 %v396, %v395
      %v426 = vpack.c.bf16 %v398, %v397
      %v427 = vpack.c.bf16 %v400, %v399
      %v428 = vpack.c.bf16 %v402, %v401
      %v429 = vpack.c.bf16 %v404, %v403
      %v430 = vpack.c.bf16 %v406, %v405
      %v431 = vpack.c.bf16 %v408, %v407
      %v432 = vpack.c.bf16 %v410, %v409
      %v433 = vpack.c.bf16 %v412, %v411
      %v434 = vpack.c.bf16 %v414, %v413
      %v435 = vpack.c.bf16 %v416, %v415
      %v436 = vpack.c.bf16 %v418, %v417
      %v437 = vpack.c.bf16 %v420, %v419
      %v438 = vpack.c.bf16 %v422, %v421
      %v455 = vunpack.c.l.b16 %v423
      %v456 = vunpack.c.h.b16 %v423
      %v457 = vunpack.c.l.b16 %v424
      %v458 = vunpack.c.h.b16 %v424
      %v459 = vunpack.c.l.b16 %v425
      %v460 = vunpack.c.h.b16 %v425
      %v461 = vunpack.c.l.b16 %v426
      %v462 = vunpack.c.h.b16 %v426
      %v463 = vunpack.c.l.b16 %v427
      %v464 = vunpack.c.h.b16 %v427
      %v465 = vunpack.c.l.b16 %v428
      %v466 = vunpack.c.h.b16 %v428
      %v467 = vunpack.c.l.b16 %v429
      %v468 = vunpack.c.h.b16 %v429
      %v469 = vunpack.c.l.b16 %v430
      %v470 = vunpack.c.h.b16 %v430
      %v471 = vunpack.c.l.b16 %v431
      %v472 = vunpack.c.h.b16 %v431
      %v473 = vunpack.c.l.b16 %v432
      %v474 = vunpack.c.h.b16 %v432
      %v475 = vunpack.c.l.b16 %v433
      %v476 = vunpack.c.h.b16 %v433
      %v477 = vunpack.c.l.b16 %v434
      %v478 = vunpack.c.h.b16 %v434
      %v479 = vunpack.c.l.b16 %v435
      %v480 = vunpack.c.h.b16 %v435
      %v481 = vunpack.c.l.b16 %v436
      %v482 = vunpack.c.h.b16 %v436
      %v483 = vunpack.c.l.b16 %v437
      %v484 = vunpack.c.h.b16 %v437
      %v485 = vunpack.c.l.b16 %v438
      %v486 = vunpack.c.h.b16 %v438
      %v487 = vpack.c.b16 %v455, %v455
      %v488 = vpack.c.b16 %v456, %v456
      %v489 = vpack.c.b16 %v457, %v457
      %v490 = vpack.c.b16 %v458, %v458
      %v491 = vpack.c.b16 %v459, %v459
      %v492 = vpack.c.b16 %v460, %v460
      %v493 = vpack.c.b16 %v461, %v461
      %v494 = vpack.c.b16 %v462, %v462
      %v495 = vpack.c.b16 %v463, %v463
      %v496 = vpack.c.b16 %v464, %v464
      %v497 = vpack.c.b16 %v465, %v465
      %v498 = vpack.c.b16 %v466, %v466
      %v499 = vpack.c.b16 %v467, %v467
      %v500 = vpack.c.b16 %v468, %v468
      %v501 = vpack.c.b16 %v469, %v469
      %v502 = vpack.c.b16 %v470, %v470
      %v503 = vpack.c.b16 %v471, %v471
      %v504 = vpack.c.b16 %v472, %v472
      %v505 = vpack.c.b16 %v473, %v473
      %v506 = vpack.c.b16 %v474, %v474
      %v507 = vpack.c.b16 %v475, %v475
      %v508 = vpack.c.b16 %v476, %v476
      %v509 = vpack.c.b16 %v477, %v477
      %v510 = vpack.c.b16 %v478, %v478
      %v511 = vpack.c.b16 %v479, %v479
      %v512 = vpack.c.b16 %v480, %v480
      %v513 = vpack.c.b16 %v481, %v481
      %v514 = vpack.c.b16 %v482, %v482
      %v515 = vpack.c.b16 %v483, %v483
      %v516 = vpack.c.b16 %v484, %v484
      %v517 = vpack.c.b16 %v485, %v485
      %v518 = vpack.c.b16 %v486, %v486
      %vm551 = vcmask 27648
      %552 = vst.msk [vmem:[#allocation3] sm:$0xf] %vm551, %v487
      %553 = vst.msk [vmem:[#allocation3 + $0x4] sm:$0xf] %vm551, %v488
      %554 = vst.msk [vmem:[#allocation3 + $0x8] sm:$0xf] %vm551, %v489
      %555 = vst.msk [vmem:[#allocation3 + $0xc] sm:$0xf] %vm551, %v490
      %556 = vst.msk [vmem:[#allocation3 + $0x10] sm:$0xf] %vm551, %v491
      %557 = vst.msk [vmem:[#allocation3 + $0x14] sm:$0xf] %vm551, %v492
      %558 = vst.msk [vmem:[#allocation3 + $0x18] sm:$0xf] %vm551, %v493
      %559 = vst.msk [vmem:[#allocation3 + $0x1c] sm:$0xf] %vm551, %v494
      %560 = vst.msk [vmem:[#allocation3 + $0x20] sm:$0xf] %vm551, %v495
      %561 = vst.msk [vmem:[#allocation3 + $0x24] sm:$0xf] %vm551, %v496
      %562 = vst.msk [vmem:[#allocation3 + $0x28] sm:$0xf] %vm551, %v497
      %563 = vst.msk [vmem:[#allocation3 + $0x2c] sm:$0xf] %vm551, %v498
      %564 = vst.msk [vmem:[#allocation3 + $0x30] sm:$0xf] %vm551, %v499
      %565 = vst.msk [vmem:[#allocation3 + $0x34] sm:$0xf] %vm551, %v500
      %566 = vst.msk [vmem:[#allocation3 + $0x38] sm:$0xf] %vm551, %v501
      %567 = vst.msk [vmem:[#allocation3 + $0x3c] sm:$0xf] %vm551, %v502
      %568 = vst.msk [vmem:[#allocation3 + $0x40] sm:$0xf] %vm551, %v503
      %569 = vst.msk [vmem:[#allocation3 + $0x44] sm:$0xf] %vm551, %v504
      %570 = vst.msk [vmem:[#allocation3 + $0x48] sm:$0xf] %vm551, %v505
      %571 = vst.msk [vmem:[#allocation3 + $0x4c] sm:$0xf] %vm551, %v506
      %572 = vst.msk [vmem:[#allocation3 + $0x50] sm:$0xf] %vm551, %v507
      %573 = vst.msk [vmem:[#allocation3 + $0x54] sm:$0xf] %vm551, %v508
      %574 = vst.msk [vmem:[#allocation3 + $0x58] sm:$0xf] %vm551, %v509
      %575 = vst.msk [vmem:[#allocation3 + $0x5c] sm:$0xf] %vm551, %v510
      %576 = vst.msk [vmem:[#allocation3 + $0x60] sm:$0xf] %vm551, %v511
      %577 = vst.msk [vmem:[#allocation3 + $0x64] sm:$0xf] %vm551, %v512
      %578 = vst.msk [vmem:[#allocation3 + $0x68] sm:$0xf] %vm551, %v513
      %579 = vst.msk [vmem:[#allocation3 + $0x6c] sm:$0xf] %vm551, %v514
      %580 = vst.msk [vmem:[#allocation3 + $0x70] sm:$0xf] %vm551, %v515
      %581 = vst.msk [vmem:[#allocation3 + $0x74] sm:$0xf] %vm551, %v516
      %582 = vst.msk [vmem:[#allocation3 + $0x78] sm:$0xf] %vm551, %v517
      %583 = vst.msk [vmem:[#allocation3 + $0x7c] sm:$0xf] %vm551, %v518
      %v584 = vld [vmem:[#allocation2 + $0x1] sm:$0xff]
      %v585 = vld [vmem:[#allocation2 + $0x9] sm:$0xff]
      %v586 = vld [vmem:[#allocation2 + $0x19] sm:$0xff]
      %v587 = vld [vmem:[#allocation2 + $0x21] sm:$0xff]
      %v588 = vld [vmem:[#allocation2 + $0x31] sm:$0xff]
      %v589 = vld [vmem:[#allocation2 + $0x39] sm:$0xff]
      %v590 = vld [vmem:[#allocation2 + $0x49] sm:$0xff]
      %v591 = vld [vmem:[#allocation2 + $0x51] sm:$0xff]
      %v592 = vld [vmem:[#allocation2 + $0x61] sm:$0xff]
      %v593 = vld [vmem:[#allocation2 + $0x69] sm:$0xff]
      %v594 = vld [vmem:[#allocation2 + $0x79] sm:$0xff]
      %v595 = vld [vmem:[#allocation2 + $0x81] sm:$0xff]
      %v596 = vld [vmem:[#allocation2 + $0x91] sm:$0xff]
      %v597 = vld [vmem:[#allocation2 + $0x99] sm:$0xff]
      %v598 = vld [vmem:[#allocation2 + $0xa9] sm:$0xff]
      %v599 = vld [vmem:[#allocation2 + $0xb1] sm:$0xff]
      %v600 = vld [vmem:[#allocation2 + $0xc1] sm:$0xff]
      %v601 = vld [vmem:[#allocation2 + $0xc9] sm:$0xff]
      %v602 = vld [vmem:[#allocation2 + $0xd9] sm:$0xff]
      %v603 = vld [vmem:[#allocation2 + $0xe1] sm:$0xff]
      %v604 = vld [vmem:[#allocation2 + $0xf1] sm:$0xff]
      %v605 = vld [vmem:[#allocation2 + $0xf9] sm:$0xff]
      %v606 = vld [vmem:[#allocation2 + $0x109] sm:$0xff]
      %v607 = vld [vmem:[#allocation2 + $0x111] sm:$0xff]
      %v608 = vld [vmem:[#allocation2 + $0x121] sm:$0xff]
      %v609 = vld [vmem:[#allocation2 + $0x129] sm:$0xff]
      %v610 = vld [vmem:[#allocation2 + $0x139] sm:$0xff]
      %v611 = vld [vmem:[#allocation2 + $0x141] sm:$0xff]
      %v612 = vld [vmem:[#allocation2 + $0x151] sm:$0xff]
      %v613 = vld [vmem:[#allocation2 + $0x159] sm:$0xff]
      %v614 = vld [vmem:[#allocation2 + $0x169] sm:$0xff]
      %v615 = vld [vmem:[#allocation2 + $0x171] sm:$0xff]
      %v616 = vpack.c.bf16 %v585, %v584
      %v617 = vpack.c.bf16 %v587, %v586
      %v618 = vpack.c.bf16 %v589, %v588
      %v619 = vpack.c.bf16 %v591, %v590
      %v620 = vpack.c.bf16 %v593, %v592
      %v621 = vpack.c.bf16 %v595, %v594
      %v622 = vpack.c.bf16 %v597, %v596
      %v623 = vpack.c.bf16 %v599, %v598
      %v624 = vpack.c.bf16 %v601, %v600
      %v625 = vpack.c.bf16 %v603, %v602
      %v626 = vpack.c.bf16 %v605, %v604
      %v627 = vpack.c.bf16 %v607, %v606
      %v628 = vpack.c.bf16 %v609, %v608
      %v629 = vpack.c.bf16 %v611, %v610
      %v630 = vpack.c.bf16 %v613, %v612
      %v631 = vpack.c.bf16 %v615, %v614
      %v648 = vunpack.c.l.b16 %v616
      %v649 = vunpack.c.h.b16 %v616
      %v650 = vunpack.c.l.b16 %v617
      %v651 = vunpack.c.h.b16 %v617
      %v652 = vunpack.c.l.b16 %v618
      %v653 = vunpack.c.h.b16 %v618
      %v654 = vunpack.c.l.b16 %v619
      %v655 = vunpack.c.h.b16 %v619
      %v656 = vunpack.c.l.b16 %v620
      %v657 = vunpack.c.h.b16 %v620
      %v658 = vunpack.c.l.b16 %v621
      %v659 = vunpack.c.h.b16 %v621
      %v660 = vunpack.c.l.b16 %v622
      %v661 = vunpack.c.h.b16 %v622
      %v662 = vunpack.c.l.b16 %v623
      %v663 = vunpack.c.h.b16 %v623
      %v664 = vunpack.c.l.b16 %v624
      %v665 = vunpack.c.h.b16 %v624
      %v666 = vunpack.c.l.b16 %v625
      %v667 = vunpack.c.h.b16 %v625
      %v668 = vunpack.c.l.b16 %v626
      %v669 = vunpack.c.h.b16 %v626
      %v670 = vunpack.c.l.b16 %v627
      %v671 = vunpack.c.h.b16 %v627
      %v672 = vunpack.c.l.b16 %v628
      %v673 = vunpack.c.h.b16 %v628
      %v674 = vunpack.c.l.b16 %v629
      %v675 = vunpack.c.h.b16 %v629
      %v676 = vunpack.c.l.b16 %v630
      %v677 = vunpack.c.h.b16 %v630
      %v678 = vunpack.c.l.b16 %v631
      %v679 = vunpack.c.h.b16 %v631
      %v680 = vpack.c.b16 %v648, %v648
      %v681 = vpack.c.b16 %v649, %v649
      %v682 = vpack.c.b16 %v650, %v650
      %v683 = vpack.c.b16 %v651, %v651
      %v684 = vpack.c.b16 %v652, %v652
      %v685 = vpack.c.b16 %v653, %v653
      %v686 = vpack.c.b16 %v654, %v654
      %v687 = vpack.c.b16 %v655, %v655
      %v688 = vpack.c.b16 %v656, %v656
      %v689 = vpack.c.b16 %v657, %v657
      %v690 = vpack.c.b16 %v658, %v658
      %v691 = vpack.c.b16 %v659, %v659
      %v692 = vpack.c.b16 %v660, %v660
      %v693 = vpack.c.b16 %v661, %v661
      %v694 = vpack.c.b16 %v662, %v662
      %v695 = vpack.c.b16 %v663, %v663
      %v696 = vpack.c.b16 %v664, %v664
      %v697 = vpack.c.b16 %v665, %v665
      %v698 = vpack.c.b16 %v666, %v666
      %v699 = vpack.c.b16 %v667, %v667
      %v700 = vpack.c.b16 %v668, %v668
      %v701 = vpack.c.b16 %v669, %v669
      %v702 = vpack.c.b16 %v670, %v670
      %v703 = vpack.c.b16 %v671, %v671
      %v704 = vpack.c.b16 %v672, %v672
      %v705 = vpack.c.b16 %v673, %v673
      %v706 = vpack.c.b16 %v674, %v674
      %v707 = vpack.c.b16 %v675, %v675
      %v708 = vpack.c.b16 %v676, %v676
      %v709 = vpack.c.b16 %v677, %v677
      %v710 = vpack.c.b16 %v678, %v678
      %v711 = vpack.c.b16 %v679, %v679
      %712 = vrot.lane.b32.xlu0 %v680, 4
      %v713 = vpop.permute.xlu0 %712
      %714 = vrot.lane.b32.xlu0 %v681, 4
      %v715 = vpop.permute.xlu0 %714
      %716 = vrot.lane.b32.xlu0 %v682, 4
      %v717 = vpop.permute.xlu0 %716
      %718 = vrot.lane.b32.xlu0 %v683, 4
      %v719 = vpop.permute.xlu0 %718
      %720 = vrot.lane.b32.xlu0 %v684, 4
      %v721 = vpop.permute.xlu0 %720
      %722 = vrot.lane.b32.xlu0 %v685, 4
      %v723 = vpop.permute.xlu0 %722
      %724 = vrot.lane.b32.xlu0 %v686, 4
      %v725 = vpop.permute.xlu0 %724
      %726 = vrot.lane.b32.xlu0 %v687, 4
      %v727 = vpop.permute.xlu0 %726
      %728 = vrot.lane.b32.xlu0 %v688, 4
      %v729 = vpop.permute.xlu0 %728
      %730 = vrot.lane.b32.xlu0 %v689, 4
      %v731 = vpop.permute.xlu0 %730
      %732 = vrot.lane.b32.xlu0 %v690, 4
      %v733 = vpop.permute.xlu0 %732
      %734 = vrot.lane.b32.xlu0 %v691, 4
      %v735 = vpop.permute.xlu0 %734
      %736 = vrot.lane.b32.xlu0 %v692, 4
      %v737 = vpop.permute.xlu0 %736
      %738 = vrot.lane.b32.xlu0 %v693, 4
      %v739 = vpop.permute.xlu0 %738
      %740 = vrot.lane.b32.xlu0 %v694, 4
      %v741 = vpop.permute.xlu0 %740
      %742 = vrot.lane.b32.xlu0 %v695, 4
      %v743 = vpop.permute.xlu0 %742
      %744 = vrot.lane.b32.xlu0 %v696, 4
      %v745 = vpop.permute.xlu0 %744
      %746 = vrot.lane.b32.xlu0 %v697, 4
      %v747 = vpop.permute.xlu0 %746
      %748 = vrot.lane.b32.xlu0 %v698, 4
      %v749 = vpop.permute.xlu0 %748
      %750 = vrot.lane.b32.xlu0 %v699, 4
      %v751 = vpop.permute.xlu0 %750
      %752 = vrot.lane.b32.xlu0 %v700, 4
      %v753 = vpop.permute.xlu0 %752
      %754 = vrot.lane.b32.xlu0 %v701, 4
      %v755 = vpop.permute.xlu0 %754
      %756 = vrot.lane.b32.xlu0 %v702, 4
      %v757 = vpop.permute.xlu0 %756
      %758 = vrot.lane.b32.xlu0 %v703, 4
      %v759 = vpop.permute.xlu0 %758
      %760 = vrot.lane.b32.xlu0 %v704, 4
      %v761 = vpop.permute.xlu0 %760
      %762 = vrot.lane.b32.xlu0 %v705, 4
      %v763 = vpop.permute.xlu0 %762
      %764 = vrot.lane.b32.xlu0 %v706, 4
      %v765 = vpop.permute.xlu0 %764
      %766 = vrot.lane.b32.xlu0 %v707, 4
      %v767 = vpop.permute.xlu0 %766
      %768 = vrot.lane.b32.xlu0 %v708, 4
      %v769 = vpop.permute.xlu0 %768
      %770 = vrot.lane.b32.xlu0 %v709, 4
      %v771 = vpop.permute.xlu0 %770
      %772 = vrot.lane.b32.xlu0 %v710, 4
      %v773 = vpop.permute.xlu0 %772
      %774 = vrot.lane.b32.xlu0 %v711, 4
      %v775 = vpop.permute.xlu0 %774
      %vm808 = vcmask 60448
      %809 = vst.msk [vmem:[#allocation3] sm:$0xf] %vm808, %v713
      %810 = vst.msk [vmem:[#allocation3 + $0x4] sm:$0xf] %vm808, %v715
      %811 = vst.msk [vmem:[#allocation3 + $0x8] sm:$0xf] %vm808, %v717
      %812 = vst.msk [vmem:[#allocation3 + $0xc] sm:$0xf] %vm808, %v719
      %813 = vst.msk [vmem:[#allocation3 + $0x10] sm:$0xf] %vm808, %v721
      %814 = vst.msk [vmem:[#allocation3 + $0x14] sm:$0xf] %vm808, %v723
      %815 = vst.msk [vmem:[#allocation3 + $0x18] sm:$0xf] %vm808, %v725
      %816 = vst.msk [vmem:[#allocation3 + $0x1c] sm:$0xf] %vm808, %v727
      %817 = vst.msk [vmem:[#allocation3 + $0x20] sm:$0xf] %vm808, %v729
      %818 = vst.msk [vmem:[#allocation3 + $0x24] sm:$0xf] %vm808, %v731
      %819 = vst.msk [vmem:[#allocation3 + $0x28] sm:$0xf] %vm808, %v733
      %820 = vst.msk [vmem:[#allocation3 + $0x2c] sm:$0xf] %vm808, %v735
      %821 = vst.msk [vmem:[#allocation3 + $0x30] sm:$0xf] %vm808, %v737
      %822 = vst.msk [vmem:[#allocation3 + $0x34] sm:$0xf] %vm808, %v739
      %823 = vst.msk [vmem:[#allocation3 + $0x38] sm:$0xf] %vm808, %v741
      %824 = vst.msk [vmem:[#allocation3 + $0x3c] sm:$0xf] %vm808, %v743
      %825 = vst.msk [vmem:[#allocation3 + $0x40] sm:$0xf] %vm808, %v745
      %826 = vst.msk [vmem:[#allocation3 + $0x44] sm:$0xf] %vm808, %v747
      %827 = vst.msk [vmem:[#allocation3 + $0x48] sm:$0xf] %vm808, %v749
      %828 = vst.msk [vmem:[#allocation3 + $0x4c] sm:$0xf] %vm808, %v751
      %829 = vst.msk [vmem:[#allocation3 + $0x50] sm:$0xf] %vm808, %v753
      %830 = vst.msk [vmem:[#allocation3 + $0x54] sm:$0xf] %vm808, %v755
      %831 = vst.msk [vmem:[#allocation3 + $0x58] sm:$0xf] %vm808, %v757
      %832 = vst.msk [vmem:[#allocation3 + $0x5c] sm:$0xf] %vm808, %v759
      %833 = vst.msk [vmem:[#allocation3 + $0x60] sm:$0xf] %vm808, %v761
      %834 = vst.msk [vmem:[#allocation3 + $0x64] sm:$0xf] %vm808, %v763
      %835 = vst.msk [vmem:[#allocation3 + $0x68] sm:$0xf] %vm808, %v765
      %836 = vst.msk [vmem:[#allocation3 + $0x6c] sm:$0xf] %vm808, %v767
      %837 = vst.msk [vmem:[#allocation3 + $0x70] sm:$0xf] %vm808, %v769
      %838 = vst.msk [vmem:[#allocation3 + $0x74] sm:$0xf] %vm808, %v771
      %839 = vst.msk [vmem:[#allocation3 + $0x78] sm:$0xf] %vm808, %v773
      %840 = vst.msk [vmem:[#allocation3 + $0x7c] sm:$0xf] %vm808, %v775
      %v841 = vld [vmem:[#allocation2 + $0x2] sm:$0xff]
      %v842 = vld [vmem:[#allocation2 + $0xa] sm:$0xff]
      %v843 = vld [vmem:[#allocation2 + $0x1a] sm:$0xff]
      %v844 = vld [vmem:[#allocation2 + $0x22] sm:$0xff]
      %v845 = vld [vmem:[#allocation2 + $0x32] sm:$0xff]
      %v846 = vld [vmem:[#allocation2 + $0x3a] sm:$0xff]
      %v847 = vld [vmem:[#allocation2 + $0x4a] sm:$0xff]
      %v848 = vld [vmem:[#allocation2 + $0x52] sm:$0xff]
      %v849 = vld [vmem:[#allocation2 + $0x62] sm:$0xff]
      %v850 = vld [vmem:[#allocation2 + $0x6a] sm:$0xff]
      %v851 = vld [vmem:[#allocation2 + $0x7a] sm:$0xff]
      %v852 = vld [vmem:[#allocation2 + $0x82] sm:$0xff]
      %v853 = vld [vmem:[#allocation2 + $0x92] sm:$0xff]
      %v854 = vld [vmem:[#allocation2 + $0x9a] sm:$0xff]
      %v855 = vld [vmem:[#allocation2 + $0xaa] sm:$0xff]
      %v856 = vld [vmem:[#allocation2 + $0xb2] sm:$0xff]
      %v857 = vld [vmem:[#allocation2 + $0xc2] sm:$0xff]
      %v858 = vld [vmem:[#allocation2 + $0xca] sm:$0xff]
      %v859 = vld [vmem:[#allocation2 + $0xda] sm:$0xff]
      %v860 = vld [vmem:[#allocation2 + $0xe2] sm:$0xff]
      %v861 = vld [vmem:[#allocation2 + $0xf2] sm:$0xff]
      %v862 = vld [vmem:[#allocation2 + $0xfa] sm:$0xff]
      %v863 = vld [vmem:[#allocation2 + $0x10a] sm:$0xff]
      %v864 = vld [vmem:[#allocation2 + $0x112] sm:$0xff]
      %v865 = vld [vmem:[#allocation2 + $0x122] sm:$0xff]
      %v866 = vld [vmem:[#allocation2 + $0x12a] sm:$0xff]
      %v867 = vld [vmem:[#allocation2 + $0x13a] sm:$0xff]
      %v868 = vld [vmem:[#allocation2 + $0x142] sm:$0xff]
      %v869 = vld [vmem:[#allocation2 + $0x152] sm:$0xff]
      %v870 = vld [vmem:[#allocation2 + $0x15a] sm:$0xff]
      %v871 = vld [vmem:[#allocation2 + $0x16a] sm:$0xff]
      %v872 = vld [vmem:[#allocation2 + $0x172] sm:$0xff]
      %v873 = vpack.c.bf16 %v842, %v841
      %v874 = vpack.c.bf16 %v844, %v843
      %v875 = vpack.c.bf16 %v846, %v845
      %v876 = vpack.c.bf16 %v848, %v847
      %v877 = vpack.c.bf16 %v850, %v849
      %v878 = vpack.c.bf16 %v852, %v851
      %v879 = vpack.c.bf16 %v854, %v853
      %v880 = vpack.c.bf16 %v856, %v855
      %v881 = vpack.c.bf16 %v858, %v857
      %v882 = vpack.c.bf16 %v860, %v859
      %v883 = vpack.c.bf16 %v862, %v861
      %v884 = vpack.c.bf16 %v864, %v863
      %v885 = vpack.c.bf16 %v866, %v865
      %v886 = vpack.c.bf16 %v868, %v867
      %v887 = vpack.c.bf16 %v870, %v869
      %v888 = vpack.c.bf16 %v872, %v871
      %v905 = vunpack.c.l.b16 %v873
      %v906 = vunpack.c.h.b16 %v873
      %v907 = vunpack.c.l.b16 %v874
      %v908 = vunpack.c.h.b16 %v874
      %v909 = vunpack.c.l.b16 %v875
      %v910 = vunpack.c.h.b16 %v875
      %v911 = vunpack.c.l.b16 %v876
      %v912 = vunpack.c.h.b16 %v876
      %v913 = vunpack.c.l.b16 %v877
      %v914 = vunpack.c.h.b16 %v877
      %v915 = vunpack.c.l.b16 %v878
      %v916 = vunpack.c.h.b16 %v878
      %v917 = vunpack.c.l.b16 %v879
      %v918 = vunpack.c.h.b16 %v879
      %v919 = vunpack.c.l.b16 %v880
      %v920 = vunpack.c.h.b16 %v880
      %v921 = vunpack.c.l.b16 %v881
      %v922 = vunpack.c.h.b16 %v881
      %v923 = vunpack.c.l.b16 %v882
      %v924 = vunpack.c.h.b16 %v882
      %v925 = vunpack.c.l.b16 %v883
      %v926 = vunpack.c.h.b16 %v883
      %v927 = vunpack.c.l.b16 %v884
      %v928 = vunpack.c.h.b16 %v884
      %v929 = vunpack.c.l.b16 %v885
      %v930 = vunpack.c.h.b16 %v885
      %v931 = vunpack.c.l.b16 %v886
      %v932 = vunpack.c.h.b16 %v886
      %v933 = vunpack.c.l.b16 %v887
      %v934 = vunpack.c.h.b16 %v887
      %v935 = vunpack.c.l.b16 %v888
      %v936 = vunpack.c.h.b16 %v888
      %v937 = vpack.c.b16 %v905, %v905
      %v938 = vpack.c.b16 %v906, %v906
      %v939 = vpack.c.b16 %v907, %v907
      %v940 = vpack.c.b16 %v908, %v908
      %v941 = vpack.c.b16 %v909, %v909
      %v942 = vpack.c.b16 %v910, %v910
      %v943 = vpack.c.b16 %v911, %v911
      %v944 = vpack.c.b16 %v912, %v912
      %v945 = vpack.c.b16 %v913, %v913
      %v946 = vpack.c.b16 %v914, %v914
      %v947 = vpack.c.b16 %v915, %v915
      %v948 = vpack.c.b16 %v916, %v916
      %v949 = vpack.c.b16 %v917, %v917
      %v950 = vpack.c.b16 %v918, %v918
      %v951 = vpack.c.b16 %v919, %v919
      %v952 = vpack.c.b16 %v920, %v920
      %v953 = vpack.c.b16 %v921, %v921
      %v954 = vpack.c.b16 %v922, %v922
      %v955 = vpack.c.b16 %v923, %v923
      %v956 = vpack.c.b16 %v924, %v924
      %v957 = vpack.c.b16 %v925, %v925
      %v958 = vpack.c.b16 %v926, %v926
      %v959 = vpack.c.b16 %v927, %v927
      %v960 = vpack.c.b16 %v928, %v928
      %v961 = vpack.c.b16 %v929, %v929
      %v962 = vpack.c.b16 %v930, %v930
      %v963 = vpack.c.b16 %v931, %v931
      %v964 = vpack.c.b16 %v932, %v932
      %v965 = vpack.c.b16 %v933, %v933
      %v966 = vpack.c.b16 %v934, %v934
      %v967 = vpack.c.b16 %v935, %v935
      %v968 = vpack.c.b16 %v936, %v936
      %969 = vrot.lane.b32.xlu0 %v937, 8
      %v970 = vpop.permute.xlu0 %969
      %971 = vrot.lane.b32.xlu0 %v938, 8
      %v972 = vpop.permute.xlu0 %971
      %973 = vrot.lane.b32.xlu0 %v939, 8
      %v974 = vpop.permute.xlu0 %973
      %975 = vrot.lane.b32.xlu0 %v940, 8
      %v976 = vpop.permute.xlu0 %975
      %977 = vrot.lane.b32.xlu0 %v941, 8
      %v978 = vpop.permute.xlu0 %977
      %979 = vrot.lane.b32.xlu0 %v942, 8
      %v980 = vpop.permute.xlu0 %979
      %981 = vrot.lane.b32.xlu0 %v943, 8
      %v982 = vpop.permute.xlu0 %981
      %983 = vrot.lane.b32.xlu0 %v944, 8
      %v984 = vpop.permute.xlu0 %983
      %985 = vrot.lane.b32.xlu0 %v945, 8
      %v986 = vpop.permute.xlu0 %985
      %987 = vrot.lane.b32.xlu0 %v946, 8
      %v988 = vpop.permute.xlu0 %987
      %989 = vrot.lane.b32.xlu0 %v947, 8
      %v990 = vpop.permute.xlu0 %989
      %991 = vrot.lane.b32.xlu0 %v948, 8
      %v992 = vpop.permute.xlu0 %991
      %993 = vrot.lane.b32.xlu0 %v949, 8
      %v994 = vpop.permute.xlu0 %993
      %995 = vrot.lane.b32.xlu0 %v950, 8
      %v996 = vpop.permute.xlu0 %995
      %997 = vrot.lane.b32.xlu0 %v951, 8
      %v998 = vpop.permute.xlu0 %997
      %999 = vrot.lane.b32.xlu0 %v952, 8
      %v1000 = vpop.permute.xlu0 %999
      %1001 = vrot.lane.b32.xlu0 %v953, 8
      %v1002 = vpop.permute.xlu0 %1001
      %1003 = vrot.lane.b32.xlu0 %v954, 8
      %v1004 = vpop.permute.xlu0 %1003
      %1005 = vrot.lane.b32.xlu0 %v955, 8
      %v1006 = vpop.permute.xlu0 %1005
      %1007 = vrot.lane.b32.xlu0 %v956, 8
      %v1008 = vpop.permute.xlu0 %1007
      %1009 = vrot.lane.b32.xlu0 %v957, 8
      %v1010 = vpop.permute.xlu0 %1009
      %1011 = vrot.lane.b32.xlu0 %v958, 8
      %v1012 = vpop.permute.xlu0 %1011
      %1013 = vrot.lane.b32.xlu0 %v959, 8
      %v1014 = vpop.permute.xlu0 %1013
      %1015 = vrot.lane.b32.xlu0 %v960, 8
      %v1016 = vpop.permute.xlu0 %1015
      %1017 = vrot.lane.b32.xlu0 %v961, 8
      %v1018 = vpop.permute.xlu0 %1017
      %1019 = vrot.lane.b32.xlu0 %v962, 8
      %v1020 = vpop.permute.xlu0 %1019
      %1021 = vrot.lane.b32.xlu0 %v963, 8
      %v1022 = vpop.permute.xlu0 %1021
      %1023 = vrot.lane.b32.xlu0 %v964, 8
      %v1024 = vpop.permute.xlu0 %1023
      %1025 = vrot.lane.b32.xlu0 %v965, 8
      %v1026 = vpop.permute.xlu0 %1025
      %1027 = vrot.lane.b32.xlu0 %v966, 8
      %v1028 = vpop.permute.xlu0 %1027
      %1029 = vrot.lane.b32.xlu0 %v967, 8
      %v1030 = vpop.permute.xlu0 %1029
      %1031 = vrot.lane.b32.xlu0 %v968, 8
      %v1032 = vpop.permute.xlu0 %1031
      %vm1065 = vcmask 93248
      %1066 = vst.msk [vmem:[#allocation3] sm:$0xf] %vm1065, %v970
      %1067 = vst.msk [vmem:[#allocation3 + $0x4] sm:$0xf] %vm1065, %v972
      %1068 = vst.msk [vmem:[#allocation3 + $0x8] sm:$0xf] %vm1065, %v974
      %1069 = vst.msk [vmem:[#allocation3 + $0xc] sm:$0xf] %vm1065, %v976
      %1070 = vst.msk [vmem:[#allocation3 + $0x10] sm:$0xf] %vm1065, %v978
      %1071 = vst.msk [vmem:[#allocation3 + $0x14] sm:$0xf] %vm1065, %v980
      %1072 = vst.msk [vmem:[#allocation3 + $0x18] sm:$0xf] %vm1065, %v982
      %1073 = vst.msk [vmem:[#allocation3 + $0x1c] sm:$0xf] %vm1065, %v984
      %1074 = vst.msk [vmem:[#allocation3 + $0x20] sm:$0xf] %vm1065, %v986
      %1075 = vst.msk [vmem:[#allocation3 + $0x24] sm:$0xf] %vm1065, %v988
      %1076 = vst.msk [vmem:[#allocation3 + $0x28] sm:$0xf] %vm1065, %v990
      %1077 = vst.msk [vmem:[#allocation3 + $0x2c] sm:$0xf] %vm1065, %v992
      %1078 = vst.msk [vmem:[#allocation3 + $0x30] sm:$0xf] %vm1065, %v994
      %1079 = vst.msk [vmem:[#allocation3 + $0x34] sm:$0xf] %vm1065, %v996
      %1080 = vst.msk [vmem:[#allocation3 + $0x38] sm:$0xf] %vm1065, %v998
      %1081 = vst.msk [vmem:[#allocation3 + $0x3c] sm:$0xf] %vm1065, %v1000
      %1082 = vst.msk [vmem:[#allocation3 + $0x40] sm:$0xf] %vm1065, %v1002
      %1083 = vst.msk [vmem:[#allocation3 + $0x44] sm:$0xf] %vm1065, %v1004
      %1084 = vst.msk [vmem:[#allocation3 + $0x48] sm:$0xf] %vm1065, %v1006
      %1085 = vst.msk [vmem:[#allocation3 + $0x4c] sm:$0xf] %vm1065, %v1008
      %1086 = vst.msk [vmem:[#allocation3 + $0x50] sm:$0xf] %vm1065, %v1010
      %1087 = vst.msk [vmem:[#allocation3 + $0x54] sm:$0xf] %vm1065, %v1012
      %1088 = vst.msk [vmem:[#allocation3 + $0x58] sm:$0xf] %vm1065, %v1014
      %1089 = vst.msk [vmem:[#allocation3 + $0x5c] sm:$0xf] %vm1065, %v1016
      %1090 = vst.msk [vmem:[#allocation3 + $0x60] sm:$0xf] %vm1065, %v1018
      %1091 = vst.msk [vmem:[#allocation3 + $0x64] sm:$0xf] %vm1065, %v1020
      %1092 = vst.msk [vmem:[#allocation3 + $0x68] sm:$0xf] %vm1065, %v1022
      %1093 = vst.msk [vmem:[#allocation3 + $0x6c] sm:$0xf] %vm1065, %v1024
      %1094 = vst.msk [vmem:[#allocation3 + $0x70] sm:$0xf] %vm1065, %v1026
      %1095 = vst.msk [vmem:[#allocation3 + $0x74] sm:$0xf] %vm1065, %v1028
      %1096 = vst.msk [vmem:[#allocation3 + $0x78] sm:$0xf] %vm1065, %v1030
      %1097 = vst.msk [vmem:[#allocation3 + $0x7c] sm:$0xf] %vm1065, %v1032
      %v1098 = vld [vmem:[%s358] sm:$0xff]
      %v1099 = vld [vmem:[%s358 + $0x8] sm:$0xff]
      %v1100 = vld [vmem:[%s358 + $0x18] sm:$0xff]
      %v1101 = vld [vmem:[%s358 + $0x20] sm:$0xff]
      %v1102 = vld [vmem:[%s358 + $0x30] sm:$0xff]
      %v1103 = vld [vmem:[%s358 + $0x38] sm:$0xff]
      %v1104 = vld [vmem:[%s358 + $0x48] sm:$0xff]
      %v1105 = vld [vmem:[%s358 + $0x50] sm:$0xff]
      %v1106 = vld [vmem:[%s358 + $0x60] sm:$0xff]
      %v1107 = vld [vmem:[%s358 + $0x68] sm:$0xff]
      %v1108 = vld [vmem:[%s358 + $0x78] sm:$0xff]
      %v1109 = vld [vmem:[%s358 + $0x80] sm:$0xff]
      %v1110 = vld [vmem:[%s358 + $0x90] sm:$0xff]
      %v1111 = vld [vmem:[%s358 + $0x98] sm:$0xff]
      %v1112 = vld [vmem:[%s358 + $0xa8] sm:$0xff]
      %v1113 = vld [vmem:[%s358 + $0xb0] sm:$0xff]
      %v1114 = vld [vmem:[%s358 + $0xc0] sm:$0xff]
      %v1115 = vld [vmem:[%s358 + $0xc8] sm:$0xff]
      %v1116 = vld [vmem:[%s358 + $0xd8] sm:$0xff]
      %v1117 = vld [vmem:[%s358 + $0xe0] sm:$0xff]
      %v1118 = vld [vmem:[%s358 + $0xf0] sm:$0xff]
      %v1119 = vld [vmem:[%s358 + $0xf8] sm:$0xff]
      %v1120 = vld [vmem:[%s358 + $0x108] sm:$0xff]
      %v1121 = vld [vmem:[%s358 + $0x110] sm:$0xff]
      %v1122 = vld [vmem:[%s358 + $0x120] sm:$0xff]
      %v1123 = vld [vmem:[%s358 + $0x128] sm:$0xff]
      %v1124 = vld [vmem:[%s358 + $0x138] sm:$0xff]
      %v1125 = vld [vmem:[%s358 + $0x140] sm:$0xff]
      %v1126 = vld [vmem:[%s358 + $0x150] sm:$0xff]
      %v1127 = vld [vmem:[%s358 + $0x158] sm:$0xff]
      %v1128 = vld [vmem:[%s358 + $0x168] sm:$0xff]
      %v1129 = vld [vmem:[%s358 + $0x170] sm:$0xff]
      %v1130 = vpack.c.bf16 %v1099, %v1098
      %v1131 = vpack.c.bf16 %v1101, %v1100
      %v1132 = vpack.c.bf16 %v1103, %v1102
      %v1133 = vpack.c.bf16 %v1105, %v1104
      %v1134 = vpack.c.bf16 %v1107, %v1106
      %v1135 = vpack.c.bf16 %v1109, %v1108
      %v1136 = vpack.c.bf16 %v1111, %v1110
      %v1137 = vpack.c.bf16 %v1113, %v1112
      %v1138 = vpack.c.bf16 %v1115, %v1114
      %v1139 = vpack.c.bf16 %v1117, %v1116
      %v1140 = vpack.c.bf16 %v1119, %v1118
      %v1141 = vpack.c.bf16 %v1121, %v1120
      %v1142 = vpack.c.bf16 %v1123, %v1122
      %v1143 = vpack.c.bf16 %v1125, %v1124
      %v1144 = vpack.c.bf16 %v1127, %v1126
      %v1145 = vpack.c.bf16 %v1129, %v1128
      %v1162 = vunpack.c.l.b16 %v1130
      %v1163 = vunpack.c.h.b16 %v1130
      %v1164 = vunpack.c.l.b16 %v1131
      %v1165 = vunpack.c.h.b16 %v1131
      %v1166 = vunpack.c.l.b16 %v1132
      %v1167 = vunpack.c.h.b16 %v1132
      %v1168 = vunpack.c.l.b16 %v1133
      %v1169 = vunpack.c.h.b16 %v1133
      %v1170 = vunpack.c.l.b16 %v1134
      %v1171 = vunpack.c.h.b16 %v1134
      %v1172 = vunpack.c.l.b16 %v1135
      %v1173 = vunpack.c.h.b16 %v1135
      %v1174 = vunpack.c.l.b16 %v1136
      %v1175 = vunpack.c.h.b16 %v1136
      %v1176 = vunpack.c.l.b16 %v1137
      %v1177 = vunpack.c.h.b16 %v1137
      %v1178 = vunpack.c.l.b16 %v1138
      %v1179 = vunpack.c.h.b16 %v1138
      %v1180 = vunpack.c.l.b16 %v1139
      %v1181 = vunpack.c.h.b16 %v1139
      %v1182 = vunpack.c.l.b16 %v1140
      %v1183 = vunpack.c.h.b16 %v1140
      %v1184 = vunpack.c.l.b16 %v1141
      %v1185 = vunpack.c.h.b16 %v1141
      %v1186 = vunpack.c.l.b16 %v1142
      %v1187 = vunpack.c.h.b16 %v1142
      %v1188 = vunpack.c.l.b16 %v1143
      %v1189 = vunpack.c.h.b16 %v1143
      %v1190 = vunpack.c.l.b16 %v1144
      %v1191 = vunpack.c.h.b16 %v1144
      %v1192 = vunpack.c.l.b16 %v1145
      %v1193 = vunpack.c.h.b16 %v1145
      %v1194 = vpack.c.b16 %v1162, %v1162
      %v1195 = vpack.c.b16 %v1163, %v1163
      %v1196 = vpack.c.b16 %v1164, %v1164
      %v1197 = vpack.c.b16 %v1165, %v1165
      %v1198 = vpack.c.b16 %v1166, %v1166
      %v1199 = vpack.c.b16 %v1167, %v1167
      %v1200 = vpack.c.b16 %v1168, %v1168
      %v1201 = vpack.c.b16 %v1169, %v1169
      %v1202 = vpack.c.b16 %v1170, %v1170
      %v1203 = vpack.c.b16 %v1171, %v1171
      %v1204 = vpack.c.b16 %v1172, %v1172
      %v1205 = vpack.c.b16 %v1173, %v1173
      %v1206 = vpack.c.b16 %v1174, %v1174
      %v1207 = vpack.c.b16 %v1175, %v1175
      %v1208 = vpack.c.b16 %v1176, %v1176
      %v1209 = vpack.c.b16 %v1177, %v1177
      %v1210 = vpack.c.b16 %v1178, %v1178
      %v1211 = vpack.c.b16 %v1179, %v1179
      %v1212 = vpack.c.b16 %v1180, %v1180
      %v1213 = vpack.c.b16 %v1181, %v1181
      %v1214 = vpack.c.b16 %v1182, %v1182
      %v1215 = vpack.c.b16 %v1183, %v1183
      %v1216 = vpack.c.b16 %v1184, %v1184
      %v1217 = vpack.c.b16 %v1185, %v1185
      %v1218 = vpack.c.b16 %v1186, %v1186
      %v1219 = vpack.c.b16 %v1187, %v1187
      %v1220 = vpack.c.b16 %v1188, %v1188
      %v1221 = vpack.c.b16 %v1189, %v1189
      %v1222 = vpack.c.b16 %v1190, %v1190
      %v1223 = vpack.c.b16 %v1191, %v1191
      %v1224 = vpack.c.b16 %v1192, %v1192
      %v1225 = vpack.c.b16 %v1193, %v1193
      %1226 = vrot.lane.b32.xlu0 %v1194, 12
      %v1227 = vpop.permute.xlu0 %1226
      %1228 = vrot.lane.b32.xlu0 %v1195, 12
      %v1229 = vpop.permute.xlu0 %1228
      %1230 = vrot.lane.b32.xlu0 %v1196, 12
      %v1231 = vpop.permute.xlu0 %1230
      %1232 = vrot.lane.b32.xlu0 %v1197, 12
      %v1233 = vpop.permute.xlu0 %1232
      %1234 = vrot.lane.b32.xlu0 %v1198, 12
      %v1235 = vpop.permute.xlu0 %1234
      %1236 = vrot.lane.b32.xlu0 %v1199, 12
      %v1237 = vpop.permute.xlu0 %1236
      %1238 = vrot.lane.b32.xlu0 %v1200, 12
      %v1239 = vpop.permute.xlu0 %1238
      %1240 = vrot.lane.b32.xlu0 %v1201, 12
      %v1241 = vpop.permute.xlu0 %1240
      %1242 = vrot.lane.b32.xlu0 %v1202, 12
      %v1243 = vpop.permute.xlu0 %1242
      %1244 = vrot.lane.b32.xlu0 %v1203, 12
      %v1245 = vpop.permute.xlu0 %1244
      %1246 = vrot.lane.b32.xlu0 %v1204, 12
      %v1247 = vpop.permute.xlu0 %1246
      %1248 = vrot.lane.b32.xlu0 %v1205, 12
      %v1249 = vpop.permute.xlu0 %1248
      %1250 = vrot.lane.b32.xlu0 %v1206, 12
      %v1251 = vpop.permute.xlu0 %1250
      %1252 = vrot.lane.b32.xlu0 %v1207, 12
      %v1253 = vpop.permute.xlu0 %1252
      %1254 = vrot.lane.b32.xlu0 %v1208, 12
      %v1255 = vpop.permute.xlu0 %1254
      %1256 = vrot.lane.b32.xlu0 %v1209, 12
      %v1257 = vpop.permute.xlu0 %1256
      %1258 = vrot.lane.b32.xlu0 %v1210, 12
      %v1259 = vpop.permute.xlu0 %1258
      %1260 = vrot.lane.b32.xlu0 %v1211, 12
      %v1261 = vpop.permute.xlu0 %1260
      %1262 = vrot.lane.b32.xlu0 %v1212, 12
      %v1263 = vpop.permute.xlu0 %1262
      %1264 = vrot.lane.b32.xlu0 %v1213, 12
      %v1265 = vpop.permute.xlu0 %1264
      %1266 = vrot.lane.b32.xlu0 %v1214, 12
      %v1267 = vpop.permute.xlu0 %1266
      %1268 = vrot.lane.b32.xlu0 %v1215, 12
      %v1269 = vpop.permute.xlu0 %1268
      %1270 = vrot.lane.b32.xlu0 %v1216, 12
      %v1271 = vpop.permute.xlu0 %1270
      %1272 = vrot.lane.b32.xlu0 %v1217, 12
      %v1273 = vpop.permute.xlu0 %1272
      %1274 = vrot.lane.b32.xlu0 %v1218, 12
      %v1275 = vpop.permute.xlu0 %1274
      %1276 = vrot.lane.b32.xlu0 %v1219, 12
      %v1277 = vpop.permute.xlu0 %1276
      %1278 = vrot.lane.b32.xlu0 %v1220, 12
      %v1279 = vpop.permute.xlu0 %1278
      %1280 = vrot.lane.b32.xlu0 %v1221, 12
      %v1281 = vpop.permute.xlu0 %1280
      %1282 = vrot.lane.b32.xlu0 %v1222, 12
      %v1283 = vpop.permute.xlu0 %1282
      %1284 = vrot.lane.b32.xlu0 %v1223, 12
      %v1285 = vpop.permute.xlu0 %1284
      %1286 = vrot.lane.b32.xlu0 %v1224, 12
      %v1287 = vpop.permute.xlu0 %1286
      %1288 = vrot.lane.b32.xlu0 %v1225, 12
      %v1289 = vpop.permute.xlu0 %1288
      %vm1322 = vcmask 126048
      %1323 = vst.msk [vmem:[#allocation3] sm:$0xf] %vm1322, %v1227
      %1324 = vst.msk [vmem:[#allocation3 + $0x4] sm:$0xf] %vm1322, %v1229
      %1325 = vst.msk [vmem:[#allocation3 + $0x8] sm:$0xf] %vm1322, %v1231
      %1326 = vst.msk [vmem:[#allocation3 + $0xc] sm:$0xf] %vm1322, %v1233
      %1327 = vst.msk [vmem:[#allocation3 + $0x10] sm:$0xf] %vm1322, %v1235
      %1328 = vst.msk [vmem:[#allocation3 + $0x14] sm:$0xf] %vm1322, %v1237
      %1329 = vst.msk [vmem:[#allocation3 + $0x18] sm:$0xf] %vm1322, %v1239
      %1330 = vst.msk [vmem:[#allocation3 + $0x1c] sm:$0xf] %vm1322, %v1241
      %1331 = vst.msk [vmem:[#allocation3 + $0x20] sm:$0xf] %vm1322, %v1243
      %1332 = vst.msk [vmem:[#allocation3 + $0x24] sm:$0xf] %vm1322, %v1245
      %1333 = vst.msk [vmem:[#allocation3 + $0x28] sm:$0xf] %vm1322, %v1247
      %1334 = vst.msk [vmem:[#allocation3 + $0x2c] sm:$0xf] %vm1322, %v1249
      %1335 = vst.msk [vmem:[#allocation3 + $0x30] sm:$0xf] %vm1322, %v1251
      %1336 = vst.msk [vmem:[#allocation3 + $0x34] sm:$0xf] %vm1322, %v1253
      %1337 = vst.msk [vmem:[#allocation3 + $0x38] sm:$0xf] %vm1322, %v1255
      %1338 = vst.msk [vmem:[#allocation3 + $0x3c] sm:$0xf] %vm1322, %v1257
      %1339 = vst.msk [vmem:[#allocation3 + $0x40] sm:$0xf] %vm1322, %v1259
      %1340 = vst.msk [vmem:[#allocation3 + $0x44] sm:$0xf] %vm1322, %v1261
      %1341 = vst.msk [vmem:[#allocation3 + $0x48] sm:$0xf] %vm1322, %v1263
      %1342 = vst.msk [vmem:[#allocation3 + $0x4c] sm:$0xf] %vm1322, %v1265
      %1343 = vst.msk [vmem:[#allocation3 + $0x50] sm:$0xf] %vm1322, %v1267
      %1344 = vst.msk [vmem:[#allocation3 + $0x54] sm:$0xf] %vm1322, %v1269
      %1345 = vst.msk [vmem:[#allocation3 + $0x58] sm:$0xf] %vm1322, %v1271
      %1346 = vst.msk [vmem:[#allocation3 + $0x5c] sm:$0xf] %vm1322, %v1273
      %1347 = vst.msk [vmem:[#allocation3 + $0x60] sm:$0xf] %vm1322, %v1275
      %1348 = vst.msk [vmem:[#allocation3 + $0x64] sm:$0xf] %vm1322, %v1277
      %1349 = vst.msk [vmem:[#allocation3 + $0x68] sm:$0xf] %vm1322, %v1279
      %1350 = vst.msk [vmem:[#allocation3 + $0x6c] sm:$0xf] %vm1322, %v1281
      %1351 = vst.msk [vmem:[#allocation3 + $0x70] sm:$0xf] %vm1322, %v1283
      %1352 = vst.msk [vmem:[#allocation3 + $0x74] sm:$0xf] %vm1322, %v1285
      %1353 = vst.msk [vmem:[#allocation3 + $0x78] sm:$0xf] %vm1322, %v1287
      %1354 = vst.msk [vmem:[#allocation3 + $0x7c] sm:$0xf] %vm1322, %v1289
      %v1355 = vld [vmem:[%s358 + $0x1] sm:$0xff]
      %v1356 = vld [vmem:[%s358 + $0x9] sm:$0xff]
      %v1357 = vld [vmem:[%s358 + $0x19] sm:$0xff]
      %v1358 = vld [vmem:[%s358 + $0x21] sm:$0xff]
      %v1359 = vld [vmem:[%s358 + $0x31] sm:$0xff]
      %v1360 = vld [vmem:[%s358 + $0x39] sm:$0xff]
      %v1361 = vld [vmem:[%s358 + $0x49] sm:$0xff]
      %v1362 = vld [vmem:[%s358 + $0x51] sm:$0xff]
      %v1363 = vld [vmem:[%s358 + $0x61] sm:$0xff]
      %v1364 = vld [vmem:[%s358 + $0x69] sm:$0xff]
      %v1365 = vld [vmem:[%s358 + $0x79] sm:$0xff]
      %v1366 = vld [vmem:[%s358 + $0x81] sm:$0xff]
      %v1367 = vld [vmem:[%s358 + $0x91] sm:$0xff]
      %v1368 = vld [vmem:[%s358 + $0x99] sm:$0xff]
      %v1369 = vld [vmem:[%s358 + $0xa9] sm:$0xff]
      %v1370 = vld [vmem:[%s358 + $0xb1] sm:$0xff]
      %v1371 = vld [vmem:[%s358 + $0xc1] sm:$0xff]
      %v1372 = vld [vmem:[%s358 + $0xc9] sm:$0xff]
      %v1373 = vld [vmem:[%s358 + $0xd9] sm:$0xff]
      %v1374 = vld [vmem:[%s358 + $0xe1] sm:$0xff]
      %v1375 = vld [vmem:[%s358 + $0xf1] sm:$0xff]
      %v1376 = vld [vmem:[%s358 + $0xf9] sm:$0xff]
      %v1377 = vld [vmem:[%s358 + $0x109] sm:$0xff]
      %v1378 = vld [vmem:[%s358 + $0x111] sm:$0xff]
      %v1379 = vld [vmem:[%s358 + $0x121] sm:$0xff]
      %v1380 = vld [vmem:[%s358 + $0x129] sm:$0xff]
      %v1381 = vld [vmem:[%s358 + $0x139] sm:$0xff]
      %v1382 = vld [vmem:[%s358 + $0x141] sm:$0xff]
      %v1383 = vld [vmem:[%s358 + $0x151] sm:$0xff]
      %v1384 = vld [vmem:[%s358 + $0x159] sm:$0xff]
      %v1385 = vld [vmem:[%s358 + $0x169] sm:$0xff]
      %v1386 = vld [vmem:[%s358 + $0x171] sm:$0xff]
      %v1387 = vpack.c.bf16 %v1356, %v1355
      %v1388 = vpack.c.bf16 %v1358, %v1357
      %v1389 = vpack.c.bf16 %v1360, %v1359
      %v1390 = vpack.c.bf16 %v1362, %v1361
      %v1391 = vpack.c.bf16 %v1364, %v1363
      %v1392 = vpack.c.bf16 %v1366, %v1365
      %v1393 = vpack.c.bf16 %v1368, %v1367
      %v1394 = vpack.c.bf16 %v1370, %v1369
      %v1395 = vpack.c.bf16 %v1372, %v1371
      %v1396 = vpack.c.bf16 %v1374, %v1373
      %v1397 = vpack.c.bf16 %v1376, %v1375
      %v1398 = vpack.c.bf16 %v1378, %v1377
      %v1399 = vpack.c.bf16 %v1380, %v1379
      %v1400 = vpack.c.bf16 %v1382, %v1381
      %v1401 = vpack.c.bf16 %v1384, %v1383
      %v1402 = vpack.c.bf16 %v1386, %v1385
      %v1419 = vunpack.c.l.b16 %v1387
      %v1420 = vunpack.c.h.b16 %v1387
      %v1421 = vunpack.c.l.b16 %v1388
      %v1422 = vunpack.c.h.b16 %v1388
      %v1423 = vunpack.c.l.b16 %v1389
      %v1424 = vunpack.c.h.b16 %v1389
      %v1425 = vunpack.c.l.b16 %v1390
      %v1426 = vunpack.c.h.b16 %v1390
      %v1427 = vunpack.c.l.b16 %v1391
      %v1428 = vunpack.c.h.b16 %v1391
      %v1429 = vunpack.c.l.b16 %v1392
      %v1430 = vunpack.c.h.b16 %v1392
      %v1431 = vunpack.c.l.b16 %v1393
      %v1432 = vunpack.c.h.b16 %v1393
      %v1433 = vunpack.c.l.b16 %v1394
      %v1434 = vunpack.c.h.b16 %v1394
      %v1435 = vunpack.c.l.b16 %v1395
      %v1436 = vunpack.c.h.b16 %v1395
      %v1437 = vunpack.c.l.b16 %v1396
      %v1438 = vunpack.c.h.b16 %v1396
      %v1439 = vunpack.c.l.b16 %v1397
      %v1440 = vunpack.c.h.b16 %v1397
      %v1441 = vunpack.c.l.b16 %v1398
      %v1442 = vunpack.c.h.b16 %v1398
      %v1443 = vunpack.c.l.b16 %v1399
      %v1444 = vunpack.c.h.b16 %v1399
      %v1445 = vunpack.c.l.b16 %v1400
      %v1446 = vunpack.c.h.b16 %v1400
      %v1447 = vunpack.c.l.b16 %v1401
      %v1448 = vunpack.c.h.b16 %v1401
      %v1449 = vunpack.c.l.b16 %v1402
      %v1450 = vunpack.c.h.b16 %v1402
      %v1451 = vpack.c.b16 %v1419, %v1419
      %v1452 = vpack.c.b16 %v1420, %v1420
      %v1453 = vpack.c.b16 %v1421, %v1421
      %v1454 = vpack.c.b16 %v1422, %v1422
      %v1455 = vpack.c.b16 %v1423, %v1423
      %v1456 = vpack.c.b16 %v1424, %v1424
      %v1457 = vpack.c.b16 %v1425, %v1425
      %v1458 = vpack.c.b16 %v1426, %v1426
      %v1459 = vpack.c.b16 %v1427, %v1427
      %v1460 = vpack.c.b16 %v1428, %v1428
      %v1461 = vpack.c.b16 %v1429, %v1429
      %v1462 = vpack.c.b16 %v1430, %v1430
      %v1463 = vpack.c.b16 %v1431, %v1431
      %v1464 = vpack.c.b16 %v1432, %v1432
      %v1465 = vpack.c.b16 %v1433, %v1433
      %v1466 = vpack.c.b16 %v1434, %v1434
      %v1467 = vpack.c.b16 %v1435, %v1435
      %v1468 = vpack.c.b16 %v1436, %v1436
      %v1469 = vpack.c.b16 %v1437, %v1437
      %v1470 = vpack.c.b16 %v1438, %v1438
      %v1471 = vpack.c.b16 %v1439, %v1439
      %v1472 = vpack.c.b16 %v1440, %v1440
      %v1473 = vpack.c.b16 %v1441, %v1441
      %v1474 = vpack.c.b16 %v1442, %v1442
      %v1475 = vpack.c.b16 %v1443, %v1443
      %v1476 = vpack.c.b16 %v1444, %v1444
      %v1477 = vpack.c.b16 %v1445, %v1445
      %v1478 = vpack.c.b16 %v1446, %v1446
      %v1479 = vpack.c.b16 %v1447, %v1447
      %v1480 = vpack.c.b16 %v1448, %v1448
      %v1481 = vpack.c.b16 %v1449, %v1449
      %v1482 = vpack.c.b16 %v1450, %v1450
      %1483 = vrot.lane.b32.xlu0 %v1451, 16
      %v1484 = vpop.permute.xlu0 %1483
      %1485 = vrot.lane.b32.xlu0 %v1452, 16
      %v1486 = vpop.permute.xlu0 %1485
      %1487 = vrot.lane.b32.xlu0 %v1453, 16
      %v1488 = vpop.permute.xlu0 %1487
      %1489 = vrot.lane.b32.xlu0 %v1454, 16
      %v1490 = vpop.permute.xlu0 %1489
      %1491 = vrot.lane.b32.xlu0 %v1455, 16
      %v1492 = vpop.permute.xlu0 %1491
      %1493 = vrot.lane.b32.xlu0 %v1456, 16
      %v1494 = vpop.permute.xlu0 %1493
      %1495 = vrot.lane.b32.xlu0 %v1457, 16
      %v1496 = vpop.permute.xlu0 %1495
      %1497 = vrot.lane.b32.xlu0 %v1458, 16
      %v1498 = vpop.permute.xlu0 %1497
      %1499 = vrot.lane.b32.xlu0 %v1459, 16
      %v1500 = vpop.permute.xlu0 %1499
      %1501 = vrot.lane.b32.xlu0 %v1460, 16
      %v1502 = vpop.permute.xlu0 %1501
      %1503 = vrot.lane.b32.xlu0 %v1461, 16
      %v1504 = vpop.permute.xlu0 %1503
      %1505 = vrot.lane.b32.xlu0 %v1462, 16
      %v1506 = vpop.permute.xlu0 %1505
      %1507 = vrot.lane.b32.xlu0 %v1463, 16
      %v1508 = vpop.permute.xlu0 %1507
      %1509 = vrot.lane.b32.xlu0 %v1464, 16
      %v1510 = vpop.permute.xlu0 %1509
      %1511 = vrot.lane.b32.xlu0 %v1465, 16
      %v1512 = vpop.permute.xlu0 %1511
      %1513 = vrot.lane.b32.xlu0 %v1466, 16
      %v1514 = vpop.permute.xlu0 %1513
      %1515 = vrot.lane.b32.xlu0 %v1467, 16
      %v1516 = vpop.permute.xlu0 %1515
      %1517 = vrot.lane.b32.xlu0 %v1468, 16
      %v1518 = vpop.permute.xlu0 %1517
      %1519 = vrot.lane.b32.xlu0 %v1469, 16
      %v1520 = vpop.permute.xlu0 %1519
      %1521 = vrot.lane.b32.xlu0 %v1470, 16
      %v1522 = vpop.permute.xlu0 %1521
      %1523 = vrot.lane.b32.xlu0 %v1471, 16
      %v1524 = vpop.permute.xlu0 %1523
      %1525 = vrot.lane.b32.xlu0 %v1472, 16
      %v1526 = vpop.permute.xlu0 %1525
      %1527 = vrot.lane.b32.xlu0 %v1473, 16
      %v1528 = vpop.permute.xlu0 %1527
      %1529 = vrot.lane.b32.xlu0 %v1474, 16
      %v1530 = vpop.permute.xlu0 %1529
      %1531 = vrot.lane.b32.xlu0 %v1475, 16
      %v1532 = vpop.permute.xlu0 %1531
      %1533 = vrot.lane.b32.xlu0 %v1476, 16
      %v1534 = vpop.permute.xlu0 %1533
      %1535 = vrot.lane.b32.xlu0 %v1477, 16
      %v1536 = vpop.permute.xlu0 %1535
      %1537 = vrot.lane.b32.xlu0 %v1478, 16
      %v1538 = vpop.permute.xlu0 %1537
      %1539 = vrot.lane.b32.xlu0 %v1479, 16
      %v1540 = vpop.permute.xlu0 %1539
      %1541 = vrot.lane.b32.xlu0 %v1480, 16
      %v1542 = vpop.permute.xlu0 %1541
      %1543 = vrot.lane.b32.xlu0 %v1481, 16
      %v1544 = vpop.permute.xlu0 %1543
      %1545 = vrot.lane.b32.xlu0 %v1482, 16
      %v1546 = vpop.permute.xlu0 %1545
      %vm1579 = vcmask 158848
      %1580 = vst.msk [vmem:[#allocation3] sm:$0xf] %vm1579, %v1484
      %1581 = vst.msk [vmem:[#allocation3 + $0x4] sm:$0xf] %vm1579, %v1486
      %1582 = vst.msk [vmem:[#allocation3 + $0x8] sm:$0xf] %vm1579, %v1488
      %1583 = vst.msk [vmem:[#allocation3 + $0xc] sm:$0xf] %vm1579, %v1490
      %1584 = vst.msk [vmem:[#allocation3 + $0x10] sm:$0xf] %vm1579, %v1492
      %1585 = vst.msk [vmem:[#allocation3 + $0x14] sm:$0xf] %vm1579, %v1494
      %1586 = vst.msk [vmem:[#allocation3 + $0x18] sm:$0xf] %vm1579, %v1496
      %1587 = vst.msk [vmem:[#allocation3 + $0x1c] sm:$0xf] %vm1579, %v1498
      %1588 = vst.msk [vmem:[#allocation3 + $0x20] sm:$0xf] %vm1579, %v1500
      %1589 = vst.msk [vmem:[#allocation3 + $0x24] sm:$0xf] %vm1579, %v1502
      %1590 = vst.msk [vmem:[#allocation3 + $0x28] sm:$0xf] %vm1579, %v1504
      %1591 = vst.msk [vmem:[#allocation3 + $0x2c] sm:$0xf] %vm1579, %v1506
      %1592 = vst.msk [vmem:[#allocation3 + $0x30] sm:$0xf] %vm1579, %v1508
      %1593 = vst.msk [vmem:[#allocation3 + $0x34] sm:$0xf] %vm1579, %v1510
      %1594 = vst.msk [vmem:[#allocation3 + $0x38] sm:$0xf] %vm1579, %v1512
      %1595 = vst.msk [vmem:[#allocation3 + $0x3c] sm:$0xf] %vm1579, %v1514
      %1596 = vst.msk [vmem:[#allocation3 + $0x40] sm:$0xf] %vm1579, %v1516
      %1597 = vst.msk [vmem:[#allocation3 + $0x44] sm:$0xf] %vm1579, %v1518
      %1598 = vst.msk [vmem:[#allocation3 + $0x48] sm:$0xf] %vm1579, %v1520
      %1599 = vst.msk [vmem:[#allocation3 + $0x4c] sm:$0xf] %vm1579, %v1522
      %1600 = vst.msk [vmem:[#allocation3 + $0x50] sm:$0xf] %vm1579, %v1524
      %1601 = vst.msk [vmem:[#allocation3 + $0x54] sm:$0xf] %vm1579, %v1526
      %1602 = vst.msk [vmem:[#allocation3 + $0x58] sm:$0xf] %vm1579, %v1528
      %1603 = vst.msk [vmem:[#allocation3 + $0x5c] sm:$0xf] %vm1579, %v1530
      %1604 = vst.msk [vmem:[#allocation3 + $0x60] sm:$0xf] %vm1579, %v1532
      %1605 = vst.msk [vmem:[#allocation3 + $0x64] sm:$0xf] %vm1579, %v1534
      %1606 = vst.msk [vmem:[#allocation3 + $0x68] sm:$0xf] %vm1579, %v1536
      %1607 = vst.msk [vmem:[#allocation3 + $0x6c] sm:$0xf] %vm1579, %v1538
      %1608 = vst.msk [vmem:[#allocation3 + $0x70] sm:$0xf] %vm1579, %v1540
      %1609 = vst.msk [vmem:[#allocation3 + $0x74] sm:$0xf] %vm1579, %v1542
      %1610 = vst.msk [vmem:[#allocation3 + $0x78] sm:$0xf] %vm1579, %v1544
      %1611 = vst.msk [vmem:[#allocation3 + $0x7c] sm:$0xf] %vm1579, %v1546
      %v1612 = vld [vmem:[%s358 + $0x2] sm:$0xff]
      %v1613 = vld [vmem:[%s358 + $0xa] sm:$0xff]
      %v1614 = vld [vmem:[%s358 + $0x1a] sm:$0xff]
      %v1615 = vld [vmem:[%s358 + $0x22] sm:$0xff]
      %v1616 = vld [vmem:[%s358 + $0x32] sm:$0xff]
      %v1617 = vld [vmem:[%s358 + $0x3a] sm:$0xff]
      %v1618 = vld [vmem:[%s358 + $0x4a] sm:$0xff]
      %v1619 = vld [vmem:[%s358 + $0x52] sm:$0xff]
      %v1620 = vld [vmem:[%s358 + $0x62] sm:$0xff]
      %v1621 = vld [vmem:[%s358 + $0x6a] sm:$0xff]
      %v1622 = vld [vmem:[%s358 + $0x7a] sm:$0xff]
      %v1623 = vld [vmem:[%s358 + $0x82] sm:$0xff]
      %v1624 = vld [vmem:[%s358 + $0x92] sm:$0xff]
      %v1625 = vld [vmem:[%s358 + $0x9a] sm:$0xff]
      %v1626 = vld [vmem:[%s358 + $0xaa] sm:$0xff]
      %v1627 = vld [vmem:[%s358 + $0xb2] sm:$0xff]
      %v1628 = vld [vmem:[%s358 + $0xc2] sm:$0xff]
      %v1629 = vld [vmem:[%s358 + $0xca] sm:$0xff]
      %v1630 = vld [vmem:[%s358 + $0xda] sm:$0xff]
      %v1631 = vld [vmem:[%s358 + $0xe2] sm:$0xff]
      %v1632 = vld [vmem:[%s358 + $0xf2] sm:$0xff]
      %v1633 = vld [vmem:[%s358 + $0xfa] sm:$0xff]
      %v1634 = vld [vmem:[%s358 + $0x10a] sm:$0xff]
      %v1635 = vld [vmem:[%s358 + $0x112] sm:$0xff]
      %v1636 = vld [vmem:[%s358 + $0x122] sm:$0xff]
      %v1637 = vld [vmem:[%s358 + $0x12a] sm:$0xff]
      %v1638 = vld [vmem:[%s358 + $0x13a] sm:$0xff]
      %v1639 = vld [vmem:[%s358 + $0x142] sm:$0xff]
      %v1640 = vld [vmem:[%s358 + $0x152] sm:$0xff]
      %v1641 = vld [vmem:[%s358 + $0x15a] sm:$0xff]
      %v1642 = vld [vmem:[%s358 + $0x16a] sm:$0xff]
      %v1643 = vld [vmem:[%s358 + $0x172] sm:$0xff]
      %v1644 = vpack.c.bf16 %v1613, %v1612
      %v1645 = vpack.c.bf16 %v1615, %v1614
      %v1646 = vpack.c.bf16 %v1617, %v1616
      %v1647 = vpack.c.bf16 %v1619, %v1618
      %v1648 = vpack.c.bf16 %v1621, %v1620
      %v1649 = vpack.c.bf16 %v1623, %v1622
      %v1650 = vpack.c.bf16 %v1625, %v1624
      %v1651 = vpack.c.bf16 %v1627, %v1626
      %v1652 = vpack.c.bf16 %v1629, %v1628
      %v1653 = vpack.c.bf16 %v1631, %v1630
      %v1654 = vpack.c.bf16 %v1633, %v1632
      %v1655 = vpack.c.bf16 %v1635, %v1634
      %v1656 = vpack.c.bf16 %v1637, %v1636
      %v1657 = vpack.c.bf16 %v1639, %v1638
      %v1658 = vpack.c.bf16 %v1641, %v1640
      %v1659 = vpack.c.bf16 %v1643, %v1642
      %v1676 = vunpack.c.l.b16 %v1644
      %v1677 = vunpack.c.h.b16 %v1644
      %v1678 = vunpack.c.l.b16 %v1645
      %v1679 = vunpack.c.h.b16 %v1645
      %v1680 = vunpack.c.l.b16 %v1646
      %v1681 = vunpack.c.h.b16 %v1646
      %v1682 = vunpack.c.l.b16 %v1647
      %v1683 = vunpack.c.h.b16 %v1647
      %v1684 = vunpack.c.l.b16 %v1648
      %v1685 = vunpack.c.h.b16 %v1648
      %v1686 = vunpack.c.l.b16 %v1649
      %v1687 = vunpack.c.h.b16 %v1649
      %v1688 = vunpack.c.l.b16 %v1650
      %v1689 = vunpack.c.h.b16 %v1650
      %v1690 = vunpack.c.l.b16 %v1651
      %v1691 = vunpack.c.h.b16 %v1651
      %v1692 = vunpack.c.l.b16 %v1652
      %v1693 = vunpack.c.h.b16 %v1652
      %v1694 = vunpack.c.l.b16 %v1653
      %v1695 = vunpack.c.h.b16 %v1653
      %v1696 = vunpack.c.l.b16 %v1654
      %v1697 = vunpack.c.h.b16 %v1654
      %v1698 = vunpack.c.l.b16 %v1655
      %v1699 = vunpack.c.h.b16 %v1655
      %v1700 = vunpack.c.l.b16 %v1656
      %v1701 = vunpack.c.h.b16 %v1656
      %v1702 = vunpack.c.l.b16 %v1657
      %v1703 = vunpack.c.h.b16 %v1657
      %v1704 = vunpack.c.l.b16 %v1658
      %v1705 = vunpack.c.h.b16 %v1658
      %v1706 = vunpack.c.l.b16 %v1659
      %v1707 = vunpack.c.h.b16 %v1659
      %v1708 = vpack.c.b16 %v1676, %v1676
      %v1709 = vpack.c.b16 %v1677, %v1677
      %v1710 = vpack.c.b16 %v1678, %v1678
      %v1711 = vpack.c.b16 %v1679, %v1679
      %v1712 = vpack.c.b16 %v1680, %v1680
      %v1713 = vpack.c.b16 %v1681, %v1681
      %v1714 = vpack.c.b16 %v1682, %v1682
      %v1715 = vpack.c.b16 %v1683, %v1683
      %v1716 = vpack.c.b16 %v1684, %v1684
      %v1717 = vpack.c.b16 %v1685, %v1685
      %v1718 = vpack.c.b16 %v1686, %v1686
      %v1719 = vpack.c.b16 %v1687, %v1687
      %v1720 = vpack.c.b16 %v1688, %v1688
      %v1721 = vpack.c.b16 %v1689, %v1689
      %v1722 = vpack.c.b16 %v1690, %v1690
      %v1723 = vpack.c.b16 %v1691, %v1691
      %v1724 = vpack.c.b16 %v1692, %v1692
      %v1725 = vpack.c.b16 %v1693, %v1693
      %v1726 = vpack.c.b16 %v1694, %v1694
      %v1727 = vpack.c.b16 %v1695, %v1695
      %v1728 = vpack.c.b16 %v1696, %v1696
      %v1729 = vpack.c.b16 %v1697, %v1697
      %v1730 = vpack.c.b16 %v1698, %v1698
      %v1731 = vpack.c.b16 %v1699, %v1699
      %v1732 = vpack.c.b16 %v1700, %v1700
      %v1733 = vpack.c.b16 %v1701, %v1701
      %v1734 = vpack.c.b16 %v1702, %v1702
      %v1735 = vpack.c.b16 %v1703, %v1703
      %v1736 = vpack.c.b16 %v1704, %v1704
      %v1737 = vpack.c.b16 %v1705, %v1705
      %v1738 = vpack.c.b16 %v1706, %v1706
      %v1739 = vpack.c.b16 %v1707, %v1707
      %1740 = vrot.lane.b32.xlu0 %v1708, 20
      %v1741 = vpop.permute.xlu0 %1740
      %1742 = vrot.lane.b32.xlu0 %v1709, 20
      %v1743 = vpop.permute.xlu0 %1742
      %1744 = vrot.lane.b32.xlu0 %v1710, 20
      %v1745 = vpop.permute.xlu0 %1744
      %1746 = vrot.lane.b32.xlu0 %v1711, 20
      %v1747 = vpop.permute.xlu0 %1746
      %1748 = vrot.lane.b32.xlu0 %v1712, 20
      %v1749 = vpop.permute.xlu0 %1748
      %1750 = vrot.lane.b32.xlu0 %v1713, 20
      %v1751 = vpop.permute.xlu0 %1750
      %1752 = vrot.lane.b32.xlu0 %v1714, 20
      %v1753 = vpop.permute.xlu0 %1752
      %1754 = vrot.lane.b32.xlu0 %v1715, 20
      %v1755 = vpop.permute.xlu0 %1754
      %1756 = vrot.lane.b32.xlu0 %v1716, 20
      %v1757 = vpop.permute.xlu0 %1756
      %1758 = vrot.lane.b32.xlu0 %v1717, 20
      %v1759 = vpop.permute.xlu0 %1758
      %1760 = vrot.lane.b32.xlu0 %v1718, 20
      %v1761 = vpop.permute.xlu0 %1760
      %1762 = vrot.lane.b32.xlu0 %v1719, 20
      %v1763 = vpop.permute.xlu0 %1762
      %1764 = vrot.lane.b32.xlu0 %v1720, 20
      %v1765 = vpop.permute.xlu0 %1764
      %1766 = vrot.lane.b32.xlu0 %v1721, 20
      %v1767 = vpop.permute.xlu0 %1766
      %1768 = vrot.lane.b32.xlu0 %v1722, 20
      %v1769 = vpop.permute.xlu0 %1768
      %1770 = vrot.lane.b32.xlu0 %v1723, 20
      %v1771 = vpop.permute.xlu0 %1770
      %1772 = vrot.lane.b32.xlu0 %v1724, 20
      %v1773 = vpop.permute.xlu0 %1772
      %1774 = vrot.lane.b32.xlu0 %v1725, 20
      %v1775 = vpop.permute.xlu0 %1774
      %1776 = vrot.lane.b32.xlu0 %v1726, 20
      %v1777 = vpop.permute.xlu0 %1776
      %1778 = vrot.lane.b32.xlu0 %v1727, 20
      %v1779 = vpop.permute.xlu0 %1778
      %1780 = vrot.lane.b32.xlu0 %v1728, 20
      %v1781 = vpop.permute.xlu0 %1780
      %1782 = vrot.lane.b32.xlu0 %v1729, 20
      %v1783 = vpop.permute.xlu0 %1782
      %1784 = vrot.lane.b32.xlu0 %v1730, 20
      %v1785 = vpop.permute.xlu0 %1784
      %1786 = vrot.lane.b32.xlu0 %v1731, 20
      %v1787 = vpop.permute.xlu0 %1786
      %1788 = vrot.lane.b32.xlu0 %v1732, 20
      %v1789 = vpop.permute.xlu0 %1788
      %1790 = vrot.lane.b32.xlu0 %v1733, 20
      %v1791 = vpop.permute.xlu0 %1790
      %1792 = vrot.lane.b32.xlu0 %v1734, 20
      %v1793 = vpop.permute.xlu0 %1792
      %1794 = vrot.lane.b32.xlu0 %v1735, 20
      %v1795 = vpop.permute.xlu0 %1794
      %1796 = vrot.lane.b32.xlu0 %v1736, 20
      %v1797 = vpop.permute.xlu0 %1796
      %1798 = vrot.lane.b32.xlu0 %v1737, 20
      %v1799 = vpop.permute.xlu0 %1798
      %1800 = vrot.lane.b32.xlu0 %v1738, 20
      %v1801 = vpop.permute.xlu0 %1800
      %1802 = vrot.lane.b32.xlu0 %v1739, 20
      %v1803 = vpop.permute.xlu0 %1802
      %vm1836 = vcmask 191648
      %1837 = vst.msk [vmem:[#allocation3] sm:$0xf] %vm1836, %v1741
      %1838 = vst.msk [vmem:[#allocation3 + $0x4] sm:$0xf] %vm1836, %v1743
      %1839 = vst.msk [vmem:[#allocation3 + $0x8] sm:$0xf] %vm1836, %v1745
      %1840 = vst.msk [vmem:[#allocation3 + $0xc] sm:$0xf] %vm1836, %v1747
      %1841 = vst.msk [vmem:[#allocation3 + $0x10] sm:$0xf] %vm1836, %v1749
      %1842 = vst.msk [vmem:[#allocation3 + $0x14] sm:$0xf] %vm1836, %v1751
      %1843 = vst.msk [vmem:[#allocation3 + $0x18] sm:$0xf] %vm1836, %v1753
      %1844 = vst.msk [vmem:[#allocation3 + $0x1c] sm:$0xf] %vm1836, %v1755
      %1845 = vst.msk [vmem:[#allocation3 + $0x20] sm:$0xf] %vm1836, %v1757
      %1846 = vst.msk [vmem:[#allocation3 + $0x24] sm:$0xf] %vm1836, %v1759
      %1847 = vst.msk [vmem:[#allocation3 + $0x28] sm:$0xf] %vm1836, %v1761
      %1848 = vst.msk [vmem:[#allocation3 + $0x2c] sm:$0xf] %vm1836, %v1763
      %1849 = vst.msk [vmem:[#allocation3 + $0x30] sm:$0xf] %vm1836, %v1765
      %1850 = vst.msk [vmem:[#allocation3 + $0x34] sm:$0xf] %vm1836, %v1767
      %1851 = vst.msk [vmem:[#allocation3 + $0x38] sm:$0xf] %vm1836, %v1769
      %1852 = vst.msk [vmem:[#allocation3 + $0x3c] sm:$0xf] %vm1836, %v1771
      %1853 = vst.msk [vmem:[#allocation3 + $0x40] sm:$0xf] %vm1836, %v1773
      %1854 = vst.msk [vmem:[#allocation3 + $0x44] sm:$0xf] %vm1836, %v1775
      %1855 = vst.msk [vmem:[#allocation3 + $0x48] sm:$0xf] %vm1836, %v1777
      %1856 = vst.msk [vmem:[#allocation3 + $0x4c] sm:$0xf] %vm1836, %v1779
      %1857 = vst.msk [vmem:[#allocation3 + $0x50] sm:$0xf] %vm1836, %v1781
      %1858 = vst.msk [vmem:[#allocation3 + $0x54] sm:$0xf] %vm1836, %v1783
      %1859 = vst.msk [vmem:[#allocation3 + $0x58] sm:$0xf] %vm1836, %v1785
      %1860 = vst.msk [vmem:[#allocation3 + $0x5c] sm:$0xf] %vm1836, %v1787
      %1861 = vst.msk [vmem:[#allocation3 + $0x60] sm:$0xf] %vm1836, %v1789
      %1862 = vst.msk [vmem:[#allocation3 + $0x64] sm:$0xf] %vm1836, %v1791
      %1863 = vst.msk [vmem:[#allocation3 + $0x68] sm:$0xf] %vm1836, %v1793
      %1864 = vst.msk [vmem:[#allocation3 + $0x6c] sm:$0xf] %vm1836, %v1795
      %1865 = vst.msk [vmem:[#allocation3 + $0x70] sm:$0xf] %vm1836, %v1797
      %1866 = vst.msk [vmem:[#allocation3 + $0x74] sm:$0xf] %vm1836, %v1799
      %1867 = vst.msk [vmem:[#allocation3 + $0x78] sm:$0xf] %vm1836, %v1801
      %1868 = vst.msk [vmem:[#allocation3 + $0x7c] sm:$0xf] %vm1836, %v1803
      %s1869 = scalar_lea.vmem [#allocation2], 48
      %v1870 = vld [vmem:[%s1869] sm:$0xff]
      %v1871 = vld [vmem:[%s1869 + $0x8] sm:$0xff]
      %v1872 = vld [vmem:[%s1869 + $0x18] sm:$0xff]
      %v1873 = vld [vmem:[%s1869 + $0x20] sm:$0xff]
      %v1874 = vld [vmem:[%s1869 + $0x30] sm:$0xff]
      %v1875 = vld [vmem:[%s1869 + $0x38] sm:$0xff]
      %v1876 = vld [vmem:[%s1869 + $0x48] sm:$0xff]
      %v1877 = vld [vmem:[%s1869 + $0x50] sm:$0xff]
      %v1878 = vld [vmem:[%s1869 + $0x60] sm:$0xff]
      %v1879 = vld [vmem:[%s1869 + $0x68] sm:$0xff]
      %v1880 = vld [vmem:[%s1869 + $0x78] sm:$0xff]
      %v1881 = vld [vmem:[%s1869 + $0x80] sm:$0xff]
      %v1882 = vld [vmem:[%s1869 + $0x90] sm:$0xff]
      %v1883 = vld [vmem:[%s1869 + $0x98] sm:$0xff]
      %v1884 = vld [vmem:[%s1869 + $0xa8] sm:$0xff]
      %v1885 = vld [vmem:[%s1869 + $0xb0] sm:$0xff]
      %v1886 = vld [vmem:[%s1869 + $0xc0] sm:$0xff]
      %v1887 = vld [vmem:[%s1869 + $0xc8] sm:$0xff]
      %v1888 = vld [vmem:[%s1869 + $0xd8] sm:$0xff]
      %v1889 = vld [vmem:[%s1869 + $0xe0] sm:$0xff]
      %v1890 = vld [vmem:[%s1869 + $0xf0] sm:$0xff]
      %v1891 = vld [vmem:[%s1869 + $0xf8] sm:$0xff]
      %v1892 = vld [vmem:[%s1869 + $0x108] sm:$0xff]
      %v1893 = vld [vmem:[%s1869 + $0x110] sm:$0xff]
      %v1894 = vld [vmem:[%s1869 + $0x120] sm:$0xff]
      %v1895 = vld [vmem:[%s1869 + $0x128] sm:$0xff]
      %v1896 = vld [vmem:[%s1869 + $0x138] sm:$0xff]
      %v1897 = vld [vmem:[%s1869 + $0x140] sm:$0xff]
      %v1898 = vld [vmem:[%s1869 + $0x150] sm:$0xff]
      %v1899 = vld [vmem:[%s1869 + $0x158] sm:$0xff]
      %v1900 = vld [vmem:[%s1869 + $0x168] sm:$0xff]
      %v1901 = vld [vmem:[%s1869 + $0x170] sm:$0xff]
      %v1902 = vpack.c.bf16 %v1871, %v1870
      %v1903 = vpack.c.bf16 %v1873, %v1872
      %v1904 = vpack.c.bf16 %v1875, %v1874
      %v1905 = vpack.c.bf16 %v1877, %v1876
      %v1906 = vpack.c.bf16 %v1879, %v1878
      %v1907 = vpack.c.bf16 %v1881, %v1880
      %v1908 = vpack.c.bf16 %v1883, %v1882
      %v1909 = vpack.c.bf16 %v1885, %v1884
      %v1910 = vpack.c.bf16 %v1887, %v1886
      %v1911 = vpack.c.bf16 %v1889, %v1888
      %v1912 = vpack.c.bf16 %v1891, %v1890
      %v1913 = vpack.c.bf16 %v1893, %v1892
      %v1914 = vpack.c.bf16 %v1895, %v1894
      %v1915 = vpack.c.bf16 %v1897, %v1896
      %v1916 = vpack.c.bf16 %v1899, %v1898
      %v1917 = vpack.c.bf16 %v1901, %v1900
      %v1934 = vunpack.c.l.b16 %v1902
      %v1935 = vunpack.c.h.b16 %v1902
      %v1936 = vunpack.c.l.b16 %v1903
      %v1937 = vunpack.c.h.b16 %v1903
      %v1938 = vunpack.c.l.b16 %v1904
      %v1939 = vunpack.c.h.b16 %v1904
      %v1940 = vunpack.c.l.b16 %v1905
      %v1941 = vunpack.c.h.b16 %v1905
      %v1942 = vunpack.c.l.b16 %v1906
      %v1943 = vunpack.c.h.b16 %v1906
      %v1944 = vunpack.c.l.b16 %v1907
      %v1945 = vunpack.c.h.b16 %v1907
      %v1946 = vunpack.c.l.b16 %v1908
      %v1947 = vunpack.c.h.b16 %v1908
      %v1948 = vunpack.c.l.b16 %v1909
      %v1949 = vunpack.c.h.b16 %v1909
      %v1950 = vunpack.c.l.b16 %v1910
      %v1951 = vunpack.c.h.b16 %v1910
      %v1952 = vunpack.c.l.b16 %v1911
      %v1953 = vunpack.c.h.b16 %v1911
      %v1954 = vunpack.c.l.b16 %v1912
      %v1955 = vunpack.c.h.b16 %v1912
      %v1956 = vunpack.c.l.b16 %v1913
      %v1957 = vunpack.c.h.b16 %v1913
      %v1958 = vunpack.c.l.b16 %v1914
      %v1959 = vunpack.c.h.b16 %v1914
      %v1960 = vunpack.c.l.b16 %v1915
      %v1961 = vunpack.c.h.b16 %v1915
      %v1962 = vunpack.c.l.b16 %v1916
      %v1963 = vunpack.c.h.b16 %v1916
      %v1964 = vunpack.c.l.b16 %v1917
      %v1965 = vunpack.c.h.b16 %v1917
      %v1966 = vpack.c.b16 %v1934, %v1934
      %v1967 = vpack.c.b16 %v1935, %v1935
      %v1968 = vpack.c.b16 %v1936, %v1936
      %v1969 = vpack.c.b16 %v1937, %v1937
      %v1970 = vpack.c.b16 %v1938, %v1938
      %v1971 = vpack.c.b16 %v1939, %v1939
      %v1972 = vpack.c.b16 %v1940, %v1940
      %v1973 = vpack.c.b16 %v1941, %v1941
      %v1974 = vpack.c.b16 %v1942, %v1942
      %v1975 = vpack.c.b16 %v1943, %v1943
      %v1976 = vpack.c.b16 %v1944, %v1944
      %v1977 = vpack.c.b16 %v1945, %v1945
      %v1978 = vpack.c.b16 %v1946, %v1946
      %v1979 = vpack.c.b16 %v1947, %v1947
      %v1980 = vpack.c.b16 %v1948, %v1948
      %v1981 = vpack.c.b16 %v1949, %v1949
      %v1982 = vpack.c.b16 %v1950, %v1950
      %v1983 = vpack.c.b16 %v1951, %v1951
      %v1984 = vpack.c.b16 %v1952, %v1952
      %v1985 = vpack.c.b16 %v1953, %v1953
      %v1986 = vpack.c.b16 %v1954, %v1954
      %v1987 = vpack.c.b16 %v1955, %v1955
      %v1988 = vpack.c.b16 %v1956, %v1956
      %v1989 = vpack.c.b16 %v1957, %v1957
      %v1990 = vpack.c.b16 %v1958, %v1958
      %v1991 = vpack.c.b16 %v1959, %v1959
      %v1992 = vpack.c.b16 %v1960, %v1960
      %v1993 = vpack.c.b16 %v1961, %v1961
      %v1994 = vpack.c.b16 %v1962, %v1962
      %v1995 = vpack.c.b16 %v1963, %v1963
      %v1996 = vpack.c.b16 %v1964, %v1964
      %v1997 = vpack.c.b16 %v1965, %v1965
      %1998 = vrot.lane.b32.xlu0 %v1966, 24
      %v1999 = vpop.permute.xlu0 %1998
      %2000 = vrot.lane.b32.xlu0 %v1967, 24
      %v2001 = vpop.permute.xlu0 %2000
      %2002 = vrot.lane.b32.xlu0 %v1968, 24
      %v2003 = vpop.permute.xlu0 %2002
      %2004 = vrot.lane.b32.xlu0 %v1969, 24
      %v2005 = vpop.permute.xlu0 %2004
      %2006 = vrot.lane.b32.xlu0 %v1970, 24
      %v2007 = vpop.permute.xlu0 %2006
      %2008 = vrot.lane.b32.xlu0 %v1971, 24
      %v2009 = vpop.permute.xlu0 %2008
      %2010 = vrot.lane.b32.xlu0 %v1972, 24
      %v2011 = vpop.permute.xlu0 %2010
      %2012 = vrot.lane.b32.xlu0 %v1973, 24
      %v2013 = vpop.permute.xlu0 %2012
      %2014 = vrot.lane.b32.xlu0 %v1974, 24
      %v2015 = vpop.permute.xlu0 %2014
      %2016 = vrot.lane.b32.xlu0 %v1975, 24
      %v2017 = vpop.permute.xlu0 %2016
      %2018 = vrot.lane.b32.xlu0 %v1976, 24
      %v2019 = vpop.permute.xlu0 %2018
      %2020 = vrot.lane.b32.xlu0 %v1977, 24
      %v2021 = vpop.permute.xlu0 %2020
      %2022 = vrot.lane.b32.xlu0 %v1978, 24
      %v2023 = vpop.permute.xlu0 %2022
      %2024 = vrot.lane.b32.xlu0 %v1979, 24
      %v2025 = vpop.permute.xlu0 %2024
      %2026 = vrot.lane.b32.xlu0 %v1980, 24
      %v2027 = vpop.permute.xlu0 %2026
      %2028 = vrot.lane.b32.xlu0 %v1981, 24
      %v2029 = vpop.permute.xlu0 %2028
      %2030 = vrot.lane.b32.xlu0 %v1982, 24
      %v2031 = vpop.permute.xlu0 %2030
      %2032 = vrot.lane.b32.xlu0 %v1983, 24
      %v2033 = vpop.permute.xlu0 %2032
      %2034 = vrot.lane.b32.xlu0 %v1984, 24
      %v2035 = vpop.permute.xlu0 %2034
      %2036 = vrot.lane.b32.xlu0 %v1985, 24
      %v2037 = vpop.permute.xlu0 %2036
      %2038 = vrot.lane.b32.xlu0 %v1986, 24
      %v2039 = vpop.permute.xlu0 %2038
      %2040 = vrot.lane.b32.xlu0 %v1987, 24
      %v2041 = vpop.permute.xlu0 %2040
      %2042 = vrot.lane.b32.xlu0 %v1988, 24
      %v2043 = vpop.permute.xlu0 %2042
      %2044 = vrot.lane.b32.xlu0 %v1989, 24
      %v2045 = vpop.permute.xlu0 %2044
      %2046 = vrot.lane.b32.xlu0 %v1990, 24
      %v2047 = vpop.permute.xlu0 %2046
      %2048 = vrot.lane.b32.xlu0 %v1991, 24
      %v2049 = vpop.permute.xlu0 %2048
      %2050 = vrot.lane.b32.xlu0 %v1992, 24
      %v2051 = vpop.permute.xlu0 %2050
      %2052 = vrot.lane.b32.xlu0 %v1993, 24
      %v2053 = vpop.permute.xlu0 %2052
      %2054 = vrot.lane.b32.xlu0 %v1994, 24
      %v2055 = vpop.permute.xlu0 %2054
      %2056 = vrot.lane.b32.xlu0 %v1995, 24
      %v2057 = vpop.permute.xlu0 %2056
      %2058 = vrot.lane.b32.xlu0 %v1996, 24
      %v2059 = vpop.permute.xlu0 %2058
      %2060 = vrot.lane.b32.xlu0 %v1997, 24
      %v2061 = vpop.permute.xlu0 %2060
      %vm2094 = vcmask 224448
      %2095 = vst.msk [vmem:[#allocation3] sm:$0xf] %vm2094, %v1999
      %2096 = vst.msk [vmem:[#allocation3 + $0x4] sm:$0xf] %vm2094, %v2001
      %2097 = vst.msk [vmem:[#allocation3 + $0x8] sm:$0xf] %vm2094, %v2003
      %2098 = vst.msk [vmem:[#allocation3 + $0xc] sm:$0xf] %vm2094, %v2005
      %2099 = vst.msk [vmem:[#allocation3 + $0x10] sm:$0xf] %vm2094, %v2007
      %2100 = vst.msk [vmem:[#allocation3 + $0x14] sm:$0xf] %vm2094, %v2009
      %2101 = vst.msk [vmem:[#allocation3 + $0x18] sm:$0xf] %vm2094, %v2011
      %2102 = vst.msk [vmem:[#allocation3 + $0x1c] sm:$0xf] %vm2094, %v2013
      %2103 = vst.msk [vmem:[#allocation3 + $0x20] sm:$0xf] %vm2094, %v2015
      %2104 = vst.msk [vmem:[#allocation3 + $0x24] sm:$0xf] %vm2094, %v2017
      %2105 = vst.msk [vmem:[#allocation3 + $0x28] sm:$0xf] %vm2094, %v2019
      %2106 = vst.msk [vmem:[#allocation3 + $0x2c] sm:$0xf] %vm2094, %v2021
      %2107 = vst.msk [vmem:[#allocation3 + $0x30] sm:$0xf] %vm2094, %v2023
      %2108 = vst.msk [vmem:[#allocation3 + $0x34] sm:$0xf] %vm2094, %v2025
      %2109 = vst.msk [vmem:[#allocation3 + $0x38] sm:$0xf] %vm2094, %v2027
      %2110 = vst.msk [vmem:[#allocation3 + $0x3c] sm:$0xf] %vm2094, %v2029
      %2111 = vst.msk [vmem:[#allocation3 + $0x40] sm:$0xf] %vm2094, %v2031
      %2112 = vst.msk [vmem:[#allocation3 + $0x44] sm:$0xf] %vm2094, %v2033
      %2113 = vst.msk [vmem:[#allocation3 + $0x48] sm:$0xf] %vm2094, %v2035
      %2114 = vst.msk [vmem:[#allocation3 + $0x4c] sm:$0xf] %vm2094, %v2037
      %2115 = vst.msk [vmem:[#allocation3 + $0x50] sm:$0xf] %vm2094, %v2039
      %2116 = vst.msk [vmem:[#allocation3 + $0x54] sm:$0xf] %vm2094, %v2041
      %2117 = vst.msk [vmem:[#allocation3 + $0x58] sm:$0xf] %vm2094, %v2043
      %2118 = vst.msk [vmem:[#allocation3 + $0x5c] sm:$0xf] %vm2094, %v2045
      %2119 = vst.msk [vmem:[#allocation3 + $0x60] sm:$0xf] %vm2094, %v2047
      %2120 = vst.msk [vmem:[#allocation3 + $0x64] sm:$0xf] %vm2094, %v2049
      %2121 = vst.msk [vmem:[#allocation3 + $0x68] sm:$0xf] %vm2094, %v2051
      %2122 = vst.msk [vmem:[#allocation3 + $0x6c] sm:$0xf] %vm2094, %v2053
      %2123 = vst.msk [vmem:[#allocation3 + $0x70] sm:$0xf] %vm2094, %v2055
      %2124 = vst.msk [vmem:[#allocation3 + $0x74] sm:$0xf] %vm2094, %v2057
      %2125 = vst.msk [vmem:[#allocation3 + $0x78] sm:$0xf] %vm2094, %v2059
      %2126 = vst.msk [vmem:[#allocation3 + $0x7c] sm:$0xf] %vm2094, %v2061
      %v2127 = vld [vmem:[%s1869 + $0x1] sm:$0xff]
      %v2128 = vld [vmem:[%s1869 + $0x9] sm:$0xff]
      %v2129 = vld [vmem:[%s1869 + $0x19] sm:$0xff]
      %v2130 = vld [vmem:[%s1869 + $0x21] sm:$0xff]
      %v2131 = vld [vmem:[%s1869 + $0x31] sm:$0xff]
      %v2132 = vld [vmem:[%s1869 + $0x39] sm:$0xff]
      %v2133 = vld [vmem:[%s1869 + $0x49] sm:$0xff]
      %v2134 = vld [vmem:[%s1869 + $0x51] sm:$0xff]
      %v2135 = vld [vmem:[%s1869 + $0x61] sm:$0xff]
      %v2136 = vld [vmem:[%s1869 + $0x69] sm:$0xff]
      %v2137 = vld [vmem:[%s1869 + $0x79] sm:$0xff]
      %v2138 = vld [vmem:[%s1869 + $0x81] sm:$0xff]
      %v2139 = vld [vmem:[%s1869 + $0x91] sm:$0xff]
      %v2140 = vld [vmem:[%s1869 + $0x99] sm:$0xff]
      %v2141 = vld [vmem:[%s1869 + $0xa9] sm:$0xff]
      %v2142 = vld [vmem:[%s1869 + $0xb1] sm:$0xff]
      %v2143 = vld [vmem:[%s1869 + $0xc1] sm:$0xff]
      %v2144 = vld [vmem:[%s1869 + $0xc9] sm:$0xff]
      %v2145 = vld [vmem:[%s1869 + $0xd9] sm:$0xff]
      %v2146 = vld [vmem:[%s1869 + $0xe1] sm:$0xff]
      %v2147 = vld [vmem:[%s1869 + $0xf1] sm:$0xff]
      %v2148 = vld [vmem:[%s1869 + $0xf9] sm:$0xff]
      %v2149 = vld [vmem:[%s1869 + $0x109] sm:$0xff]
      %v2150 = vld [vmem:[%s1869 + $0x111] sm:$0xff]
      %v2151 = vld [vmem:[%s1869 + $0x121] sm:$0xff]
      %v2152 = vld [vmem:[%s1869 + $0x129] sm:$0xff]
      %v2153 = vld [vmem:[%s1869 + $0x139] sm:$0xff]
      %v2154 = vld [vmem:[%s1869 + $0x141] sm:$0xff]
      %v2155 = vld [vmem:[%s1869 + $0x151] sm:$0xff]
      %v2156 = vld [vmem:[%s1869 + $0x159] sm:$0xff]
      %v2157 = vld [vmem:[%s1869 + $0x169] sm:$0xff]
      %v2158 = vld [vmem:[%s1869 + $0x171] sm:$0xff]
      %v2159 = vpack.c.bf16 %v2128, %v2127
      %v2160 = vpack.c.bf16 %v2130, %v2129
      %v2161 = vpack.c.bf16 %v2132, %v2131
      %v2162 = vpack.c.bf16 %v2134, %v2133
      %v2163 = vpack.c.bf16 %v2136, %v2135
      %v2164 = vpack.c.bf16 %v2138, %v2137
      %v2165 = vpack.c.bf16 %v2140, %v2139
      %v2166 = vpack.c.bf16 %v2142, %v2141
      %v2167 = vpack.c.bf16 %v2144, %v2143
      %v2168 = vpack.c.bf16 %v2146, %v2145
      %v2169 = vpack.c.bf16 %v2148, %v2147
      %v2170 = vpack.c.bf16 %v2150, %v2149
      %v2171 = vpack.c.bf16 %v2152, %v2151
      %v2172 = vpack.c.bf16 %v2154, %v2153
      %v2173 = vpack.c.bf16 %v2156, %v2155
      %v2174 = vpack.c.bf16 %v2158, %v2157
      %v2191 = vunpack.c.l.b16 %v2159
      %v2192 = vunpack.c.h.b16 %v2159
      %v2193 = vunpack.c.l.b16 %v2160
      %v2194 = vunpack.c.h.b16 %v2160
      %v2195 = vunpack.c.l.b16 %v2161
      %v2196 = vunpack.c.h.b16 %v2161
      %v2197 = vunpack.c.l.b16 %v2162
      %v2198 = vunpack.c.h.b16 %v2162
      %v2199 = vunpack.c.l.b16 %v2163
      %v2200 = vunpack.c.h.b16 %v2163
      %v2201 = vunpack.c.l.b16 %v2164
      %v2202 = vunpack.c.h.b16 %v2164
      %v2203 = vunpack.c.l.b16 %v2165
      %v2204 = vunpack.c.h.b16 %v2165
      %v2205 = vunpack.c.l.b16 %v2166
      %v2206 = vunpack.c.h.b16 %v2166
      %v2207 = vunpack.c.l.b16 %v2167
      %v2208 = vunpack.c.h.b16 %v2167
      %v2209 = vunpack.c.l.b16 %v2168
      %v2210 = vunpack.c.h.b16 %v2168
      %v2211 = vunpack.c.l.b16 %v2169
      %v2212 = vunpack.c.h.b16 %v2169
      %v2213 = vunpack.c.l.b16 %v2170
      %v2214 = vunpack.c.h.b16 %v2170
      %v2215 = vunpack.c.l.b16 %v2171
      %v2216 = vunpack.c.h.b16 %v2171
      %v2217 = vunpack.c.l.b16 %v2172
      %v2218 = vunpack.c.h.b16 %v2172
      %v2219 = vunpack.c.l.b16 %v2173
      %v2220 = vunpack.c.h.b16 %v2173
      %v2221 = vunpack.c.l.b16 %v2174
      %v2222 = vunpack.c.h.b16 %v2174
      %v2223 = vpack.c.b16 %v2191, %v2191
      %v2224 = vpack.c.b16 %v2192, %v2192
      %v2225 = vpack.c.b16 %v2193, %v2193
      %v2226 = vpack.c.b16 %v2194, %v2194
      %v2227 = vpack.c.b16 %v2195, %v2195
      %v2228 = vpack.c.b16 %v2196, %v2196
      %v2229 = vpack.c.b16 %v2197, %v2197
      %v2230 = vpack.c.b16 %v2198, %v2198
      %v2231 = vpack.c.b16 %v2199, %v2199
      %v2232 = vpack.c.b16 %v2200, %v2200
      %v2233 = vpack.c.b16 %v2201, %v2201
      %v2234 = vpack.c.b16 %v2202, %v2202
      %v2235 = vpack.c.b16 %v2203, %v2203
      %v2236 = vpack.c.b16 %v2204, %v2204
      %v2237 = vpack.c.b16 %v2205, %v2205
      %v2238 = vpack.c.b16 %v2206, %v2206
      %v2239 = vpack.c.b16 %v2207, %v2207
      %v2240 = vpack.c.b16 %v2208, %v2208
      %v2241 = vpack.c.b16 %v2209, %v2209
      %v2242 = vpack.c.b16 %v2210, %v2210
      %v2243 = vpack.c.b16 %v2211, %v2211
      %v2244 = vpack.c.b16 %v2212, %v2212
      %v2245 = vpack.c.b16 %v2213, %v2213
      %v2246 = vpack.c.b16 %v2214, %v2214
      %v2247 = vpack.c.b16 %v2215, %v2215
      %v2248 = vpack.c.b16 %v2216, %v2216
      %v2249 = vpack.c.b16 %v2217, %v2217
      %v2250 = vpack.c.b16 %v2218, %v2218
      %v2251 = vpack.c.b16 %v2219, %v2219
      %v2252 = vpack.c.b16 %v2220, %v2220
      %v2253 = vpack.c.b16 %v2221, %v2221
      %v2254 = vpack.c.b16 %v2222, %v2222
      %2255 = vrot.lane.b32.xlu0 %v2223, 28
      %v2256 = vpop.permute.xlu0 %2255
      %2257 = vrot.lane.b32.xlu0 %v2224, 28
      %v2258 = vpop.permute.xlu0 %2257
      %2259 = vrot.lane.b32.xlu0 %v2225, 28
      %v2260 = vpop.permute.xlu0 %2259
      %2261 = vrot.lane.b32.xlu0 %v2226, 28
      %v2262 = vpop.permute.xlu0 %2261
      %2263 = vrot.lane.b32.xlu0 %v2227, 28
      %v2264 = vpop.permute.xlu0 %2263
      %2265 = vrot.lane.b32.xlu0 %v2228, 28
      %v2266 = vpop.permute.xlu0 %2265
      %2267 = vrot.lane.b32.xlu0 %v2229, 28
      %v2268 = vpop.permute.xlu0 %2267
      %2269 = vrot.lane.b32.xlu0 %v2230, 28
      %v2270 = vpop.permute.xlu0 %2269
      %2271 = vrot.lane.b32.xlu0 %v2231, 28
      %v2272 = vpop.permute.xlu0 %2271
      %2273 = vrot.lane.b32.xlu0 %v2232, 28
      %v2274 = vpop.permute.xlu0 %2273
      %2275 = vrot.lane.b32.xlu0 %v2233, 28
      %v2276 = vpop.permute.xlu0 %2275
      %2277 = vrot.lane.b32.xlu0 %v2234, 28
      %v2278 = vpop.permute.xlu0 %2277
      %2279 = vrot.lane.b32.xlu0 %v2235, 28
      %v2280 = vpop.permute.xlu0 %2279
      %2281 = vrot.lane.b32.xlu0 %v2236, 28
      %v2282 = vpop.permute.xlu0 %2281
      %2283 = vrot.lane.b32.xlu0 %v2237, 28
      %v2284 = vpop.permute.xlu0 %2283
      %2285 = vrot.lane.b32.xlu0 %v2238, 28
      %v2286 = vpop.permute.xlu0 %2285
      %2287 = vrot.lane.b32.xlu0 %v2239, 28
      %v2288 = vpop.permute.xlu0 %2287
      %2289 = vrot.lane.b32.xlu0 %v2240, 28
      %v2290 = vpop.permute.xlu0 %2289
      %2291 = vrot.lane.b32.xlu0 %v2241, 28
      %v2292 = vpop.permute.xlu0 %2291
      %2293 = vrot.lane.b32.xlu0 %v2242, 28
      %v2294 = vpop.permute.xlu0 %2293
      %2295 = vrot.lane.b32.xlu0 %v2243, 28
      %v2296 = vpop.permute.xlu0 %2295
      %2297 = vrot.lane.b32.xlu0 %v2244, 28
      %v2298 = vpop.permute.xlu0 %2297
      %2299 = vrot.lane.b32.xlu0 %v2245, 28
      %v2300 = vpop.permute.xlu0 %2299
      %2301 = vrot.lane.b32.xlu0 %v2246, 28
      %v2302 = vpop.permute.xlu0 %2301
      %2303 = vrot.lane.b32.xlu0 %v2247, 28
      %v2304 = vpop.permute.xlu0 %2303
      %2305 = vrot.lane.b32.xlu0 %v2248, 28
      %v2306 = vpop.permute.xlu0 %2305
      %2307 = vrot.lane.b32.xlu0 %v2249, 28
      %v2308 = vpop.permute.xlu0 %2307
      %2309 = vrot.lane.b32.xlu0 %v2250, 28
      %v2310 = vpop.permute.xlu0 %2309
      %2311 = vrot.lane.b32.xlu0 %v2251, 28
      %v2312 = vpop.permute.xlu0 %2311
      %2313 = vrot.lane.b32.xlu0 %v2252, 28
      %v2314 = vpop.permute.xlu0 %2313
      %2315 = vrot.lane.b32.xlu0 %v2253, 28
      %v2316 = vpop.permute.xlu0 %2315
      %2317 = vrot.lane.b32.xlu0 %v2254, 28
      %v2318 = vpop.permute.xlu0 %2317
      %vm2351 = vcmask 257248
      %2352 = vst.msk [vmem:[#allocation3] sm:$0xf] %vm2351, %v2256
      %2353 = vst.msk [vmem:[#allocation3 + $0x4] sm:$0xf] %vm2351, %v2258
      %2354 = vst.msk [vmem:[#allocation3 + $0x8] sm:$0xf] %vm2351, %v2260
      %2355 = vst.msk [vmem:[#allocation3 + $0xc] sm:$0xf] %vm2351, %v2262
      %2356 = vst.msk [vmem:[#allocation3 + $0x10] sm:$0xf] %vm2351, %v2264
      %2357 = vst.msk [vmem:[#allocation3 + $0x14] sm:$0xf] %vm2351, %v2266
      %2358 = vst.msk [vmem:[#allocation3 + $0x18] sm:$0xf] %vm2351, %v2268
      %2359 = vst.msk [vmem:[#allocation3 + $0x1c] sm:$0xf] %vm2351, %v2270
      %2360 = vst.msk [vmem:[#allocation3 + $0x20] sm:$0xf] %vm2351, %v2272
      %2361 = vst.msk [vmem:[#allocation3 + $0x24] sm:$0xf] %vm2351, %v2274
      %2362 = vst.msk [vmem:[#allocation3 + $0x28] sm:$0xf] %vm2351, %v2276
      %2363 = vst.msk [vmem:[#allocation3 + $0x2c] sm:$0xf] %vm2351, %v2278
      %2364 = vst.msk [vmem:[#allocation3 + $0x30] sm:$0xf] %vm2351, %v2280
      %2365 = vst.msk [vmem:[#allocation3 + $0x34] sm:$0xf] %vm2351, %v2282
      %2366 = vst.msk [vmem:[#allocation3 + $0x38] sm:$0xf] %vm2351, %v2284
      %2367 = vst.msk [vmem:[#allocation3 + $0x3c] sm:$0xf] %vm2351, %v2286
      %2368 = vst.msk [vmem:[#allocation3 + $0x40] sm:$0xf] %vm2351, %v2288
      %2369 = vst.msk [vmem:[#allocation3 + $0x44] sm:$0xf] %vm2351, %v2290
      %2370 = vst.msk [vmem:[#allocation3 + $0x48] sm:$0xf] %vm2351, %v2292
      %2371 = vst.msk [vmem:[#allocation3 + $0x4c] sm:$0xf] %vm2351, %v2294
      %2372 = vst.msk [vmem:[#allocation3 + $0x50] sm:$0xf] %vm2351, %v2296
      %2373 = vst.msk [vmem:[#allocation3 + $0x54] sm:$0xf] %vm2351, %v2298
      %2374 = vst.msk [vmem:[#allocation3 + $0x58] sm:$0xf] %vm2351, %v2300
      %2375 = vst.msk [vmem:[#allocation3 + $0x5c] sm:$0xf] %vm2351, %v2302
      %2376 = vst.msk [vmem:[#allocation3 + $0x60] sm:$0xf] %vm2351, %v2304
      %2377 = vst.msk [vmem:[#allocation3 + $0x64] sm:$0xf] %vm2351, %v2306
      %2378 = vst.msk [vmem:[#allocation3 + $0x68] sm:$0xf] %vm2351, %v2308
      %2379 = vst.msk [vmem:[#allocation3 + $0x6c] sm:$0xf] %vm2351, %v2310
      %2380 = vst.msk [vmem:[#allocation3 + $0x70] sm:$0xf] %vm2351, %v2312
      %2381 = vst.msk [vmem:[#allocation3 + $0x74] sm:$0xf] %vm2351, %v2314
      %2382 = vst.msk [vmem:[#allocation3 + $0x78] sm:$0xf] %vm2351, %v2316
      %2383 = vst.msk [vmem:[#allocation3 + $0x7c] sm:$0xf] %vm2351, %v2318
      %v2384 = vld [vmem:[%s1869 + $0x2] sm:$0xff]
      %v2385 = vld [vmem:[%s1869 + $0xa] sm:$0xff]
      %v2386 = vld [vmem:[%s1869 + $0x1a] sm:$0xff]
      %v2387 = vld [vmem:[%s1869 + $0x22] sm:$0xff]
      %v2388 = vld [vmem:[%s1869 + $0x32] sm:$0xff]
      %v2389 = vld [vmem:[%s1869 + $0x3a] sm:$0xff]
      %v2390 = vld [vmem:[%s1869 + $0x4a] sm:$0xff]
      %v2391 = vld [vmem:[%s1869 + $0x52] sm:$0xff]
      %v2392 = vld [vmem:[%s1869 + $0x62] sm:$0xff]
      %v2393 = vld [vmem:[%s1869 + $0x6a] sm:$0xff]
      %v2394 = vld [vmem:[%s1869 + $0x7a] sm:$0xff]
      %v2395 = vld [vmem:[%s1869 + $0x82] sm:$0xff]
      %v2396 = vld [vmem:[%s1869 + $0x92] sm:$0xff]
      %v2397 = vld [vmem:[%s1869 + $0x9a] sm:$0xff]
      %v2398 = vld [vmem:[%s1869 + $0xaa] sm:$0xff]
      %v2399 = vld [vmem:[%s1869 + $0xb2] sm:$0xff]
      %v2400 = vld [vmem:[%s1869 + $0xc2] sm:$0xff]
      %v2401 = vld [vmem:[%s1869 + $0xca] sm:$0xff]
      %v2402 = vld [vmem:[%s1869 + $0xda] sm:$0xff]
      %v2403 = vld [vmem:[%s1869 + $0xe2] sm:$0xff]
      %v2404 = vld [vmem:[%s1869 + $0xf2] sm:$0xff]
      %v2405 = vld [vmem:[%s1869 + $0xfa] sm:$0xff]
      %v2406 = vld [vmem:[%s1869 + $0x10a] sm:$0xff]
      %v2407 = vld [vmem:[%s1869 + $0x112] sm:$0xff]
      %v2408 = vld [vmem:[%s1869 + $0x122] sm:$0xff]
      %v2409 = vld [vmem:[%s1869 + $0x12a] sm:$0xff]
      %v2410 = vld [vmem:[%s1869 + $0x13a] sm:$0xff]
      %v2411 = vld [vmem:[%s1869 + $0x142] sm:$0xff]
      %v2412 = vld [vmem:[%s1869 + $0x152] sm:$0xff]
      %v2413 = vld [vmem:[%s1869 + $0x15a] sm:$0xff]
      %v2414 = vld [vmem:[%s1869 + $0x16a] sm:$0xff]
      %v2415 = vld [vmem:[%s1869 + $0x172] sm:$0xff]
      %v2416 = vpack.c.bf16 %v2385, %v2384
      %v2417 = vpack.c.bf16 %v2387, %v2386
      %v2418 = vpack.c.bf16 %v2389, %v2388
      %v2419 = vpack.c.bf16 %v2391, %v2390
      %v2420 = vpack.c.bf16 %v2393, %v2392
      %v2421 = vpack.c.bf16 %v2395, %v2394
      %v2422 = vpack.c.bf16 %v2397, %v2396
      %v2423 = vpack.c.bf16 %v2399, %v2398
      %v2424 = vpack.c.bf16 %v2401, %v2400
      %v2425 = vpack.c.bf16 %v2403, %v2402
      %v2426 = vpack.c.bf16 %v2405, %v2404
      %v2427 = vpack.c.bf16 %v2407, %v2406
      %v2428 = vpack.c.bf16 %v2409, %v2408
      %v2429 = vpack.c.bf16 %v2411, %v2410
      %v2430 = vpack.c.bf16 %v2413, %v2412
      %v2431 = vpack.c.bf16 %v2415, %v2414
      %v2448 = vunpack.c.l.b16 %v2416
      %v2449 = vunpack.c.h.b16 %v2416
      %v2450 = vunpack.c.l.b16 %v2417
      %v2451 = vunpack.c.h.b16 %v2417
      %v2452 = vunpack.c.l.b16 %v2418
      %v2453 = vunpack.c.h.b16 %v2418
      %v2454 = vunpack.c.l.b16 %v2419
      %v2455 = vunpack.c.h.b16 %v2419
      %v2456 = vunpack.c.l.b16 %v2420
      %v2457 = vunpack.c.h.b16 %v2420
      %v2458 = vunpack.c.l.b16 %v2421
      %v2459 = vunpack.c.h.b16 %v2421
      %v2460 = vunpack.c.l.b16 %v2422
      %v2461 = vunpack.c.h.b16 %v2422
      %v2462 = vunpack.c.l.b16 %v2423
      %v2463 = vunpack.c.h.b16 %v2423
      %v2464 = vunpack.c.l.b16 %v2424
      %v2465 = vunpack.c.h.b16 %v2424
      %v2466 = vunpack.c.l.b16 %v2425
      %v2467 = vunpack.c.h.b16 %v2425
      %v2468 = vunpack.c.l.b16 %v2426
      %v2469 = vunpack.c.h.b16 %v2426
      %v2470 = vunpack.c.l.b16 %v2427
      %v2471 = vunpack.c.h.b16 %v2427
      %v2472 = vunpack.c.l.b16 %v2428
      %v2473 = vunpack.c.h.b16 %v2428
      %v2474 = vunpack.c.l.b16 %v2429
      %v2475 = vunpack.c.h.b16 %v2429
      %v2476 = vunpack.c.l.b16 %v2430
      %v2477 = vunpack.c.h.b16 %v2430
      %v2478 = vunpack.c.l.b16 %v2431
      %v2479 = vunpack.c.h.b16 %v2431
      %v2480 = vpack.c.b16 %v2448, %v2448
      %v2481 = vpack.c.b16 %v2449, %v2449
      %v2482 = vpack.c.b16 %v2450, %v2450
      %v2483 = vpack.c.b16 %v2451, %v2451
      %v2484 = vpack.c.b16 %v2452, %v2452
      %v2485 = vpack.c.b16 %v2453, %v2453
      %v2486 = vpack.c.b16 %v2454, %v2454
      %v2487 = vpack.c.b16 %v2455, %v2455
      %v2488 = vpack.c.b16 %v2456, %v2456
      %v2489 = vpack.c.b16 %v2457, %v2457
      %v2490 = vpack.c.b16 %v2458, %v2458
      %v2491 = vpack.c.b16 %v2459, %v2459
      %v2492 = vpack.c.b16 %v2460, %v2460
      %v2493 = vpack.c.b16 %v2461, %v2461
      %v2494 = vpack.c.b16 %v2462, %v2462
      %v2495 = vpack.c.b16 %v2463, %v2463
      %v2496 = vpack.c.b16 %v2464, %v2464
      %v2497 = vpack.c.b16 %v2465, %v2465
      %v2498 = vpack.c.b16 %v2466, %v2466
      %v2499 = vpack.c.b16 %v2467, %v2467
      %v2500 = vpack.c.b16 %v2468, %v2468
      %v2501 = vpack.c.b16 %v2469, %v2469
      %v2502 = vpack.c.b16 %v2470, %v2470
      %v2503 = vpack.c.b16 %v2471, %v2471
      %v2504 = vpack.c.b16 %v2472, %v2472
      %v2505 = vpack.c.b16 %v2473, %v2473
      %v2506 = vpack.c.b16 %v2474, %v2474
      %v2507 = vpack.c.b16 %v2475, %v2475
      %v2508 = vpack.c.b16 %v2476, %v2476
      %v2509 = vpack.c.b16 %v2477, %v2477
      %v2510 = vpack.c.b16 %v2478, %v2478
      %v2511 = vpack.c.b16 %v2479, %v2479
      %2512 = vrot.lane.b32.xlu0 %v2480, 32
      %v2513 = vpop.permute.xlu0 %2512
      %2514 = vrot.lane.b32.xlu0 %v2481, 32
      %v2515 = vpop.permute.xlu0 %2514
      %2516 = vrot.lane.b32.xlu0 %v2482, 32
      %v2517 = vpop.permute.xlu0 %2516
      %2518 = vrot.lane.b32.xlu0 %v2483, 32
      %v2519 = vpop.permute.xlu0 %2518
      %2520 = vrot.lane.b32.xlu0 %v2484, 32
      %v2521 = vpop.permute.xlu0 %2520
      %2522 = vrot.lane.b32.xlu0 %v2485, 32
      %v2523 = vpop.permute.xlu0 %2522
      %2524 = vrot.lane.b32.xlu0 %v2486, 32
      %v2525 = vpop.permute.xlu0 %2524
      %2526 = vrot.lane.b32.xlu0 %v2487, 32
      %v2527 = vpop.permute.xlu0 %2526
      %2528 = vrot.lane.b32.xlu0 %v2488, 32
      %v2529 = vpop.permute.xlu0 %2528
      %2530 = vrot.lane.b32.xlu0 %v2489, 32
      %v2531 = vpop.permute.xlu0 %2530
      %2532 = vrot.lane.b32.xlu0 %v2490, 32
      %v2533 = vpop.permute.xlu0 %2532
      %2534 = vrot.lane.b32.xlu0 %v2491, 32
      %v2535 = vpop.permute.xlu0 %2534
      %2536 = vrot.lane.b32.xlu0 %v2492, 32
      %v2537 = vpop.permute.xlu0 %2536
      %2538 = vrot.lane.b32.xlu0 %v2493, 32
      %v2539 = vpop.permute.xlu0 %2538
      %2540 = vrot.lane.b32.xlu0 %v2494, 32
      %v2541 = vpop.permute.xlu0 %2540
      %2542 = vrot.lane.b32.xlu0 %v2495, 32
      %v2543 = vpop.permute.xlu0 %2542
      %2544 = vrot.lane.b32.xlu0 %v2496, 32
      %v2545 = vpop.permute.xlu0 %2544
      %2546 = vrot.lane.b32.xlu0 %v2497, 32
      %v2547 = vpop.permute.xlu0 %2546
      %2548 = vrot.lane.b32.xlu0 %v2498, 32
      %v2549 = vpop.permute.xlu0 %2548
      %2550 = vrot.lane.b32.xlu0 %v2499, 32
      %v2551 = vpop.permute.xlu0 %2550
      %2552 = vrot.lane.b32.xlu0 %v2500, 32
      %v2553 = vpop.permute.xlu0 %2552
      %2554 = vrot.lane.b32.xlu0 %v2501, 32
      %v2555 = vpop.permute.xlu0 %2554
      %2556 = vrot.lane.b32.xlu0 %v2502, 32
      %v2557 = vpop.permute.xlu0 %2556
      %2558 = vrot.lane.b32.xlu0 %v2503, 32
      %v2559 = vpop.permute.xlu0 %2558
      %2560 = vrot.lane.b32.xlu0 %v2504, 32
      %v2561 = vpop.permute.xlu0 %2560
      %2562 = vrot.lane.b32.xlu0 %v2505, 32
      %v2563 = vpop.permute.xlu0 %2562
      %2564 = vrot.lane.b32.xlu0 %v2506, 32
      %v2565 = vpop.permute.xlu0 %2564
      %2566 = vrot.lane.b32.xlu0 %v2507, 32
      %v2567 = vpop.permute.xlu0 %2566
      %2568 = vrot.lane.b32.xlu0 %v2508, 32
      %v2569 = vpop.permute.xlu0 %2568
      %2570 = vrot.lane.b32.xlu0 %v2509, 32
      %v2571 = vpop.permute.xlu0 %2570
      %2572 = vrot.lane.b32.xlu0 %v2510, 32
      %v2573 = vpop.permute.xlu0 %2572
      %2574 = vrot.lane.b32.xlu0 %v2511, 32
      %v2575 = vpop.permute.xlu0 %2574
      %vm2608 = vcmask 290048
      %2609 = vst.msk [vmem:[#allocation3] sm:$0xf] %vm2608, %v2513
      %2610 = vst.msk [vmem:[#allocation3 + $0x4] sm:$0xf] %vm2608, %v2515
      %2611 = vst.msk [vmem:[#allocation3 + $0x8] sm:$0xf] %vm2608, %v2517
      %2612 = vst.msk [vmem:[#allocation3 + $0xc] sm:$0xf] %vm2608, %v2519
      %2613 = vst.msk [vmem:[#allocation3 + $0x10] sm:$0xf] %vm2608, %v2521
      %2614 = vst.msk [vmem:[#allocation3 + $0x14] sm:$0xf] %vm2608, %v2523
      %2615 = vst.msk [vmem:[#allocation3 + $0x18] sm:$0xf] %vm2608, %v2525
      %2616 = vst.msk [vmem:[#allocation3 + $0x1c] sm:$0xf] %vm2608, %v2527
      %2617 = vst.msk [vmem:[#allocation3 + $0x20] sm:$0xf] %vm2608, %v2529
      %2618 = vst.msk [vmem:[#allocation3 + $0x24] sm:$0xf] %vm2608, %v2531
      %2619 = vst.msk [vmem:[#allocation3 + $0x28] sm:$0xf] %vm2608, %v2533
      %2620 = vst.msk [vmem:[#allocation3 + $0x2c] sm:$0xf] %vm2608, %v2535
      %2621 = vst.msk [vmem:[#allocation3 + $0x30] sm:$0xf] %vm2608, %v2537
      %2622 = vst.msk [vmem:[#allocation3 + $0x34] sm:$0xf] %vm2608, %v2539
      %2623 = vst.msk [vmem:[#allocation3 + $0x38] sm:$0xf] %vm2608, %v2541
      %2624 = vst.msk [vmem:[#allocation3 + $0x3c] sm:$0xf] %vm2608, %v2543
      %2625 = vst.msk [vmem:[#allocation3 + $0x40] sm:$0xf] %vm2608, %v2545
      %2626 = vst.msk [vmem:[#allocation3 + $0x44] sm:$0xf] %vm2608, %v2547
      %2627 = vst.msk [vmem:[#allocation3 + $0x48] sm:$0xf] %vm2608, %v2549
      %2628 = vst.msk [vmem:[#allocation3 + $0x4c] sm:$0xf] %vm2608, %v2551
      %2629 = vst.msk [vmem:[#allocation3 + $0x50] sm:$0xf] %vm2608, %v2553
      %2630 = vst.msk [vmem:[#allocation3 + $0x54] sm:$0xf] %vm2608, %v2555
      %2631 = vst.msk [vmem:[#allocation3 + $0x58] sm:$0xf] %vm2608, %v2557
      %2632 = vst.msk [vmem:[#allocation3 + $0x5c] sm:$0xf] %vm2608, %v2559
      %2633 = vst.msk [vmem:[#allocation3 + $0x60] sm:$0xf] %vm2608, %v2561
      %2634 = vst.msk [vmem:[#allocation3 + $0x64] sm:$0xf] %vm2608, %v2563
      %2635 = vst.msk [vmem:[#allocation3 + $0x68] sm:$0xf] %vm2608, %v2565
      %2636 = vst.msk [vmem:[#allocation3 + $0x6c] sm:$0xf] %vm2608, %v2567
      %2637 = vst.msk [vmem:[#allocation3 + $0x70] sm:$0xf] %vm2608, %v2569
      %2638 = vst.msk [vmem:[#allocation3 + $0x74] sm:$0xf] %vm2608, %v2571
      %2639 = vst.msk [vmem:[#allocation3 + $0x78] sm:$0xf] %vm2608, %v2573
      %2640 = vst.msk [vmem:[#allocation3 + $0x7c] sm:$0xf] %vm2608, %v2575
      %v2641 = vld [vmem:[#allocation3] sm:$0xf]
      %v2642 = vld [vmem:[#allocation3 + $0x4] sm:$0xf]
      %v2643 = vld [vmem:[#allocation3 + $0x8] sm:$0xf]
      %v2644 = vld [vmem:[#allocation3 + $0xc] sm:$0xf]
      %v2645 = vld [vmem:[#allocation3 + $0x10] sm:$0xf]
      %v2646 = vld [vmem:[#allocation3 + $0x14] sm:$0xf]
      %v2647 = vld [vmem:[#allocation3 + $0x18] sm:$0xf]
      %v2648 = vld [vmem:[#allocation3 + $0x1c] sm:$0xf]
      %v2649 = vld [vmem:[#allocation3 + $0x20] sm:$0xf]
      %v2650 = vld [vmem:[#allocation3 + $0x24] sm:$0xf]
      %v2651 = vld [vmem:[#allocation3 + $0x28] sm:$0xf]
      %v2652 = vld [vmem:[#allocation3 + $0x2c] sm:$0xf]
      %v2653 = vld [vmem:[#allocation3 + $0x30] sm:$0xf]
      %v2654 = vld [vmem:[#allocation3 + $0x34] sm:$0xf]
      %v2655 = vld [vmem:[#allocation3 + $0x38] sm:$0xf]
      %v2656 = vld [vmem:[#allocation3 + $0x3c] sm:$0xf]
      %v2657 = vld [vmem:[#allocation3 + $0x40] sm:$0xf]
      %v2658 = vld [vmem:[#allocation3 + $0x44] sm:$0xf]
      %v2659 = vld [vmem:[#allocation3 + $0x48] sm:$0xf]
      %v2660 = vld [vmem:[#allocation3 + $0x4c] sm:$0xf]
      %v2661 = vld [vmem:[#allocation3 + $0x50] sm:$0xf]
      %v2662 = vld [vmem:[#allocation3 + $0x54] sm:$0xf]
      %v2663 = vld [vmem:[#allocation3 + $0x58] sm:$0xf]
      %v2664 = vld [vmem:[#allocation3 + $0x5c] sm:$0xf]
      %v2665 = vld [vmem:[#allocation3 + $0x60] sm:$0xf]
      %v2666 = vld [vmem:[#allocation3 + $0x64] sm:$0xf]
      %v2667 = vld [vmem:[#allocation3 + $0x68] sm:$0xf]
      %v2668 = vld [vmem:[#allocation3 + $0x6c] sm:$0xf]
      %v2669 = vld [vmem:[#allocation3 + $0x70] sm:$0xf]
      %v2670 = vld [vmem:[#allocation3 + $0x74] sm:$0xf]
      %v2671 = vld [vmem:[#allocation3 + $0x78] sm:$0xf]
      %v2672 = vld [vmem:[#allocation3 + $0x7c] sm:$0xf]
      %v2673 = vld [vmem:[%s1] sm:$0xf]
      %v2674 = vld [vmem:[%s1 + $0x4] sm:$0xf]
      %v2675 = vld [vmem:[%s1 + $0x8] sm:$0xf]
      %v2676 = vld [vmem:[%s1 + $0xc] sm:$0xf]
      %v2677 = vld [vmem:[%s1 + $0x10] sm:$0x3]
      %v2710 = vunpack.c.l.b16 %v2641
      %v2711 = vunpack.c.l.b16 %v2642
      %v2712 = vunpack.c.l.b16 %v2643
      %v2713 = vunpack.c.l.b16 %v2644
      %v2714 = vunpack.c.l.b16 %v2645
      %v2715 = vunpack.c.l.b16 %v2646
      %v2716 = vunpack.c.l.b16 %v2647
      %v2717 = vunpack.c.l.b16 %v2648
      %v2718 = vunpack.c.l.b16 %v2649
      %v2719 = vunpack.c.l.b16 %v2650
      %v2720 = vunpack.c.l.b16 %v2651
      %v2721 = vunpack.c.l.b16 %v2652
      %v2722 = vunpack.c.l.b16 %v2653
      %v2723 = vunpack.c.l.b16 %v2654
      %v2724 = vunpack.c.l.b16 %v2655
      %v2725 = vunpack.c.l.b16 %v2656
      %v2726 = vunpack.c.l.b16 %v2657
      %v2727 = vunpack.c.l.b16 %v2658
      %v2728 = vunpack.c.l.b16 %v2659
      %v2729 = vunpack.c.l.b16 %v2660
      %v2730 = vunpack.c.l.b16 %v2661
      %v2731 = vunpack.c.l.b16 %v2662
      %v2732 = vunpack.c.l.b16 %v2663
      %v2733 = vunpack.c.l.b16 %v2664
      %v2734 = vunpack.c.l.b16 %v2665
      %v2735 = vunpack.c.l.b16 %v2666
      %v2736 = vunpack.c.l.b16 %v2667
      %v2737 = vunpack.c.l.b16 %v2668
      %v2738 = vunpack.c.l.b16 %v2669
      %v2739 = vunpack.c.l.b16 %v2670
      %v2740 = vunpack.c.l.b16 %v2671
      %v2741 = vunpack.c.l.b16 %v2672
      %v2742 = vpack.c.b16 %v2711, %v2710
      %v2743 = vpack.c.b16 %v2713, %v2712
      %v2744 = vpack.c.b16 %v2715, %v2714
      %v2745 = vpack.c.b16 %v2717, %v2716
      %v2746 = vpack.c.b16 %v2719, %v2718
      %v2747 = vpack.c.b16 %v2721, %v2720
      %v2748 = vpack.c.b16 %v2723, %v2722
      %v2749 = vpack.c.b16 %v2725, %v2724
      %v2750 = vpack.c.b16 %v2727, %v2726
      %v2751 = vpack.c.b16 %v2729, %v2728
      %v2752 = vpack.c.b16 %v2731, %v2730
      %v2753 = vpack.c.b16 %v2733, %v2732
      %v2754 = vpack.c.b16 %v2735, %v2734
      %v2755 = vpack.c.b16 %v2737, %v2736
      %v2756 = vpack.c.b16 %v2739, %v2738
      %v2757 = vpack.c.b16 %v2741, %v2740
      %v2763 = vunpack.c.l.b16 %v2673
      %v2764 = vunpack.c.l.b16 %v2674
      %v2765 = vunpack.c.l.b16 %v2675
      %v2766 = vunpack.c.l.b16 %v2676
      %v2767 = vunpack.c.l.b16 %v2677
      %v2768 = vpack.c.b16 %v2764, %v2763
      %v2769 = vpack.c.b16 %v2766, %v2765
      %v2770 = vpack.c.b16 %v2767, %v2767
      %vm2773 = vcmask 293888
      %v2775 = vsel %vm2773, %v2742, 0
      %v2778 = vsel %vm2773, %v2743, 0
      %v2781 = vsel %vm2773, %v2744, 0
      %v2784 = vsel %vm2773, %v2745, 0
      %v2787 = vsel %vm2773, %v2746, 0
      %v2790 = vsel %vm2773, %v2747, 0
      %v2793 = vsel %vm2773, %v2748, 0
      %v2796 = vsel %vm2773, %v2749, 0
      %v2799 = vsel %vm2773, %v2750, 0
      %v2802 = vsel %vm2773, %v2751, 0
      %v2805 = vsel %vm2773, %v2752, 0
      %v2808 = vsel %vm2773, %v2753, 0
      %v2811 = vsel %vm2773, %v2754, 0
      %v2814 = vsel %vm2773, %v2755, 0
      %v2817 = vsel %vm2773, %v2756, 0
      %v2820 = vsel %vm2773, %v2757, 0
      %vm2822 = vcmask 1041408
      %v2824 = vsel %vm2822, %v2770, 0
      %2826 = vmatprep.subr.bf16.mxu0 0
      %2827 = vmatpush1.bf16.msra.mxu0 0
      %2828 = vmatprep.subr.bf16.mxu0 0
      %2829 = vmatpush1.bf16.msra.mxu0 0
      %2830 = vmatprep.subr.bf16.mxu0 0
      %2831 = vmatpush1.bf16.msra.mxu0 0
      %2832 = vmatprep.subr.bf16.mxu0 0
      %2833 = vmatpush1.bf16.msra.mxu0 0
      %2834 = vmatprep.subr.bf16.mxu0 0
      %2835 = vmatpush1.bf16.msra.mxu0 0
      %2836 = vmatprep.subr.bf16.mxu0 0
      %2837 = vmatpush1.bf16.msra.mxu0 %v2824
      %2838 = vmatprep.subr.bf16.mxu0 0
      %2839 = vmatpush1.bf16.msra.mxu0 %v2769
      %2840 = vmatprep.subr.bf16.mxu0 0
      %2841 = vmatpush1.bf16.msra.mxu0 %v2768
      %2842 = vmatprep.subr.bf16.mxu0 0
      %2843 = vmatpush2.bf16.msra.mxu0 0
      %2844 = vmatprep.subr.bf16.mxu0 0
      %2845 = vmatpush2.bf16.msra.mxu0 0
      %2846 = vmatprep.subr.bf16.mxu0 0
      %2847 = vmatpush2.bf16.msra.mxu0 0
      %2848 = vmatprep.subr.bf16.mxu0 0
      %2849 = vmatpush2.bf16.msra.mxu0 0
      %2850 = vmatprep.subr.bf16.mxu0 0
      %2851 = vmatpush2.bf16.msra.mxu0 0
      %2852 = vmatprep.subr.bf16.mxu0 0
      %2853 = vmatpush2.bf16.msra.mxu0 0
      %2854 = vmatprep.subr.bf16.mxu0 0
      %2855 = vmatpush2.bf16.msra.mxu0 0
      %2856 = vmatprep.subr.bf16.mxu0 0
      %2857 = vmatpush2.bf16.msra.mxu0 0
      %2858 = vmatprep.mubr.bf16.mxu0 0
      %2859 = vmatmul.mubr.bf16.gmra.mxu0 %v2775
      %v2860 = vpop.f32.mrf.mxu0
      %v2861 = vadd.f32 0.0, %v2860
      %v2862 = vpop.f32.mrf.mxu0
      %v2863 = vpop.f32.mrf.mxu0
      %v2864 = vadd.f32 0.0, %v2863
      %v2865 = vpop.f32.mrf.mxu0
      %2866 = vmatprep.mubr.bf16.mxu0 0
      %2867 = vmatmul.mubr.bf16.gmra.mxu0 %v2778
      %v2868 = vpop.f32.mrf.mxu0
      %v2869 = vadd.f32 0.0, %v2868
      %v2870 = vpop.f32.mrf.mxu0
      %v2871 = vpop.f32.mrf.mxu0
      %v2872 = vadd.f32 0.0, %v2871
      %v2873 = vpop.f32.mrf.mxu0
      %2874 = vmatprep.mubr.bf16.mxu0 0
      %2875 = vmatmul.mubr.bf16.gmra.mxu0 %v2781
      %v2876 = vpop.f32.mrf.mxu0
      %v2877 = vadd.f32 0.0, %v2876
      %v2878 = vpop.f32.mrf.mxu0
      %v2879 = vpop.f32.mrf.mxu0
      %v2880 = vadd.f32 0.0, %v2879
      %v2881 = vpop.f32.mrf.mxu0
      %2882 = vmatprep.mubr.bf16.mxu0 0
      %2883 = vmatmul.mubr.bf16.gmra.mxu0 %v2784
      %v2884 = vpop.f32.mrf.mxu0
      %v2885 = vadd.f32 0.0, %v2884
      %v2886 = vpop.f32.mrf.mxu0
      %v2887 = vpop.f32.mrf.mxu0
      %v2888 = vadd.f32 0.0, %v2887
      %v2889 = vpop.f32.mrf.mxu0
      %2890 = vmatprep.mubr.bf16.mxu0 0
      %2891 = vmatmul.mubr.bf16.gmra.mxu0 %v2787
      %v2892 = vpop.f32.mrf.mxu0
      %v2893 = vadd.f32 0.0, %v2892
      %v2894 = vpop.f32.mrf.mxu0
      %v2895 = vpop.f32.mrf.mxu0
      %v2896 = vadd.f32 0.0, %v2895
      %v2897 = vpop.f32.mrf.mxu0
      %2898 = vmatprep.mubr.bf16.mxu0 0
      %2899 = vmatmul.mubr.bf16.gmra.mxu0 %v2790
      %v2900 = vpop.f32.mrf.mxu0
      %v2901 = vadd.f32 0.0, %v2900
      %v2902 = vpop.f32.mrf.mxu0
      %v2903 = vpop.f32.mrf.mxu0
      %v2904 = vadd.f32 0.0, %v2903
      %v2905 = vpop.f32.mrf.mxu0
      %2906 = vmatprep.mubr.bf16.mxu0 0
      %2907 = vmatmul.mubr.bf16.gmra.mxu0 %v2793
      %v2908 = vpop.f32.mrf.mxu0
      %v2909 = vadd.f32 0.0, %v2908
      %v2910 = vpop.f32.mrf.mxu0
      %v2911 = vpop.f32.mrf.mxu0
      %v2912 = vadd.f32 0.0, %v2911
      %v2913 = vpop.f32.mrf.mxu0
      %2914 = vmatprep.mubr.bf16.mxu0 0
      %2915 = vmatmul.mubr.bf16.gmra.mxu0 %v2796
      %v2916 = vpop.f32.mrf.mxu0
      %v2917 = vadd.f32 0.0, %v2916
      %v2918 = vpop.f32.mrf.mxu0
      %v2919 = vpop.f32.mrf.mxu0
      %v2920 = vadd.f32 0.0, %v2919
      %v2921 = vpop.f32.mrf.mxu0
      %2922 = vmatprep.mubr.bf16.mxu0 0
      %2923 = vmatmul.mubr.bf16.gmra.mxu0 %v2799
      %v2924 = vpop.f32.mrf.mxu0
      %v2925 = vadd.f32 0.0, %v2924
      %v2926 = vpop.f32.mrf.mxu0
      %v2927 = vpop.f32.mrf.mxu0
      %v2928 = vadd.f32 0.0, %v2927
      %v2929 = vpop.f32.mrf.mxu0
      %2930 = vmatprep.mubr.bf16.mxu0 0
      %2931 = vmatmul.mubr.bf16.gmra.mxu0 %v2802
      %v2932 = vpop.f32.mrf.mxu0
      %v2933 = vadd.f32 0.0, %v2932
      %v2934 = vpop.f32.mrf.mxu0
      %v2935 = vpop.f32.mrf.mxu0
      %v2936 = vadd.f32 0.0, %v2935
      %v2937 = vpop.f32.mrf.mxu0
      %2938 = vmatprep.mubr.bf16.mxu0 0
      %2939 = vmatmul.mubr.bf16.gmra.mxu0 %v2805
      %v2940 = vpop.f32.mrf.mxu0
      %v2941 = vadd.f32 0.0, %v2940
      %v2942 = vpop.f32.mrf.mxu0
      %v2943 = vpop.f32.mrf.mxu0
      %v2944 = vadd.f32 0.0, %v2943
      %v2945 = vpop.f32.mrf.mxu0
      %2946 = vmatprep.mubr.bf16.mxu0 0
      %2947 = vmatmul.mubr.bf16.gmra.mxu0 %v2808
      %v2948 = vpop.f32.mrf.mxu0
      %v2949 = vadd.f32 0.0, %v2948
      %v2950 = vpop.f32.mrf.mxu0
      %v2951 = vpop.f32.mrf.mxu0
      %v2952 = vadd.f32 0.0, %v2951
      %v2953 = vpop.f32.mrf.mxu0
      %2954 = vmatprep.mubr.bf16.mxu0 0
      %2955 = vmatmul.mubr.bf16.gmra.mxu0 %v2811
      %v2956 = vpop.f32.mrf.mxu0
      %v2957 = vadd.f32 0.0, %v2956
      %v2958 = vpop.f32.mrf.mxu0
      %v2959 = vpop.f32.mrf.mxu0
      %v2960 = vadd.f32 0.0, %v2959
      %v2961 = vpop.f32.mrf.mxu0
      %2962 = vmatprep.mubr.bf16.mxu0 0
      %2963 = vmatmul.mubr.bf16.gmra.mxu0 %v2814
      %v2964 = vpop.f32.mrf.mxu0
      %v2965 = vadd.f32 0.0, %v2964
      %v2966 = vpop.f32.mrf.mxu0
      %v2967 = vpop.f32.mrf.mxu0
      %v2968 = vadd.f32 0.0, %v2967
      %v2969 = vpop.f32.mrf.mxu0
      %2970 = vmatprep.mubr.bf16.mxu0 0
      %2971 = vmatmul.mubr.bf16.gmra.mxu0 %v2817
      %v2972 = vpop.f32.mrf.mxu0
      %v2973 = vadd.f32 0.0, %v2972
      %v2974 = vpop.f32.mrf.mxu0
      %v2975 = vpop.f32.mrf.mxu0
      %v2976 = vadd.f32 0.0, %v2975
      %v2977 = vpop.f32.mrf.mxu0
      %2978 = vmatprep.mubr.bf16.mxu0 0
      %2979 = vmatmul.mubr.bf16.gmra.mxu0 %v2820
      %v2980 = vpop.f32.mrf.mxu0
      %v2981 = vadd.f32 0.0, %v2980
      %v2982 = vpop.f32.mrf.mxu0
      %v2983 = vpop.f32.mrf.mxu0
      %v2984 = vadd.f32 0.0, %v2983
      %v2985 = vpop.f32.mrf.mxu0
      %2986 = vdwg.mxu0
      %v2987 = vsel %vm312, %v2861, 0.0
      %v2988 = vsel %vm312, %v2864, 0.0
      %v2989 = vadd.f32 %v2987, %v2988
      %v2990 = vsel %vm312, %v2869, 0.0
      %v2991 = vadd.f32 %v2989, %v2990
      %v2992 = vsel %vm312, %v2872, 0.0
      %v2993 = vadd.f32 %v2991, %v2992
      %v2994 = vsel %vm312, %v2877, 0.0
      %v2995 = vadd.f32 %v2993, %v2994
      %v2996 = vsel %vm312, %v2880, 0.0
      %v2997 = vadd.f32 %v2995, %v2996
      %v2998 = vsel %vm312, %v2885, 0.0
      %v2999 = vadd.f32 %v2997, %v2998
      %v3000 = vsel %vm312, %v2888, 0.0
      %v3001 = vadd.f32 %v2999, %v3000
      %v3002 = vsel %vm312, %v2893, 0.0
      %v3003 = vadd.f32 %v3001, %v3002
      %v3004 = vsel %vm312, %v2896, 0.0
      %v3005 = vadd.f32 %v3003, %v3004
      %v3006 = vsel %vm312, %v2901, 0.0
      %v3007 = vadd.f32 %v3005, %v3006
      %v3008 = vsel %vm312, %v2904, 0.0
      %v3009 = vadd.f32 %v3007, %v3008
      %v3010 = vsel %vm312, %v2909, 0.0
      %v3011 = vadd.f32 %v3009, %v3010
      %v3012 = vsel %vm312, %v2912, 0.0
      %v3013 = vadd.f32 %v3011, %v3012
      %v3014 = vsel %vm312, %v2917, 0.0
      %v3015 = vadd.f32 %v3013, %v3014
      %v3016 = vsel %vm312, %v2920, 0.0
      %v3017 = vadd.f32 %v3015, %v3016
      %v3018 = vsel %vm312, %v2925, 0.0
      %v3019 = vadd.f32 %v3017, %v3018
      %v3020 = vsel %vm312, %v2928, 0.0
      %v3021 = vadd.f32 %v3019, %v3020
      %v3022 = vsel %vm312, %v2933, 0.0
      %v3023 = vadd.f32 %v3021, %v3022
      %v3024 = vsel %vm312, %v2936, 0.0
      %v3025 = vadd.f32 %v3023, %v3024
      %v3026 = vsel %vm312, %v2941, 0.0
      %v3027 = vadd.f32 %v3025, %v3026
      %v3028 = vsel %vm312, %v2944, 0.0
      %v3029 = vadd.f32 %v3027, %v3028
      %v3030 = vsel %vm312, %v2949, 0.0
      %v3031 = vadd.f32 %v3029, %v3030
      %v3032 = vsel %vm312, %v2952, 0.0
      %v3033 = vadd.f32 %v3031, %v3032
      %v3034 = vsel %vm312, %v2957, 0.0
      %v3035 = vadd.f32 %v3033, %v3034
      %v3036 = vsel %vm312, %v2960, 0.0
      %v3037 = vadd.f32 %v3035, %v3036
      %v3038 = vsel %vm312, %v2965, 0.0
      %v3039 = vadd.f32 %v3037, %v3038
      %v3040 = vsel %vm312, %v2968, 0.0
      %v3041 = vadd.f32 %v3039, %v3040
      %v3042 = vsel %vm312, %v2973, 0.0
      %v3043 = vadd.f32 %v3041, %v3042
      %v3044 = vsel %vm312, %v2976, 0.0
      %v3045 = vadd.f32 %v3043, %v3044
      %v3046 = vsel %vm312, %v2981, 0.0
      %v3047 = vadd.f32 %v3045, %v3046
      %v3048 = vsel %vm312, %v2984, 0.0
      %v3049 = vadd.f32 %v3047, %v3048
      %v3050 = vrot.slane %v3049, 4
      %v3051 = vadd.f32 %v3049, %v3050
      %v3052 = vrot.slane %v3051, 2
      %v3053 = vadd.f32 %v3051, %v3052
      %v3054 = vrot.slane %v3053, 1
      %v3055 = vadd.f32 %v3053, %v3054
      %v3056 = vrcp.pop 256.0
      %v3057 = vmul.f32 %v3055, %v3056
      %v3058 = vsub.f32 %v2861, %v3057
      %v3059 = vsub.f32 %v2864, %v3057
      %v3060 = vsub.f32 %v2869, %v3057
      %v3061 = vsub.f32 %v2872, %v3057
      %v3062 = vsub.f32 %v2877, %v3057
      %v3063 = vsub.f32 %v2880, %v3057
      %v3064 = vsub.f32 %v2885, %v3057
      %v3065 = vsub.f32 %v2888, %v3057
      %v3066 = vsub.f32 %v2893, %v3057
      %v3067 = vsub.f32 %v2896, %v3057
      %v3068 = vsub.f32 %v2901, %v3057
      %v3069 = vsub.f32 %v2904, %v3057
      %v3070 = vsub.f32 %v2909, %v3057
      %v3071 = vsub.f32 %v2912, %v3057
      %v3072 = vsub.f32 %v2917, %v3057
      %v3073 = vsub.f32 %v2920, %v3057
      %v3074 = vsub.f32 %v2925, %v3057
      %v3075 = vsub.f32 %v2928, %v3057
      %v3076 = vsub.f32 %v2933, %v3057
      %v3077 = vsub.f32 %v2936, %v3057
      %v3078 = vsub.f32 %v2941, %v3057
      %v3079 = vsub.f32 %v2944, %v3057
      %v3080 = vsub.f32 %v2949, %v3057
      %v3081 = vsub.f32 %v2952, %v3057
      %v3082 = vsub.f32 %v2957, %v3057
      %v3083 = vsub.f32 %v2960, %v3057
      %v3084 = vsub.f32 %v2965, %v3057
      %v3085 = vsub.f32 %v2968, %v3057
      %v3086 = vsub.f32 %v2973, %v3057
      %v3087 = vsub.f32 %v2976, %v3057
      %v3088 = vsub.f32 %v2981, %v3057
      %v3089 = vsub.f32 %v2984, %v3057
      %v3090 = vmul.f32 %v3058, %v3058
      %v3091 = vmul.f32 %v3059, %v3059
      %v3092 = vmul.f32 %v3060, %v3060
      %v3093 = vmul.f32 %v3061, %v3061
      %v3094 = vmul.f32 %v3062, %v3062
      %v3095 = vmul.f32 %v3063, %v3063
      %v3096 = vmul.f32 %v3064, %v3064
      %v3097 = vmul.f32 %v3065, %v3065
      %v3098 = vmul.f32 %v3066, %v3066
      %v3099 = vmul.f32 %v3067, %v3067
      %v3100 = vmul.f32 %v3068, %v3068
      %v3101 = vmul.f32 %v3069, %v3069
      %v3102 = vmul.f32 %v3070, %v3070
      %v3103 = vmul.f32 %v3071, %v3071
      %v3104 = vmul.f32 %v3072, %v3072
      %v3105 = vmul.f32 %v3073, %v3073
      %v3106 = vmul.f32 %v3074, %v3074
      %v3107 = vmul.f32 %v3075, %v3075
      %v3108 = vmul.f32 %v3076, %v3076
      %v3109 = vmul.f32 %v3077, %v3077
      %v3110 = vmul.f32 %v3078, %v3078
      %v3111 = vmul.f32 %v3079, %v3079
      %v3112 = vmul.f32 %v3080, %v3080
      %v3113 = vmul.f32 %v3081, %v3081
      %v3114 = vmul.f32 %v3082, %v3082
      %v3115 = vmul.f32 %v3083, %v3083
      %v3116 = vmul.f32 %v3084, %v3084
      %v3117 = vmul.f32 %v3085, %v3085
      %v3118 = vmul.f32 %v3086, %v3086
      %v3119 = vmul.f32 %v3087, %v3087
      %v3120 = vmul.f32 %v3088, %v3088
      %v3121 = vmul.f32 %v3089, %v3089
      %v3122 = vsel %vm312, %v3090, 0.0
      %v3123 = vsel %vm312, %v3091, 0.0
      %v3124 = vadd.f32 %v3122, %v3123
      %v3125 = vsel %vm312, %v3092, 0.0
      %v3126 = vadd.f32 %v3124, %v3125
      %v3127 = vsel %vm312, %v3093, 0.0
      %v3128 = vadd.f32 %v3126, %v3127
      %v3129 = vsel %vm312, %v3094, 0.0
      %v3130 = vadd.f32 %v3128, %v3129
      %v3131 = vsel %vm312, %v3095, 0.0
      %v3132 = vadd.f32 %v3130, %v3131
      %v3133 = vsel %vm312, %v3096, 0.0
      %v3134 = vadd.f32 %v3132, %v3133
      %v3135 = vsel %vm312, %v3097, 0.0
      %v3136 = vadd.f32 %v3134, %v3135
      %v3137 = vsel %vm312, %v3098, 0.0
      %v3138 = vadd.f32 %v3136, %v3137
      %v3139 = vsel %vm312, %v3099, 0.0
      %v3140 = vadd.f32 %v3138, %v3139
      %v3141 = vsel %vm312, %v3100, 0.0
      %v3142 = vadd.f32 %v3140, %v3141
      %v3143 = vsel %vm312, %v3101, 0.0
      %v3144 = vadd.f32 %v3142, %v3143
      %v3145 = vsel %vm312, %v3102, 0.0
      %v3146 = vadd.f32 %v3144, %v3145
      %v3147 = vsel %vm312, %v3103, 0.0
      %v3148 = vadd.f32 %v3146, %v3147
      %v3149 = vsel %vm312, %v3104, 0.0
      %v3150 = vadd.f32 %v3148, %v3149
      %v3151 = vsel %vm312, %v3105, 0.0
      %v3152 = vadd.f32 %v3150, %v3151
      %v3153 = vsel %vm312, %v3106, 0.0
      %v3154 = vadd.f32 %v3152, %v3153
      %v3155 = vsel %vm312, %v3107, 0.0
      %v3156 = vadd.f32 %v3154, %v3155
      %v3157 = vsel %vm312, %v3108, 0.0
      %v3158 = vadd.f32 %v3156, %v3157
      %v3159 = vsel %vm312, %v3109, 0.0
      %v3160 = vadd.f32 %v3158, %v3159
      %v3161 = vsel %vm312, %v3110, 0.0
      %v3162 = vadd.f32 %v3160, %v3161
      %v3163 = vsel %vm312, %v3111, 0.0
      %v3164 = vadd.f32 %v3162, %v3163
      %v3165 = vsel %vm312, %v3112, 0.0
      %v3166 = vadd.f32 %v3164, %v3165
      %v3167 = vsel %vm312, %v3113, 0.0
      %v3168 = vadd.f32 %v3166, %v3167
      %v3169 = vsel %vm312, %v3114, 0.0
      %v3170 = vadd.f32 %v3168, %v3169
      %v3171 = vsel %vm312, %v3115, 0.0
      %v3172 = vadd.f32 %v3170, %v3171
      %v3173 = vsel %vm312, %v3116, 0.0
      %v3174 = vadd.f32 %v3172, %v3173
      %v3175 = vsel %vm312, %v3117, 0.0
      %v3176 = vadd.f32 %v3174, %v3175
      %v3177 = vsel %vm312, %v3118, 0.0
      %v3178 = vadd.f32 %v3176, %v3177
      %v3179 = vsel %vm312, %v3119, 0.0
      %v3180 = vadd.f32 %v3178, %v3179
      %v3181 = vsel %vm312, %v3120, 0.0
      %v3182 = vadd.f32 %v3180, %v3181
      %v3183 = vsel %vm312, %v3121, 0.0
      %v3184 = vadd.f32 %v3182, %v3183
      %v3185 = vrot.slane %v3184, 4
      %v3186 = vadd.f32 %v3184, %v3185
      %v3187 = vrot.slane %v3186, 2
      %v3188 = vadd.f32 %v3186, %v3187
      %v3189 = vrot.slane %v3188, 1
      %v3190 = vadd.f32 %v3188, %v3189
      %v3191 = vmul.f32 %v3190, %v3056
      %v3192 = vadd.f32 %v3191, 1e-05
      %v3193 = vrsqrt.pop %v3192
      %v3194 = vmul.f32 %v3058, %v3193
      %v3195 = vmul.f32 %v3059, %v3193
      %v3196 = vmul.f32 %v3060, %v3193
      %v3197 = vmul.f32 %v3061, %v3193
      %v3198 = vmul.f32 %v3062, %v3193
      %v3199 = vmul.f32 %v3063, %v3193
      %v3200 = vmul.f32 %v3064, %v3193
      %v3201 = vmul.f32 %v3065, %v3193
      %v3202 = vmul.f32 %v3066, %v3193
      %v3203 = vmul.f32 %v3067, %v3193
      %v3204 = vmul.f32 %v3068, %v3193
      %v3205 = vmul.f32 %v3069, %v3193
      %v3206 = vmul.f32 %v3070, %v3193
      %v3207 = vmul.f32 %v3071, %v3193
      %v3208 = vmul.f32 %v3072, %v3193
      %v3209 = vmul.f32 %v3073, %v3193
      %v3210 = vmul.f32 %v3074, %v3193
      %v3211 = vmul.f32 %v3075, %v3193
      %v3212 = vmul.f32 %v3076, %v3193
      %v3213 = vmul.f32 %v3077, %v3193
      %v3214 = vmul.f32 %v3078, %v3193
      %v3215 = vmul.f32 %v3079, %v3193
      %v3216 = vmul.f32 %v3080, %v3193
      %v3217 = vmul.f32 %v3081, %v3193
      %v3218 = vmul.f32 %v3082, %v3193
      %v3219 = vmul.f32 %v3083, %v3193
      %v3220 = vmul.f32 %v3084, %v3193
      %v3221 = vmul.f32 %v3085, %v3193
      %v3222 = vmul.f32 %v3086, %v3193
      %v3223 = vmul.f32 %v3087, %v3193
      %v3224 = vmul.f32 %v3088, %v3193
      %v3225 = vmul.f32 %v3089, %v3193
      %v3226 = vld [vmem:[%s2] sm:$0x1]
      %v3228 = vlaneseq
      %v3229 = vshrl.u32 %v3228, 7
      %v3230 = vsub.s32 0, %v3229
      %v3231 = vrot.slane %v3226, %v3230
      %v3233 = vmul.f32 %v3194, %v3231
      %v3234 = vmul.f32 %v3195, %v3231
      %v3235 = vmul.f32 %v3196, %v3231
      %v3236 = vmul.f32 %v3197, %v3231
      %v3237 = vmul.f32 %v3198, %v3231
      %v3238 = vmul.f32 %v3199, %v3231
      %v3239 = vmul.f32 %v3200, %v3231
      %v3240 = vmul.f32 %v3201, %v3231
      %v3241 = vmul.f32 %v3202, %v3231
      %v3242 = vmul.f32 %v3203, %v3231
      %v3243 = vmul.f32 %v3204, %v3231
      %v3244 = vmul.f32 %v3205, %v3231
      %v3245 = vmul.f32 %v3206, %v3231
      %v3246 = vmul.f32 %v3207, %v3231
      %v3247 = vmul.f32 %v3208, %v3231
      %v3248 = vmul.f32 %v3209, %v3231
      %v3249 = vmul.f32 %v3210, %v3231
      %v3250 = vmul.f32 %v3211, %v3231
      %v3251 = vmul.f32 %v3212, %v3231
      %v3252 = vmul.f32 %v3213, %v3231
      %v3253 = vmul.f32 %v3214, %v3231
      %v3254 = vmul.f32 %v3215, %v3231
      %v3255 = vmul.f32 %v3216, %v3231
      %v3256 = vmul.f32 %v3217, %v3231
      %v3257 = vmul.f32 %v3218, %v3231
      %v3258 = vmul.f32 %v3219, %v3231
      %v3259 = vmul.f32 %v3220, %v3231
      %v3260 = vmul.f32 %v3221, %v3231
      %v3261 = vmul.f32 %v3222, %v3231
      %v3262 = vmul.f32 %v3223, %v3231
      %v3263 = vmul.f32 %v3224, %v3231
      %v3264 = vmul.f32 %v3225, %v3231
      %v3265 = vld [vmem:[%s3] sm:$0x1]
      %v3267 = vlaneseq
      %v3268 = vshrl.u32 %v3267, 7
      %v3269 = vsub.s32 0, %v3268
      %v3270 = vrot.slane %v3265, %v3269
      %v3272 = vadd.f32 %v3233, %v3270
      %v3273 = vadd.f32 %v3234, %v3270
      %v3274 = vadd.f32 %v3235, %v3270
      %v3275 = vadd.f32 %v3236, %v3270
      %v3276 = vadd.f32 %v3237, %v3270
      %v3277 = vadd.f32 %v3238, %v3270
      %v3278 = vadd.f32 %v3239, %v3270
      %v3279 = vadd.f32 %v3240, %v3270
      %v3280 = vadd.f32 %v3241, %v3270
      %v3281 = vadd.f32 %v3242, %v3270
      %v3282 = vadd.f32 %v3243, %v3270
      %v3283 = vadd.f32 %v3244, %v3270
      %v3284 = vadd.f32 %v3245, %v3270
      %v3285 = vadd.f32 %v3246, %v3270
      %v3286 = vadd.f32 %v3247, %v3270
      %v3287 = vadd.f32 %v3248, %v3270
      %v3288 = vadd.f32 %v3249, %v3270
      %v3289 = vadd.f32 %v3250, %v3270
      %v3290 = vadd.f32 %v3251, %v3270
      %v3291 = vadd.f32 %v3252, %v3270
      %v3292 = vadd.f32 %v3253, %v3270
      %v3293 = vadd.f32 %v3254, %v3270
      %v3294 = vadd.f32 %v3255, %v3270
      %v3295 = vadd.f32 %v3256, %v3270
      %v3296 = vadd.f32 %v3257, %v3270
      %v3297 = vadd.f32 %v3258, %v3270
      %v3298 = vadd.f32 %v3259, %v3270
      %v3299 = vadd.f32 %v3260, %v3270
      %v3300 = vadd.f32 %v3261, %v3270
      %v3301 = vadd.f32 %v3262, %v3270
      %v3302 = vadd.f32 %v3263, %v3270
      %v3303 = vadd.f32 %v3264, %v3270
      %v3304 = vmax.f32 %v3272, 0.0
      %v3305 = vmax.f32 %v3273, 0.0
      %v3306 = vmax.f32 %v3274, 0.0
      %v3307 = vmax.f32 %v3275, 0.0
      %v3308 = vmax.f32 %v3276, 0.0
      %v3309 = vmax.f32 %v3277, 0.0
      %v3310 = vmax.f32 %v3278, 0.0
      %v3311 = vmax.f32 %v3279, 0.0
      %v3312 = vmax.f32 %v3280, 0.0
      %v3313 = vmax.f32 %v3281, 0.0
      %v3314 = vmax.f32 %v3282, 0.0
      %v3315 = vmax.f32 %v3283, 0.0
      %v3316 = vmax.f32 %v3284, 0.0
      %v3317 = vmax.f32 %v3285, 0.0
      %v3318 = vmax.f32 %v3286, 0.0
      %v3319 = vmax.f32 %v3287, 0.0
      %v3320 = vmax.f32 %v3288, 0.0
      %v3321 = vmax.f32 %v3289, 0.0
      %v3322 = vmax.f32 %v3290, 0.0
      %v3323 = vmax.f32 %v3291, 0.0
      %v3324 = vmax.f32 %v3292, 0.0
      %v3325 = vmax.f32 %v3293, 0.0
      %v3326 = vmax.f32 %v3294, 0.0
      %v3327 = vmax.f32 %v3295, 0.0
      %v3328 = vmax.f32 %v3296, 0.0
      %v3329 = vmax.f32 %v3297, 0.0
      %v3330 = vmax.f32 %v3298, 0.0
      %v3331 = vmax.f32 %v3299, 0.0
      %v3332 = vmax.f32 %v3300, 0.0
      %v3333 = vmax.f32 %v3301, 0.0
      %v3334 = vmax.f32 %v3302, 0.0
      %v3335 = vmax.f32 %v3303, 0.0
      %3336 = vst.msk [vmem:[%s358 + $0x1] sm:$0xff] %vm312, %v3304
      %3337 = vst.msk [vmem:[%s358 + $0x9] sm:$0xff] %vm312, %v3305
      %3338 = vst.msk [vmem:[%s358 + $0x19] sm:$0xff] %vm312, %v3306
      %3339 = vst.msk [vmem:[%s358 + $0x21] sm:$0xff] %vm312, %v3307
      %3340 = vst.msk [vmem:[%s358 + $0x31] sm:$0xff] %vm312, %v3308
      %3341 = vst.msk [vmem:[%s358 + $0x39] sm:$0xff] %vm312, %v3309
      %3342 = vst.msk [vmem:[%s358 + $0x49] sm:$0xff] %vm312, %v3310
      %3343 = vst.msk [vmem:[%s358 + $0x51] sm:$0xff] %vm312, %v3311
      %3344 = vst.msk [vmem:[%s358 + $0x61] sm:$0xff] %vm312, %v3312
      %3345 = vst.msk [vmem:[%s358 + $0x69] sm:$0xff] %vm312, %v3313
      %3346 = vst.msk [vmem:[%s358 + $0x79] sm:$0xff] %vm312, %v3314
      %3347 = vst.msk [vmem:[%s358 + $0x81] sm:$0xff] %vm312, %v3315
      %3348 = vst.msk [vmem:[%s358 + $0x91] sm:$0xff] %vm312, %v3316
      %3349 = vst.msk [vmem:[%s358 + $0x99] sm:$0xff] %vm312, %v3317
      %3350 = vst.msk [vmem:[%s358 + $0xa9] sm:$0xff] %vm312, %v3318
      %3351 = vst.msk [vmem:[%s358 + $0xb1] sm:$0xff] %vm312, %v3319
      %3352 = vst.msk [vmem:[%s358 + $0xc1] sm:$0xff] %vm312, %v3320
      %3353 = vst.msk [vmem:[%s358 + $0xc9] sm:$0xff] %vm312, %v3321
      %3354 = vst.msk [vmem:[%s358 + $0xd9] sm:$0xff] %vm312, %v3322
      %3355 = vst.msk [vmem:[%s358 + $0xe1] sm:$0xff] %vm312, %v3323
      %3356 = vst.msk [vmem:[%s358 + $0xf1] sm:$0xff] %vm312, %v3324
      %3357 = vst.msk [vmem:[%s358 + $0xf9] sm:$0xff] %vm312, %v3325
      %3358 = vst.msk [vmem:[%s358 + $0x109] sm:$0xff] %vm312, %v3326
      %3359 = vst.msk [vmem:[%s358 + $0x111] sm:$0xff] %vm312, %v3327
      %3360 = vst.msk [vmem:[%s358 + $0x121] sm:$0xff] %vm312, %v3328
      %3361 = vst.msk [vmem:[%s358 + $0x129] sm:$0xff] %vm312, %v3329
      %3362 = vst.msk [vmem:[%s358 + $0x139] sm:$0xff] %vm312, %v3330
      %3363 = vst.msk [vmem:[%s358 + $0x141] sm:$0xff] %vm312, %v3331
      %3364 = vst.msk [vmem:[%s358 + $0x151] sm:$0xff] %vm312, %v3332
      %3365 = vst.msk [vmem:[%s358 + $0x159] sm:$0xff] %vm312, %v3333
      %3366 = vst.msk [vmem:[%s358 + $0x169] sm:$0xff] %vm312, %v3334
      %3367 = vst.msk [vmem:[%s358 + $0x171] sm:$0xff] %vm312, %v3335
      %v3368 = vld [vmem:[#allocation2] sm:$0xff]
      %v3369 = vld [vmem:[#allocation2 + $0x8] sm:$0xff]
      %v3370 = vld [vmem:[#allocation2 + $0x18] sm:$0xff]
      %v3371 = vld [vmem:[#allocation2 + $0x20] sm:$0xff]
      %v3372 = vld [vmem:[#allocation2 + $0x30] sm:$0xff]
      %v3373 = vld [vmem:[#allocation2 + $0x38] sm:$0xff]
      %v3374 = vld [vmem:[#allocation2 + $0x48] sm:$0xff]
      %v3375 = vld [vmem:[#allocation2 + $0x50] sm:$0xff]
      %v3376 = vld [vmem:[#allocation2 + $0x60] sm:$0xff]
      %v3377 = vld [vmem:[#allocation2 + $0x68] sm:$0xff]
      %v3378 = vld [vmem:[#allocation2 + $0x78] sm:$0xff]
      %v3379 = vld [vmem:[#allocation2 + $0x80] sm:$0xff]
      %v3380 = vld [vmem:[#allocation2 + $0x90] sm:$0xff]
      %v3381 = vld [vmem:[#allocation2 + $0x98] sm:$0xff]
      %v3382 = vld [vmem:[#allocation2 + $0xa8] sm:$0xff]
      %v3383 = vld [vmem:[#allocation2 + $0xb0] sm:$0xff]
      %v3384 = vld [vmem:[#allocation2 + $0xc0] sm:$0xff]
      %v3385 = vld [vmem:[#allocation2 + $0xc8] sm:$0xff]
      %v3386 = vld [vmem:[#allocation2 + $0xd8] sm:$0xff]
      %v3387 = vld [vmem:[#allocation2 + $0xe0] sm:$0xff]
      %v3388 = vld [vmem:[#allocation2 + $0xf0] sm:$0xff]
      %v3389 = vld [vmem:[#allocation2 + $0xf8] sm:$0xff]
      %v3390 = vld [vmem:[#allocation2 + $0x108] sm:$0xff]
      %v3391 = vld [vmem:[#allocation2 + $0x110] sm:$0xff]
      %v3392 = vld [vmem:[#allocation2 + $0x120] sm:$0xff]
      %v3393 = vld [vmem:[#allocation2 + $0x128] sm:$0xff]
      %v3394 = vld [vmem:[#allocation2 + $0x138] sm:$0xff]
      %v3395 = vld [vmem:[#allocation2 + $0x140] sm:$0xff]
      %v3396 = vld [vmem:[#allocation2 + $0x150] sm:$0xff]
      %v3397 = vld [vmem:[#allocation2 + $0x158] sm:$0xff]
      %v3398 = vld [vmem:[#allocation2 + $0x168] sm:$0xff]
      %v3399 = vld [vmem:[#allocation2 + $0x170] sm:$0xff]
      %v3400 = vpack.c.bf16 %v3369, %v3368
      %v3401 = vpack.c.bf16 %v3371, %v3370
      %v3402 = vpack.c.bf16 %v3373, %v3372
      %v3403 = vpack.c.bf16 %v3375, %v3374
      %v3404 = vpack.c.bf16 %v3377, %v3376
      %v3405 = vpack.c.bf16 %v3379, %v3378
      %v3406 = vpack.c.bf16 %v3381, %v3380
      %v3407 = vpack.c.bf16 %v3383, %v3382
      %v3408 = vpack.c.bf16 %v3385, %v3384
      %v3409 = vpack.c.bf16 %v3387, %v3386
      %v3410 = vpack.c.bf16 %v3389, %v3388
      %v3411 = vpack.c.bf16 %v3391, %v3390
      %v3412 = vpack.c.bf16 %v3393, %v3392
      %v3413 = vpack.c.bf16 %v3395, %v3394
      %v3414 = vpack.c.bf16 %v3397, %v3396
      %v3415 = vpack.c.bf16 %v3399, %v3398
      %v3432 = vunpack.c.l.b16 %v3400
      %v3433 = vunpack.c.h.b16 %v3400
      %v3434 = vunpack.c.l.b16 %v3401
      %v3435 = vunpack.c.h.b16 %v3401
      %v3436 = vunpack.c.l.b16 %v3402
      %v3437 = vunpack.c.h.b16 %v3402
      %v3438 = vunpack.c.l.b16 %v3403
      %v3439 = vunpack.c.h.b16 %v3403
      %v3440 = vunpack.c.l.b16 %v3404
      %v3441 = vunpack.c.h.b16 %v3404
      %v3442 = vunpack.c.l.b16 %v3405
      %v3443 = vunpack.c.h.b16 %v3405
      %v3444 = vunpack.c.l.b16 %v3406
      %v3445 = vunpack.c.h.b16 %v3406
      %v3446 = vunpack.c.l.b16 %v3407
      %v3447 = vunpack.c.h.b16 %v3407
      %v3448 = vunpack.c.l.b16 %v3408
      %v3449 = vunpack.c.h.b16 %v3408
      %v3450 = vunpack.c.l.b16 %v3409
      %v3451 = vunpack.c.h.b16 %v3409
      %v3452 = vunpack.c.l.b16 %v3410
      %v3453 = vunpack.c.h.b16 %v3410
      %v3454 = vunpack.c.l.b16 %v3411
      %v3455 = vunpack.c.h.b16 %v3411
      %v3456 = vunpack.c.l.b16 %v3412
      %v3457 = vunpack.c.h.b16 %v3412
      %v3458 = vunpack.c.l.b16 %v3413
      %v3459 = vunpack.c.h.b16 %v3413
      %v3460 = vunpack.c.l.b16 %v3414
      %v3461 = vunpack.c.h.b16 %v3414
      %v3462 = vunpack.c.l.b16 %v3415
      %v3463 = vunpack.c.h.b16 %v3415
      %v3464 = vpack.c.b16 %v3432, %v3432
      %v3465 = vpack.c.b16 %v3433, %v3433
      %v3466 = vpack.c.b16 %v3434, %v3434
      %v3467 = vpack.c.b16 %v3435, %v3435
      %v3468 = vpack.c.b16 %v3436, %v3436
      %v3469 = vpack.c.b16 %v3437, %v3437
      %v3470 = vpack.c.b16 %v3438, %v3438
      %v3471 = vpack.c.b16 %v3439, %v3439
      %v3472 = vpack.c.b16 %v3440, %v3440
      %v3473 = vpack.c.b16 %v3441, %v3441
      %v3474 = vpack.c.b16 %v3442, %v3442
      %v3475 = vpack.c.b16 %v3443, %v3443
      %v3476 = vpack.c.b16 %v3444, %v3444
      %v3477 = vpack.c.b16 %v3445, %v3445
      %v3478 = vpack.c.b16 %v3446, %v3446
      %v3479 = vpack.c.b16 %v3447, %v3447
      %v3480 = vpack.c.b16 %v3448, %v3448
      %v3481 = vpack.c.b16 %v3449, %v3449
      %v3482 = vpack.c.b16 %v3450, %v3450
      %v3483 = vpack.c.b16 %v3451, %v3451
      %v3484 = vpack.c.b16 %v3452, %v3452
      %v3485 = vpack.c.b16 %v3453, %v3453
      %v3486 = vpack.c.b16 %v3454, %v3454
      %v3487 = vpack.c.b16 %v3455, %v3455
      %v3488 = vpack.c.b16 %v3456, %v3456
      %v3489 = vpack.c.b16 %v3457, %v3457
      %v3490 = vpack.c.b16 %v3458, %v3458
      %v3491 = vpack.c.b16 %v3459, %v3459
      %v3492 = vpack.c.b16 %v3460, %v3460
      %v3493 = vpack.c.b16 %v3461, %v3461
      %v3494 = vpack.c.b16 %v3462, %v3462
      %v3495 = vpack.c.b16 %v3463, %v3463
      %3528 = vst.msk [vmem:[#allocation3] sm:$0xf] %vm551, %v3464
      %3529 = vst.msk [vmem:[#allocation3 + $0x4] sm:$0xf] %vm551, %v3465
      %3530 = vst.msk [vmem:[#allocation3 + $0x8] sm:$0xf] %vm551, %v3466
      %3531 = vst.msk [vmem:[#allocation3 + $0xc] sm:$0xf] %vm551, %v3467
      %3532 = vst.msk [vmem:[#allocation3 + $0x10] sm:$0xf] %vm551, %v3468
      %3533 = vst.msk [vmem:[#allocation3 + $0x14] sm:$0xf] %vm551, %v3469
      %3534 = vst.msk [vmem:[#allocation3 + $0x18] sm:$0xf] %vm551, %v3470
      %3535 = vst.msk [vmem:[#allocation3 + $0x1c] sm:$0xf] %vm551, %v3471
      %3536 = vst.msk [vmem:[#allocation3 + $0x20] sm:$0xf] %vm551, %v3472
      %3537 = vst.msk [vmem:[#allocation3 + $0x24] sm:$0xf] %vm551, %v3473
      %3538 = vst.msk [vmem:[#allocation3 + $0x28] sm:$0xf] %vm551, %v3474
      %3539 = vst.msk [vmem:[#allocation3 + $0x2c] sm:$0xf] %vm551, %v3475
      %3540 = vst.msk [vmem:[#allocation3 + $0x30] sm:$0xf] %vm551, %v3476
      %3541 = vst.msk [vmem:[#allocation3 + $0x34] sm:$0xf] %vm551, %v3477
      %3542 = vst.msk [vmem:[#allocation3 + $0x38] sm:$0xf] %vm551, %v3478
      %3543 = vst.msk [vmem:[#allocation3 + $0x3c] sm:$0xf] %vm551, %v3479
      %3544 = vst.msk [vmem:[#allocation3 + $0x40] sm:$0xf] %vm551, %v3480
      %3545 = vst.msk [vmem:[#allocation3 + $0x44] sm:$0xf] %vm551, %v3481
      %3546 = vst.msk [vmem:[#allocation3 + $0x48] sm:$0xf] %vm551, %v3482
      %3547 = vst.msk [vmem:[#allocation3 + $0x4c] sm:$0xf] %vm551, %v3483
      %3548 = vst.msk [vmem:[#allocation3 + $0x50] sm:$0xf] %vm551, %v3484
      %3549 = vst.msk [vmem:[#allocation3 + $0x54] sm:$0xf] %vm551, %v3485
      %3550 = vst.msk [vmem:[#allocation3 + $0x58] sm:$0xf] %vm551, %v3486
      %3551 = vst.msk [vmem:[#allocation3 + $0x5c] sm:$0xf] %vm551, %v3487
      %3552 = vst.msk [vmem:[#allocation3 + $0x60] sm:$0xf] %vm551, %v3488
      %3553 = vst.msk [vmem:[#allocation3 + $0x64] sm:$0xf] %vm551, %v3489
      %3554 = vst.msk [vmem:[#allocation3 + $0x68] sm:$0xf] %vm551, %v3490
      %3555 = vst.msk [vmem:[#allocation3 + $0x6c] sm:$0xf] %vm551, %v3491
      %3556 = vst.msk [vmem:[#allocation3 + $0x70] sm:$0xf] %vm551, %v3492
      %3557 = vst.msk [vmem:[#allocation3 + $0x74] sm:$0xf] %vm551, %v3493
      %3558 = vst.msk [vmem:[#allocation3 + $0x78] sm:$0xf] %vm551, %v3494
      %3559 = vst.msk [vmem:[#allocation3 + $0x7c] sm:$0xf] %vm551, %v3495
      %v3560 = vld [vmem:[#allocation2 + $0x1] sm:$0xff]
      %v3561 = vld [vmem:[#allocation2 + $0x9] sm:$0xff]
      %v3562 = vld [vmem:[#allocation2 + $0x19] sm:$0xff]
      %v3563 = vld [vmem:[#allocation2 + $0x21] sm:$0xff]
      %v3564 = vld [vmem:[#allocation2 + $0x31] sm:$0xff]
      %v3565 = vld [vmem:[#allocation2 + $0x39] sm:$0xff]
      %v3566 = vld [vmem:[#allocation2 + $0x49] sm:$0xff]
      %v3567 = vld [vmem:[#allocation2 + $0x51] sm:$0xff]
      %v3568 = vld [vmem:[#allocation2 + $0x61] sm:$0xff]
      %v3569 = vld [vmem:[#allocation2 + $0x69] sm:$0xff]
      %v3570 = vld [vmem:[#allocation2 + $0x79] sm:$0xff]
      %v3571 = vld [vmem:[#allocation2 + $0x81] sm:$0xff]
      %v3572 = vld [vmem:[#allocation2 + $0x91] sm:$0xff]
      %v3573 = vld [vmem:[#allocation2 + $0x99] sm:$0xff]
      %v3574 = vld [vmem:[#allocation2 + $0xa9] sm:$0xff]
      %v3575 = vld [vmem:[#allocation2 + $0xb1] sm:$0xff]
      %v3576 = vld [vmem:[#allocation2 + $0xc1] sm:$0xff]
      %v3577 = vld [vmem:[#allocation2 + $0xc9] sm:$0xff]
      %v3578 = vld [vmem:[#allocation2 + $0xd9] sm:$0xff]
      %v3579 = vld [vmem:[#allocation2 + $0xe1] sm:$0xff]
      %v3580 = vld [vmem:[#allocation2 + $0xf1] sm:$0xff]
      %v3581 = vld [vmem:[#allocation2 + $0xf9] sm:$0xff]
      %v3582 = vld [vmem:[#allocation2 + $0x109] sm:$0xff]
      %v3583 = vld [vmem:[#allocation2 + $0x111] sm:$0xff]
      %v3584 = vld [vmem:[#allocation2 + $0x121] sm:$0xff]
      %v3585 = vld [vmem:[#allocation2 + $0x129] sm:$0xff]
      %v3586 = vld [vmem:[#allocation2 + $0x139] sm:$0xff]
      %v3587 = vld [vmem:[#allocation2 + $0x141] sm:$0xff]
      %v3588 = vld [vmem:[#allocation2 + $0x151] sm:$0xff]
      %v3589 = vld [vmem:[#allocation2 + $0x159] sm:$0xff]
      %v3590 = vld [vmem:[#allocation2 + $0x169] sm:$0xff]
      %v3591 = vld [vmem:[#allocation2 + $0x171] sm:$0xff]
      %v3592 = vpack.c.bf16 %v3561, %v3560
      %v3593 = vpack.c.bf16 %v3563, %v3562
      %v3594 = vpack.c.bf16 %v3565, %v3564
      %v3595 = vpack.c.bf16 %v3567, %v3566
      %v3596 = vpack.c.bf16 %v3569, %v3568
      %v3597 = vpack.c.bf16 %v3571, %v3570
      %v3598 = vpack.c.bf16 %v3573, %v3572
      %v3599 = vpack.c.bf16 %v3575, %v3574
      %v3600 = vpack.c.bf16 %v3577, %v3576
      %v3601 = vpack.c.bf16 %v3579, %v3578
      %v3602 = vpack.c.bf16 %v3581, %v3580
      %v3603 = vpack.c.bf16 %v3583, %v3582
      %v3604 = vpack.c.bf16 %v3585, %v3584
      %v3605 = vpack.c.bf16 %v3587, %v3586
      %v3606 = vpack.c.bf16 %v3589, %v3588
      %v3607 = vpack.c.bf16 %v3591, %v3590
      %v3624 = vunpack.c.l.b16 %v3592
      %v3625 = vunpack.c.h.b16 %v3592
      %v3626 = vunpack.c.l.b16 %v3593
      %v3627 = vunpack.c.h.b16 %v3593
      %v3628 = vunpack.c.l.b16 %v3594
      %v3629 = vunpack.c.h.b16 %v3594
      %v3630 = vunpack.c.l.b16 %v3595
      %v3631 = vunpack.c.h.b16 %v3595
      %v3632 = vunpack.c.l.b16 %v3596
      %v3633 = vunpack.c.h.b16 %v3596
      %v3634 = vunpack.c.l.b16 %v3597
      %v3635 = vunpack.c.h.b16 %v3597
      %v3636 = vunpack.c.l.b16 %v3598
      %v3637 = vunpack.c.h.b16 %v3598
      %v3638 = vunpack.c.l.b16 %v3599
      %v3639 = vunpack.c.h.b16 %v3599
      %v3640 = vunpack.c.l.b16 %v3600
      %v3641 = vunpack.c.h.b16 %v3600
      %v3642 = vunpack.c.l.b16 %v3601
      %v3643 = vunpack.c.h.b16 %v3601
      %v3644 = vunpack.c.l.b16 %v3602
      %v3645 = vunpack.c.h.b16 %v3602
      %v3646 = vunpack.c.l.b16 %v3603
      %v3647 = vunpack.c.h.b16 %v3603
      %v3648 = vunpack.c.l.b16 %v3604
      %v3649 = vunpack.c.h.b16 %v3604
      %v3650 = vunpack.c.l.b16 %v3605
      %v3651 = vunpack.c.h.b16 %v3605
      %v3652 = vunpack.c.l.b16 %v3606
      %v3653 = vunpack.c.h.b16 %v3606
      %v3654 = vunpack.c.l.b16 %v3607
      %v3655 = vunpack.c.h.b16 %v3607
      %v3656 = vpack.c.b16 %v3624, %v3624
      %v3657 = vpack.c.b16 %v3625, %v3625
      %v3658 = vpack.c.b16 %v3626, %v3626
      %v3659 = vpack.c.b16 %v3627, %v3627
      %v3660 = vpack.c.b16 %v3628, %v3628
      %v3661 = vpack.c.b16 %v3629, %v3629
      %v3662 = vpack.c.b16 %v3630, %v3630
      %v3663 = vpack.c.b16 %v3631, %v3631
      %v3664 = vpack.c.b16 %v3632, %v3632
      %v3665 = vpack.c.b16 %v3633, %v3633
      %v3666 = vpack.c.b16 %v3634, %v3634
      %v3667 = vpack.c.b16 %v3635, %v3635
      %v3668 = vpack.c.b16 %v3636, %v3636
      %v3669 = vpack.c.b16 %v3637, %v3637
      %v3670 = vpack.c.b16 %v3638, %v3638
      %v3671 = vpack.c.b16 %v3639, %v3639
      %v3672 = vpack.c.b16 %v3640, %v3640
      %v3673 = vpack.c.b16 %v3641, %v3641
      %v3674 = vpack.c.b16 %v3642, %v3642
      %v3675 = vpack.c.b16 %v3643, %v3643
      %v3676 = vpack.c.b16 %v3644, %v3644
      %v3677 = vpack.c.b16 %v3645, %v3645
      %v3678 = vpack.c.b16 %v3646, %v3646
      %v3679 = vpack.c.b16 %v3647, %v3647
      %v3680 = vpack.c.b16 %v3648, %v3648
      %v3681 = vpack.c.b16 %v3649, %v3649
      %v3682 = vpack.c.b16 %v3650, %v3650
      %v3683 = vpack.c.b16 %v3651, %v3651
      %v3684 = vpack.c.b16 %v3652, %v3652
      %v3685 = vpack.c.b16 %v3653, %v3653
      %v3686 = vpack.c.b16 %v3654, %v3654
      %v3687 = vpack.c.b16 %v3655, %v3655
      %3688 = vrot.lane.b32.xlu0 %v3656, 4
      %v3689 = vpop.permute.xlu0 %3688
      %3690 = vrot.lane.b32.xlu0 %v3657, 4
      %v3691 = vpop.permute.xlu0 %3690
      %3692 = vrot.lane.b32.xlu0 %v3658, 4
      %v3693 = vpop.permute.xlu0 %3692
      %3694 = vrot.lane.b32.xlu0 %v3659, 4
      %v3695 = vpop.permute.xlu0 %3694
      %3696 = vrot.lane.b32.xlu0 %v3660, 4
      %v3697 = vpop.permute.xlu0 %3696
      %3698 = vrot.lane.b32.xlu0 %v3661, 4
      %v3699 = vpop.permute.xlu0 %3698
      %3700 = vrot.lane.b32.xlu0 %v3662, 4
      %v3701 = vpop.permute.xlu0 %3700
      %3702 = vrot.lane.b32.xlu0 %v3663, 4
      %v3703 = vpop.permute.xlu0 %3702
      %3704 = vrot.lane.b32.xlu0 %v3664, 4
      %v3705 = vpop.permute.xlu0 %3704
      %3706 = vrot.lane.b32.xlu0 %v3665, 4
      %v3707 = vpop.permute.xlu0 %3706
      %3708 = vrot.lane.b32.xlu0 %v3666, 4
      %v3709 = vpop.permute.xlu0 %3708
      %3710 = vrot.lane.b32.xlu0 %v3667, 4
      %v3711 = vpop.permute.xlu0 %3710
      %3712 = vrot.lane.b32.xlu0 %v3668, 4
      %v3713 = vpop.permute.xlu0 %3712
      %3714 = vrot.lane.b32.xlu0 %v3669, 4
      %v3715 = vpop.permute.xlu0 %3714
      %3716 = vrot.lane.b32.xlu0 %v3670, 4
      %v3717 = vpop.permute.xlu0 %3716
      %3718 = vrot.lane.b32.xlu0 %v3671, 4
      %v3719 = vpop.permute.xlu0 %3718
      %3720 = vrot.lane.b32.xlu0 %v3672, 4
      %v3721 = vpop.permute.xlu0 %3720
      %3722 = vrot.lane.b32.xlu0 %v3673, 4
      %v3723 = vpop.permute.xlu0 %3722
      %3724 = vrot.lane.b32.xlu0 %v3674, 4
      %v3725 = vpop.permute.xlu0 %3724
      %3726 = vrot.lane.b32.xlu0 %v3675, 4
      %v3727 = vpop.permute.xlu0 %3726
      %3728 = vrot.lane.b32.xlu0 %v3676, 4
      %v3729 = vpop.permute.xlu0 %3728
      %3730 = vrot.lane.b32.xlu0 %v3677, 4
      %v3731 = vpop.permute.xlu0 %3730
      %3732 = vrot.lane.b32.xlu0 %v3678, 4
      %v3733 = vpop.permute.xlu0 %3732
      %3734 = vrot.lane.b32.xlu0 %v3679, 4
      %v3735 = vpop.permute.xlu0 %3734
      %3736 = vrot.lane.b32.xlu0 %v3680, 4
      %v3737 = vpop.permute.xlu0 %3736
      %3738 = vrot.lane.b32.xlu0 %v3681, 4
      %v3739 = vpop.permute.xlu0 %3738
      %3740 = vrot.lane.b32.xlu0 %v3682, 4
      %v3741 = vpop.permute.xlu0 %3740
      %3742 = vrot.lane.b32.xlu0 %v3683, 4
      %v3743 = vpop.permute.xlu0 %3742
      %3744 = vrot.lane.b32.xlu0 %v3684, 4
      %v3745 = vpop.permute.xlu0 %3744
      %3746 = vrot.lane.b32.xlu0 %v3685, 4
      %v3747 = vpop.permute.xlu0 %3746
      %3748 = vrot.lane.b32.xlu0 %v3686, 4
      %v3749 = vpop.permute.xlu0 %3748
      %3750 = vrot.lane.b32.xlu0 %v3687, 4
      %v3751 = vpop.permute.xlu0 %3750
      %3784 = vst.msk [vmem:[#allocation3] sm:$0xf] %vm808, %v3689
      %3785 = vst.msk [vmem:[#allocation3 + $0x4] sm:$0xf] %vm808, %v3691
      %3786 = vst.msk [vmem:[#allocation3 + $0x8] sm:$0xf] %vm808, %v3693
      %3787 = vst.msk [vmem:[#allocation3 + $0xc] sm:$0xf] %vm808, %v3695
      %3788 = vst.msk [vmem:[#allocation3 + $0x10] sm:$0xf] %vm808, %v3697
      %3789 = vst.msk [vmem:[#allocation3 + $0x14] sm:$0xf] %vm808, %v3699
      %3790 = vst.msk [vmem:[#allocation3 + $0x18] sm:$0xf] %vm808, %v3701
      %3791 = vst.msk [vmem:[#allocation3 + $0x1c] sm:$0xf] %vm808, %v3703
      %3792 = vst.msk [vmem:[#allocation3 + $0x20] sm:$0xf] %vm808, %v3705
      %3793 = vst.msk [vmem:[#allocation3 + $0x24] sm:$0xf] %vm808, %v3707
      %3794 = vst.msk [vmem:[#allocation3 + $0x28] sm:$0xf] %vm808, %v3709
      %3795 = vst.msk [vmem:[#allocation3 + $0x2c] sm:$0xf] %vm808, %v3711
      %3796 = vst.msk [vmem:[#allocation3 + $0x30] sm:$0xf] %vm808, %v3713
      %3797 = vst.msk [vmem:[#allocation3 + $0x34] sm:$0xf] %vm808, %v3715
      %3798 = vst.msk [vmem:[#allocation3 + $0x38] sm:$0xf] %vm808, %v3717
      %3799 = vst.msk [vmem:[#allocation3 + $0x3c] sm:$0xf] %vm808, %v3719
      %3800 = vst.msk [vmem:[#allocation3 + $0x40] sm:$0xf] %vm808, %v3721
      %3801 = vst.msk [vmem:[#allocation3 + $0x44] sm:$0xf] %vm808, %v3723
      %3802 = vst.msk [vmem:[#allocation3 + $0x48] sm:$0xf] %vm808, %v3725
      %3803 = vst.msk [vmem:[#allocation3 + $0x4c] sm:$0xf] %vm808, %v3727
      %3804 = vst.msk [vmem:[#allocation3 + $0x50] sm:$0xf] %vm808, %v3729
      %3805 = vst.msk [vmem:[#allocation3 + $0x54] sm:$0xf] %vm808, %v3731
      %3806 = vst.msk [vmem:[#allocation3 + $0x58] sm:$0xf] %vm808, %v3733
      %3807 = vst.msk [vmem:[#allocation3 + $0x5c] sm:$0xf] %vm808, %v3735
      %3808 = vst.msk [vmem:[#allocation3 + $0x60] sm:$0xf] %vm808, %v3737
      %3809 = vst.msk [vmem:[#allocation3 + $0x64] sm:$0xf] %vm808, %v3739
      %3810 = vst.msk [vmem:[#allocation3 + $0x68] sm:$0xf] %vm808, %v3741
      %3811 = vst.msk [vmem:[#allocation3 + $0x6c] sm:$0xf] %vm808, %v3743
      %3812 = vst.msk [vmem:[#allocation3 + $0x70] sm:$0xf] %vm808, %v3745
      %3813 = vst.msk [vmem:[#allocation3 + $0x74] sm:$0xf] %vm808, %v3747
      %3814 = vst.msk [vmem:[#allocation3 + $0x78] sm:$0xf] %vm808, %v3749
      %3815 = vst.msk [vmem:[#allocation3 + $0x7c] sm:$0xf] %vm808, %v3751
      %v3816 = vld [vmem:[#allocation2 + $0x2] sm:$0xff]
      %v3817 = vld [vmem:[#allocation2 + $0xa] sm:$0xff]
      %v3818 = vld [vmem:[#allocation2 + $0x1a] sm:$0xff]
      %v3819 = vld [vmem:[#allocation2 + $0x22] sm:$0xff]
      %v3820 = vld [vmem:[#allocation2 + $0x32] sm:$0xff]
      %v3821 = vld [vmem:[#allocation2 + $0x3a] sm:$0xff]
      %v3822 = vld [vmem:[#allocation2 + $0x4a] sm:$0xff]
      %v3823 = vld [vmem:[#allocation2 + $0x52] sm:$0xff]
      %v3824 = vld [vmem:[#allocation2 + $0x62] sm:$0xff]
      %v3825 = vld [vmem:[#allocation2 + $0x6a] sm:$0xff]
      %v3826 = vld [vmem:[#allocation2 + $0x7a] sm:$0xff]
      %v3827 = vld [vmem:[#allocation2 + $0x82] sm:$0xff]
      %v3828 = vld [vmem:[#allocation2 + $0x92] sm:$0xff]
      %v3829 = vld [vmem:[#allocation2 + $0x9a] sm:$0xff]
      %v3830 = vld [vmem:[#allocation2 + $0xaa] sm:$0xff]
      %v3831 = vld [vmem:[#allocation2 + $0xb2] sm:$0xff]
      %v3832 = vld [vmem:[#allocation2 + $0xc2] sm:$0xff]
      %v3833 = vld [vmem:[#allocation2 + $0xca] sm:$0xff]
      %v3834 = vld [vmem:[#allocation2 + $0xda] sm:$0xff]
      %v3835 = vld [vmem:[#allocation2 + $0xe2] sm:$0xff]
      %v3836 = vld [vmem:[#allocation2 + $0xf2] sm:$0xff]
      %v3837 = vld [vmem:[#allocation2 + $0xfa] sm:$0xff]
      %v3838 = vld [vmem:[#allocation2 + $0x10a] sm:$0xff]
      %v3839 = vld [vmem:[#allocation2 + $0x112] sm:$0xff]
      %v3840 = vld [vmem:[#allocation2 + $0x122] sm:$0xff]
      %v3841 = vld [vmem:[#allocation2 + $0x12a] sm:$0xff]
      %v3842 = vld [vmem:[#allocation2 + $0x13a] sm:$0xff]
      %v3843 = vld [vmem:[#allocation2 + $0x142] sm:$0xff]
      %v3844 = vld [vmem:[#allocation2 + $0x152] sm:$0xff]
      %v3845 = vld [vmem:[#allocation2 + $0x15a] sm:$0xff]
      %v3846 = vld [vmem:[#allocation2 + $0x16a] sm:$0xff]
      %v3847 = vld [vmem:[#allocation2 + $0x172] sm:$0xff]
      %v3848 = vpack.c.bf16 %v3817, %v3816
      %v3849 = vpack.c.bf16 %v3819, %v3818
      %v3850 = vpack.c.bf16 %v3821, %v3820
      %v3851 = vpack.c.bf16 %v3823, %v3822
      %v3852 = vpack.c.bf16 %v3825, %v3824
      %v3853 = vpack.c.bf16 %v3827, %v3826
      %v3854 = vpack.c.bf16 %v3829, %v3828
      %v3855 = vpack.c.bf16 %v3831, %v3830
      %v3856 = vpack.c.bf16 %v3833, %v3832
      %v3857 = vpack.c.bf16 %v3835, %v3834
      %v3858 = vpack.c.bf16 %v3837, %v3836
      %v3859 = vpack.c.bf16 %v3839, %v3838
      %v3860 = vpack.c.bf16 %v3841, %v3840
      %v3861 = vpack.c.bf16 %v3843, %v3842
      %v3862 = vpack.c.bf16 %v3845, %v3844
      %v3863 = vpack.c.bf16 %v3847, %v3846
      %v3880 = vunpack.c.l.b16 %v3848
      %v3881 = vunpack.c.h.b16 %v3848
      %v3882 = vunpack.c.l.b16 %v3849
      %v3883 = vunpack.c.h.b16 %v3849
      %v3884 = vunpack.c.l.b16 %v3850
      %v3885 = vunpack.c.h.b16 %v3850
      %v3886 = vunpack.c.l.b16 %v3851
      %v3887 = vunpack.c.h.b16 %v3851
      %v3888 = vunpack.c.l.b16 %v3852
      %v3889 = vunpack.c.h.b16 %v3852
      %v3890 = vunpack.c.l.b16 %v3853
      %v3891 = vunpack.c.h.b16 %v3853
      %v3892 = vunpack.c.l.b16 %v3854
      %v3893 = vunpack.c.h.b16 %v3854
      %v3894 = vunpack.c.l.b16 %v3855
      %v3895 = vunpack.c.h.b16 %v3855
      %v3896 = vunpack.c.l.b16 %v3856
      %v3897 = vunpack.c.h.b16 %v3856
      %v3898 = vunpack.c.l.b16 %v3857
      %v3899 = vunpack.c.h.b16 %v3857
      %v3900 = vunpack.c.l.b16 %v3858
      %v3901 = vunpack.c.h.b16 %v3858
      %v3902 = vunpack.c.l.b16 %v3859
      %v3903 = vunpack.c.h.b16 %v3859
      %v3904 = vunpack.c.l.b16 %v3860
      %v3905 = vunpack.c.h.b16 %v3860
      %v3906 = vunpack.c.l.b16 %v3861
      %v3907 = vunpack.c.h.b16 %v3861
      %v3908 = vunpack.c.l.b16 %v3862
      %v3909 = vunpack.c.h.b16 %v3862
      %v3910 = vunpack.c.l.b16 %v3863
      %v3911 = vunpack.c.h.b16 %v3863
      %v3912 = vpack.c.b16 %v3880, %v3880
      %v3913 = vpack.c.b16 %v3881, %v3881
      %v3914 = vpack.c.b16 %v3882, %v3882
      %v3915 = vpack.c.b16 %v3883, %v3883
      %v3916 = vpack.c.b16 %v3884, %v3884
      %v3917 = vpack.c.b16 %v3885, %v3885
      %v3918 = vpack.c.b16 %v3886, %v3886
      %v3919 = vpack.c.b16 %v3887, %v3887
      %v3920 = vpack.c.b16 %v3888, %v3888
      %v3921 = vpack.c.b16 %v3889, %v3889
      %v3922 = vpack.c.b16 %v3890, %v3890
      %v3923 = vpack.c.b16 %v3891, %v3891
      %v3924 = vpack.c.b16 %v3892, %v3892
      %v3925 = vpack.c.b16 %v3893, %v3893
      %v3926 = vpack.c.b16 %v3894, %v3894
      %v3927 = vpack.c.b16 %v3895, %v3895
      %v3928 = vpack.c.b16 %v3896, %v3896
      %v3929 = vpack.c.b16 %v3897, %v3897
      %v3930 = vpack.c.b16 %v3898, %v3898
      %v3931 = vpack.c.b16 %v3899, %v3899
      %v3932 = vpack.c.b16 %v3900, %v3900
      %v3933 = vpack.c.b16 %v3901, %v3901
      %v3934 = vpack.c.b16 %v3902, %v3902
      %v3935 = vpack.c.b16 %v3903, %v3903
      %v3936 = vpack.c.b16 %v3904, %v3904
      %v3937 = vpack.c.b16 %v3905, %v3905
      %v3938 = vpack.c.b16 %v3906, %v3906
      %v3939 = vpack.c.b16 %v3907, %v3907
      %v3940 = vpack.c.b16 %v3908, %v3908
      %v3941 = vpack.c.b16 %v3909, %v3909
      %v3942 = vpack.c.b16 %v3910, %v3910
      %v3943 = vpack.c.b16 %v3911, %v3911
      %3944 = vrot.lane.b32.xlu0 %v3912, 8
      %v3945 = vpop.permute.xlu0 %3944
      %3946 = vrot.lane.b32.xlu0 %v3913, 8
      %v3947 = vpop.permute.xlu0 %3946
      %3948 = vrot.lane.b32.xlu0 %v3914, 8
      %v3949 = vpop.permute.xlu0 %3948
      %3950 = vrot.lane.b32.xlu0 %v3915, 8
      %v3951 = vpop.permute.xlu0 %3950
      %3952 = vrot.lane.b32.xlu0 %v3916, 8
      %v3953 = vpop.permute.xlu0 %3952
      %3954 = vrot.lane.b32.xlu0 %v3917, 8
      %v3955 = vpop.permute.xlu0 %3954
      %3956 = vrot.lane.b32.xlu0 %v3918, 8
      %v3957 = vpop.permute.xlu0 %3956
      %3958 = vrot.lane.b32.xlu0 %v3919, 8
      %v3959 = vpop.permute.xlu0 %3958
      %3960 = vrot.lane.b32.xlu0 %v3920, 8
      %v3961 = vpop.permute.xlu0 %3960
      %3962 = vrot.lane.b32.xlu0 %v3921, 8
      %v3963 = vpop.permute.xlu0 %3962
      %3964 = vrot.lane.b32.xlu0 %v3922, 8
      %v3965 = vpop.permute.xlu0 %3964
      %3966 = vrot.lane.b32.xlu0 %v3923, 8
      %v3967 = vpop.permute.xlu0 %3966
      %3968 = vrot.lane.b32.xlu0 %v3924, 8
      %v3969 = vpop.permute.xlu0 %3968
      %3970 = vrot.lane.b32.xlu0 %v3925, 8
      %v3971 = vpop.permute.xlu0 %3970
      %3972 = vrot.lane.b32.xlu0 %v3926, 8
      %v3973 = vpop.permute.xlu0 %3972
      %3974 = vrot.lane.b32.xlu0 %v3927, 8
      %v3975 = vpop.permute.xlu0 %3974
      %3976 = vrot.lane.b32.xlu0 %v3928, 8
      %v3977 = vpop.permute.xlu0 %3976
      %3978 = vrot.lane.b32.xlu0 %v3929, 8
      %v3979 = vpop.permute.xlu0 %3978
      %3980 = vrot.lane.b32.xlu0 %v3930, 8
      %v3981 = vpop.permute.xlu0 %3980
      %3982 = vrot.lane.b32.xlu0 %v3931, 8
      %v3983 = vpop.permute.xlu0 %3982
      %3984 = vrot.lane.b32.xlu0 %v3932, 8
      %v3985 = vpop.permute.xlu0 %3984
      %3986 = vrot.lane.b32.xlu0 %v3933, 8
      %v3987 = vpop.permute.xlu0 %3986
      %3988 = vrot.lane.b32.xlu0 %v3934, 8
      %v3989 = vpop.permute.xlu0 %3988
      %3990 = vrot.lane.b32.xlu0 %v3935, 8
      %v3991 = vpop.permute.xlu0 %3990
      %3992 = vrot.lane.b32.xlu0 %v3936, 8
      %v3993 = vpop.permute.xlu0 %3992
      %3994 = vrot.lane.b32.xlu0 %v3937, 8
      %v3995 = vpop.permute.xlu0 %3994
      %3996 = vrot.lane.b32.xlu0 %v3938, 8
      %v3997 = vpop.permute.xlu0 %3996
      %3998 = vrot.lane.b32.xlu0 %v3939, 8
      %v3999 = vpop.permute.xlu0 %3998
      %4000 = vrot.lane.b32.xlu0 %v3940, 8
      %v4001 = vpop.permute.xlu0 %4000
      %4002 = vrot.lane.b32.xlu0 %v3941, 8
      %v4003 = vpop.permute.xlu0 %4002
      %4004 = vrot.lane.b32.xlu0 %v3942, 8
      %v4005 = vpop.permute.xlu0 %4004
      %4006 = vrot.lane.b32.xlu0 %v3943, 8
      %v4007 = vpop.permute.xlu0 %4006
      %4040 = vst.msk [vmem:[#allocation3] sm:$0xf] %vm1065, %v3945
      %4041 = vst.msk [vmem:[#allocation3 + $0x4] sm:$0xf] %vm1065, %v3947
      %4042 = vst.msk [vmem:[#allocation3 + $0x8] sm:$0xf] %vm1065, %v3949
      %4043 = vst.msk [vmem:[#allocation3 + $0xc] sm:$0xf] %vm1065, %v3951
      %4044 = vst.msk [vmem:[#allocation3 + $0x10] sm:$0xf] %vm1065, %v3953
      %4045 = vst.msk [vmem:[#allocation3 + $0x14] sm:$0xf] %vm1065, %v3955
      %4046 = vst.msk [vmem:[#allocation3 + $0x18] sm:$0xf] %vm1065, %v3957
      %4047 = vst.msk [vmem:[#allocation3 + $0x1c] sm:$0xf] %vm1065, %v3959
      %4048 = vst.msk [vmem:[#allocation3 + $0x20] sm:$0xf] %vm1065, %v3961
      %4049 = vst.msk [vmem:[#allocation3 + $0x24] sm:$0xf] %vm1065, %v3963
      %4050 = vst.msk [vmem:[#allocation3 + $0x28] sm:$0xf] %vm1065, %v3965
      %4051 = vst.msk [vmem:[#allocation3 + $0x2c] sm:$0xf] %vm1065, %v3967
      %4052 = vst.msk [vmem:[#allocation3 + $0x30] sm:$0xf] %vm1065, %v3969
      %4053 = vst.msk [vmem:[#allocation3 + $0x34] sm:$0xf] %vm1065, %v3971
      %4054 = vst.msk [vmem:[#allocation3 + $0x38] sm:$0xf] %vm1065, %v3973
      %4055 = vst.msk [vmem:[#allocation3 + $0x3c] sm:$0xf] %vm1065, %v3975
      %4056 = vst.msk [vmem:[#allocation3 + $0x40] sm:$0xf] %vm1065, %v3977
      %4057 = vst.msk [vmem:[#allocation3 + $0x44] sm:$0xf] %vm1065, %v3979
      %4058 = vst.msk [vmem:[#allocation3 + $0x48] sm:$0xf] %vm1065, %v3981
      %4059 = vst.msk [vmem:[#allocation3 + $0x4c] sm:$0xf] %vm1065, %v3983
      %4060 = vst.msk [vmem:[#allocation3 + $0x50] sm:$0xf] %vm1065, %v3985
      %4061 = vst.msk [vmem:[#allocation3 + $0x54] sm:$0xf] %vm1065, %v3987
      %4062 = vst.msk [vmem:[#allocation3 + $0x58] sm:$0xf] %vm1065, %v3989
      %4063 = vst.msk [vmem:[#allocation3 + $0x5c] sm:$0xf] %vm1065, %v3991
      %4064 = vst.msk [vmem:[#allocation3 + $0x60] sm:$0xf] %vm1065, %v3993
      %4065 = vst.msk [vmem:[#allocation3 + $0x64] sm:$0xf] %vm1065, %v3995
      %4066 = vst.msk [vmem:[#allocation3 + $0x68] sm:$0xf] %vm1065, %v3997
      %4067 = vst.msk [vmem:[#allocation3 + $0x6c] sm:$0xf] %vm1065, %v3999
      %4068 = vst.msk [vmem:[#allocation3 + $0x70] sm:$0xf] %vm1065, %v4001
      %4069 = vst.msk [vmem:[#allocation3 + $0x74] sm:$0xf] %vm1065, %v4003
      %4070 = vst.msk [vmem:[#allocation3 + $0x78] sm:$0xf] %vm1065, %v4005
      %4071 = vst.msk [vmem:[#allocation3 + $0x7c] sm:$0xf] %vm1065, %v4007
      %v4072 = vld [vmem:[%s358] sm:$0xff]
      %v4073 = vld [vmem:[%s358 + $0x8] sm:$0xff]
      %v4074 = vld [vmem:[%s358 + $0x18] sm:$0xff]
      %v4075 = vld [vmem:[%s358 + $0x20] sm:$0xff]
      %v4076 = vld [vmem:[%s358 + $0x30] sm:$0xff]
      %v4077 = vld [vmem:[%s358 + $0x38] sm:$0xff]
      %v4078 = vld [vmem:[%s358 + $0x48] sm:$0xff]
      %v4079 = vld [vmem:[%s358 + $0x50] sm:$0xff]
      %v4080 = vld [vmem:[%s358 + $0x60] sm:$0xff]
      %v4081 = vld [vmem:[%s358 + $0x68] sm:$0xff]
      %v4082 = vld [vmem:[%s358 + $0x78] sm:$0xff]
      %v4083 = vld [vmem:[%s358 + $0x80] sm:$0xff]
      %v4084 = vld [vmem:[%s358 + $0x90] sm:$0xff]
      %v4085 = vld [vmem:[%s358 + $0x98] sm:$0xff]
      %v4086 = vld [vmem:[%s358 + $0xa8] sm:$0xff]
      %v4087 = vld [vmem:[%s358 + $0xb0] sm:$0xff]
      %v4088 = vld [vmem:[%s358 + $0xc0] sm:$0xff]
      %v4089 = vld [vmem:[%s358 + $0xc8] sm:$0xff]
      %v4090 = vld [vmem:[%s358 + $0xd8] sm:$0xff]
      %v4091 = vld [vmem:[%s358 + $0xe0] sm:$0xff]
      %v4092 = vld [vmem:[%s358 + $0xf0] sm:$0xff]
      %v4093 = vld [vmem:[%s358 + $0xf8] sm:$0xff]
      %v4094 = vld [vmem:[%s358 + $0x108] sm:$0xff]
      %v4095 = vld [vmem:[%s358 + $0x110] sm:$0xff]
      %v4096 = vld [vmem:[%s358 + $0x120] sm:$0xff]
      %v4097 = vld [vmem:[%s358 + $0x128] sm:$0xff]
      %v4098 = vld [vmem:[%s358 + $0x138] sm:$0xff]
      %v4099 = vld [vmem:[%s358 + $0x140] sm:$0xff]
      %v4100 = vld [vmem:[%s358 + $0x150] sm:$0xff]
      %v4101 = vld [vmem:[%s358 + $0x158] sm:$0xff]
      %v4102 = vld [vmem:[%s358 + $0x168] sm:$0xff]
      %v4103 = vld [vmem:[%s358 + $0x170] sm:$0xff]
      %v4104 = vpack.c.bf16 %v4073, %v4072
      %v4105 = vpack.c.bf16 %v4075, %v4074
      %v4106 = vpack.c.bf16 %v4077, %v4076
      %v4107 = vpack.c.bf16 %v4079, %v4078
      %v4108 = vpack.c.bf16 %v4081, %v4080
      %v4109 = vpack.c.bf16 %v4083, %v4082
      %v4110 = vpack.c.bf16 %v4085, %v4084
      %v4111 = vpack.c.bf16 %v4087, %v4086
      %v4112 = vpack.c.bf16 %v4089, %v4088
      %v4113 = vpack.c.bf16 %v4091, %v4090
      %v4114 = vpack.c.bf16 %v4093, %v4092
      %v4115 = vpack.c.bf16 %v4095, %v4094
      %v4116 = vpack.c.bf16 %v4097, %v4096
      %v4117 = vpack.c.bf16 %v4099, %v4098
      %v4118 = vpack.c.bf16 %v4101, %v4100
      %v4119 = vpack.c.bf16 %v4103, %v4102
      %v4136 = vunpack.c.l.b16 %v4104
      %v4137 = vunpack.c.h.b16 %v4104
      %v4138 = vunpack.c.l.b16 %v4105
      %v4139 = vunpack.c.h.b16 %v4105
      %v4140 = vunpack.c.l.b16 %v4106
      %v4141 = vunpack.c.h.b16 %v4106
      %v4142 = vunpack.c.l.b16 %v4107
      %v4143 = vunpack.c.h.b16 %v4107
      %v4144 = vunpack.c.l.b16 %v4108
      %v4145 = vunpack.c.h.b16 %v4108
      %v4146 = vunpack.c.l.b16 %v4109
      %v4147 = vunpack.c.h.b16 %v4109
      %v4148 = vunpack.c.l.b16 %v4110
      %v4149 = vunpack.c.h.b16 %v4110
      %v4150 = vunpack.c.l.b16 %v4111
      %v4151 = vunpack.c.h.b16 %v4111
      %v4152 = vunpack.c.l.b16 %v4112
      %v4153 = vunpack.c.h.b16 %v4112
      %v4154 = vunpack.c.l.b16 %v4113
      %v4155 = vunpack.c.h.b16 %v4113
      %v4156 = vunpack.c.l.b16 %v4114
      %v4157 = vunpack.c.h.b16 %v4114
      %v4158 = vunpack.c.l.b16 %v4115
      %v4159 = vunpack.c.h.b16 %v4115
      %v4160 = vunpack.c.l.b16 %v4116
      %v4161 = vunpack.c.h.b16 %v4116
      %v4162 = vunpack.c.l.b16 %v4117
      %v4163 = vunpack.c.h.b16 %v4117
      %v4164 = vunpack.c.l.b16 %v4118
      %v4165 = vunpack.c.h.b16 %v4118
      %v4166 = vunpack.c.l.b16 %v4119
      %v4167 = vunpack.c.h.b16 %v4119
      %v4168 = vpack.c.b16 %v4136, %v4136
      %v4169 = vpack.c.b16 %v4137, %v4137
      %v4170 = vpack.c.b16 %v4138, %v4138
      %v4171 = vpack.c.b16 %v4139, %v4139
      %v4172 = vpack.c.b16 %v4140, %v4140
      %v4173 = vpack.c.b16 %v4141, %v4141
      %v4174 = vpack.c.b16 %v4142, %v4142
      %v4175 = vpack.c.b16 %v4143, %v4143
      %v4176 = vpack.c.b16 %v4144, %v4144
      %v4177 = vpack.c.b16 %v4145, %v4145
      %v4178 = vpack.c.b16 %v4146, %v4146
      %v4179 = vpack.c.b16 %v4147, %v4147
      %v4180 = vpack.c.b16 %v4148, %v4148
      %v4181 = vpack.c.b16 %v4149, %v4149
      %v4182 = vpack.c.b16 %v4150, %v4150
      %v4183 = vpack.c.b16 %v4151, %v4151
      %v4184 = vpack.c.b16 %v4152, %v4152
      %v4185 = vpack.c.b16 %v4153, %v4153
      %v4186 = vpack.c.b16 %v4154, %v4154
      %v4187 = vpack.c.b16 %v4155, %v4155
      %v4188 = vpack.c.b16 %v4156, %v4156
      %v4189 = vpack.c.b16 %v4157, %v4157
      %v4190 = vpack.c.b16 %v4158, %v4158
      %v4191 = vpack.c.b16 %v4159, %v4159
      %v4192 = vpack.c.b16 %v4160, %v4160
      %v4193 = vpack.c.b16 %v4161, %v4161
      %v4194 = vpack.c.b16 %v4162, %v4162
      %v4195 = vpack.c.b16 %v4163, %v4163
      %v4196 = vpack.c.b16 %v4164, %v4164
      %v4197 = vpack.c.b16 %v4165, %v4165
      %v4198 = vpack.c.b16 %v4166, %v4166
      %v4199 = vpack.c.b16 %v4167, %v4167
      %4200 = vrot.lane.b32.xlu0 %v4168, 12
      %v4201 = vpop.permute.xlu0 %4200
      %4202 = vrot.lane.b32.xlu0 %v4169, 12
      %v4203 = vpop.permute.xlu0 %4202
      %4204 = vrot.lane.b32.xlu0 %v4170, 12
      %v4205 = vpop.permute.xlu0 %4204
      %4206 = vrot.lane.b32.xlu0 %v4171, 12
      %v4207 = vpop.permute.xlu0 %4206
      %4208 = vrot.lane.b32.xlu0 %v4172, 12
      %v4209 = vpop.permute.xlu0 %4208
      %4210 = vrot.lane.b32.xlu0 %v4173, 12
      %v4211 = vpop.permute.xlu0 %4210
      %4212 = vrot.lane.b32.xlu0 %v4174, 12
      %v4213 = vpop.permute.xlu0 %4212
      %4214 = vrot.lane.b32.xlu0 %v4175, 12
      %v4215 = vpop.permute.xlu0 %4214
      %4216 = vrot.lane.b32.xlu0 %v4176, 12
      %v4217 = vpop.permute.xlu0 %4216
      %4218 = vrot.lane.b32.xlu0 %v4177, 12
      %v4219 = vpop.permute.xlu0 %4218
      %4220 = vrot.lane.b32.xlu0 %v4178, 12
      %v4221 = vpop.permute.xlu0 %4220
      %4222 = vrot.lane.b32.xlu0 %v4179, 12
      %v4223 = vpop.permute.xlu0 %4222
      %4224 = vrot.lane.b32.xlu0 %v4180, 12
      %v4225 = vpop.permute.xlu0 %4224
      %4226 = vrot.lane.b32.xlu0 %v4181, 12
      %v4227 = vpop.permute.xlu0 %4226
      %4228 = vrot.lane.b32.xlu0 %v4182, 12
      %v4229 = vpop.permute.xlu0 %4228
      %4230 = vrot.lane.b32.xlu0 %v4183, 12
      %v4231 = vpop.permute.xlu0 %4230
      %4232 = vrot.lane.b32.xlu0 %v4184, 12
      %v4233 = vpop.permute.xlu0 %4232
      %4234 = vrot.lane.b32.xlu0 %v4185, 12
      %v4235 = vpop.permute.xlu0 %4234
      %4236 = vrot.lane.b32.xlu0 %v4186, 12
      %v4237 = vpop.permute.xlu0 %4236
      %4238 = vrot.lane.b32.xlu0 %v4187, 12
      %v4239 = vpop.permute.xlu0 %4238
      %4240 = vrot.lane.b32.xlu0 %v4188, 12
      %v4241 = vpop.permute.xlu0 %4240
      %4242 = vrot.lane.b32.xlu0 %v4189, 12
      %v4243 = vpop.permute.xlu0 %4242
      %4244 = vrot.lane.b32.xlu0 %v4190, 12
      %v4245 = vpop.permute.xlu0 %4244
      %4246 = vrot.lane.b32.xlu0 %v4191, 12
      %v4247 = vpop.permute.xlu0 %4246
      %4248 = vrot.lane.b32.xlu0 %v4192, 12
      %v4249 = vpop.permute.xlu0 %4248
      %4250 = vrot.lane.b32.xlu0 %v4193, 12
      %v4251 = vpop.permute.xlu0 %4250
      %4252 = vrot.lane.b32.xlu0 %v4194, 12
      %v4253 = vpop.permute.xlu0 %4252
      %4254 = vrot.lane.b32.xlu0 %v4195, 12
      %v4255 = vpop.permute.xlu0 %4254
      %4256 = vrot.lane.b32.xlu0 %v4196, 12
      %v4257 = vpop.permute.xlu0 %4256
      %4258 = vrot.lane.b32.xlu0 %v4197, 12
      %v4259 = vpop.permute.xlu0 %4258
      %4260 = vrot.lane.b32.xlu0 %v4198, 12
      %v4261 = vpop.permute.xlu0 %4260
      %4262 = vrot.lane.b32.xlu0 %v4199, 12
      %v4263 = vpop.permute.xlu0 %4262
      %4296 = vst.msk [vmem:[#allocation3] sm:$0xf] %vm1322, %v4201
      %4297 = vst.msk [vmem:[#allocation3 + $0x4] sm:$0xf] %vm1322, %v4203
      %4298 = vst.msk [vmem:[#allocation3 + $0x8] sm:$0xf] %vm1322, %v4205
      %4299 = vst.msk [vmem:[#allocation3 + $0xc] sm:$0xf] %vm1322, %v4207
      %4300 = vst.msk [vmem:[#allocation3 + $0x10] sm:$0xf] %vm1322, %v4209
      %4301 = vst.msk [vmem:[#allocation3 + $0x14] sm:$0xf] %vm1322, %v4211
      %4302 = vst.msk [vmem:[#allocation3 + $0x18] sm:$0xf] %vm1322, %v4213
      %4303 = vst.msk [vmem:[#allocation3 + $0x1c] sm:$0xf] %vm1322, %v4215
      %4304 = vst.msk [vmem:[#allocation3 + $0x20] sm:$0xf] %vm1322, %v4217
      %4305 = vst.msk [vmem:[#allocation3 + $0x24] sm:$0xf] %vm1322, %v4219
      %4306 = vst.msk [vmem:[#allocation3 + $0x28] sm:$0xf] %vm1322, %v4221
      %4307 = vst.msk [vmem:[#allocation3 + $0x2c] sm:$0xf] %vm1322, %v4223
      %4308 = vst.msk [vmem:[#allocation3 + $0x30] sm:$0xf] %vm1322, %v4225
      %4309 = vst.msk [vmem:[#allocation3 + $0x34] sm:$0xf] %vm1322, %v4227
      %4310 = vst.msk [vmem:[#allocation3 + $0x38] sm:$0xf] %vm1322, %v4229
      %4311 = vst.msk [vmem:[#allocation3 + $0x3c] sm:$0xf] %vm1322, %v4231
      %4312 = vst.msk [vmem:[#allocation3 + $0x40] sm:$0xf] %vm1322, %v4233
      %4313 = vst.msk [vmem:[#allocation3 + $0x44] sm:$0xf] %vm1322, %v4235
      %4314 = vst.msk [vmem:[#allocation3 + $0x48] sm:$0xf] %vm1322, %v4237
      %4315 = vst.msk [vmem:[#allocation3 + $0x4c] sm:$0xf] %vm1322, %v4239
      %4316 = vst.msk [vmem:[#allocation3 + $0x50] sm:$0xf] %vm1322, %v4241
      %4317 = vst.msk [vmem:[#allocation3 + $0x54] sm:$0xf] %vm1322, %v4243
      %4318 = vst.msk [vmem:[#allocation3 + $0x58] sm:$0xf] %vm1322, %v4245
      %4319 = vst.msk [vmem:[#allocation3 + $0x5c] sm:$0xf] %vm1322, %v4247
      %4320 = vst.msk [vmem:[#allocation3 + $0x60] sm:$0xf] %vm1322, %v4249
      %4321 = vst.msk [vmem:[#allocation3 + $0x64] sm:$0xf] %vm1322, %v4251
      %4322 = vst.msk [vmem:[#allocation3 + $0x68] sm:$0xf] %vm1322, %v4253
      %4323 = vst.msk [vmem:[#allocation3 + $0x6c] sm:$0xf] %vm1322, %v4255
      %4324 = vst.msk [vmem:[#allocation3 + $0x70] sm:$0xf] %vm1322, %v4257
      %4325 = vst.msk [vmem:[#allocation3 + $0x74] sm:$0xf] %vm1322, %v4259
      %4326 = vst.msk [vmem:[#allocation3 + $0x78] sm:$0xf] %vm1322, %v4261
      %4327 = vst.msk [vmem:[#allocation3 + $0x7c] sm:$0xf] %vm1322, %v4263
      %v4328 = vld [vmem:[%s358 + $0x1] sm:$0xff]
      %v4329 = vld [vmem:[%s358 + $0x9] sm:$0xff]
      %v4330 = vld [vmem:[%s358 + $0x19] sm:$0xff]
      %v4331 = vld [vmem:[%s358 + $0x21] sm:$0xff]
      %v4332 = vld [vmem:[%s358 + $0x31] sm:$0xff]
      %v4333 = vld [vmem:[%s358 + $0x39] sm:$0xff]
      %v4334 = vld [vmem:[%s358 + $0x49] sm:$0xff]
      %v4335 = vld [vmem:[%s358 + $0x51] sm:$0xff]
      %v4336 = vld [vmem:[%s358 + $0x61] sm:$0xff]
      %v4337 = vld [vmem:[%s358 + $0x69] sm:$0xff]
      %v4338 = vld [vmem:[%s358 + $0x79] sm:$0xff]
      %v4339 = vld [vmem:[%s358 + $0x81] sm:$0xff]
      %v4340 = vld [vmem:[%s358 + $0x91] sm:$0xff]
      %v4341 = vld [vmem:[%s358 + $0x99] sm:$0xff]
      %v4342 = vld [vmem:[%s358 + $0xa9] sm:$0xff]
      %v4343 = vld [vmem:[%s358 + $0xb1] sm:$0xff]
      %v4344 = vld [vmem:[%s358 + $0xc1] sm:$0xff]
      %v4345 = vld [vmem:[%s358 + $0xc9] sm:$0xff]
      %v4346 = vld [vmem:[%s358 + $0xd9] sm:$0xff]
      %v4347 = vld [vmem:[%s358 + $0xe1] sm:$0xff]
      %v4348 = vld [vmem:[%s358 + $0xf1] sm:$0xff]
      %v4349 = vld [vmem:[%s358 + $0xf9] sm:$0xff]
      %v4350 = vld [vmem:[%s358 + $0x109] sm:$0xff]
      %v4351 = vld [vmem:[%s358 + $0x111] sm:$0xff]
      %v4352 = vld [vmem:[%s358 + $0x121] sm:$0xff]
      %v4353 = vld [vmem:[%s358 + $0x129] sm:$0xff]
      %v4354 = vld [vmem:[%s358 + $0x139] sm:$0xff]
      %v4355 = vld [vmem:[%s358 + $0x141] sm:$0xff]
      %v4356 = vld [vmem:[%s358 + $0x151] sm:$0xff]
      %v4357 = vld [vmem:[%s358 + $0x159] sm:$0xff]
      %v4358 = vld [vmem:[%s358 + $0x169] sm:$0xff]
      %v4359 = vld [vmem:[%s358 + $0x171] sm:$0xff]
      %v4360 = vpack.c.bf16 %v4329, %v4328
      %v4361 = vpack.c.bf16 %v4331, %v4330
      %v4362 = vpack.c.bf16 %v4333, %v4332
      %v4363 = vpack.c.bf16 %v4335, %v4334
      %v4364 = vpack.c.bf16 %v4337, %v4336
      %v4365 = vpack.c.bf16 %v4339, %v4338
      %v4366 = vpack.c.bf16 %v4341, %v4340
      %v4367 = vpack.c.bf16 %v4343, %v4342
      %v4368 = vpack.c.bf16 %v4345, %v4344
      %v4369 = vpack.c.bf16 %v4347, %v4346
      %v4370 = vpack.c.bf16 %v4349, %v4348
      %v4371 = vpack.c.bf16 %v4351, %v4350
      %v4372 = vpack.c.bf16 %v4353, %v4352
      %v4373 = vpack.c.bf16 %v4355, %v4354
      %v4374 = vpack.c.bf16 %v4357, %v4356
      %v4375 = vpack.c.bf16 %v4359, %v4358
      %v4392 = vunpack.c.l.b16 %v4360
      %v4393 = vunpack.c.h.b16 %v4360
      %v4394 = vunpack.c.l.b16 %v4361
      %v4395 = vunpack.c.h.b16 %v4361
      %v4396 = vunpack.c.l.b16 %v4362
      %v4397 = vunpack.c.h.b16 %v4362
      %v4398 = vunpack.c.l.b16 %v4363
      %v4399 = vunpack.c.h.b16 %v4363
      %v4400 = vunpack.c.l.b16 %v4364
      %v4401 = vunpack.c.h.b16 %v4364
      %v4402 = vunpack.c.l.b16 %v4365
      %v4403 = vunpack.c.h.b16 %v4365
      %v4404 = vunpack.c.l.b16 %v4366
      %v4405 = vunpack.c.h.b16 %v4366
      %v4406 = vunpack.c.l.b16 %v4367
      %v4407 = vunpack.c.h.b16 %v4367
      %v4408 = vunpack.c.l.b16 %v4368
      %v4409 = vunpack.c.h.b16 %v4368
      %v4410 = vunpack.c.l.b16 %v4369
      %v4411 = vunpack.c.h.b16 %v4369
      %v4412 = vunpack.c.l.b16 %v4370
      %v4413 = vunpack.c.h.b16 %v4370
      %v4414 = vunpack.c.l.b16 %v4371
      %v4415 = vunpack.c.h.b16 %v4371
      %v4416 = vunpack.c.l.b16 %v4372
      %v4417 = vunpack.c.h.b16 %v4372
      %v4418 = vunpack.c.l.b16 %v4373
      %v4419 = vunpack.c.h.b16 %v4373
      %v4420 = vunpack.c.l.b16 %v4374
      %v4421 = vunpack.c.h.b16 %v4374
      %v4422 = vunpack.c.l.b16 %v4375
      %v4423 = vunpack.c.h.b16 %v4375
      %v4424 = vpack.c.b16 %v4392, %v4392
      %v4425 = vpack.c.b16 %v4393, %v4393
      %v4426 = vpack.c.b16 %v4394, %v4394
      %v4427 = vpack.c.b16 %v4395, %v4395
      %v4428 = vpack.c.b16 %v4396, %v4396
      %v4429 = vpack.c.b16 %v4397, %v4397
      %v4430 = vpack.c.b16 %v4398, %v4398
      %v4431 = vpack.c.b16 %v4399, %v4399
      %v4432 = vpack.c.b16 %v4400, %v4400
      %v4433 = vpack.c.b16 %v4401, %v4401
      %v4434 = vpack.c.b16 %v4402, %v4402
      %v4435 = vpack.c.b16 %v4403, %v4403
      %v4436 = vpack.c.b16 %v4404, %v4404
      %v4437 = vpack.c.b16 %v4405, %v4405
      %v4438 = vpack.c.b16 %v4406, %v4406
      %v4439 = vpack.c.b16 %v4407, %v4407
      %v4440 = vpack.c.b16 %v4408, %v4408
      %v4441 = vpack.c.b16 %v4409, %v4409
      %v4442 = vpack.c.b16 %v4410, %v4410
      %v4443 = vpack.c.b16 %v4411, %v4411
      %v4444 = vpack.c.b16 %v4412, %v4412
      %v4445 = vpack.c.b16 %v4413, %v4413
      %v4446 = vpack.c.b16 %v4414, %v4414
      %v4447 = vpack.c.b16 %v4415, %v4415
      %v4448 = vpack.c.b16 %v4416, %v4416
      %v4449 = vpack.c.b16 %v4417, %v4417
      %v4450 = vpack.c.b16 %v4418, %v4418
      %v4451 = vpack.c.b16 %v4419, %v4419
      %v4452 = vpack.c.b16 %v4420, %v4420
      %v4453 = vpack.c.b16 %v4421, %v4421
      %v4454 = vpack.c.b16 %v4422, %v4422
      %v4455 = vpack.c.b16 %v4423, %v4423
      %4456 = vrot.lane.b32.xlu0 %v4424, 16
      %v4457 = vpop.permute.xlu0 %4456
      %4458 = vrot.lane.b32.xlu0 %v4425, 16
      %v4459 = vpop.permute.xlu0 %4458
      %4460 = vrot.lane.b32.xlu0 %v4426, 16
      %v4461 = vpop.permute.xlu0 %4460
      %4462 = vrot.lane.b32.xlu0 %v4427, 16
      %v4463 = vpop.permute.xlu0 %4462
      %4464 = vrot.lane.b32.xlu0 %v4428, 16
      %v4465 = vpop.permute.xlu0 %4464
      %4466 = vrot.lane.b32.xlu0 %v4429, 16
      %v4467 = vpop.permute.xlu0 %4466
      %4468 = vrot.lane.b32.xlu0 %v4430, 16
      %v4469 = vpop.permute.xlu0 %4468
      %4470 = vrot.lane.b32.xlu0 %v4431, 16
      %v4471 = vpop.permute.xlu0 %4470
      %4472 = vrot.lane.b32.xlu0 %v4432, 16
      %v4473 = vpop.permute.xlu0 %4472
      %4474 = vrot.lane.b32.xlu0 %v4433, 16
      %v4475 = vpop.permute.xlu0 %4474
      %4476 = vrot.lane.b32.xlu0 %v4434, 16
      %v4477 = vpop.permute.xlu0 %4476
      %4478 = vrot.lane.b32.xlu0 %v4435, 16
      %v4479 = vpop.permute.xlu0 %4478
      %4480 = vrot.lane.b32.xlu0 %v4436, 16
      %v4481 = vpop.permute.xlu0 %4480
      %4482 = vrot.lane.b32.xlu0 %v4437, 16
      %v4483 = vpop.permute.xlu0 %4482
      %4484 = vrot.lane.b32.xlu0 %v4438, 16
      %v4485 = vpop.permute.xlu0 %4484
      %4486 = vrot.lane.b32.xlu0 %v4439, 16
      %v4487 = vpop.permute.xlu0 %4486
      %4488 = vrot.lane.b32.xlu0 %v4440, 16
      %v4489 = vpop.permute.xlu0 %4488
      %4490 = vrot.lane.b32.xlu0 %v4441, 16
      %v4491 = vpop.permute.xlu0 %4490
      %4492 = vrot.lane.b32.xlu0 %v4442, 16
      %v4493 = vpop.permute.xlu0 %4492
      %4494 = vrot.lane.b32.xlu0 %v4443, 16
      %v4495 = vpop.permute.xlu0 %4494
      %4496 = vrot.lane.b32.xlu0 %v4444, 16
      %v4497 = vpop.permute.xlu0 %4496
      %4498 = vrot.lane.b32.xlu0 %v4445, 16
      %v4499 = vpop.permute.xlu0 %4498
      %4500 = vrot.lane.b32.xlu0 %v4446, 16
      %v4501 = vpop.permute.xlu0 %4500
      %4502 = vrot.lane.b32.xlu0 %v4447, 16
      %v4503 = vpop.permute.xlu0 %4502
      %4504 = vrot.lane.b32.xlu0 %v4448, 16
      %v4505 = vpop.permute.xlu0 %4504
      %4506 = vrot.lane.b32.xlu0 %v4449, 16
      %v4507 = vpop.permute.xlu0 %4506
      %4508 = vrot.lane.b32.xlu0 %v4450, 16
      %v4509 = vpop.permute.xlu0 %4508
      %4510 = vrot.lane.b32.xlu0 %v4451, 16
      %v4511 = vpop.permute.xlu0 %4510
      %4512 = vrot.lane.b32.xlu0 %v4452, 16
      %v4513 = vpop.permute.xlu0 %4512
      %4514 = vrot.lane.b32.xlu0 %v4453, 16
      %v4515 = vpop.permute.xlu0 %4514
      %4516 = vrot.lane.b32.xlu0 %v4454, 16
      %v4517 = vpop.permute.xlu0 %4516
      %4518 = vrot.lane.b32.xlu0 %v4455, 16
      %v4519 = vpop.permute.xlu0 %4518
      %4552 = vst.msk [vmem:[#allocation3] sm:$0xf] %vm1579, %v4457
      %4553 = vst.msk [vmem:[#allocation3 + $0x4] sm:$0xf] %vm1579, %v4459
      %4554 = vst.msk [vmem:[#allocation3 + $0x8] sm:$0xf] %vm1579, %v4461
      %4555 = vst.msk [vmem:[#allocation3 + $0xc] sm:$0xf] %vm1579, %v4463
      %4556 = vst.msk [vmem:[#allocation3 + $0x10] sm:$0xf] %vm1579, %v4465
      %4557 = vst.msk [vmem:[#allocation3 + $0x14] sm:$0xf] %vm1579, %v4467
      %4558 = vst.msk [vmem:[#allocation3 + $0x18] sm:$0xf] %vm1579, %v4469
      %4559 = vst.msk [vmem:[#allocation3 + $0x1c] sm:$0xf] %vm1579, %v4471
      %4560 = vst.msk [vmem:[#allocation3 + $0x20] sm:$0xf] %vm1579, %v4473
      %4561 = vst.msk [vmem:[#allocation3 + $0x24] sm:$0xf] %vm1579, %v4475
      %4562 = vst.msk [vmem:[#allocation3 + $0x28] sm:$0xf] %vm1579, %v4477
      %4563 = vst.msk [vmem:[#allocation3 + $0x2c] sm:$0xf] %vm1579, %v4479
      %4564 = vst.msk [vmem:[#allocation3 + $0x30] sm:$0xf] %vm1579, %v4481
      %4565 = vst.msk [vmem:[#allocation3 + $0x34] sm:$0xf] %vm1579, %v4483
      %4566 = vst.msk [vmem:[#allocation3 + $0x38] sm:$0xf] %vm1579, %v4485
      %4567 = vst.msk [vmem:[#allocation3 + $0x3c] sm:$0xf] %vm1579, %v4487
      %4568 = vst.msk [vmem:[#allocation3 + $0x40] sm:$0xf] %vm1579, %v4489
      %4569 = vst.msk [vmem:[#allocation3 + $0x44] sm:$0xf] %vm1579, %v4491
      %4570 = vst.msk [vmem:[#allocation3 + $0x48] sm:$0xf] %vm1579, %v4493
      %4571 = vst.msk [vmem:[#allocation3 + $0x4c] sm:$0xf] %vm1579, %v4495
      %4572 = vst.msk [vmem:[#allocation3 + $0x50] sm:$0xf] %vm1579, %v4497
      %4573 = vst.msk [vmem:[#allocation3 + $0x54] sm:$0xf] %vm1579, %v4499
      %4574 = vst.msk [vmem:[#allocation3 + $0x58] sm:$0xf] %vm1579, %v4501
      %4575 = vst.msk [vmem:[#allocation3 + $0x5c] sm:$0xf] %vm1579, %v4503
      %4576 = vst.msk [vmem:[#allocation3 + $0x60] sm:$0xf] %vm1579, %v4505
      %4577 = vst.msk [vmem:[#allocation3 + $0x64] sm:$0xf] %vm1579, %v4507
      %4578 = vst.msk [vmem:[#allocation3 + $0x68] sm:$0xf] %vm1579, %v4509
      %4579 = vst.msk [vmem:[#allocation3 + $0x6c] sm:$0xf] %vm1579, %v4511
      %4580 = vst.msk [vmem:[#allocation3 + $0x70] sm:$0xf] %vm1579, %v4513
      %4581 = vst.msk [vmem:[#allocation3 + $0x74] sm:$0xf] %vm1579, %v4515
      %4582 = vst.msk [vmem:[#allocation3 + $0x78] sm:$0xf] %vm1579, %v4517
      %4583 = vst.msk [vmem:[#allocation3 + $0x7c] sm:$0xf] %vm1579, %v4519
      %v4584 = vld [vmem:[%s358 + $0x2] sm:$0xff]
      %v4585 = vld [vmem:[%s358 + $0xa] sm:$0xff]
      %v4586 = vld [vmem:[%s358 + $0x1a] sm:$0xff]
      %v4587 = vld [vmem:[%s358 + $0x22] sm:$0xff]
      %v4588 = vld [vmem:[%s358 + $0x32] sm:$0xff]
      %v4589 = vld [vmem:[%s358 + $0x3a] sm:$0xff]
      %v4590 = vld [vmem:[%s358 + $0x4a] sm:$0xff]
      %v4591 = vld [vmem:[%s358 + $0x52] sm:$0xff]
      %v4592 = vld [vmem:[%s358 + $0x62] sm:$0xff]
      %v4593 = vld [vmem:[%s358 + $0x6a] sm:$0xff]
      %v4594 = vld [vmem:[%s358 + $0x7a] sm:$0xff]
      %v4595 = vld [vmem:[%s358 + $0x82] sm:$0xff]
      %v4596 = vld [vmem:[%s358 + $0x92] sm:$0xff]
      %v4597 = vld [vmem:[%s358 + $0x9a] sm:$0xff]
      %v4598 = vld [vmem:[%s358 + $0xaa] sm:$0xff]
      %v4599 = vld [vmem:[%s358 + $0xb2] sm:$0xff]
      %v4600 = vld [vmem:[%s358 + $0xc2] sm:$0xff]
      %v4601 = vld [vmem:[%s358 + $0xca] sm:$0xff]
      %v4602 = vld [vmem:[%s358 + $0xda] sm:$0xff]
      %v4603 = vld [vmem:[%s358 + $0xe2] sm:$0xff]
      %v4604 = vld [vmem:[%s358 + $0xf2] sm:$0xff]
      %v4605 = vld [vmem:[%s358 + $0xfa] sm:$0xff]
      %v4606 = vld [vmem:[%s358 + $0x10a] sm:$0xff]
      %v4607 = vld [vmem:[%s358 + $0x112] sm:$0xff]
      %v4608 = vld [vmem:[%s358 + $0x122] sm:$0xff]
      %v4609 = vld [vmem:[%s358 + $0x12a] sm:$0xff]
      %v4610 = vld [vmem:[%s358 + $0x13a] sm:$0xff]
      %v4611 = vld [vmem:[%s358 + $0x142] sm:$0xff]
      %v4612 = vld [vmem:[%s358 + $0x152] sm:$0xff]
      %v4613 = vld [vmem:[%s358 + $0x15a] sm:$0xff]
      %v4614 = vld [vmem:[%s358 + $0x16a] sm:$0xff]
      %v4615 = vld [vmem:[%s358 + $0x172] sm:$0xff]
      %v4616 = vpack.c.bf16 %v4585, %v4584
      %v4617 = vpack.c.bf16 %v4587, %v4586
      %v4618 = vpack.c.bf16 %v4589, %v4588
      %v4619 = vpack.c.bf16 %v4591, %v4590
      %v4620 = vpack.c.bf16 %v4593, %v4592
      %v4621 = vpack.c.bf16 %v4595, %v4594
      %v4622 = vpack.c.bf16 %v4597, %v4596
      %v4623 = vpack.c.bf16 %v4599, %v4598
      %v4624 = vpack.c.bf16 %v4601, %v4600
      %v4625 = vpack.c.bf16 %v4603, %v4602
      %v4626 = vpack.c.bf16 %v4605, %v4604
      %v4627 = vpack.c.bf16 %v4607, %v4606
      %v4628 = vpack.c.bf16 %v4609, %v4608
      %v4629 = vpack.c.bf16 %v4611, %v4610
      %v4630 = vpack.c.bf16 %v4613, %v4612
      %v4631 = vpack.c.bf16 %v4615, %v4614
      %v4648 = vunpack.c.l.b16 %v4616
      %v4649 = vunpack.c.h.b16 %v4616
      %v4650 = vunpack.c.l.b16 %v4617
      %v4651 = vunpack.c.h.b16 %v4617
      %v4652 = vunpack.c.l.b16 %v4618
      %v4653 = vunpack.c.h.b16 %v4618
      %v4654 = vunpack.c.l.b16 %v4619
      %v4655 = vunpack.c.h.b16 %v4619
      %v4656 = vunpack.c.l.b16 %v4620
      %v4657 = vunpack.c.h.b16 %v4620
      %v4658 = vunpack.c.l.b16 %v4621
      %v4659 = vunpack.c.h.b16 %v4621
      %v4660 = vunpack.c.l.b16 %v4622
      %v4661 = vunpack.c.h.b16 %v4622
      %v4662 = vunpack.c.l.b16 %v4623
      %v4663 = vunpack.c.h.b16 %v4623
      %v4664 = vunpack.c.l.b16 %v4624
      %v4665 = vunpack.c.h.b16 %v4624
      %v4666 = vunpack.c.l.b16 %v4625
      %v4667 = vunpack.c.h.b16 %v4625
      %v4668 = vunpack.c.l.b16 %v4626
      %v4669 = vunpack.c.h.b16 %v4626
      %v4670 = vunpack.c.l.b16 %v4627
      %v4671 = vunpack.c.h.b16 %v4627
      %v4672 = vunpack.c.l.b16 %v4628
      %v4673 = vunpack.c.h.b16 %v4628
      %v4674 = vunpack.c.l.b16 %v4629
      %v4675 = vunpack.c.h.b16 %v4629
      %v4676 = vunpack.c.l.b16 %v4630
      %v4677 = vunpack.c.h.b16 %v4630
      %v4678 = vunpack.c.l.b16 %v4631
      %v4679 = vunpack.c.h.b16 %v4631
      %v4680 = vpack.c.b16 %v4648, %v4648
      %v4681 = vpack.c.b16 %v4649, %v4649
      %v4682 = vpack.c.b16 %v4650, %v4650
      %v4683 = vpack.c.b16 %v4651, %v4651
      %v4684 = vpack.c.b16 %v4652, %v4652
      %v4685 = vpack.c.b16 %v4653, %v4653
      %v4686 = vpack.c.b16 %v4654, %v4654
      %v4687 = vpack.c.b16 %v4655, %v4655
      %v4688 = vpack.c.b16 %v4656, %v4656
      %v4689 = vpack.c.b16 %v4657, %v4657
      %v4690 = vpack.c.b16 %v4658, %v4658
      %v4691 = vpack.c.b16 %v4659, %v4659
      %v4692 = vpack.c.b16 %v4660, %v4660
      %v4693 = vpack.c.b16 %v4661, %v4661
      %v4694 = vpack.c.b16 %v4662, %v4662
      %v4695 = vpack.c.b16 %v4663, %v4663
      %v4696 = vpack.c.b16 %v4664, %v4664
      %v4697 = vpack.c.b16 %v4665, %v4665
      %v4698 = vpack.c.b16 %v4666, %v4666
      %v4699 = vpack.c.b16 %v4667, %v4667
      %v4700 = vpack.c.b16 %v4668, %v4668
      %v4701 = vpack.c.b16 %v4669, %v4669
      %v4702 = vpack.c.b16 %v4670, %v4670
      %v4703 = vpack.c.b16 %v4671, %v4671
      %v4704 = vpack.c.b16 %v4672, %v4672
      %v4705 = vpack.c.b16 %v4673, %v4673
      %v4706 = vpack.c.b16 %v4674, %v4674
      %v4707 = vpack.c.b16 %v4675, %v4675
      %v4708 = vpack.c.b16 %v4676, %v4676
      %v4709 = vpack.c.b16 %v4677, %v4677
      %v4710 = vpack.c.b16 %v4678, %v4678
      %v4711 = vpack.c.b16 %v4679, %v4679
      %4712 = vrot.lane.b32.xlu0 %v4680, 20
      %v4713 = vpop.permute.xlu0 %4712
      %4714 = vrot.lane.b32.xlu0 %v4681, 20
      %v4715 = vpop.permute.xlu0 %4714
      %4716 = vrot.lane.b32.xlu0 %v4682, 20
      %v4717 = vpop.permute.xlu0 %4716
      %4718 = vrot.lane.b32.xlu0 %v4683, 20
      %v4719 = vpop.permute.xlu0 %4718
      %4720 = vrot.lane.b32.xlu0 %v4684, 20
      %v4721 = vpop.permute.xlu0 %4720
      %4722 = vrot.lane.b32.xlu0 %v4685, 20
      %v4723 = vpop.permute.xlu0 %4722
      %4724 = vrot.lane.b32.xlu0 %v4686, 20
      %v4725 = vpop.permute.xlu0 %4724
      %4726 = vrot.lane.b32.xlu0 %v4687, 20
      %v4727 = vpop.permute.xlu0 %4726
      %4728 = vrot.lane.b32.xlu0 %v4688, 20
      %v4729 = vpop.permute.xlu0 %4728
      %4730 = vrot.lane.b32.xlu0 %v4689, 20
      %v4731 = vpop.permute.xlu0 %4730
      %4732 = vrot.lane.b32.xlu0 %v4690, 20
      %v4733 = vpop.permute.xlu0 %4732
      %4734 = vrot.lane.b32.xlu0 %v4691, 20
      %v4735 = vpop.permute.xlu0 %4734
      %4736 = vrot.lane.b32.xlu0 %v4692, 20
      %v4737 = vpop.permute.xlu0 %4736
      %4738 = vrot.lane.b32.xlu0 %v4693, 20
      %v4739 = vpop.permute.xlu0 %4738
      %4740 = vrot.lane.b32.xlu0 %v4694, 20
      %v4741 = vpop.permute.xlu0 %4740
      %4742 = vrot.lane.b32.xlu0 %v4695, 20
      %v4743 = vpop.permute.xlu0 %4742
      %4744 = vrot.lane.b32.xlu0 %v4696, 20
      %v4745 = vpop.permute.xlu0 %4744
      %4746 = vrot.lane.b32.xlu0 %v4697, 20
      %v4747 = vpop.permute.xlu0 %4746
      %4748 = vrot.lane.b32.xlu0 %v4698, 20
      %v4749 = vpop.permute.xlu0 %4748
      %4750 = vrot.lane.b32.xlu0 %v4699, 20
      %v4751 = vpop.permute.xlu0 %4750
      %4752 = vrot.lane.b32.xlu0 %v4700, 20
      %v4753 = vpop.permute.xlu0 %4752
      %4754 = vrot.lane.b32.xlu0 %v4701, 20
      %v4755 = vpop.permute.xlu0 %4754
      %4756 = vrot.lane.b32.xlu0 %v4702, 20
      %v4757 = vpop.permute.xlu0 %4756
      %4758 = vrot.lane.b32.xlu0 %v4703, 20
      %v4759 = vpop.permute.xlu0 %4758
      %4760 = vrot.lane.b32.xlu0 %v4704, 20
      %v4761 = vpop.permute.xlu0 %4760
      %4762 = vrot.lane.b32.xlu0 %v4705, 20
      %v4763 = vpop.permute.xlu0 %4762
      %4764 = vrot.lane.b32.xlu0 %v4706, 20
      %v4765 = vpop.permute.xlu0 %4764
      %4766 = vrot.lane.b32.xlu0 %v4707, 20
      %v4767 = vpop.permute.xlu0 %4766
      %4768 = vrot.lane.b32.xlu0 %v4708, 20
      %v4769 = vpop.permute.xlu0 %4768
      %4770 = vrot.lane.b32.xlu0 %v4709, 20
      %v4771 = vpop.permute.xlu0 %4770
      %4772 = vrot.lane.b32.xlu0 %v4710, 20
      %v4773 = vpop.permute.xlu0 %4772
      %4774 = vrot.lane.b32.xlu0 %v4711, 20
      %v4775 = vpop.permute.xlu0 %4774
      %4808 = vst.msk [vmem:[#allocation3] sm:$0xf] %vm1836, %v4713
      %4809 = vst.msk [vmem:[#allocation3 + $0x4] sm:$0xf] %vm1836, %v4715
      %4810 = vst.msk [vmem:[#allocation3 + $0x8] sm:$0xf] %vm1836, %v4717
      %4811 = vst.msk [vmem:[#allocation3 + $0xc] sm:$0xf] %vm1836, %v4719
      %4812 = vst.msk [vmem:[#allocation3 + $0x10] sm:$0xf] %vm1836, %v4721
      %4813 = vst.msk [vmem:[#allocation3 + $0x14] sm:$0xf] %vm1836, %v4723
      %4814 = vst.msk [vmem:[#allocation3 + $0x18] sm:$0xf] %vm1836, %v4725
      %4815 = vst.msk [vmem:[#allocation3 + $0x1c] sm:$0xf] %vm1836, %v4727
      %4816 = vst.msk [vmem:[#allocation3 + $0x20] sm:$0xf] %vm1836, %v4729
      %4817 = vst.msk [vmem:[#allocation3 + $0x24] sm:$0xf] %vm1836, %v4731
      %4818 = vst.msk [vmem:[#allocation3 + $0x28] sm:$0xf] %vm1836, %v4733
      %4819 = vst.msk [vmem:[#allocation3 + $0x2c] sm:$0xf] %vm1836, %v4735
      %4820 = vst.msk [vmem:[#allocation3 + $0x30] sm:$0xf] %vm1836, %v4737
      %4821 = vst.msk [vmem:[#allocation3 + $0x34] sm:$0xf] %vm1836, %v4739
      %4822 = vst.msk [vmem:[#allocation3 + $0x38] sm:$0xf] %vm1836, %v4741
      %4823 = vst.msk [vmem:[#allocation3 + $0x3c] sm:$0xf] %vm1836, %v4743
      %4824 = vst.msk [vmem:[#allocation3 + $0x40] sm:$0xf] %vm1836, %v4745
      %4825 = vst.msk [vmem:[#allocation3 + $0x44] sm:$0xf] %vm1836, %v4747
      %4826 = vst.msk [vmem:[#allocation3 + $0x48] sm:$0xf] %vm1836, %v4749
      %4827 = vst.msk [vmem:[#allocation3 + $0x4c] sm:$0xf] %vm1836, %v4751
      %4828 = vst.msk [vmem:[#allocation3 + $0x50] sm:$0xf] %vm1836, %v4753
      %4829 = vst.msk [vmem:[#allocation3 + $0x54] sm:$0xf] %vm1836, %v4755
      %4830 = vst.msk [vmem:[#allocation3 + $0x58] sm:$0xf] %vm1836, %v4757
      %4831 = vst.msk [vmem:[#allocation3 + $0x5c] sm:$0xf] %vm1836, %v4759
      %4832 = vst.msk [vmem:[#allocation3 + $0x60] sm:$0xf] %vm1836, %v4761
      %4833 = vst.msk [vmem:[#allocation3 + $0x64] sm:$0xf] %vm1836, %v4763
      %4834 = vst.msk [vmem:[#allocation3 + $0x68] sm:$0xf] %vm1836, %v4765
      %4835 = vst.msk [vmem:[#allocation3 + $0x6c] sm:$0xf] %vm1836, %v4767
      %4836 = vst.msk [vmem:[#allocation3 + $0x70] sm:$0xf] %vm1836, %v4769
      %4837 = vst.msk [vmem:[#allocation3 + $0x74] sm:$0xf] %vm1836, %v4771
      %4838 = vst.msk [vmem:[#allocation3 + $0x78] sm:$0xf] %vm1836, %v4773
      %4839 = vst.msk [vmem:[#allocation3 + $0x7c] sm:$0xf] %vm1836, %v4775
      %v4840 = vld [vmem:[%s1869] sm:$0xff]
      %v4841 = vld [vmem:[%s1869 + $0x8] sm:$0xff]
      %v4842 = vld [vmem:[%s1869 + $0x18] sm:$0xff]
      %v4843 = vld [vmem:[%s1869 + $0x20] sm:$0xff]
      %v4844 = vld [vmem:[%s1869 + $0x30] sm:$0xff]
      %v4845 = vld [vmem:[%s1869 + $0x38] sm:$0xff]
      %v4846 = vld [vmem:[%s1869 + $0x48] sm:$0xff]
      %v4847 = vld [vmem:[%s1869 + $0x50] sm:$0xff]
      %v4848 = vld [vmem:[%s1869 + $0x60] sm:$0xff]
      %v4849 = vld [vmem:[%s1869 + $0x68] sm:$0xff]
      %v4850 = vld [vmem:[%s1869 + $0x78] sm:$0xff]
      %v4851 = vld [vmem:[%s1869 + $0x80] sm:$0xff]
      %v4852 = vld [vmem:[%s1869 + $0x90] sm:$0xff]
      %v4853 = vld [vmem:[%s1869 + $0x98] sm:$0xff]
      %v4854 = vld [vmem:[%s1869 + $0xa8] sm:$0xff]
      %v4855 = vld [vmem:[%s1869 + $0xb0] sm:$0xff]
      %v4856 = vld [vmem:[%s1869 + $0xc0] sm:$0xff]
      %v4857 = vld [vmem:[%s1869 + $0xc8] sm:$0xff]
      %v4858 = vld [vmem:[%s1869 + $0xd8] sm:$0xff]
      %v4859 = vld [vmem:[%s1869 + $0xe0] sm:$0xff]
      %v4860 = vld [vmem:[%s1869 + $0xf0] sm:$0xff]
      %v4861 = vld [vmem:[%s1869 + $0xf8] sm:$0xff]
      %v4862 = vld [vmem:[%s1869 + $0x108] sm:$0xff]
      %v4863 = vld [vmem:[%s1869 + $0x110] sm:$0xff]
      %v4864 = vld [vmem:[%s1869 + $0x120] sm:$0xff]
      %v4865 = vld [vmem:[%s1869 + $0x128] sm:$0xff]
      %v4866 = vld [vmem:[%s1869 + $0x138] sm:$0xff]
      %v4867 = vld [vmem:[%s1869 + $0x140] sm:$0xff]
      %v4868 = vld [vmem:[%s1869 + $0x150] sm:$0xff]
      %v4869 = vld [vmem:[%s1869 + $0x158] sm:$0xff]
      %v4870 = vld [vmem:[%s1869 + $0x168] sm:$0xff]
      %v4871 = vld [vmem:[%s1869 + $0x170] sm:$0xff]
      %v4872 = vpack.c.bf16 %v4841, %v4840
      %v4873 = vpack.c.bf16 %v4843, %v4842
      %v4874 = vpack.c.bf16 %v4845, %v4844
      %v4875 = vpack.c.bf16 %v4847, %v4846
      %v4876 = vpack.c.bf16 %v4849, %v4848
      %v4877 = vpack.c.bf16 %v4851, %v4850
      %v4878 = vpack.c.bf16 %v4853, %v4852
      %v4879 = vpack.c.bf16 %v4855, %v4854
      %v4880 = vpack.c.bf16 %v4857, %v4856
      %v4881 = vpack.c.bf16 %v4859, %v4858
      %v4882 = vpack.c.bf16 %v4861, %v4860
      %v4883 = vpack.c.bf16 %v4863, %v4862
      %v4884 = vpack.c.bf16 %v4865, %v4864
      %v4885 = vpack.c.bf16 %v4867, %v4866
      %v4886 = vpack.c.bf16 %v4869, %v4868
      %v4887 = vpack.c.bf16 %v4871, %v4870
      %v4904 = vunpack.c.l.b16 %v4872
      %v4905 = vunpack.c.h.b16 %v4872
      %v4906 = vunpack.c.l.b16 %v4873
      %v4907 = vunpack.c.h.b16 %v4873
      %v4908 = vunpack.c.l.b16 %v4874
      %v4909 = vunpack.c.h.b16 %v4874
      %v4910 = vunpack.c.l.b16 %v4875
      %v4911 = vunpack.c.h.b16 %v4875
      %v4912 = vunpack.c.l.b16 %v4876
      %v4913 = vunpack.c.h.b16 %v4876
      %v4914 = vunpack.c.l.b16 %v4877
      %v4915 = vunpack.c.h.b16 %v4877
      %v4916 = vunpack.c.l.b16 %v4878
      %v4917 = vunpack.c.h.b16 %v4878
      %v4918 = vunpack.c.l.b16 %v4879
      %v4919 = vunpack.c.h.b16 %v4879
      %v4920 = vunpack.c.l.b16 %v4880
      %v4921 = vunpack.c.h.b16 %v4880
      %v4922 = vunpack.c.l.b16 %v4881
      %v4923 = vunpack.c.h.b16 %v4881
      %v4924 = vunpack.c.l.b16 %v4882
      %v4925 = vunpack.c.h.b16 %v4882
      %v4926 = vunpack.c.l.b16 %v4883
      %v4927 = vunpack.c.h.b16 %v4883
      %v4928 = vunpack.c.l.b16 %v4884
      %v4929 = vunpack.c.h.b16 %v4884
      %v4930 = vunpack.c.l.b16 %v4885
      %v4931 = vunpack.c.h.b16 %v4885
      %v4932 = vunpack.c.l.b16 %v4886
      %v4933 = vunpack.c.h.b16 %v4886
      %v4934 = vunpack.c.l.b16 %v4887
      %v4935 = vunpack.c.h.b16 %v4887
      %v4936 = vpack.c.b16 %v4904, %v4904
      %v4937 = vpack.c.b16 %v4905, %v4905
      %v4938 = vpack.c.b16 %v4906, %v4906
      %v4939 = vpack.c.b16 %v4907, %v4907
      %v4940 = vpack.c.b16 %v4908, %v4908
      %v4941 = vpack.c.b16 %v4909, %v4909
      %v4942 = vpack.c.b16 %v4910, %v4910
      %v4943 = vpack.c.b16 %v4911, %v4911
      %v4944 = vpack.c.b16 %v4912, %v4912
      %v4945 = vpack.c.b16 %v4913, %v4913
      %v4946 = vpack.c.b16 %v4914, %v4914
      %v4947 = vpack.c.b16 %v4915, %v4915
      %v4948 = vpack.c.b16 %v4916, %v4916
      %v4949 = vpack.c.b16 %v4917, %v4917
      %v4950 = vpack.c.b16 %v4918, %v4918
      %v4951 = vpack.c.b16 %v4919, %v4919
      %v4952 = vpack.c.b16 %v4920, %v4920
      %v4953 = vpack.c.b16 %v4921, %v4921
      %v4954 = vpack.c.b16 %v4922, %v4922
      %v4955 = vpack.c.b16 %v4923, %v4923
      %v4956 = vpack.c.b16 %v4924, %v4924
      %v4957 = vpack.c.b16 %v4925, %v4925
      %v4958 = vpack.c.b16 %v4926, %v4926
      %v4959 = vpack.c.b16 %v4927, %v4927
      %v4960 = vpack.c.b16 %v4928, %v4928
      %v4961 = vpack.c.b16 %v4929, %v4929
      %v4962 = vpack.c.b16 %v4930, %v4930
      %v4963 = vpack.c.b16 %v4931, %v4931
      %v4964 = vpack.c.b16 %v4932, %v4932
      %v4965 = vpack.c.b16 %v4933, %v4933
      %v4966 = vpack.c.b16 %v4934, %v4934
      %v4967 = vpack.c.b16 %v4935, %v4935
      %4968 = vrot.lane.b32.xlu0 %v4936, 24
      %v4969 = vpop.permute.xlu0 %4968
      %4970 = vrot.lane.b32.xlu0 %v4937, 24
      %v4971 = vpop.permute.xlu0 %4970
      %4972 = vrot.lane.b32.xlu0 %v4938, 24
      %v4973 = vpop.permute.xlu0 %4972
      %4974 = vrot.lane.b32.xlu0 %v4939, 24
      %v4975 = vpop.permute.xlu0 %4974
      %4976 = vrot.lane.b32.xlu0 %v4940, 24
      %v4977 = vpop.permute.xlu0 %4976
      %4978 = vrot.lane.b32.xlu0 %v4941, 24
      %v4979 = vpop.permute.xlu0 %4978
      %4980 = vrot.lane.b32.xlu0 %v4942, 24
      %v4981 = vpop.permute.xlu0 %4980
      %4982 = vrot.lane.b32.xlu0 %v4943, 24
      %v4983 = vpop.permute.xlu0 %4982
      %4984 = vrot.lane.b32.xlu0 %v4944, 24
      %v4985 = vpop.permute.xlu0 %4984
      %4986 = vrot.lane.b32.xlu0 %v4945, 24
      %v4987 = vpop.permute.xlu0 %4986
      %4988 = vrot.lane.b32.xlu0 %v4946, 24
      %v4989 = vpop.permute.xlu0 %4988
      %4990 = vrot.lane.b32.xlu0 %v4947, 24
      %v4991 = vpop.permute.xlu0 %4990
      %4992 = vrot.lane.b32.xlu0 %v4948, 24
      %v4993 = vpop.permute.xlu0 %4992
      %4994 = vrot.lane.b32.xlu0 %v4949, 24
      %v4995 = vpop.permute.xlu0 %4994
      %4996 = vrot.lane.b32.xlu0 %v4950, 24
      %v4997 = vpop.permute.xlu0 %4996
      %4998 = vrot.lane.b32.xlu0 %v4951, 24
      %v4999 = vpop.permute.xlu0 %4998
      %5000 = vrot.lane.b32.xlu0 %v4952, 24
      %v5001 = vpop.permute.xlu0 %5000
      %5002 = vrot.lane.b32.xlu0 %v4953, 24
      %v5003 = vpop.permute.xlu0 %5002
      %5004 = vrot.lane.b32.xlu0 %v4954, 24
      %v5005 = vpop.permute.xlu0 %5004
      %5006 = vrot.lane.b32.xlu0 %v4955, 24
      %v5007 = vpop.permute.xlu0 %5006
      %5008 = vrot.lane.b32.xlu0 %v4956, 24
      %v5009 = vpop.permute.xlu0 %5008
      %5010 = vrot.lane.b32.xlu0 %v4957, 24
      %v5011 = vpop.permute.xlu0 %5010
      %5012 = vrot.lane.b32.xlu0 %v4958, 24
      %v5013 = vpop.permute.xlu0 %5012
      %5014 = vrot.lane.b32.xlu0 %v4959, 24
      %v5015 = vpop.permute.xlu0 %5014
      %5016 = vrot.lane.b32.xlu0 %v4960, 24
      %v5017 = vpop.permute.xlu0 %5016
      %5018 = vrot.lane.b32.xlu0 %v4961, 24
      %v5019 = vpop.permute.xlu0 %5018
      %5020 = vrot.lane.b32.xlu0 %v4962, 24
      %v5021 = vpop.permute.xlu0 %5020
      %5022 = vrot.lane.b32.xlu0 %v4963, 24
      %v5023 = vpop.permute.xlu0 %5022
      %5024 = vrot.lane.b32.xlu0 %v4964, 24
      %v5025 = vpop.permute.xlu0 %5024
      %5026 = vrot.lane.b32.xlu0 %v4965, 24
      %v5027 = vpop.permute.xlu0 %5026
      %5028 = vrot.lane.b32.xlu0 %v4966, 24
      %v5029 = vpop.permute.xlu0 %5028
      %5030 = vrot.lane.b32.xlu0 %v4967, 24
      %v5031 = vpop.permute.xlu0 %5030
      %5064 = vst.msk [vmem:[#allocation3] sm:$0xf] %vm2094, %v4969
      %5065 = vst.msk [vmem:[#allocation3 + $0x4] sm:$0xf] %vm2094, %v4971
      %5066 = vst.msk [vmem:[#allocation3 + $0x8] sm:$0xf] %vm2094, %v4973
      %5067 = vst.msk [vmem:[#allocation3 + $0xc] sm:$0xf] %vm2094, %v4975
      %5068 = vst.msk [vmem:[#allocation3 + $0x10] sm:$0xf] %vm2094, %v4977
      %5069 = vst.msk [vmem:[#allocation3 + $0x14] sm:$0xf] %vm2094, %v4979
      %5070 = vst.msk [vmem:[#allocation3 + $0x18] sm:$0xf] %vm2094, %v4981
      %5071 = vst.msk [vmem:[#allocation3 + $0x1c] sm:$0xf] %vm2094, %v4983
      %5072 = vst.msk [vmem:[#allocation3 + $0x20] sm:$0xf] %vm2094, %v4985
      %5073 = vst.msk [vmem:[#allocation3 + $0x24] sm:$0xf] %vm2094, %v4987
      %5074 = vst.msk [vmem:[#allocation3 + $0x28] sm:$0xf] %vm2094, %v4989
      %5075 = vst.msk [vmem:[#allocation3 + $0x2c] sm:$0xf] %vm2094, %v4991
      %5076 = vst.msk [vmem:[#allocation3 + $0x30] sm:$0xf] %vm2094, %v4993
      %5077 = vst.msk [vmem:[#allocation3 + $0x34] sm:$0xf] %vm2094, %v4995
      %5078 = vst.msk [vmem:[#allocation3 + $0x38] sm:$0xf] %vm2094, %v4997
      %5079 = vst.msk [vmem:[#allocation3 + $0x3c] sm:$0xf] %vm2094, %v4999
      %5080 = vst.msk [vmem:[#allocation3 + $0x40] sm:$0xf] %vm2094, %v5001
      %5081 = vst.msk [vmem:[#allocation3 + $0x44] sm:$0xf] %vm2094, %v5003
      %5082 = vst.msk [vmem:[#allocation3 + $0x48] sm:$0xf] %vm2094, %v5005
      %5083 = vst.msk [vmem:[#allocation3 + $0x4c] sm:$0xf] %vm2094, %v5007
      %5084 = vst.msk [vmem:[#allocation3 + $0x50] sm:$0xf] %vm2094, %v5009
      %5085 = vst.msk [vmem:[#allocation3 + $0x54] sm:$0xf] %vm2094, %v5011
      %5086 = vst.msk [vmem:[#allocation3 + $0x58] sm:$0xf] %vm2094, %v5013
      %5087 = vst.msk [vmem:[#allocation3 + $0x5c] sm:$0xf] %vm2094, %v5015
      %5088 = vst.msk [vmem:[#allocation3 + $0x60] sm:$0xf] %vm2094, %v5017
      %5089 = vst.msk [vmem:[#allocation3 + $0x64] sm:$0xf] %vm2094, %v5019
      %5090 = vst.msk [vmem:[#allocation3 + $0x68] sm:$0xf] %vm2094, %v5021
      %5091 = vst.msk [vmem:[#allocation3 + $0x6c] sm:$0xf] %vm2094, %v5023
      %5092 = vst.msk [vmem:[#allocation3 + $0x70] sm:$0xf] %vm2094, %v5025
      %5093 = vst.msk [vmem:[#allocation3 + $0x74] sm:$0xf] %vm2094, %v5027
      %5094 = vst.msk [vmem:[#allocation3 + $0x78] sm:$0xf] %vm2094, %v5029
      %5095 = vst.msk [vmem:[#allocation3 + $0x7c] sm:$0xf] %vm2094, %v5031
      %v5096 = vld [vmem:[%s1869 + $0x1] sm:$0xff]
      %v5097 = vld [vmem:[%s1869 + $0x9] sm:$0xff]
      %v5098 = vld [vmem:[%s1869 + $0x19] sm:$0xff]
      %v5099 = vld [vmem:[%s1869 + $0x21] sm:$0xff]
      %v5100 = vld [vmem:[%s1869 + $0x31] sm:$0xff]
      %v5101 = vld [vmem:[%s1869 + $0x39] sm:$0xff]
      %v5102 = vld [vmem:[%s1869 + $0x49] sm:$0xff]
      %v5103 = vld [vmem:[%s1869 + $0x51] sm:$0xff]
      %v5104 = vld [vmem:[%s1869 + $0x61] sm:$0xff]
      %v5105 = vld [vmem:[%s1869 + $0x69] sm:$0xff]
      %v5106 = vld [vmem:[%s1869 + $0x79] sm:$0xff]
      %v5107 = vld [vmem:[%s1869 + $0x81] sm:$0xff]
      %v5108 = vld [vmem:[%s1869 + $0x91] sm:$0xff]
      %v5109 = vld [vmem:[%s1869 + $0x99] sm:$0xff]
      %v5110 = vld [vmem:[%s1869 + $0xa9] sm:$0xff]
      %v5111 = vld [vmem:[%s1869 + $0xb1] sm:$0xff]
      %v5112 = vld [vmem:[%s1869 + $0xc1] sm:$0xff]
      %v5113 = vld [vmem:[%s1869 + $0xc9] sm:$0xff]
      %v5114 = vld [vmem:[%s1869 + $0xd9] sm:$0xff]
      %v5115 = vld [vmem:[%s1869 + $0xe1] sm:$0xff]
      %v5116 = vld [vmem:[%s1869 + $0xf1] sm:$0xff]
      %v5117 = vld [vmem:[%s1869 + $0xf9] sm:$0xff]
      %v5118 = vld [vmem:[%s1869 + $0x109] sm:$0xff]
      %v5119 = vld [vmem:[%s1869 + $0x111] sm:$0xff]
      %v5120 = vld [vmem:[%s1869 + $0x121] sm:$0xff]
      %v5121 = vld [vmem:[%s1869 + $0x129] sm:$0xff]
      %v5122 = vld [vmem:[%s1869 + $0x139] sm:$0xff]
      %v5123 = vld [vmem:[%s1869 + $0x141] sm:$0xff]
      %v5124 = vld [vmem:[%s1869 + $0x151] sm:$0xff]
      %v5125 = vld [vmem:[%s1869 + $0x159] sm:$0xff]
      %v5126 = vld [vmem:[%s1869 + $0x169] sm:$0xff]
      %v5127 = vld [vmem:[%s1869 + $0x171] sm:$0xff]
      %v5128 = vpack.c.bf16 %v5097, %v5096
      %v5129 = vpack.c.bf16 %v5099, %v5098
      %v5130 = vpack.c.bf16 %v5101, %v5100
      %v5131 = vpack.c.bf16 %v5103, %v5102
      %v5132 = vpack.c.bf16 %v5105, %v5104
      %v5133 = vpack.c.bf16 %v5107, %v5106
      %v5134 = vpack.c.bf16 %v5109, %v5108
      %v5135 = vpack.c.bf16 %v5111, %v5110
      %v5136 = vpack.c.bf16 %v5113, %v5112
      %v5137 = vpack.c.bf16 %v5115, %v5114
      %v5138 = vpack.c.bf16 %v5117, %v5116
      %v5139 = vpack.c.bf16 %v5119, %v5118
      %v5140 = vpack.c.bf16 %v5121, %v5120
      %v5141 = vpack.c.bf16 %v5123, %v5122
      %v5142 = vpack.c.bf16 %v5125, %v5124
      %v5143 = vpack.c.bf16 %v5127, %v5126
      %v5160 = vunpack.c.l.b16 %v5128
      %v5161 = vunpack.c.h.b16 %v5128
      %v5162 = vunpack.c.l.b16 %v5129
      %v5163 = vunpack.c.h.b16 %v5129
      %v5164 = vunpack.c.l.b16 %v5130
      %v5165 = vunpack.c.h.b16 %v5130
      %v5166 = vunpack.c.l.b16 %v5131
      %v5167 = vunpack.c.h.b16 %v5131
      %v5168 = vunpack.c.l.b16 %v5132
      %v5169 = vunpack.c.h.b16 %v5132
      %v5170 = vunpack.c.l.b16 %v5133
      %v5171 = vunpack.c.h.b16 %v5133
      %v5172 = vunpack.c.l.b16 %v5134
      %v5173 = vunpack.c.h.b16 %v5134
      %v5174 = vunpack.c.l.b16 %v5135
      %v5175 = vunpack.c.h.b16 %v5135
      %v5176 = vunpack.c.l.b16 %v5136
      %v5177 = vunpack.c.h.b16 %v5136
      %v5178 = vunpack.c.l.b16 %v5137
      %v5179 = vunpack.c.h.b16 %v5137
      %v5180 = vunpack.c.l.b16 %v5138
      %v5181 = vunpack.c.h.b16 %v5138
      %v5182 = vunpack.c.l.b16 %v5139
      %v5183 = vunpack.c.h.b16 %v5139
      %v5184 = vunpack.c.l.b16 %v5140
      %v5185 = vunpack.c.h.b16 %v5140
      %v5186 = vunpack.c.l.b16 %v5141
      %v5187 = vunpack.c.h.b16 %v5141
      %v5188 = vunpack.c.l.b16 %v5142
      %v5189 = vunpack.c.h.b16 %v5142
      %v5190 = vunpack.c.l.b16 %v5143
      %v5191 = vunpack.c.h.b16 %v5143
      %v5192 = vpack.c.b16 %v5160, %v5160
      %v5193 = vpack.c.b16 %v5161, %v5161
      %v5194 = vpack.c.b16 %v5162, %v5162
      %v5195 = vpack.c.b16 %v5163, %v5163
      %v5196 = vpack.c.b16 %v5164, %v5164
      %v5197 = vpack.c.b16 %v5165, %v5165
      %v5198 = vpack.c.b16 %v5166, %v5166
      %v5199 = vpack.c.b16 %v5167, %v5167
      %v5200 = vpack.c.b16 %v5168, %v5168
      %v5201 = vpack.c.b16 %v5169, %v5169
      %v5202 = vpack.c.b16 %v5170, %v5170
      %v5203 = vpack.c.b16 %v5171, %v5171
      %v5204 = vpack.c.b16 %v5172, %v5172
      %v5205 = vpack.c.b16 %v5173, %v5173
      %v5206 = vpack.c.b16 %v5174, %v5174
      %v5207 = vpack.c.b16 %v5175, %v5175
      %v5208 = vpack.c.b16 %v5176, %v5176
      %v5209 = vpack.c.b16 %v5177, %v5177
      %v5210 = vpack.c.b16 %v5178, %v5178
      %v5211 = vpack.c.b16 %v5179, %v5179
      %v5212 = vpack.c.b16 %v5180, %v5180
      %v5213 = vpack.c.b16 %v5181, %v5181
      %v5214 = vpack.c.b16 %v5182, %v5182
      %v5215 = vpack.c.b16 %v5183, %v5183
      %v5216 = vpack.c.b16 %v5184, %v5184
      %v5217 = vpack.c.b16 %v5185, %v5185
      %v5218 = vpack.c.b16 %v5186, %v5186
      %v5219 = vpack.c.b16 %v5187, %v5187
      %v5220 = vpack.c.b16 %v5188, %v5188
      %v5221 = vpack.c.b16 %v5189, %v5189
      %v5222 = vpack.c.b16 %v5190, %v5190
      %v5223 = vpack.c.b16 %v5191, %v5191
      %5224 = vrot.lane.b32.xlu0 %v5192, 28
      %v5225 = vpop.permute.xlu0 %5224
      %5226 = vrot.lane.b32.xlu0 %v5193, 28
      %v5227 = vpop.permute.xlu0 %5226
      %5228 = vrot.lane.b32.xlu0 %v5194, 28
      %v5229 = vpop.permute.xlu0 %5228
      %5230 = vrot.lane.b32.xlu0 %v5195, 28
      %v5231 = vpop.permute.xlu0 %5230
      %5232 = vrot.lane.b32.xlu0 %v5196, 28
      %v5233 = vpop.permute.xlu0 %5232
      %5234 = vrot.lane.b32.xlu0 %v5197, 28
      %v5235 = vpop.permute.xlu0 %5234
      %5236 = vrot.lane.b32.xlu0 %v5198, 28
      %v5237 = vpop.permute.xlu0 %5236
      %5238 = vrot.lane.b32.xlu0 %v5199, 28
      %v5239 = vpop.permute.xlu0 %5238
      %5240 = vrot.lane.b32.xlu0 %v5200, 28
      %v5241 = vpop.permute.xlu0 %5240
      %5242 = vrot.lane.b32.xlu0 %v5201, 28
      %v5243 = vpop.permute.xlu0 %5242
      %5244 = vrot.lane.b32.xlu0 %v5202, 28
      %v5245 = vpop.permute.xlu0 %5244
      %5246 = vrot.lane.b32.xlu0 %v5203, 28
      %v5247 = vpop.permute.xlu0 %5246
      %5248 = vrot.lane.b32.xlu0 %v5204, 28
      %v5249 = vpop.permute.xlu0 %5248
      %5250 = vrot.lane.b32.xlu0 %v5205, 28
      %v5251 = vpop.permute.xlu0 %5250
      %5252 = vrot.lane.b32.xlu0 %v5206, 28
      %v5253 = vpop.permute.xlu0 %5252
      %5254 = vrot.lane.b32.xlu0 %v5207, 28
      %v5255 = vpop.permute.xlu0 %5254
      %5256 = vrot.lane.b32.xlu0 %v5208, 28
      %v5257 = vpop.permute.xlu0 %5256
      %5258 = vrot.lane.b32.xlu0 %v5209, 28
      %v5259 = vpop.permute.xlu0 %5258
      %5260 = vrot.lane.b32.xlu0 %v5210, 28
      %v5261 = vpop.permute.xlu0 %5260
      %5262 = vrot.lane.b32.xlu0 %v5211, 28
      %v5263 = vpop.permute.xlu0 %5262
      %5264 = vrot.lane.b32.xlu0 %v5212, 28
      %v5265 = vpop.permute.xlu0 %5264
      %5266 = vrot.lane.b32.xlu0 %v5213, 28
      %v5267 = vpop.permute.xlu0 %5266
      %5268 = vrot.lane.b32.xlu0 %v5214, 28
      %v5269 = vpop.permute.xlu0 %5268
      %5270 = vrot.lane.b32.xlu0 %v5215, 28
      %v5271 = vpop.permute.xlu0 %5270
      %5272 = vrot.lane.b32.xlu0 %v5216, 28
      %v5273 = vpop.permute.xlu0 %5272
      %5274 = vrot.lane.b32.xlu0 %v5217, 28
      %v5275 = vpop.permute.xlu0 %5274
      %5276 = vrot.lane.b32.xlu0 %v5218, 28
      %v5277 = vpop.permute.xlu0 %5276
      %5278 = vrot.lane.b32.xlu0 %v5219, 28
      %v5279 = vpop.permute.xlu0 %5278
      %5280 = vrot.lane.b32.xlu0 %v5220, 28
      %v5281 = vpop.permute.xlu0 %5280
      %5282 = vrot.lane.b32.xlu0 %v5221, 28
      %v5283 = vpop.permute.xlu0 %5282
      %5284 = vrot.lane.b32.xlu0 %v5222, 28
      %v5285 = vpop.permute.xlu0 %5284
      %5286 = vrot.lane.b32.xlu0 %v5223, 28
      %v5287 = vpop.permute.xlu0 %5286
      %5320 = vst.msk [vmem:[#allocation3] sm:$0xf] %vm2351, %v5225
      %5321 = vst.msk [vmem:[#allocation3 + $0x4] sm:$0xf] %vm2351, %v5227
      %5322 = vst.msk [vmem:[#allocation3 + $0x8] sm:$0xf] %vm2351, %v5229
      %5323 = vst.msk [vmem:[#allocation3 + $0xc] sm:$0xf] %vm2351, %v5231
      %5324 = vst.msk [vmem:[#allocation3 + $0x10] sm:$0xf] %vm2351, %v5233
      %5325 = vst.msk [vmem:[#allocation3 + $0x14] sm:$0xf] %vm2351, %v5235
      %5326 = vst.msk [vmem:[#allocation3 + $0x18] sm:$0xf] %vm2351, %v5237
      %5327 = vst.msk [vmem:[#allocation3 + $0x1c] sm:$0xf] %vm2351, %v5239
      %5328 = vst.msk [vmem:[#allocation3 + $0x20] sm:$0xf] %vm2351, %v5241
      %5329 = vst.msk [vmem:[#allocation3 + $0x24] sm:$0xf] %vm2351, %v5243
      %5330 = vst.msk [vmem:[#allocation3 + $0x28] sm:$0xf] %vm2351, %v5245
      %5331 = vst.msk [vmem:[#allocation3 + $0x2c] sm:$0xf] %vm2351, %v5247
      %5332 = vst.msk [vmem:[#allocation3 + $0x30] sm:$0xf] %vm2351, %v5249
      %5333 = vst.msk [vmem:[#allocation3 + $0x34] sm:$0xf] %vm2351, %v5251
      %5334 = vst.msk [vmem:[#allocation3 + $0x38] sm:$0xf] %vm2351, %v5253
      %5335 = vst.msk [vmem:[#allocation3 + $0x3c] sm:$0xf] %vm2351, %v5255
      %5336 = vst.msk [vmem:[#allocation3 + $0x40] sm:$0xf] %vm2351, %v5257
      %5337 = vst.msk [vmem:[#allocation3 + $0x44] sm:$0xf] %vm2351, %v5259
      %5338 = vst.msk [vmem:[#allocation3 + $0x48] sm:$0xf] %vm2351, %v5261
      %5339 = vst.msk [vmem:[#allocation3 + $0x4c] sm:$0xf] %vm2351, %v5263
      %5340 = vst.msk [vmem:[#allocation3 + $0x50] sm:$0xf] %vm2351, %v5265
      %5341 = vst.msk [vmem:[#allocation3 + $0x54] sm:$0xf] %vm2351, %v5267
      %5342 = vst.msk [vmem:[#allocation3 + $0x58] sm:$0xf] %vm2351, %v5269
      %5343 = vst.msk [vmem:[#allocation3 + $0x5c] sm:$0xf] %vm2351, %v5271
      %5344 = vst.msk [vmem:[#allocation3 + $0x60] sm:$0xf] %vm2351, %v5273
      %5345 = vst.msk [vmem:[#allocation3 + $0x64] sm:$0xf] %vm2351, %v5275
      %5346 = vst.msk [vmem:[#allocation3 + $0x68] sm:$0xf] %vm2351, %v5277
      %5347 = vst.msk [vmem:[#allocation3 + $0x6c] sm:$0xf] %vm2351, %v5279
      %5348 = vst.msk [vmem:[#allocation3 + $0x70] sm:$0xf] %vm2351, %v5281
      %5349 = vst.msk [vmem:[#allocation3 + $0x74] sm:$0xf] %vm2351, %v5283
      %5350 = vst.msk [vmem:[#allocation3 + $0x78] sm:$0xf] %vm2351, %v5285
      %5351 = vst.msk [vmem:[#allocation3 + $0x7c] sm:$0xf] %vm2351, %v5287
      %v5352 = vld [vmem:[%s1869 + $0x2] sm:$0xff]
      %v5353 = vld [vmem:[%s1869 + $0xa] sm:$0xff]
      %v5354 = vld [vmem:[%s1869 + $0x1a] sm:$0xff]
      %v5355 = vld [vmem:[%s1869 + $0x22] sm:$0xff]
      %v5356 = vld [vmem:[%s1869 + $0x32] sm:$0xff]
      %v5357 = vld [vmem:[%s1869 + $0x3a] sm:$0xff]
      %v5358 = vld [vmem:[%s1869 + $0x4a] sm:$0xff]
      %v5359 = vld [vmem:[%s1869 + $0x52] sm:$0xff]
      %v5360 = vld [vmem:[%s1869 + $0x62] sm:$0xff]
      %v5361 = vld [vmem:[%s1869 + $0x6a] sm:$0xff]
      %v5362 = vld [vmem:[%s1869 + $0x7a] sm:$0xff]
      %v5363 = vld [vmem:[%s1869 + $0x82] sm:$0xff]
      %v5364 = vld [vmem:[%s1869 + $0x92] sm:$0xff]
      %v5365 = vld [vmem:[%s1869 + $0x9a] sm:$0xff]
      %v5366 = vld [vmem:[%s1869 + $0xaa] sm:$0xff]
      %v5367 = vld [vmem:[%s1869 + $0xb2] sm:$0xff]
      %v5368 = vld [vmem:[%s1869 + $0xc2] sm:$0xff]
      %v5369 = vld [vmem:[%s1869 + $0xca] sm:$0xff]
      %v5370 = vld [vmem:[%s1869 + $0xda] sm:$0xff]
      %v5371 = vld [vmem:[%s1869 + $0xe2] sm:$0xff]
      %v5372 = vld [vmem:[%s1869 + $0xf2] sm:$0xff]
      %v5373 = vld [vmem:[%s1869 + $0xfa] sm:$0xff]
      %v5374 = vld [vmem:[%s1869 + $0x10a] sm:$0xff]
      %v5375 = vld [vmem:[%s1869 + $0x112] sm:$0xff]
      %v5376 = vld [vmem:[%s1869 + $0x122] sm:$0xff]
      %v5377 = vld [vmem:[%s1869 + $0x12a] sm:$0xff]
      %v5378 = vld [vmem:[%s1869 + $0x13a] sm:$0xff]
      %v5379 = vld [vmem:[%s1869 + $0x142] sm:$0xff]
      %v5380 = vld [vmem:[%s1869 + $0x152] sm:$0xff]
      %v5381 = vld [vmem:[%s1869 + $0x15a] sm:$0xff]
      %v5382 = vld [vmem:[%s1869 + $0x16a] sm:$0xff]
      %v5383 = vld [vmem:[%s1869 + $0x172] sm:$0xff]
      %v5384 = vpack.c.bf16 %v5353, %v5352
      %v5385 = vpack.c.bf16 %v5355, %v5354
      %v5386 = vpack.c.bf16 %v5357, %v5356
      %v5387 = vpack.c.bf16 %v5359, %v5358
      %v5388 = vpack.c.bf16 %v5361, %v5360
      %v5389 = vpack.c.bf16 %v5363, %v5362
      %v5390 = vpack.c.bf16 %v5365, %v5364
      %v5391 = vpack.c.bf16 %v5367, %v5366
      %v5392 = vpack.c.bf16 %v5369, %v5368
      %v5393 = vpack.c.bf16 %v5371, %v5370
      %v5394 = vpack.c.bf16 %v5373, %v5372
      %v5395 = vpack.c.bf16 %v5375, %v5374
      %v5396 = vpack.c.bf16 %v5377, %v5376
      %v5397 = vpack.c.bf16 %v5379, %v5378
      %v5398 = vpack.c.bf16 %v5381, %v5380
      %v5399 = vpack.c.bf16 %v5383, %v5382
      %v5416 = vunpack.c.l.b16 %v5384
      %v5417 = vunpack.c.h.b16 %v5384
      %v5418 = vunpack.c.l.b16 %v5385
      %v5419 = vunpack.c.h.b16 %v5385
      %v5420 = vunpack.c.l.b16 %v5386
      %v5421 = vunpack.c.h.b16 %v5386
      %v5422 = vunpack.c.l.b16 %v5387
      %v5423 = vunpack.c.h.b16 %v5387
      %v5424 = vunpack.c.l.b16 %v5388
      %v5425 = vunpack.c.h.b16 %v5388
      %v5426 = vunpack.c.l.b16 %v5389
      %v5427 = vunpack.c.h.b16 %v5389
      %v5428 = vunpack.c.l.b16 %v5390
      %v5429 = vunpack.c.h.b16 %v5390
      %v5430 = vunpack.c.l.b16 %v5391
      %v5431 = vunpack.c.h.b16 %v5391
      %v5432 = vunpack.c.l.b16 %v5392
      %v5433 = vunpack.c.h.b16 %v5392
      %v5434 = vunpack.c.l.b16 %v5393
      %v5435 = vunpack.c.h.b16 %v5393
      %v5436 = vunpack.c.l.b16 %v5394
      %v5437 = vunpack.c.h.b16 %v5394
      %v5438 = vunpack.c.l.b16 %v5395
      %v5439 = vunpack.c.h.b16 %v5395
      %v5440 = vunpack.c.l.b16 %v5396
      %v5441 = vunpack.c.h.b16 %v5396
      %v5442 = vunpack.c.l.b16 %v5397
      %v5443 = vunpack.c.h.b16 %v5397
      %v5444 = vunpack.c.l.b16 %v5398
      %v5445 = vunpack.c.h.b16 %v5398
      %v5446 = vunpack.c.l.b16 %v5399
      %v5447 = vunpack.c.h.b16 %v5399
      %v5448 = vpack.c.b16 %v5416, %v5416
      %v5449 = vpack.c.b16 %v5417, %v5417
      %v5450 = vpack.c.b16 %v5418, %v5418
      %v5451 = vpack.c.b16 %v5419, %v5419
      %v5452 = vpack.c.b16 %v5420, %v5420
      %v5453 = vpack.c.b16 %v5421, %v5421
      %v5454 = vpack.c.b16 %v5422, %v5422
      %v5455 = vpack.c.b16 %v5423, %v5423
      %v5456 = vpack.c.b16 %v5424, %v5424
      %v5457 = vpack.c.b16 %v5425, %v5425
      %v5458 = vpack.c.b16 %v5426, %v5426
      %v5459 = vpack.c.b16 %v5427, %v5427
      %v5460 = vpack.c.b16 %v5428, %v5428
      %v5461 = vpack.c.b16 %v5429, %v5429
      %v5462 = vpack.c.b16 %v5430, %v5430
      %v5463 = vpack.c.b16 %v5431, %v5431
      %v5464 = vpack.c.b16 %v5432, %v5432
      %v5465 = vpack.c.b16 %v5433, %v5433
      %v5466 = vpack.c.b16 %v5434, %v5434
      %v5467 = vpack.c.b16 %v5435, %v5435
      %v5468 = vpack.c.b16 %v5436, %v5436
      %v5469 = vpack.c.b16 %v5437, %v5437
      %v5470 = vpack.c.b16 %v5438, %v5438
      %v5471 = vpack.c.b16 %v5439, %v5439
      %v5472 = vpack.c.b16 %v5440, %v5440
      %v5473 = vpack.c.b16 %v5441, %v5441
      %v5474 = vpack.c.b16 %v5442, %v5442
      %v5475 = vpack.c.b16 %v5443, %v5443
      %v5476 = vpack.c.b16 %v5444, %v5444
      %v5477 = vpack.c.b16 %v5445, %v5445
      %v5478 = vpack.c.b16 %v5446, %v5446
      %v5479 = vpack.c.b16 %v5447, %v5447
      %5480 = vrot.lane.b32.xlu0 %v5448, 32
      %v5481 = vpop.permute.xlu0 %5480
      %5482 = vrot.lane.b32.xlu0 %v5449, 32
      %v5483 = vpop.permute.xlu0 %5482
      %5484 = vrot.lane.b32.xlu0 %v5450, 32
      %v5485 = vpop.permute.xlu0 %5484
      %5486 = vrot.lane.b32.xlu0 %v5451, 32
      %v5487 = vpop.permute.xlu0 %5486
      %5488 = vrot.lane.b32.xlu0 %v5452, 32
      %v5489 = vpop.permute.xlu0 %5488
      %5490 = vrot.lane.b32.xlu0 %v5453, 32
      %v5491 = vpop.permute.xlu0 %5490
      %5492 = vrot.lane.b32.xlu0 %v5454, 32
      %v5493 = vpop.permute.xlu0 %5492
      %5494 = vrot.lane.b32.xlu0 %v5455, 32
      %v5495 = vpop.permute.xlu0 %5494
      %5496 = vrot.lane.b32.xlu0 %v5456, 32
      %v5497 = vpop.permute.xlu0 %5496
      %5498 = vrot.lane.b32.xlu0 %v5457, 32
      %v5499 = vpop.permute.xlu0 %5498
      %5500 = vrot.lane.b32.xlu0 %v5458, 32
      %v5501 = vpop.permute.xlu0 %5500
      %5502 = vrot.lane.b32.xlu0 %v5459, 32
      %v5503 = vpop.permute.xlu0 %5502
      %5504 = vrot.lane.b32.xlu0 %v5460, 32
      %v5505 = vpop.permute.xlu0 %5504
      %5506 = vrot.lane.b32.xlu0 %v5461, 32
      %v5507 = vpop.permute.xlu0 %5506
      %5508 = vrot.lane.b32.xlu0 %v5462, 32
      %v5509 = vpop.permute.xlu0 %5508
      %5510 = vrot.lane.b32.xlu0 %v5463, 32
      %v5511 = vpop.permute.xlu0 %5510
      %5512 = vrot.lane.b32.xlu0 %v5464, 32
      %v5513 = vpop.permute.xlu0 %5512
      %5514 = vrot.lane.b32.xlu0 %v5465, 32
      %v5515 = vpop.permute.xlu0 %5514
      %5516 = vrot.lane.b32.xlu0 %v5466, 32
      %v5517 = vpop.permute.xlu0 %5516
      %5518 = vrot.lane.b32.xlu0 %v5467, 32
      %v5519 = vpop.permute.xlu0 %5518
      %5520 = vrot.lane.b32.xlu0 %v5468, 32
      %v5521 = vpop.permute.xlu0 %5520
      %5522 = vrot.lane.b32.xlu0 %v5469, 32
      %v5523 = vpop.permute.xlu0 %5522
      %5524 = vrot.lane.b32.xlu0 %v5470, 32
      %v5525 = vpop.permute.xlu0 %5524
      %5526 = vrot.lane.b32.xlu0 %v5471, 32
      %v5527 = vpop.permute.xlu0 %5526
      %5528 = vrot.lane.b32.xlu0 %v5472, 32
      %v5529 = vpop.permute.xlu0 %5528
      %5530 = vrot.lane.b32.xlu0 %v5473, 32
      %v5531 = vpop.permute.xlu0 %5530
      %5532 = vrot.lane.b32.xlu0 %v5474, 32
      %v5533 = vpop.permute.xlu0 %5532
      %5534 = vrot.lane.b32.xlu0 %v5475, 32
      %v5535 = vpop.permute.xlu0 %5534
      %5536 = vrot.lane.b32.xlu0 %v5476, 32
      %v5537 = vpop.permute.xlu0 %5536
      %5538 = vrot.lane.b32.xlu0 %v5477, 32
      %v5539 = vpop.permute.xlu0 %5538
      %5540 = vrot.lane.b32.xlu0 %v5478, 32
      %v5541 = vpop.permute.xlu0 %5540
      %5542 = vrot.lane.b32.xlu0 %v5479, 32
      %v5543 = vpop.permute.xlu0 %5542
      %5576 = vst.msk [vmem:[#allocation3] sm:$0xf] %vm2608, %v5481
      %5577 = vst.msk [vmem:[#allocation3 + $0x4] sm:$0xf] %vm2608, %v5483
      %5578 = vst.msk [vmem:[#allocation3 + $0x8] sm:$0xf] %vm2608, %v5485
      %5579 = vst.msk [vmem:[#allocation3 + $0xc] sm:$0xf] %vm2608, %v5487
      %5580 = vst.msk [vmem:[#allocation3 + $0x10] sm:$0xf] %vm2608, %v5489
      %5581 = vst.msk [vmem:[#allocation3 + $0x14] sm:$0xf] %vm2608, %v5491
      %5582 = vst.msk [vmem:[#allocation3 + $0x18] sm:$0xf] %vm2608, %v5493
      %5583 = vst.msk [vmem:[#allocation3 + $0x1c] sm:$0xf] %vm2608, %v5495
      %5584 = vst.msk [vmem:[#allocation3 + $0x20] sm:$0xf] %vm2608, %v5497
      %5585 = vst.msk [vmem:[#allocation3 + $0x24] sm:$0xf] %vm2608, %v5499
      %5586 = vst.msk [vmem:[#allocation3 + $0x28] sm:$0xf] %vm2608, %v5501
      %5587 = vst.msk [vmem:[#allocation3 + $0x2c] sm:$0xf] %vm2608, %v5503
      %5588 = vst.msk [vmem:[#allocation3 + $0x30] sm:$0xf] %vm2608, %v5505
      %5589 = vst.msk [vmem:[#allocation3 + $0x34] sm:$0xf] %vm2608, %v5507
      %5590 = vst.msk [vmem:[#allocation3 + $0x38] sm:$0xf] %vm2608, %v5509
      %5591 = vst.msk [vmem:[#allocation3 + $0x3c] sm:$0xf] %vm2608, %v5511
      %5592 = vst.msk [vmem:[#allocation3 + $0x40] sm:$0xf] %vm2608, %v5513
      %5593 = vst.msk [vmem:[#allocation3 + $0x44] sm:$0xf] %vm2608, %v5515
      %5594 = vst.msk [vmem:[#allocation3 + $0x48] sm:$0xf] %vm2608, %v5517
      %5595 = vst.msk [vmem:[#allocation3 + $0x4c] sm:$0xf] %vm2608, %v5519
      %5596 = vst.msk [vmem:[#allocation3 + $0x50] sm:$0xf] %vm2608, %v5521
      %5597 = vst.msk [vmem:[#allocation3 + $0x54] sm:$0xf] %vm2608, %v5523
      %5598 = vst.msk [vmem:[#allocation3 + $0x58] sm:$0xf] %vm2608, %v5525
      %5599 = vst.msk [vmem:[#allocation3 + $0x5c] sm:$0xf] %vm2608, %v5527
      %5600 = vst.msk [vmem:[#allocation3 + $0x60] sm:$0xf] %vm2608, %v5529
      %5601 = vst.msk [vmem:[#allocation3 + $0x64] sm:$0xf] %vm2608, %v5531
      %5602 = vst.msk [vmem:[#allocation3 + $0x68] sm:$0xf] %vm2608, %v5533
      %5603 = vst.msk [vmem:[#allocation3 + $0x6c] sm:$0xf] %vm2608, %v5535
      %5604 = vst.msk [vmem:[#allocation3 + $0x70] sm:$0xf] %vm2608, %v5537
      %5605 = vst.msk [vmem:[#allocation3 + $0x74] sm:$0xf] %vm2608, %v5539
      %5606 = vst.msk [vmem:[#allocation3 + $0x78] sm:$0xf] %vm2608, %v5541
      %5607 = vst.msk [vmem:[#allocation3 + $0x7c] sm:$0xf] %vm2608, %v5543
      %v5608 = vld [vmem:[#allocation3] sm:$0xf]
      %v5609 = vld [vmem:[#allocation3 + $0x4] sm:$0xf]
      %v5610 = vld [vmem:[#allocation3 + $0x8] sm:$0xf]
      %v5611 = vld [vmem:[#allocation3 + $0xc] sm:$0xf]
      %v5612 = vld [vmem:[#allocation3 + $0x10] sm:$0xf]
      %v5613 = vld [vmem:[#allocation3 + $0x14] sm:$0xf]
      %v5614 = vld [vmem:[#allocation3 + $0x18] sm:$0xf]
      %v5615 = vld [vmem:[#allocation3 + $0x1c] sm:$0xf]
      %v5616 = vld [vmem:[#allocation3 + $0x20] sm:$0xf]
      %v5617 = vld [vmem:[#allocation3 + $0x24] sm:$0xf]
      %v5618 = vld [vmem:[#allocation3 + $0x28] sm:$0xf]
      %v5619 = vld [vmem:[#allocation3 + $0x2c] sm:$0xf]
      %v5620 = vld [vmem:[#allocation3 + $0x30] sm:$0xf]
      %v5621 = vld [vmem:[#allocation3 + $0x34] sm:$0xf]
      %v5622 = vld [vmem:[#allocation3 + $0x38] sm:$0xf]
      %v5623 = vld [vmem:[#allocation3 + $0x3c] sm:$0xf]
      %v5624 = vld [vmem:[#allocation3 + $0x40] sm:$0xf]
      %v5625 = vld [vmem:[#allocation3 + $0x44] sm:$0xf]
      %v5626 = vld [vmem:[#allocation3 + $0x48] sm:$0xf]
      %v5627 = vld [vmem:[#allocation3 + $0x4c] sm:$0xf]
      %v5628 = vld [vmem:[#allocation3 + $0x50] sm:$0xf]
      %v5629 = vld [vmem:[#allocation3 + $0x54] sm:$0xf]
      %v5630 = vld [vmem:[#allocation3 + $0x58] sm:$0xf]
      %v5631 = vld [vmem:[#allocation3 + $0x5c] sm:$0xf]
      %v5632 = vld [vmem:[#allocation3 + $0x60] sm:$0xf]
      %v5633 = vld [vmem:[#allocation3 + $0x64] sm:$0xf]
      %v5634 = vld [vmem:[#allocation3 + $0x68] sm:$0xf]
      %v5635 = vld [vmem:[#allocation3 + $0x6c] sm:$0xf]
      %v5636 = vld [vmem:[#allocation3 + $0x70] sm:$0xf]
      %v5637 = vld [vmem:[#allocation3 + $0x74] sm:$0xf]
      %v5638 = vld [vmem:[#allocation3 + $0x78] sm:$0xf]
      %v5639 = vld [vmem:[#allocation3 + $0x7c] sm:$0xf]
      %v5640 = vld [vmem:[%s4] sm:$0xf]
      %v5641 = vld [vmem:[%s4 + $0x4] sm:$0xf]
      %v5642 = vld [vmem:[%s4 + $0x8] sm:$0xf]
      %v5643 = vld [vmem:[%s4 + $0xc] sm:$0xf]
      %v5644 = vld [vmem:[%s4 + $0x10] sm:$0x3]
      %v5677 = vunpack.c.l.b16 %v5608
      %v5678 = vunpack.c.l.b16 %v5609
      %v5679 = vunpack.c.l.b16 %v5610
      %v5680 = vunpack.c.l.b16 %v5611
      %v5681 = vunpack.c.l.b16 %v5612
      %v5682 = vunpack.c.l.b16 %v5613
      %v5683 = vunpack.c.l.b16 %v5614
      %v5684 = vunpack.c.l.b16 %v5615
      %v5685 = vunpack.c.l.b16 %v5616
      %v5686 = vunpack.c.l.b16 %v5617
      %v5687 = vunpack.c.l.b16 %v5618
      %v5688 = vunpack.c.l.b16 %v5619
      %v5689 = vunpack.c.l.b16 %v5620
      %v5690 = vunpack.c.l.b16 %v5621
      %v5691 = vunpack.c.l.b16 %v5622
      %v5692 = vunpack.c.l.b16 %v5623
      %v5693 = vunpack.c.l.b16 %v5624
      %v5694 = vunpack.c.l.b16 %v5625
      %v5695 = vunpack.c.l.b16 %v5626
      %v5696 = vunpack.c.l.b16 %v5627
      %v5697 = vunpack.c.l.b16 %v5628
      %v5698 = vunpack.c.l.b16 %v5629
      %v5699 = vunpack.c.l.b16 %v5630
      %v5700 = vunpack.c.l.b16 %v5631
      %v5701 = vunpack.c.l.b16 %v5632
      %v5702 = vunpack.c.l.b16 %v5633
      %v5703 = vunpack.c.l.b16 %v5634
      %v5704 = vunpack.c.l.b16 %v5635
      %v5705 = vunpack.c.l.b16 %v5636
      %v5706 = vunpack.c.l.b16 %v5637
      %v5707 = vunpack.c.l.b16 %v5638
      %v5708 = vunpack.c.l.b16 %v5639
      %v5709 = vpack.c.b16 %v5678, %v5677
      %v5710 = vpack.c.b16 %v5680, %v5679
      %v5711 = vpack.c.b16 %v5682, %v5681
      %v5712 = vpack.c.b16 %v5684, %v5683
      %v5713 = vpack.c.b16 %v5686, %v5685
      %v5714 = vpack.c.b16 %v5688, %v5687
      %v5715 = vpack.c.b16 %v5690, %v5689
      %v5716 = vpack.c.b16 %v5692, %v5691
      %v5717 = vpack.c.b16 %v5694, %v5693
      %v5718 = vpack.c.b16 %v5696, %v5695
      %v5719 = vpack.c.b16 %v5698, %v5697
      %v5720 = vpack.c.b16 %v5700, %v5699
      %v5721 = vpack.c.b16 %v5702, %v5701
      %v5722 = vpack.c.b16 %v5704, %v5703
      %v5723 = vpack.c.b16 %v5706, %v5705
      %v5724 = vpack.c.b16 %v5708, %v5707
      %v5730 = vunpack.c.l.b16 %v5640
      %v5731 = vunpack.c.l.b16 %v5641
      %v5732 = vunpack.c.l.b16 %v5642
      %v5733 = vunpack.c.l.b16 %v5643
      %v5734 = vunpack.c.l.b16 %v5644
      %v5735 = vpack.c.b16 %v5731, %v5730
      %v5736 = vpack.c.b16 %v5733, %v5732
      %v5737 = vpack.c.b16 %v5734, %v5734
      %v5741 = vsel %vm2773, %v5709, 0
      %v5744 = vsel %vm2773, %v5710, 0
      %v5747 = vsel %vm2773, %v5711, 0
      %v5750 = vsel %vm2773, %v5712, 0
      %v5753 = vsel %vm2773, %v5713, 0
      %v5756 = vsel %vm2773, %v5714, 0
      %v5759 = vsel %vm2773, %v5715, 0
      %v5762 = vsel %vm2773, %v5716, 0
      %v5765 = vsel %vm2773, %v5717, 0
      %v5768 = vsel %vm2773, %v5718, 0
      %v5771 = vsel %vm2773, %v5719, 0
      %v5774 = vsel %vm2773, %v5720, 0
      %v5777 = vsel %vm2773, %v5721, 0
      %v5780 = vsel %vm2773, %v5722, 0
      %v5783 = vsel %vm2773, %v5723, 0
      %v5786 = vsel %vm2773, %v5724, 0
      %v5789 = vsel %vm2822, %v5737, 0
      %5791 = vmatprep.subr.bf16.mxu0 0
      %5792 = vmatpush1.bf16.msra.mxu0 0
      %5793 = vmatprep.subr.bf16.mxu0 0
      %5794 = vmatpush1.bf16.msra.mxu0 0
      %5795 = vmatprep.subr.bf16.mxu0 0
      %5796 = vmatpush1.bf16.msra.mxu0 0
      %5797 = vmatprep.subr.bf16.mxu0 0
      %5798 = vmatpush1.bf16.msra.mxu0 0
      %5799 = vmatprep.subr.bf16.mxu0 0
      %5800 = vmatpush1.bf16.msra.mxu0 0
      %5801 = vmatprep.subr.bf16.mxu0 0
      %5802 = vmatpush1.bf16.msra.mxu0 %v5789
      %5803 = vmatprep.subr.bf16.mxu0 0
      %5804 = vmatpush1.bf16.msra.mxu0 %v5736
      %5805 = vmatprep.subr.bf16.mxu0 0
      %5806 = vmatpush1.bf16.msra.mxu0 %v5735
      %5807 = vmatprep.subr.bf16.mxu0 0
      %5808 = vmatpush2.bf16.msra.mxu0 0
      %5809 = vmatprep.subr.bf16.mxu0 0
      %5810 = vmatpush2.bf16.msra.mxu0 0
      %5811 = vmatprep.subr.bf16.mxu0 0
      %5812 = vmatpush2.bf16.msra.mxu0 0
      %5813 = vmatprep.subr.bf16.mxu0 0
      %5814 = vmatpush2.bf16.msra.mxu0 0
      %5815 = vmatprep.subr.bf16.mxu0 0
      %5816 = vmatpush2.bf16.msra.mxu0 0
      %5817 = vmatprep.subr.bf16.mxu0 0
      %5818 = vmatpush2.bf16.msra.mxu0 0
      %5819 = vmatprep.subr.bf16.mxu0 0
      %5820 = vmatpush2.bf16.msra.mxu0 0
      %5821 = vmatprep.subr.bf16.mxu0 0
      %5822 = vmatpush2.bf16.msra.mxu0 0
      %5823 = vmatprep.mubr.bf16.mxu0 0
      %5824 = vmatmul.mubr.bf16.gmra.mxu0 %v5741
      %v5825 = vpop.f32.mrf.mxu0
      %v5826 = vadd.f32 0.0, %v5825
      %v5827 = vpop.f32.mrf.mxu0
      %v5828 = vpop.f32.mrf.mxu0
      %v5829 = vadd.f32 0.0, %v5828
      %v5830 = vpop.f32.mrf.mxu0
      %5831 = vmatprep.mubr.bf16.mxu0 0
      %5832 = vmatmul.mubr.bf16.gmra.mxu0 %v5744
      %v5833 = vpop.f32.mrf.mxu0
      %v5834 = vadd.f32 0.0, %v5833
      %v5835 = vpop.f32.mrf.mxu0
      %v5836 = vpop.f32.mrf.mxu0
      %v5837 = vadd.f32 0.0, %v5836
      %v5838 = vpop.f32.mrf.mxu0
      %5839 = vmatprep.mubr.bf16.mxu0 0
      %5840 = vmatmul.mubr.bf16.gmra.mxu0 %v5747
      %v5841 = vpop.f32.mrf.mxu0
      %v5842 = vadd.f32 0.0, %v5841
      %v5843 = vpop.f32.mrf.mxu0
      %v5844 = vpop.f32.mrf.mxu0
      %v5845 = vadd.f32 0.0, %v5844
      %v5846 = vpop.f32.mrf.mxu0
      %5847 = vmatprep.mubr.bf16.mxu0 0
      %5848 = vmatmul.mubr.bf16.gmra.mxu0 %v5750
      %v5849 = vpop.f32.mrf.mxu0
      %v5850 = vadd.f32 0.0, %v5849
      %v5851 = vpop.f32.mrf.mxu0
      %v5852 = vpop.f32.mrf.mxu0
      %v5853 = vadd.f32 0.0, %v5852
      %v5854 = vpop.f32.mrf.mxu0
      %5855 = vmatprep.mubr.bf16.mxu0 0
      %5856 = vmatmul.mubr.bf16.gmra.mxu0 %v5753
      %v5857 = vpop.f32.mrf.mxu0
      %v5858 = vadd.f32 0.0, %v5857
      %v5859 = vpop.f32.mrf.mxu0
      %v5860 = vpop.f32.mrf.mxu0
      %v5861 = vadd.f32 0.0, %v5860
      %v5862 = vpop.f32.mrf.mxu0
      %5863 = vmatprep.mubr.bf16.mxu0 0
      %5864 = vmatmul.mubr.bf16.gmra.mxu0 %v5756
      %v5865 = vpop.f32.mrf.mxu0
      %v5866 = vadd.f32 0.0, %v5865
      %v5867 = vpop.f32.mrf.mxu0
      %v5868 = vpop.f32.mrf.mxu0
      %v5869 = vadd.f32 0.0, %v5868
      %v5870 = vpop.f32.mrf.mxu0
      %5871 = vmatprep.mubr.bf16.mxu0 0
      %5872 = vmatmul.mubr.bf16.gmra.mxu0 %v5759
      %v5873 = vpop.f32.mrf.mxu0
      %v5874 = vadd.f32 0.0, %v5873
      %v5875 = vpop.f32.mrf.mxu0
      %v5876 = vpop.f32.mrf.mxu0
      %v5877 = vadd.f32 0.0, %v5876
      %v5878 = vpop.f32.mrf.mxu0
      %5879 = vmatprep.mubr.bf16.mxu0 0
      %5880 = vmatmul.mubr.bf16.gmra.mxu0 %v5762
      %v5881 = vpop.f32.mrf.mxu0
      %v5882 = vadd.f32 0.0, %v5881
      %v5883 = vpop.f32.mrf.mxu0
      %v5884 = vpop.f32.mrf.mxu0
      %v5885 = vadd.f32 0.0, %v5884
      %v5886 = vpop.f32.mrf.mxu0
      %5887 = vmatprep.mubr.bf16.mxu0 0
      %5888 = vmatmul.mubr.bf16.gmra.mxu0 %v5765
      %v5889 = vpop.f32.mrf.mxu0
      %v5890 = vadd.f32 0.0, %v5889
      %v5891 = vpop.f32.mrf.mxu0
      %v5892 = vpop.f32.mrf.mxu0
      %v5893 = vadd.f32 0.0, %v5892
      %v5894 = vpop.f32.mrf.mxu0
      %5895 = vmatprep.mubr.bf16.mxu0 0
      %5896 = vmatmul.mubr.bf16.gmra.mxu0 %v5768
      %v5897 = vpop.f32.mrf.mxu0
      %v5898 = vadd.f32 0.0, %v5897
      %v5899 = vpop.f32.mrf.mxu0
      %v5900 = vpop.f32.mrf.mxu0
      %v5901 = vadd.f32 0.0, %v5900
      %v5902 = vpop.f32.mrf.mxu0
      %5903 = vmatprep.mubr.bf16.mxu0 0
      %5904 = vmatmul.mubr.bf16.gmra.mxu0 %v5771
      %v5905 = vpop.f32.mrf.mxu0
      %v5906 = vadd.f32 0.0, %v5905
      %v5907 = vpop.f32.mrf.mxu0
      %v5908 = vpop.f32.mrf.mxu0
      %v5909 = vadd.f32 0.0, %v5908
      %v5910 = vpop.f32.mrf.mxu0
      %5911 = vmatprep.mubr.bf16.mxu0 0
      %5912 = vmatmul.mubr.bf16.gmra.mxu0 %v5774
      %v5913 = vpop.f32.mrf.mxu0
      %v5914 = vadd.f32 0.0, %v5913
      %v5915 = vpop.f32.mrf.mxu0
      %v5916 = vpop.f32.mrf.mxu0
      %v5917 = vadd.f32 0.0, %v5916
      %v5918 = vpop.f32.mrf.mxu0
      %5919 = vmatprep.mubr.bf16.mxu0 0
      %5920 = vmatmul.mubr.bf16.gmra.mxu0 %v5777
      %v5921 = vpop.f32.mrf.mxu0
      %v5922 = vadd.f32 0.0, %v5921
      %v5923 = vpop.f32.mrf.mxu0
      %v5924 = vpop.f32.mrf.mxu0
      %v5925 = vadd.f32 0.0, %v5924
      %v5926 = vpop.f32.mrf.mxu0
      %5927 = vmatprep.mubr.bf16.mxu0 0
      %5928 = vmatmul.mubr.bf16.gmra.mxu0 %v5780
      %v5929 = vpop.f32.mrf.mxu0
      %v5930 = vadd.f32 0.0, %v5929
      %v5931 = vpop.f32.mrf.mxu0
      %v5932 = vpop.f32.mrf.mxu0
      %v5933 = vadd.f32 0.0, %v5932
      %v5934 = vpop.f32.mrf.mxu0
      %5935 = vmatprep.mubr.bf16.mxu0 0
      %5936 = vmatmul.mubr.bf16.gmra.mxu0 %v5783
      %v5937 = vpop.f32.mrf.mxu0
      %v5938 = vadd.f32 0.0, %v5937
      %v5939 = vpop.f32.mrf.mxu0
      %v5940 = vpop.f32.mrf.mxu0
      %v5941 = vadd.f32 0.0, %v5940
      %v5942 = vpop.f32.mrf.mxu0
      %5943 = vmatprep.mubr.bf16.mxu0 0
      %5944 = vmatmul.mubr.bf16.gmra.mxu0 %v5786
      %v5945 = vpop.f32.mrf.mxu0
      %v5946 = vadd.f32 0.0, %v5945
      %v5947 = vpop.f32.mrf.mxu0
      %v5948 = vpop.f32.mrf.mxu0
      %v5949 = vadd.f32 0.0, %v5948
      %v5950 = vpop.f32.mrf.mxu0
      %5951 = vdwg.mxu0
      %v5952 = vsel %vm312, %v5826, 0.0
      %v5953 = vsel %vm312, %v5829, 0.0
      %v5954 = vadd.f32 %v5952, %v5953
      %v5955 = vsel %vm312, %v5834, 0.0
      %v5956 = vadd.f32 %v5954, %v5955
      %v5957 = vsel %vm312, %v5837, 0.0
      %v5958 = vadd.f32 %v5956, %v5957
      %v5959 = vsel %vm312, %v5842, 0.0
      %v5960 = vadd.f32 %v5958, %v5959
      %v5961 = vsel %vm312, %v5845, 0.0
      %v5962 = vadd.f32 %v5960, %v5961
      %v5963 = vsel %vm312, %v5850, 0.0
      %v5964 = vadd.f32 %v5962, %v5963
      %v5965 = vsel %vm312, %v5853, 0.0
      %v5966 = vadd.f32 %v5964, %v5965
      %v5967 = vsel %vm312, %v5858, 0.0
      %v5968 = vadd.f32 %v5966, %v5967
      %v5969 = vsel %vm312, %v5861, 0.0
      %v5970 = vadd.f32 %v5968, %v5969
      %v5971 = vsel %vm312, %v5866, 0.0
      %v5972 = vadd.f32 %v5970, %v5971
      %v5973 = vsel %vm312, %v5869, 0.0
      %v5974 = vadd.f32 %v5972, %v5973
      %v5975 = vsel %vm312, %v5874, 0.0
      %v5976 = vadd.f32 %v5974, %v5975
      %v5977 = vsel %vm312, %v5877, 0.0
      %v5978 = vadd.f32 %v5976, %v5977
      %v5979 = vsel %vm312, %v5882, 0.0
      %v5980 = vadd.f32 %v5978, %v5979
      %v5981 = vsel %vm312, %v5885, 0.0
      %v5982 = vadd.f32 %v5980, %v5981
      %v5983 = vsel %vm312, %v5890, 0.0
      %v5984 = vadd.f32 %v5982, %v5983
      %v5985 = vsel %vm312, %v5893, 0.0
      %v5986 = vadd.f32 %v5984, %v5985
      %v5987 = vsel %vm312, %v5898, 0.0
      %v5988 = vadd.f32 %v5986, %v5987
      %v5989 = vsel %vm312, %v5901, 0.0
      %v5990 = vadd.f32 %v5988, %v5989
      %v5991 = vsel %vm312, %v5906, 0.0
      %v5992 = vadd.f32 %v5990, %v5991
      %v5993 = vsel %vm312, %v5909, 0.0
      %v5994 = vadd.f32 %v5992, %v5993
      %v5995 = vsel %vm312, %v5914, 0.0
      %v5996 = vadd.f32 %v5994, %v5995
      %v5997 = vsel %vm312, %v5917, 0.0
      %v5998 = vadd.f32 %v5996, %v5997
      %v5999 = vsel %vm312, %v5922, 0.0
      %v6000 = vadd.f32 %v5998, %v5999
      %v6001 = vsel %vm312, %v5925, 0.0
      %v6002 = vadd.f32 %v6000, %v6001
      %v6003 = vsel %vm312, %v5930, 0.0
      %v6004 = vadd.f32 %v6002, %v6003
      %v6005 = vsel %vm312, %v5933, 0.0
      %v6006 = vadd.f32 %v6004, %v6005
      %v6007 = vsel %vm312, %v5938, 0.0
      %v6008 = vadd.f32 %v6006, %v6007
      %v6009 = vsel %vm312, %v5941, 0.0
      %v6010 = vadd.f32 %v6008, %v6009
      %v6011 = vsel %vm312, %v5946, 0.0
      %v6012 = vadd.f32 %v6010, %v6011
      %v6013 = vsel %vm312, %v5949, 0.0
      %v6014 = vadd.f32 %v6012, %v6013
      %v6015 = vrot.slane %v6014, 4
      %v6016 = vadd.f32 %v6014, %v6015
      %v6017 = vrot.slane %v6016, 2
      %v6018 = vadd.f32 %v6016, %v6017
      %v6019 = vrot.slane %v6018, 1
      %v6020 = vadd.f32 %v6018, %v6019
      %v6021 = vmul.f32 %v6020, %v3056
      %v6022 = vsub.f32 %v5826, %v6021
      %v6023 = vsub.f32 %v5829, %v6021
      %v6024 = vsub.f32 %v5834, %v6021
      %v6025 = vsub.f32 %v5837, %v6021
      %v6026 = vsub.f32 %v5842, %v6021
      %v6027 = vsub.f32 %v5845, %v6021
      %v6028 = vsub.f32 %v5850, %v6021
      %v6029 = vsub.f32 %v5853, %v6021
      %v6030 = vsub.f32 %v5858, %v6021
      %v6031 = vsub.f32 %v5861, %v6021
      %v6032 = vsub.f32 %v5866, %v6021
      %v6033 = vsub.f32 %v5869, %v6021
      %v6034 = vsub.f32 %v5874, %v6021
      %v6035 = vsub.f32 %v5877, %v6021
      %v6036 = vsub.f32 %v5882, %v6021
      %v6037 = vsub.f32 %v5885, %v6021
      %v6038 = vsub.f32 %v5890, %v6021
      %v6039 = vsub.f32 %v5893, %v6021
      %v6040 = vsub.f32 %v5898, %v6021
      %v6041 = vsub.f32 %v5901, %v6021
      %v6042 = vsub.f32 %v5906, %v6021
      %v6043 = vsub.f32 %v5909, %v6021
      %v6044 = vsub.f32 %v5914, %v6021
      %v6045 = vsub.f32 %v5917, %v6021
      %v6046 = vsub.f32 %v5922, %v6021
      %v6047 = vsub.f32 %v5925, %v6021
      %v6048 = vsub.f32 %v5930, %v6021
      %v6049 = vsub.f32 %v5933, %v6021
      %v6050 = vsub.f32 %v5938, %v6021
      %v6051 = vsub.f32 %v5941, %v6021
      %v6052 = vsub.f32 %v5946, %v6021
      %v6053 = vsub.f32 %v5949, %v6021
      %v6054 = vmul.f32 %v6022, %v6022
      %v6055 = vmul.f32 %v6023, %v6023
      %v6056 = vmul.f32 %v6024, %v6024
      %v6057 = vmul.f32 %v6025, %v6025
      %v6058 = vmul.f32 %v6026, %v6026
      %v6059 = vmul.f32 %v6027, %v6027
      %v6060 = vmul.f32 %v6028, %v6028
      %v6061 = vmul.f32 %v6029, %v6029
      %v6062 = vmul.f32 %v6030, %v6030
      %v6063 = vmul.f32 %v6031, %v6031
      %v6064 = vmul.f32 %v6032, %v6032
      %v6065 = vmul.f32 %v6033, %v6033
      %v6066 = vmul.f32 %v6034, %v6034
      %v6067 = vmul.f32 %v6035, %v6035
      %v6068 = vmul.f32 %v6036, %v6036
      %v6069 = vmul.f32 %v6037, %v6037
      %v6070 = vmul.f32 %v6038, %v6038
      %v6071 = vmul.f32 %v6039, %v6039
      %v6072 = vmul.f32 %v6040, %v6040
      %v6073 = vmul.f32 %v6041, %v6041
      %v6074 = vmul.f32 %v6042, %v6042
      %v6075 = vmul.f32 %v6043, %v6043
      %v6076 = vmul.f32 %v6044, %v6044
      %v6077 = vmul.f32 %v6045, %v6045
      %v6078 = vmul.f32 %v6046, %v6046
      %v6079 = vmul.f32 %v6047, %v6047
      %v6080 = vmul.f32 %v6048, %v6048
      %v6081 = vmul.f32 %v6049, %v6049
      %v6082 = vmul.f32 %v6050, %v6050
      %v6083 = vmul.f32 %v6051, %v6051
      %v6084 = vmul.f32 %v6052, %v6052
      %v6085 = vmul.f32 %v6053, %v6053
      %v6086 = vsel %vm312, %v6054, 0.0
      %v6087 = vsel %vm312, %v6055, 0.0
      %v6088 = vadd.f32 %v6086, %v6087
      %v6089 = vsel %vm312, %v6056, 0.0
      %v6090 = vadd.f32 %v6088, %v6089
      %v6091 = vsel %vm312, %v6057, 0.0
      %v6092 = vadd.f32 %v6090, %v6091
      %v6093 = vsel %vm312, %v6058, 0.0
      %v6094 = vadd.f32 %v6092, %v6093
      %v6095 = vsel %vm312, %v6059, 0.0
      %v6096 = vadd.f32 %v6094, %v6095
      %v6097 = vsel %vm312, %v6060, 0.0
      %v6098 = vadd.f32 %v6096, %v6097
      %v6099 = vsel %vm312, %v6061, 0.0
      %v6100 = vadd.f32 %v6098, %v6099
      %v6101 = vsel %vm312, %v6062, 0.0
      %v6102 = vadd.f32 %v6100, %v6101
      %v6103 = vsel %vm312, %v6063, 0.0
      %v6104 = vadd.f32 %v6102, %v6103
      %v6105 = vsel %vm312, %v6064, 0.0
      %v6106 = vadd.f32 %v6104, %v6105
      %v6107 = vsel %vm312, %v6065, 0.0
      %v6108 = vadd.f32 %v6106, %v6107
      %v6109 = vsel %vm312, %v6066, 0.0
      %v6110 = vadd.f32 %v6108, %v6109
      %v6111 = vsel %vm312, %v6067, 0.0
      %v6112 = vadd.f32 %v6110, %v6111
      %v6113 = vsel %vm312, %v6068, 0.0
      %v6114 = vadd.f32 %v6112, %v6113
      %v6115 = vsel %vm312, %v6069, 0.0
      %v6116 = vadd.f32 %v6114, %v6115
      %v6117 = vsel %vm312, %v6070, 0.0
      %v6118 = vadd.f32 %v6116, %v6117
      %v6119 = vsel %vm312, %v6071, 0.0
      %v6120 = vadd.f32 %v6118, %v6119
      %v6121 = vsel %vm312, %v6072, 0.0
      %v6122 = vadd.f32 %v6120, %v6121
      %v6123 = vsel %vm312, %v6073, 0.0
      %v6124 = vadd.f32 %v6122, %v6123
      %v6125 = vsel %vm312, %v6074, 0.0
      %v6126 = vadd.f32 %v6124, %v6125
      %v6127 = vsel %vm312, %v6075, 0.0
      %v6128 = vadd.f32 %v6126, %v6127
      %v6129 = vsel %vm312, %v6076, 0.0
      %v6130 = vadd.f32 %v6128, %v6129
      %v6131 = vsel %vm312, %v6077, 0.0
      %v6132 = vadd.f32 %v6130, %v6131
      %v6133 = vsel %vm312, %v6078, 0.0
      %v6134 = vadd.f32 %v6132, %v6133
      %v6135 = vsel %vm312, %v6079, 0.0
      %v6136 = vadd.f32 %v6134, %v6135
      %v6137 = vsel %vm312, %v6080, 0.0
      %v6138 = vadd.f32 %v6136, %v6137
      %v6139 = vsel %vm312, %v6081, 0.0
      %v6140 = vadd.f32 %v6138, %v6139
      %v6141 = vsel %vm312, %v6082, 0.0
      %v6142 = vadd.f32 %v6140, %v6141
      %v6143 = vsel %vm312, %v6083, 0.0
      %v6144 = vadd.f32 %v6142, %v6143
      %v6145 = vsel %vm312, %v6084, 0.0
      %v6146 = vadd.f32 %v6144, %v6145
      %v6147 = vsel %vm312, %v6085, 0.0
      %v6148 = vadd.f32 %v6146, %v6147
      %v6149 = vrot.slane %v6148, 4
      %v6150 = vadd.f32 %v6148, %v6149
      %v6151 = vrot.slane %v6150, 2
      %v6152 = vadd.f32 %v6150, %v6151
      %v6153 = vrot.slane %v6152, 1
      %v6154 = vadd.f32 %v6152, %v6153
      %v6155 = vmul.f32 %v6154, %v3056
      %v6156 = vadd.f32 %v6155, 1e-05
      %v6157 = vrsqrt.pop %v6156
      %v6158 = vmul.f32 %v6022, %v6157
      %v6159 = vmul.f32 %v6023, %v6157
      %v6160 = vmul.f32 %v6024, %v6157
      %v6161 = vmul.f32 %v6025, %v6157
      %v6162 = vmul.f32 %v6026, %v6157
      %v6163 = vmul.f32 %v6027, %v6157
      %v6164 = vmul.f32 %v6028, %v6157
      %v6165 = vmul.f32 %v6029, %v6157
      %v6166 = vmul.f32 %v6030, %v6157
      %v6167 = vmul.f32 %v6031, %v6157
      %v6168 = vmul.f32 %v6032, %v6157
      %v6169 = vmul.f32 %v6033, %v6157
      %v6170 = vmul.f32 %v6034, %v6157
      %v6171 = vmul.f32 %v6035, %v6157
      %v6172 = vmul.f32 %v6036, %v6157
      %v6173 = vmul.f32 %v6037, %v6157
      %v6174 = vmul.f32 %v6038, %v6157
      %v6175 = vmul.f32 %v6039, %v6157
      %v6176 = vmul.f32 %v6040, %v6157
      %v6177 = vmul.f32 %v6041, %v6157
      %v6178 = vmul.f32 %v6042, %v6157
      %v6179 = vmul.f32 %v6043, %v6157
      %v6180 = vmul.f32 %v6044, %v6157
      %v6181 = vmul.f32 %v6045, %v6157
      %v6182 = vmul.f32 %v6046, %v6157
      %v6183 = vmul.f32 %v6047, %v6157
      %v6184 = vmul.f32 %v6048, %v6157
      %v6185 = vmul.f32 %v6049, %v6157
      %v6186 = vmul.f32 %v6050, %v6157
      %v6187 = vmul.f32 %v6051, %v6157
      %v6188 = vmul.f32 %v6052, %v6157
      %v6189 = vmul.f32 %v6053, %v6157
      %v6190 = vld [vmem:[%s5] sm:$0x1]
      %v6192 = vlaneseq
      %v6193 = vshrl.u32 %v6192, 7
      %v6194 = vsub.s32 0, %v6193
      %v6195 = vrot.slane %v6190, %v6194
      %v6197 = vmul.f32 %v6158, %v6195
      %v6198 = vmul.f32 %v6159, %v6195
      %v6199 = vmul.f32 %v6160, %v6195
      %v6200 = vmul.f32 %v6161, %v6195
      %v6201 = vmul.f32 %v6162, %v6195
      %v6202 = vmul.f32 %v6163, %v6195
      %v6203 = vmul.f32 %v6164, %v6195
      %v6204 = vmul.f32 %v6165, %v6195
      %v6205 = vmul.f32 %v6166, %v6195
      %v6206 = vmul.f32 %v6167, %v6195
      %v6207 = vmul.f32 %v6168, %v6195
      %v6208 = vmul.f32 %v6169, %v6195
      %v6209 = vmul.f32 %v6170, %v6195
      %v6210 = vmul.f32 %v6171, %v6195
      %v6211 = vmul.f32 %v6172, %v6195
      %v6212 = vmul.f32 %v6173, %v6195
      %v6213 = vmul.f32 %v6174, %v6195
      %v6214 = vmul.f32 %v6175, %v6195
      %v6215 = vmul.f32 %v6176, %v6195
      %v6216 = vmul.f32 %v6177, %v6195
      %v6217 = vmul.f32 %v6178, %v6195
      %v6218 = vmul.f32 %v6179, %v6195
      %v6219 = vmul.f32 %v6180, %v6195
      %v6220 = vmul.f32 %v6181, %v6195
      %v6221 = vmul.f32 %v6182, %v6195
      %v6222 = vmul.f32 %v6183, %v6195
      %v6223 = vmul.f32 %v6184, %v6195
      %v6224 = vmul.f32 %v6185, %v6195
      %v6225 = vmul.f32 %v6186, %v6195
      %v6226 = vmul.f32 %v6187, %v6195
      %v6227 = vmul.f32 %v6188, %v6195
      %v6228 = vmul.f32 %v6189, %v6195
      %v6229 = vld [vmem:[%s6] sm:$0x1]
      %v6231 = vlaneseq
      %v6232 = vshrl.u32 %v6231, 7
      %v6233 = vsub.s32 0, %v6232
      %v6234 = vrot.slane %v6229, %v6233
      %v6236 = vadd.f32 %v6197, %v6234
      %v6237 = vadd.f32 %v6198, %v6234
      %v6238 = vadd.f32 %v6199, %v6234
      %v6239 = vadd.f32 %v6200, %v6234
      %v6240 = vadd.f32 %v6201, %v6234
      %v6241 = vadd.f32 %v6202, %v6234
      %v6242 = vadd.f32 %v6203, %v6234
      %v6243 = vadd.f32 %v6204, %v6234
      %v6244 = vadd.f32 %v6205, %v6234
      %v6245 = vadd.f32 %v6206, %v6234
      %v6246 = vadd.f32 %v6207, %v6234
      %v6247 = vadd.f32 %v6208, %v6234
      %v6248 = vadd.f32 %v6209, %v6234
      %v6249 = vadd.f32 %v6210, %v6234
      %v6250 = vadd.f32 %v6211, %v6234
      %v6251 = vadd.f32 %v6212, %v6234
      %v6252 = vadd.f32 %v6213, %v6234
      %v6253 = vadd.f32 %v6214, %v6234
      %v6254 = vadd.f32 %v6215, %v6234
      %v6255 = vadd.f32 %v6216, %v6234
      %v6256 = vadd.f32 %v6217, %v6234
      %v6257 = vadd.f32 %v6218, %v6234
      %v6258 = vadd.f32 %v6219, %v6234
      %v6259 = vadd.f32 %v6220, %v6234
      %v6260 = vadd.f32 %v6221, %v6234
      %v6261 = vadd.f32 %v6222, %v6234
      %v6262 = vadd.f32 %v6223, %v6234
      %v6263 = vadd.f32 %v6224, %v6234
      %v6264 = vadd.f32 %v6225, %v6234
      %v6265 = vadd.f32 %v6226, %v6234
      %v6266 = vadd.f32 %v6227, %v6234
      %v6267 = vadd.f32 %v6228, %v6234
      %v6268 = vadd.f32 %v280, %v6236
      %v6269 = vadd.f32 %v281, %v6237
      %v6270 = vadd.f32 %v282, %v6238
      %v6271 = vadd.f32 %v283, %v6239
      %v6272 = vadd.f32 %v284, %v6240
      %v6273 = vadd.f32 %v285, %v6241
      %v6274 = vadd.f32 %v286, %v6242
      %v6275 = vadd.f32 %v287, %v6243
      %v6276 = vadd.f32 %v288, %v6244
      %v6277 = vadd.f32 %v289, %v6245
      %v6278 = vadd.f32 %v290, %v6246
      %v6279 = vadd.f32 %v291, %v6247
      %v6280 = vadd.f32 %v292, %v6248
      %v6281 = vadd.f32 %v293, %v6249
      %v6282 = vadd.f32 %v294, %v6250
      %v6283 = vadd.f32 %v295, %v6251
      %v6284 = vadd.f32 %v296, %v6252
      %v6285 = vadd.f32 %v297, %v6253
      %v6286 = vadd.f32 %v298, %v6254
      %v6287 = vadd.f32 %v299, %v6255
      %v6288 = vadd.f32 %v300, %v6256
      %v6289 = vadd.f32 %v301, %v6257
      %v6290 = vadd.f32 %v302, %v6258
      %v6291 = vadd.f32 %v303, %v6259
      %v6292 = vadd.f32 %v304, %v6260
      %v6293 = vadd.f32 %v305, %v6261
      %v6294 = vadd.f32 %v306, %v6262
      %v6295 = vadd.f32 %v307, %v6263
      %v6296 = vadd.f32 %v308, %v6264
      %v6297 = vadd.f32 %v309, %v6265
      %v6298 = vadd.f32 %v310, %v6266
      %v6299 = vadd.f32 %v311, %v6267
      %6300 = vst.msk [vmem:[%s278] sm:$0xff] %vm312, %v6268
      %6301 = vst.msk [vmem:[%s278 + $0x8] sm:$0xff] %vm312, %v6269
      %6302 = vst.msk [vmem:[%s278 + $0x10] sm:$0xff] %vm312, %v6270
      %6303 = vst.msk [vmem:[%s278 + $0x18] sm:$0xff] %vm312, %v6271
      %6304 = vst.msk [vmem:[%s278 + $0x20] sm:$0xff] %vm312, %v6272
      %6305 = vst.msk [vmem:[%s278 + $0x28] sm:$0xff] %vm312, %v6273
      %6306 = vst.msk [vmem:[%s278 + $0x30] sm:$0xff] %vm312, %v6274
      %6307 = vst.msk [vmem:[%s278 + $0x38] sm:$0xff] %vm312, %v6275
      %6308 = vst.msk [vmem:[%s278 + $0x40] sm:$0xff] %vm312, %v6276
      %6309 = vst.msk [vmem:[%s278 + $0x48] sm:$0xff] %vm312, %v6277
      %6310 = vst.msk [vmem:[%s278 + $0x50] sm:$0xff] %vm312, %v6278
      %6311 = vst.msk [vmem:[%s278 + $0x58] sm:$0xff] %vm312, %v6279
      %6312 = vst.msk [vmem:[%s278 + $0x60] sm:$0xff] %vm312, %v6280
      %6313 = vst.msk [vmem:[%s278 + $0x68] sm:$0xff] %vm312, %v6281
      %6314 = vst.msk [vmem:[%s278 + $0x70] sm:$0xff] %vm312, %v6282
      %6315 = vst.msk [vmem:[%s278 + $0x78] sm:$0xff] %vm312, %v6283
      %6316 = vst.msk [vmem:[%s278 + $0x80] sm:$0xff] %vm312, %v6284
      %6317 = vst.msk [vmem:[%s278 + $0x88] sm:$0xff] %vm312, %v6285
      %6318 = vst.msk [vmem:[%s278 + $0x90] sm:$0xff] %vm312, %v6286
      %6319 = vst.msk [vmem:[%s278 + $0x98] sm:$0xff] %vm312, %v6287
      %6320 = vst.msk [vmem:[%s278 + $0xa0] sm:$0xff] %vm312, %v6288
      %6321 = vst.msk [vmem:[%s278 + $0xa8] sm:$0xff] %vm312, %v6289
      %6322 = vst.msk [vmem:[%s278 + $0xb0] sm:$0xff] %vm312, %v6290
      %6323 = vst.msk [vmem:[%s278 + $0xb8] sm:$0xff] %vm312, %v6291
      %6324 = vst.msk [vmem:[%s278 + $0xc0] sm:$0xff] %vm312, %v6292
      %6325 = vst.msk [vmem:[%s278 + $0xc8] sm:$0xff] %vm312, %v6293
      %6326 = vst.msk [vmem:[%s278 + $0xd0] sm:$0xff] %vm312, %v6294
      %6327 = vst.msk [vmem:[%s278 + $0xd8] sm:$0xff] %vm312, %v6295
      %6328 = vst.msk [vmem:[%s278 + $0xe0] sm:$0xff] %vm312, %v6296
      %6329 = vst.msk [vmem:[%s278 + $0xe8] sm:$0xff] %vm312, %v6297
      %6330 = vst.msk [vmem:[%s278 + $0xf0] sm:$0xff] %vm312, %v6298
      %6331 = vst.msk [vmem:[%s278 + $0xf8] sm:$0xff] %vm312, %v6299
      %p6332 = scmp.lt.s32.totalorder %s18, 1
      %s6333 = scalar_select %p6332, %s18, 1
      %s6334 = smul.addr %s6333, 32
      %s6335 = smul.addr %s6334, 8
      %s6336 = scalar_lea.vmem %s7, %s6335
      // Predicated region
      $region49: #{tpu_custom_call.1} parent=47 // pred_check
        %p6337 = pneg %p188
      $region50: #{tpu_custom_call.1} parent=47 // pred_check_branch
        %6339 = sbr.rel (%p6337) target = $region52
      $region51: #{tpu_custom_call.1} parent=47 // pred_region
        _
      $region52: #{tpu_custom_call.1} parent=47 // pred_fallthru
        _
    $region48: #{tpu_custom_call.1} parent=5 // pred_fallthru
      _
    %p6340 = scmp.le.s32.totalorder 2, %s13
    // Predicated region
    $region53: #{tpu_custom_call.1} parent=5 // pred_check
      %p6341 = pneg %p6340
    $region54: #{tpu_custom_call.1} parent=5 // pred_check_branch
      %6343 = sbr.rel (%p6341) target = $region56
    $region55: #{tpu_custom_call.1} parent=5 // pred_region
      %s6344 = ssub.s32 %s13, 2
      // Predicated region
      $region57: #{tpu_custom_call.1} parent=55 // pred_check
        %p6345 = pneg %p194
      $region58: #{tpu_custom_call.1} parent=55 // pred_check_branch
        %6347 = sbr.rel (%p6345) target = $region60
      $region59: #{tpu_custom_call.1} parent=55 // pred_region
        %p6348 = scmp.lt.s32.totalorder %s19, 1
        %s6349 = scalar_select %p6348, %s19, 1
        %s6350 = smul.addr %s6349, 32
        %s6351 = smul.addr %s6350, 8
        %s6352 = scalar_lea.vmem %s7, %s6351
      $region60: #{tpu_custom_call.1} parent=55 // pred_fallthru
        _
    $region56: #{tpu_custom_call.1} parent=5 // pred_fallthru
      _
  $region6: #{tpu_custom_call.1} parent=0 // loop_footer
    %s17 = sadd.s32 1, %s13
  $region7: #{tpu_custom_call.1} parent=0 // loop_footer_branch
    %12 = sbr.rel target = $region3
  $region8: #{tpu_custom_call.1} parent=0 // loop_exit
    _

</llo_original>
